<compile_context>
chip_gen: v5e
topology: v5e:2x2
jax: 0.10.0
libtpu: 0.0.40
codegen_flags: <defaults>
</compile_context>

<pallas_src>
import functools

import jax
import jax.numpy as jnp
from jax.experimental import pallas as pl
from jax.experimental.pallas import tpu as pltpu


# bf16 dot operands (v6e/v7x MXU-native); f32 accumulation + f32 epilogue.
# Set to jnp.float32 to recover exact f32 matmul semantics.
DOT_DTYPE = jnp.bfloat16


# ---------------------------------------------------------------------------
# Pallas kernels
# ---------------------------------------------------------------------------
def _conv_relu_pool_kernel(p_ref, w_ref, b_ref, o_ref):
    """Fused Conv2d (as matmul over im2col) + MaxPool2d(2,2) + bias + ReLU.

    p_ref: (4, K, tm)   im2col patches, one slab per 2x2-pool window position
    w_ref: (Cout, K)    conv weight reshaped, resident across the grid
    b_ref: (Cout, 1)    bias column (f32)
    o_ref: (Cout, tm)   lane-dense pooled output (M = N*PH*PW on lanes)

    Pool is taken over the raw matmul results; bias + ReLU applied once after
    (valid because the bias is window-invariant and ReLU is monotone).
    """
    w = w_ref[...]
    y = jnp.dot(w, p_ref[0], preferred_element_type=jnp.float32)
    for win in range(1, 4):                    # the other 2x2-window positions
        y = jnp.maximum(
            y, jnp.dot(w, p_ref[win], preferred_element_type=jnp.float32))
    y = jnp.maximum(y + b_ref[...], 0.0)       # bias + ReLU in f32 (VPU)
    o_ref[...] = y.astype(o_ref.dtype)


def _mlp_kernel(x_ref, w1_ref, b1_ref, w2_ref, b2_ref, w3_ref, b3_ref,
                w4_ref, b4_ref, o_ref, *, dot_dtype):
    """Fused 1024->512->256->128->1 MLP: all weights resident in VMEM."""
    def lin(h, w_ref, b_ref, relu):
        y = jnp.dot(h.astype(dot_dtype), w_ref[...],
                    preferred_element_type=jnp.float32) + b_ref[...]
        return jnp.maximum(y, 0.0) if relu else y

    h = lin(x_ref[...], w1_ref, b1_ref, True)
    h = lin(h, w2_ref, b2_ref, True)
    h = lin(h, w3_ref, b3_ref, True)
    o_ref[...] = lin(h, w4_ref, b4_ref, False).astype(o_ref.dtype)


# ---------------------------------------------------------------------------
# Tiling helper
# ---------------------------------------------------------------------------
def _round_up(v, m):
    return ((v + m - 1) // m) * m


def _tile_m(M):
    """Pick the lane-tile size for the conv matmuls.

    Aims for >=2 parallel grid blocks (v7x has 2 TensorCores) while keeping
    only a handful of grid steps (per-step overhead ~0.35us) and tiles that
    comfortably fit VMEM on every generation.
    """
    if M <= 128:
        return 128, 1, 128
    nblocks = max(2, -(-M // 1024))            # >=2 blocks, <=~1024 lanes/tile
    tm = _round_up(-(-M // nblocks), 128)
    grid = -(-M // tm)
    return tm, grid, grid * tm


# ---------------------------------------------------------------------------
# Wrappers around pallas_call
# ---------------------------------------------------------------------------
def conv_relu_pool(x_cm, w_mat, b_col, k=5):
    """Conv2d(k, stride 1, no pad) + ReLU + MaxPool2d(2,2), channel-major.

    x_cm : (Cin, N, H, W)    w_mat: (Cout, Cin*k*k)    b_col: (Cout, 1)
    returns (Cout, N, PH, PW) with PH = (H-k+1)//2, PW = (W-k+1)//2.
    """
    Cin, N, H, W = x_cm.shape
    Cout, K = w_mat.shape
    assert K == Cin * k * k
    OH, OW = H - k + 1, W - k + 1
    PH, PW = OH // 2, OW // 2
    M = N * PH * PW

    # im2col per 2x2-pool window position (JAX glue).  Row order (cin, kh, kw)
    # matches torch weight.reshape(Cout, -1); column order is (n, ph, pw).
    slabs = []
    for a in range(2):
        for b in range(2):
            cols = []
            for di in range(k):
                for dj in range(k):
                    r0, c0 = a + di, b + dj
                    cols.append(x_cm[:, :,
                                     r0:r0 + 2 * (PH - 1) + 1:2,
                                     c0:c0 + 2 * (PW - 1) + 1:2])
            s = jnp.stack(cols, axis=1)                 # (Cin, k*k, N, PH, PW)
            slabs.append(s.reshape(Cin * k * k, M))
    patches = jnp.stack(slabs, axis=0).astype(DOT_DTYPE)  # (4, K, M)

    tm, grid_m, Mp = _tile_m(M)
    if Mp != M:
        patches = jnp.pad(patches, ((0, 0), (0, 0), (0, Mp - M)))

    out = pl.pallas_call(
        _conv_relu_pool_kernel,
        out_shape=jax.ShapeDtypeStruct((Cout, Mp), DOT_DTYPE),
        grid=(grid_m,),
        in_specs=[
            pl.BlockSpec((4, K, tm), lambda i: (0, 0, i)),   # patch slabs
            pl.BlockSpec((Cout, K), lambda i: (0, 0)),       # weight, resident
            pl.BlockSpec((Cout, 1), lambda i: (0, 0)),       # bias column
        ],
        out_specs=pl.BlockSpec((Cout, tm), lambda i: (0, i)),
        compiler_params=pltpu.CompilerParams(
            dimension_semantics=("parallel",)),
    )(patches, w_mat, b_col)

    return out[:, :M].reshape(Cout, N, PH, PW)


def mlp_head(x, prep):
    """Fused Linear(1024,512)+ReLU ... Linear(128,1).  x: (N, 1024)."""
    N, K = x.shape
    Np = max(8, _round_up(N, 8))
    xp = jnp.pad(x, ((0, Np - N), (0, 0))).astype(DOT_DTYPE)

    args = (xp,
            prep["l1w"], prep["l1b"], prep["l2w"], prep["l2b"],
            prep["l3w"], prep["l3b"], prep["l4w"], prep["l4b"])
    n_out = prep["l4w"].shape[1]                 # padded to 128 lanes

    out = pl.pallas_call(
        functools.partial(_mlp_kernel, dot_dtype=DOT_DTYPE),
        out_shape=jax.ShapeDtypeStruct((Np, n_out), jnp.float32),
        grid=(1,),
        in_specs=[pl.BlockSpec(a.shape, lambda i: (0, 0)) for a in args],
        out_specs=pl.BlockSpec((Np, n_out), lambda i: (0, 0)),
    )(*args)
    return out[:N, :1]


# ---------------------------------------------------------------------------
# Parameters (deterministic synthetic init: xavier-uniform weights, as in the
# PyTorch __init__; biases use torch's default uniform(-1/sqrt(fan_in), ...)).
# ---------------------------------------------------------------------------
def _xavier(key, shape, fan_in, fan_out):
    a = jnp.sqrt(6.0 / (fan_in + fan_out))
    return jax.random.uniform(key, shape, jnp.float32, -a, a)


def _bias(key, n, fan_in):
    bound = 1.0 / jnp.sqrt(float(fan_in))
    return jax.random.uniform(key, (n,), jnp.float32, -bound, bound)


def init_params(key):
    ks = jax.random.split(key, 14)
    p = {}
    # Conv2d(1,16,5) / (16,32,5) / (32,64,5)   (PyTorch (Cout, Cin, kh, kw))
    p["c1w"] = _xavier(ks[0], (16, 1, 5, 5), 1 * 25, 16 * 25)
    p["c1b"] = _bias(ks[1], 16, 1 * 25)
    p["c2w"] = _xavier(ks[2], (32, 16, 5, 5), 16 * 25, 32 * 25)
    p["c2b"] = _bias(ks[3], 32, 16 * 25)
    p["c3w"] = _xavier(ks[4], (64, 32, 5, 5), 32 * 25, 64 * 25)
    p["c3b"] = _bias(ks[5], 64, 32 * 25)
    # Linear(1024,512) / (512,256) / (256,128) / (128,1)  (PyTorch (out, in))
    p["l1w"] = _xavier(ks[6], (512, 1024), 1024, 512)
    p["l1b"] = _bias(ks[7], 512, 1024)
    p["l2w"] = _xavier(ks[8], (256, 512), 512, 256)
    p["l2b"] = _bias(ks[9], 256, 512)
    p["l3w"] = _xavier(ks[10], (128, 256), 256, 128)
    p["l3b"] = _bias(ks[11], 128, 256)
    p["l4w"] = _xavier(ks[12], (1, 128), 128, 1)
    p["l4b"] = _bias(ks[13], 1, 128)
    return p


def prepare_params(p):
    """One-time (outside the hot path) layout / dtype preparation."""
    q = {}
    for i in (1, 2, 3):
        w = p[f"c{i}w"]
        q[f"c{i}w"] = w.reshape(w.shape[0], -1).astype(DOT_DTYPE)      # (Cout,K)
        q[f"c{i}b"] = p[f"c{i}b"].reshape(-1, 1).astype(jnp.float32)   # (Cout,1)
    for i in (1, 2, 3, 4):
        q[f"l{i}w"] = p[f"l{i}w"].T.astype(DOT_DTYPE)                  # (in,out)
        q[f"l{i}b"] = p[f"l{i}b"].reshape(1, -1).astype(jnp.float32)   # (1,out)
    # Pad the final 128->1 layer out to 128 lanes (unmasked stores; padded
    # columns are zero and sliced off in the wrapper).
    q["l4w"] = jnp.pad(q["l4w"], ((0, 0), (0, 128 - q["l4w"].shape[1])))
    q["l4b"] = jnp.pad(q["l4b"], ((0, 0), (0, 128 - q["l4b"].shape[1])))
    return q


# ---------------------------------------------------------------------------
# Forward pass (matches nn.Sequential in GaugeNet.__init__)
# ---------------------------------------------------------------------------
def gauge_net_forward(x, prep):
    # x: (N, 1, 64, 64) float32, NCHW
    x_cm = jnp.transpose(x, (1, 0, 2, 3))                    # (1, N, 64, 64)
    x_cm = conv_relu_pool(x_cm, prep["c1w"], prep["c1b"])    # (16, N, 30, 30)
    x_cm = conv_relu_pool(x_cm, prep["c2w"], prep["c2b"])    # (32, N, 13, 13)
    x_cm = conv_relu_pool(x_cm, prep["c3w"], prep["c3b"])    # (64, N,  4,  4)
    N = x_cm.shape[1]
    # NCHW-order flatten (torch.nn.Flatten on NCHW):
    feat = jnp.transpose(x_cm, (1, 0, 2, 3)).reshape(N, -1)  # (N, 1024)
    out = mlp_head(feat, prep)                               # (N, 1)
    return out.astype(jnp.float32)                           # .type(torch.float)


if __name__ == "__main__":
    key = jax.random.PRNGKey(0)
    k_par, k_x = jax.random.split(key)
    params = init_params(k_par)
    prep = prepare_params(params)     # pre-transpose/reshape/cast once

    # 64x64 single-channel images: the only spatial size consistent with
    # Flatten -> Linear(1024, ...) (64 * 4 * 4 = 1024).
    x = jax.random.uniform(k_x, (2, 1, 64, 64), jnp.float32)

    fwd = jax.jit(gauge_net_forward)
    out = jax.block_until_ready(fwd(x, prep))

    assert out.shape == (2, 1), out.shape
    assert out.dtype == jnp.float32, out.dtype
    print("KERNEL_OK")
</pallas_src>

<mosaic_0001>
module attributes {stable_mosaic.version = 11 : i64} {
  func.func @_conv_relu_pool_kernel(%arg0: i32, %arg1: memref<4x25x1024xbf16, #tpu.memory_space<vmem>>, %arg2: memref<16x25xbf16, #tpu.memory_space<vmem>>, %arg3: memref<16x1xf32, #tpu.memory_space<vmem>>, %arg4: memref<16x1024xbf16, #tpu.memory_space<vmem>>) attributes {dimension_semantics = [#tpu.dimension_semantics<parallel>], iteration_bounds = array<i64: 2>, scalar_prefetch = 0 : i64, scratch_operands = 0 : i64, tpu.core_type = #tpu.core_type<tc>, window_params = [{transform_indices = @transform_0, window_bounds = array<i64: 4, 25, 1024>}, {pipeline_mode = #tpu.pipeline_mode<synchronous>, transform_indices = @transform_1, window_bounds = array<i64: 16, 25>}, {pipeline_mode = #tpu.pipeline_mode<synchronous>, transform_indices = @transform_2, window_bounds = array<i64: 16, 1>}, {transform_indices = @transform_3, window_bounds = array<i64: 16, 1024>}]} {
    %c0 = arith.constant 0 : index
    %c0_0 = arith.constant 0 : index
    %0 = vector.load %arg2[%c0, %c0_0] : memref<16x25xbf16, #tpu.memory_space<vmem>>, vector<16x25xbf16>
    %c0_1 = arith.constant 0 : index
    %c0_2 = arith.constant 0 : index
    %c0_3 = arith.constant 0 : index
    %1 = vector.load %arg1[%c0_1, %c0_2, %c0_3] : memref<4x25x1024xbf16, #tpu.memory_space<vmem>>, vector<1x25x1024xbf16>
    %2 = vector.shape_cast %1 : vector<1x25x1024xbf16> to vector<25x1024xbf16>
    %cst = arith.constant dense<0.000000e+00> : vector<16x1024xf32>
    %3 = tpu.matmul %0, %2, %cst {dimension_numbers = #tpu.dot_dimension_numbers<[1], [0], [0], [1], [0, 0, 1, 1], [], []>} : vector<16x25xbf16>, vector<25x1024xbf16>, vector<16x1024xf32> -> vector<16x1024xf32>
    %c1 = arith.constant 1 : index
    %c0_4 = arith.constant 0 : index
    %c0_5 = arith.constant 0 : index
    %4 = vector.load %arg1[%c1, %c0_4, %c0_5] : memref<4x25x1024xbf16, #tpu.memory_space<vmem>>, vector<1x25x1024xbf16>
    %5 = vector.shape_cast %4 : vector<1x25x1024xbf16> to vector<25x1024xbf16>
    %cst_6 = arith.constant dense<0.000000e+00> : vector<16x1024xf32>
    %6 = tpu.matmul %0, %5, %cst_6 {dimension_numbers = #tpu.dot_dimension_numbers<[1], [0], [0], [1], [0, 0, 1, 1], [], []>} : vector<16x25xbf16>, vector<25x1024xbf16>, vector<16x1024xf32> -> vector<16x1024xf32>
    %7 = arith.maximumf %3, %6 : vector<16x1024xf32>
    %c2 = arith.constant 2 : index
    %c0_7 = arith.constant 0 : index
    %c0_8 = arith.constant 0 : index
    %8 = vector.load %arg1[%c2, %c0_7, %c0_8] : memref<4x25x1024xbf16, #tpu.memory_space<vmem>>, vector<1x25x1024xbf16>
    %9 = vector.shape_cast %8 : vector<1x25x1024xbf16> to vector<25x1024xbf16>
    %cst_9 = arith.constant dense<0.000000e+00> : vector<16x1024xf32>
    %10 = tpu.matmul %0, %9, %cst_9 {dimension_numbers = #tpu.dot_dimension_numbers<[1], [0], [0], [1], [0, 0, 1, 1], [], []>} : vector<16x25xbf16>, vector<25x1024xbf16>, vector<16x1024xf32> -> vector<16x1024xf32>
    %11 = arith.maximumf %7, %10 : vector<16x1024xf32>
    %c3 = arith.constant 3 : index
    %c0_10 = arith.constant 0 : index
    %c0_11 = arith.constant 0 : index
    %12 = vector.load %arg1[%c3, %c0_10, %c0_11] : memref<4x25x1024xbf16, #tpu.memory_space<vmem>>, vector<1x25x1024xbf16>
    %13 = vector.shape_cast %12 : vector<1x25x1024xbf16> to vector<25x1024xbf16>
    %cst_12 = arith.constant dense<0.000000e+00> : vector<16x1024xf32>
    %14 = tpu.matmul %0, %13, %cst_12 {dimension_numbers = #tpu.dot_dimension_numbers<[1], [0], [0], [1], [0, 0, 1, 1], [], []>} : vector<16x25xbf16>, vector<25x1024xbf16>, vector<16x1024xf32> -> vector<16x1024xf32>
    %15 = arith.maximumf %11, %14 : vector<16x1024xf32>
    %c0_13 = arith.constant 0 : index
    %c0_14 = arith.constant 0 : index
    %16 = vector.load %arg3[%c0_13, %c0_14] : memref<16x1xf32, #tpu.memory_space<vmem>>, vector<16x1xf32>
    %17 = vector.broadcast %16 : vector<16x1xf32> to vector<16x1024xf32>
    %18 = arith.addf %15, %17 : vector<16x1024xf32>
    %cst_15 = arith.constant 0.000000e+00 : f32
    %19 = vector.broadcast %cst_15 : f32 to vector<16x1024xf32>
    %20 = arith.maximumf %18, %19 : vector<16x1024xf32>
    %21 = arith.truncf %20 : vector<16x1024xf32> to vector<16x1024xbf16>
    %c0_16 = arith.constant 0 : index
    %c0_17 = arith.constant 0 : index
    %22 = vector.load %arg4[%c0_16, %c0_17] : memref<16x1024xbf16, #tpu.memory_space<vmem>>, vector<16x1024xbf16>
    tpu.vector_store %arg4[%c0_16, %c0_17], %21 {strides = array<i32>} : memref<16x1024xbf16, #tpu.memory_space<vmem>>, vector<16x1024xbf16>,
    return
  }
  func.func @transform_0(%arg0: i32) -> (i32, i32, i32) {
    %c0_i32 = arith.constant 0 : i32
    %c0_i32_0 = arith.constant 0 : i32
    %c0_i32_1 = arith.constant 0 : i32
    return %c0_i32, %c0_i32_0, %arg0 : i32, i32, i32
  }
  func.func @transform_1(%arg0: i32) -> (i32, i32) {
    %c0_i32 = arith.constant 0 : i32
    %c0_i32_0 = arith.constant 0 : i32
    %c0_i32_1 = arith.constant 0 : i32
    return %c0_i32, %c0_i32_0 : i32, i32
  }
  func.func @transform_2(%arg0: i32) -> (i32, i32) {
    %c0_i32 = arith.constant 0 : i32
    %c0_i32_0 = arith.constant 0 : i32
    %c0_i32_1 = arith.constant 0 : i32
    return %c0_i32, %c0_i32_0 : i32, i32
  }
  func.func @transform_3(%arg0: i32) -> (i32, i32) {
    %c0_i32 = arith.constant 0 : i32
    %c0_i32_0 = arith.constant 0 : i32
    return %c0_i32, %arg0 : i32, i32
  }
}

module attributes {stable_mosaic.version = 11 : i64} {
  func.func @_conv_relu_pool_kernel(%arg0: i32, %arg1: memref<4x400x256xbf16, #tpu.memory_space<vmem>>, %arg2: memref<32x400xbf16, #tpu.memory_space<vmem>>, %arg3: memref<32x1xf32, #tpu.memory_space<vmem>>, %arg4: memref<32x256xbf16, #tpu.memory_space<vmem>>) attributes {dimension_semantics = [#tpu.dimension_semantics<parallel>], iteration_bounds = array<i64: 2>, scalar_prefetch = 0 : i64, scratch_operands = 0 : i64, tpu.core_type = #tpu.core_type<tc>, window_params = [{transform_indices = @transform_0, window_bounds = array<i64: 4, 400, 256>}, {pipeline_mode = #tpu.pipeline_mode<synchronous>, transform_indices = @transform_1, window_bounds = array<i64: 32, 400>}, {pipeline_mode = #tpu.pipeline_mode<synchronous>, transform_indices = @transform_2, window_bounds = array<i64: 32, 1>}, {transform_indices = @transform_3, window_bounds = array<i64: 32, 256>}]} {
    %c0 = arith.constant 0 : index
    %c0_0 = arith.constant 0 : index
    %0 = vector.load %arg2[%c0, %c0_0] : memref<32x400xbf16, #tpu.memory_space<vmem>>, vector<32x400xbf16>
    %c0_1 = arith.constant 0 : index
    %c0_2 = arith.constant 0 : index
    %c0_3 = arith.constant 0 : index
    %1 = vector.load %arg1[%c0_1, %c0_2, %c0_3] : memref<4x400x256xbf16, #tpu.memory_space<vmem>>, vector<1x400x256xbf16>
    %2 = vector.shape_cast %1 : vector<1x400x256xbf16> to vector<400x256xbf16>
    %cst = arith.constant dense<0.000000e+00> : vector<32x256xf32>
    %3 = tpu.matmul %0, %2, %cst {dimension_numbers = #tpu.dot_dimension_numbers<[1], [0], [0], [1], [0, 0, 1, 1], [], []>} : vector<32x400xbf16>, vector<400x256xbf16>, vector<32x256xf32> -> vector<32x256xf32>
    %c1 = arith.constant 1 : index
    %c0_4 = arith.constant 0 : index
    %c0_5 = arith.constant 0 : index
    %4 = vector.load %arg1[%c1, %c0_4, %c0_5] : memref<4x400x256xbf16, #tpu.memory_space<vmem>>, vector<1x400x256xbf16>
    %5 = vector.shape_cast %4 : vector<1x400x256xbf16> to vector<400x256xbf16>
    %cst_6 = arith.constant dense<0.000000e+00> : vector<32x256xf32>
    %6 = tpu.matmul %0, %5, %cst_6 {dimension_numbers = #tpu.dot_dimension_numbers<[1], [0], [0], [1], [0, 0, 1, 1], [], []>} : vector<32x400xbf16>, vector<400x256xbf16>, vector<32x256xf32> -> vector<32x256xf32>
    %7 = arith.maximumf %3, %6 : vector<32x256xf32>
    %c2 = arith.constant 2 : index
    %c0_7 = arith.constant 0 : index
    %c0_8 = arith.constant 0 : index
    %8 = vector.load %arg1[%c2, %c0_7, %c0_8] : memref<4x400x256xbf16, #tpu.memory_space<vmem>>, vector<1x400x256xbf16>
    %9 = vector.shape_cast %8 : vector<1x400x256xbf16> to vector<400x256xbf16>
    %cst_9 = arith.constant dense<0.000000e+00> : vector<32x256xf32>
    %10 = tpu.matmul %0, %9, %cst_9 {dimension_numbers = #tpu.dot_dimension_numbers<[1], [0], [0], [1], [0, 0, 1, 1], [], []>} : vector<32x400xbf16>, vector<400x256xbf16>, vector<32x256xf32> -> vector<32x256xf32>
    %11 = arith.maximumf %7, %10 : vector<32x256xf32>
    %c3 = arith.constant 3 : index
    %c0_10 = arith.constant 0 : index
    %c0_11 = arith.constant 0 : index
    %12 = vector.load %arg1[%c3, %c0_10, %c0_11] : memref<4x400x256xbf16, #tpu.memory_space<vmem>>, vector<1x400x256xbf16>
    %13 = vector.shape_cast %12 : vector<1x400x256xbf16> to vector<400x256xbf16>
    %cst_12 = arith.constant dense<0.000000e+00> : vector<32x256xf32>
    %14 = tpu.matmul %0, %13, %cst_12 {dimension_numbers = #tpu.dot_dimension_numbers<[1], [0], [0], [1], [0, 0, 1, 1], [], []>} : vector<32x400xbf16>, vector<400x256xbf16>, vector<32x256xf32> -> vector<32x256xf32>
    %15 = arith.maximumf %11, %14 : vector<32x256xf32>
    %c0_13 = arith.constant 0 : index
    %c0_14 = arith.constant 0 : index
    %16 = vector.load %arg3[%c0_13, %c0_14] : memref<32x1xf32, #tpu.memory_space<vmem>>, vector<32x1xf32>
    %17 = vector.broadcast %16 : vector<32x1xf32> to vector<32x256xf32>
    %18 = arith.addf %15, %17 : vector<32x256xf32>
    %cst_15 = arith.constant 0.000000e+00 : f32
    %19 = vector.broadcast %cst_15 : f32 to vector<32x256xf32>
    %20 = arith.maximumf %18, %19 : vector<32x256xf32>
    %21 = arith.truncf %20 : vector<32x256xf32> to vector<32x256xbf16>
    %c0_16 = arith.constant 0 : index
    %c0_17 = arith.constant 0 : index
    %22 = vector.load %arg4[%c0_16, %c0_17] : memref<32x256xbf16, #tpu.memory_space<vmem>>, vector<32x256xbf16>
    tpu.vector_store %arg4[%c0_16, %c0_17], %21 {strides = array<i32>} : memref<32x256xbf16, #tpu.memory_space<vmem>>, vector<32x256xbf16>,
    return
  }
  func.func @transform_0(%arg0: i32) -> (i32, i32, i32) {
    %c0_i32 = arith.constant 0 : i32
    %c0_i32_0 = arith.constant 0 : i32
    %c0_i32_1 = arith.constant 0 : i32
    return %c0_i32, %c0_i32_0, %arg0 : i32, i32, i32
  }
  func.func @transform_1(%arg0: i32) -> (i32, i32) {
    %c0_i32 = arith.constant 0 : i32
    %c0_i32_0 = arith.constant 0 : i32
    %c0_i32_1 = arith.constant 0 : i32
    return %c0_i32, %c0_i32_0 : i32, i32
  }
  func.func @transform_2(%arg0: i32) -> (i32, i32) {
    %c0_i32 = arith.constant 0 : i32
    %c0_i32_0 = arith.constant 0 : i32
    %c0_i32_1 = arith.constant 0 : i32
    return %c0_i32, %c0_i32_0 : i32, i32
  }
  func.func @transform_3(%arg0: i32) -> (i32, i32) {
    %c0_i32 = arith.constant 0 : i32
    %c0_i32_0 = arith.constant 0 : i32
    return %c0_i32, %arg0 : i32, i32
  }
}

module attributes {stable_mosaic.version = 11 : i64} {
  func.func @_conv_relu_pool_kernel(%arg0: i32, %arg1: memref<4x800x128xbf16, #tpu.memory_space<vmem>>, %arg2: memref<64x800xbf16, #tpu.memory_space<vmem>>, %arg3: memref<64x1xf32, #tpu.memory_space<vmem>>, %arg4: memref<64x128xbf16, #tpu.memory_space<vmem>>) attributes {dimension_semantics = [#tpu.dimension_semantics<parallel>], iteration_bounds = array<i64: 1>, scalar_prefetch = 0 : i64, scratch_operands = 0 : i64, tpu.core_type = #tpu.core_type<tc>, window_params = [{transform_indices = @transform_0, window_bounds = array<i64: 4, 800, 128>}, {pipeline_mode = #tpu.pipeline_mode<synchronous>, transform_indices = @transform_1, window_bounds = array<i64: 64, 800>}, {pipeline_mode = #tpu.pipeline_mode<synchronous>, transform_indices = @transform_2, window_bounds = array<i64: 64, 1>}, {transform_indices = @transform_3, window_bounds = array<i64: 64, 128>}]} {
    %c0 = arith.constant 0 : index
    %c0_0 = arith.constant 0 : index
    %0 = vector.load %arg2[%c0, %c0_0] : memref<64x800xbf16, #tpu.memory_space<vmem>>, vector<64x800xbf16>
    %c0_1 = arith.constant 0 : index
    %c0_2 = arith.constant 0 : index
    %c0_3 = arith.constant 0 : index
    %1 = vector.load %arg1[%c0_1, %c0_2, %c0_3] : memref<4x800x128xbf16, #tpu.memory_space<vmem>>, vector<1x800x128xbf16>
    %2 = vector.shape_cast %1 : vector<1x800x128xbf16> to vector<800x128xbf16>
    %cst = arith.constant dense<0.000000e+00> : vector<64x128xf32>
    %3 = tpu.matmul %0, %2, %cst {dimension_numbers = #tpu.dot_dimension_numbers<[1], [0], [0], [1], [0, 0, 1, 1], [], []>} : vector<64x800xbf16>, vector<800x128xbf16>, vector<64x128xf32> -> vector<64x128xf32>
    %c1 = arith.constant 1 : index
    %c0_4 = arith.constant 0 : index
    %c0_5 = arith.constant 0 : index
    %4 = vector.load %arg1[%c1, %c0_4, %c0_5] : memref<4x800x128xbf16, #tpu.memory_space<vmem>>, vector<1x800x128xbf16>
    %5 = vector.shape_cast %4 : vector<1x800x128xbf16> to vector<800x128xbf16>
    %cst_6 = arith.constant dense<0.000000e+00> : vector<64x128xf32>
    %6 = tpu.matmul %0, %5, %cst_6 {dimension_numbers = #tpu.dot_dimension_numbers<[1], [0], [0], [1], [0, 0, 1, 1], [], []>} : vector<64x800xbf16>, vector<800x128xbf16>, vector<64x128xf32> -> vector<64x128xf32>
    %7 = arith.maximumf %3, %6 : vector<64x128xf32>
    %c2 = arith.constant 2 : index
    %c0_7 = arith.constant 0 : index
    %c0_8 = arith.constant 0 : index
    %8 = vector.load %arg1[%c2, %c0_7, %c0_8] : memref<4x800x128xbf16, #tpu.memory_space<vmem>>, vector<1x800x128xbf16>
    %9 = vector.shape_cast %8 : vector<1x800x128xbf16> to vector<800x128xbf16>
    %cst_9 = arith.constant dense<0.000000e+00> : vector<64x128xf32>
    %10 = tpu.matmul %0, %9, %cst_9 {dimension_numbers = #tpu.dot_dimension_numbers<[1], [0], [0], [1], [0, 0, 1, 1], [], []>} : vector<64x800xbf16>, vector<800x128xbf16>, vector<64x128xf32> -> vector<64x128xf32>
    %11 = arith.maximumf %7, %10 : vector<64x128xf32>
    %c3 = arith.constant 3 : index
    %c0_10 = arith.constant 0 : index
    %c0_11 = arith.constant 0 : index
    %12 = vector.load %arg1[%c3, %c0_10, %c0_11] : memref<4x800x128xbf16, #tpu.memory_space<vmem>>, vector<1x800x128xbf16>
    %13 = vector.shape_cast %12 : vector<1x800x128xbf16> to vector<800x128xbf16>
    %cst_12 = arith.constant dense<0.000000e+00> : vector<64x128xf32>
    %14 = tpu.matmul %0, %13, %cst_12 {dimension_numbers = #tpu.dot_dimension_numbers<[1], [0], [0], [1], [0, 0, 1, 1], [], []>} : vector<64x800xbf16>, vector<800x128xbf16>, vector<64x128xf32> -> vector<64x128xf32>
    %15 = arith.maximumf %11, %14 : vector<64x128xf32>
    %c0_13 = arith.constant 0 : index
    %c0_14 = arith.constant 0 : index
    %16 = vector.load %arg3[%c0_13, %c0_14] : memref<64x1xf32, #tpu.memory_space<vmem>>, vector<64x1xf32>
    %17 = vector.broadcast %16 : vector<64x1xf32> to vector<64x128xf32>
    %18 = arith.addf %15, %17 : vector<64x128xf32>
    %cst_15 = arith.constant 0.000000e+00 : f32
    %19 = vector.broadcast %cst_15 : f32 to vector<64x128xf32>
    %20 = arith.maximumf %18, %19 : vector<64x128xf32>
    %21 = arith.truncf %20 : vector<64x128xf32> to vector<64x128xbf16>
    %c0_16 = arith.constant 0 : index
    %c0_17 = arith.constant 0 : index
    %22 = vector.load %arg4[%c0_16, %c0_17] : memref<64x128xbf16, #tpu.memory_space<vmem>>, vector<64x128xbf16>
    tpu.vector_store %arg4[%c0_16, %c0_17], %21 {strides = array<i32>} : memref<64x128xbf16, #tpu.memory_space<vmem>>, vector<64x128xbf16>,
    return
  }
  func.func @transform_0(%arg0: i32) -> (i32, i32, i32) {
    %c0_i32 = arith.constant 0 : i32
    %c0_i32_0 = arith.constant 0 : i32
    %c0_i32_1 = arith.constant 0 : i32
    return %c0_i32, %c0_i32_0, %arg0 : i32, i32, i32
  }
  func.func @transform_1(%arg0: i32) -> (i32, i32) {
    %c0_i32 = arith.constant 0 : i32
    %c0_i32_0 = arith.constant 0 : i32
    %c0_i32_1 = arith.constant 0 : i32
    return %c0_i32, %c0_i32_0 : i32, i32
  }
  func.func @transform_2(%arg0: i32) -> (i32, i32) {
    %c0_i32 = arith.constant 0 : i32
    %c0_i32_0 = arith.constant 0 : i32
    %c0_i32_1 = arith.constant 0 : i32
    return %c0_i32, %c0_i32_0 : i32, i32
  }
  func.func @transform_3(%arg0: i32) -> (i32, i32) {
    %c0_i32 = arith.constant 0 : i32
    %c0_i32_0 = arith.constant 0 : i32
    return %c0_i32, %arg0 : i32, i32
  }
}

module attributes {stable_mosaic.version = 11 : i64} {
  func.func @_mlp_kernel(%arg0: i32, %arg1: memref<8x1024xbf16, #tpu.memory_space<vmem>>, %arg2: memref<1024x512xbf16, #tpu.memory_space<vmem>>, %arg3: memref<1x512xf32, #tpu.memory_space<vmem>>, %arg4: memref<512x256xbf16, #tpu.memory_space<vmem>>, %arg5: memref<1x256xf32, #tpu.memory_space<vmem>>, %arg6: memref<256x128xbf16, #tpu.memory_space<vmem>>, %arg7: memref<1x128xf32, #tpu.memory_space<vmem>>, %arg8: memref<128x128xbf16, #tpu.memory_space<vmem>>, %arg9: memref<1x128xf32, #tpu.memory_space<vmem>>, %arg10: memref<8x128xf32, #tpu.memory_space<vmem>>) attributes {dimension_semantics = [#tpu.dimension_semantics<arbitrary>], iteration_bounds = array<i64: 1>, scalar_prefetch = 0 : i64, scratch_operands = 0 : i64, tpu.core_type = #tpu.core_type<tc>, window_params = [{pipeline_mode = #tpu.pipeline_mode<synchronous>, transform_indices = @transform_0, window_bounds = array<i64: 8, 1024>}, {pipeline_mode = #tpu.pipeline_mode<synchronous>, transform_indices = @transform_1, window_bounds = array<i64: 1024, 512>}, {pipeline_mode = #tpu.pipeline_mode<synchronous>, transform_indices = @transform_2, window_bounds = array<i64: 1, 512>}, {pipeline_mode = #tpu.pipeline_mode<synchronous>, transform_indices = @transform_3, window_bounds = array<i64: 512, 256>}, {pipeline_mode = #tpu.pipeline_mode<synchronous>, transform_indices = @transform_4, window_bounds = array<i64: 1, 256>}, {pipeline_mode = #tpu.pipeline_mode<synchronous>, transform_indices = @transform_5, window_bounds = array<i64: 256, 128>}, {pipeline_mode = #tpu.pipeline_mode<synchronous>, transform_indices = @transform_6, window_bounds = array<i64: 1, 128>}, {pipeline_mode = #tpu.pipeline_mode<synchronous>, transform_indices = @transform_7, window_bounds = array<i64: 128, 128>}, {pipeline_mode = #tpu.pipeline_mode<synchronous>, transform_indices = @transform_8, window_bounds = array<i64: 1, 128>}, {pipeline_mode = #tpu.pipeline_mode<synchronous>, transform_indices = @transform_9, window_bounds = array<i64: 8, 128>}]} {
    %c0 = arith.constant 0 : index
    %c0_0 = arith.constant 0 : index
    %0 = vector.load %arg1[%c0, %c0_0] : memref<8x1024xbf16, #tpu.memory_space<vmem>>, vector<8x1024xbf16>
    %c0_1 = arith.constant 0 : index
    %c0_2 = arith.constant 0 : index
    %1 = vector.load %arg2[%c0_1, %c0_2] : memref<1024x512xbf16, #tpu.memory_space<vmem>>, vector<1024x512xbf16>
    %cst = arith.constant dense<0.000000e+00> : vector<8x512xf32>
    %2 = tpu.matmul %0, %1, %cst {dimension_numbers = #tpu.dot_dimension_numbers<[1], [0], [0], [1], [0, 0, 1, 1], [], []>} : vector<8x1024xbf16>, vector<1024x512xbf16>, vector<8x512xf32> -> vector<8x512xf32>
    %c0_3 = arith.constant 0 : index
    %c0_4 = arith.constant 0 : index
    %3 = vector.load %arg3[%c0_3, %c0_4] : memref<1x512xf32, #tpu.memory_space<vmem>>, vector<1x512xf32>
    %4 = vector.broadcast %3 : vector<1x512xf32> to vector<8x512xf32>
    %5 = arith.addf %2, %4 : vector<8x512xf32>
    %cst_5 = arith.constant 0.000000e+00 : f32
    %6 = vector.broadcast %cst_5 : f32 to vector<8x512xf32>
    %7 = arith.maximumf %5, %6 : vector<8x512xf32>
    %8 = arith.truncf %7 : vector<8x512xf32> to vector<8x512xbf16>
    %c0_6 = arith.constant 0 : index
    %c0_7 = arith.constant 0 : index
    %9 = vector.load %arg4[%c0_6, %c0_7] : memref<512x256xbf16, #tpu.memory_space<vmem>>, vector<512x256xbf16>
    %cst_8 = arith.constant dense<0.000000e+00> : vector<8x256xf32>
    %10 = tpu.matmul %8, %9, %cst_8 {dimension_numbers = #tpu.dot_dimension_numbers<[1], [0], [0], [1], [0, 0, 1, 1], [], []>} : vector<8x512xbf16>, vector<512x256xbf16>, vector<8x256xf32> -> vector<8x256xf32>
    %c0_9 = arith.constant 0 : index
    %c0_10 = arith.constant 0 : index
    %11 = vector.load %arg5[%c0_9, %c0_10] : memref<1x256xf32, #tpu.memory_space<vmem>>, vector<1x256xf32>
    %12 = vector.broadcast %11 : vector<1x256xf32> to vector<8x256xf32>
    %13 = arith.addf %10, %12 : vector<8x256xf32>
    %cst_11 = arith.constant 0.000000e+00 : f32
    %14 = vector.broadcast %cst_11 : f32 to vector<8x256xf32>
    %15 = arith.maximumf %13, %14 : vector<8x256xf32>
    %16 = arith.truncf %15 : vector<8x256xf32> to vector<8x256xbf16>
    %c0_12 = arith.constant 0 : index
    %c0_13 = arith.constant 0 : index
    %17 = vector.load %arg6[%c0_12, %c0_13] : memref<256x128xbf16, #tpu.memory_space<vmem>>, vector<256x128xbf16>
    %cst_14 = arith.constant dense<0.000000e+00> : vector<8x128xf32>
    %18 = tpu.matmul %16, %17, %cst_14 {dimension_numbers = #tpu.dot_dimension_numbers<[1], [0], [0], [1], [0, 0, 1, 1], [], []>} : vector<8x256xbf16>, vector<256x128xbf16>, vector<8x128xf32> -> vector<8x128xf32>
    %c0_15 = arith.constant 0 : index
    %c0_16 = arith.constant 0 : index
    %19 = vector.load %arg7[%c0_15, %c0_16] : memref<1x128xf32, #tpu.memory_space<vmem>>, vector<1x128xf32>
    %20 = vector.broadcast %19 : vector<1x128xf32> to vector<8x128xf32>
    %21 = arith.addf %18, %20 : vector<8x128xf32>
    %cst_17 = arith.constant 0.000000e+00 : f32
    %22 = vector.broadcast %cst_17 : f32 to vector<8x128xf32>
    %23 = arith.maximumf %21, %22 : vector<8x128xf32>
    %24 = arith.truncf %23 : vector<8x128xf32> to vector<8x128xbf16>
    %c0_18 = arith.constant 0 : index
    %c0_19 = arith.constant 0 : index
    %25 = vector.load %arg8[%c0_18, %c0_19] : memref<128x128xbf16, #tpu.memory_space<vmem>>, vector<128x128xbf16>
    %cst_20 = arith.constant dense<0.000000e+00> : vector<8x128xf32>
    %26 = tpu.matmul %24, %25, %cst_20 {dimension_numbers = #tpu.dot_dimension_numbers<[1], [0], [0], [1], [0, 0, 1, 1], [], []>} : vector<8x128xbf16>, vector<128x128xbf16>, vector<8x128xf32> -> vector<8x128xf32>
    %c0_21 = arith.constant 0 : index
    %c0_22 = arith.constant 0 : index
    %27 = vector.load %arg9[%c0_21, %c0_22] : memref<1x128xf32, #tpu.memory_space<vmem>>, vector<1x128xf32>
    %28 = vector.broadcast %27 : vector<1x128xf32> to vector<8x128xf32>
    %29 = arith.addf %26, %28 : vector<8x128xf32>
    %c0_23 = arith.constant 0 : index
    %c0_24 = arith.constant 0 : index
    %30 = vector.load %arg10[%c0_23, %c0_24] : memref<8x128xf32, #tpu.memory_space<vmem>>, vector<8x128xf32>
    tpu.vector_store %arg10[%c0_23, %c0_24], %29 {strides = array<i32>} : memref<8x128xf32, #tpu.memory_space<vmem>>, vector<8x128xf32>,
    return
  }
  func.func @transform_0(%arg0: i32) -> (i32, i32) {
    %c0_i32 = arith.constant 0 : i32
    %c0_i32_0 = arith.constant 0 : i32
    %c0_i32_1 = arith.constant 0 : i32
    return %c0_i32, %c0_i32_0 : i32, i32
  }
  func.func @transform_1(%arg0: i32) -> (i32, i32) {
    %c0_i32 = arith.constant 0 : i32
    %c0_i32_0 = arith.constant 0 : i32
    %c0_i32_1 = arith.constant 0 : i32
    return %c0_i32, %c0_i32_0 : i32, i32
  }
  func.func @transform_2(%arg0: i32) -> (i32, i32) {
    %c0_i32 = arith.constant 0 : i32
    %c0_i32_0 = arith.constant 0 : i32
    %c0_i32_1 = arith.constant 0 : i32
    return %c0_i32, %c0_i32_0 : i32, i32
  }
  func.func @transform_3(%arg0: i32) -> (i32, i32) {
    %c0_i32 = arith.constant 0 : i32
    %c0_i32_0 = arith.constant 0 : i32
    %c0_i32_1 = arith.constant 0 : i32
    return %c0_i32, %c0_i32_0 : i32, i32
  }
  func.func @transform_4(%arg0: i32) -> (i32, i32) {
    %c0_i32 = arith.constant 0 : i32
    %c0_i32_0 = arith.constant 0 : i32
    %c0_i32_1 = arith.constant 0 : i32
    return %c0_i32, %c0_i32_0 : i32, i32
  }
  func.func @transform_5(%arg0: i32) -> (i32, i32) {
    %c0_i32 = arith.constant 0 : i32
    %c0_i32_0 = arith.constant 0 : i32
    %c0_i32_1 = arith.constant 0 : i32
    return %c0_i32, %c0_i32_0 : i32, i32
  }
  func.func @transform_6(%arg0: i32) -> (i32, i32) {
    %c0_i32 = arith.constant 0 : i32
    %c0_i32_0 = arith.constant 0 : i32
    %c0_i32_1 = arith.constant 0 : i32
    return %c0_i32, %c0_i32_0 : i32, i32
  }
  func.func @transform_7(%arg0: i32) -> (i32, i32) {
    %c0_i32 = arith.constant 0 : i32
    %c0_i32_0 = arith.constant 0 : i32
    %c0_i32_1 = arith.constant 0 : i32
    return %c0_i32, %c0_i32_0 : i32, i32
  }
  func.func @transform_8(%arg0: i32) -> (i32, i32) {
    %c0_i32 = arith.constant 0 : i32
    %c0_i32_0 = arith.constant 0 : i32
    %c0_i32_1 = arith.constant 0 : i32
    return %c0_i32, %c0_i32_0 : i32, i32
  }
  func.func @transform_9(%arg0: i32) -> (i32, i32) {
    %c0_i32 = arith.constant 0 : i32
    %c0_i32_0 = arith.constant 0 : i32
    %c0_i32_1 = arith.constant 0 : i32
    return %c0_i32, %c0_i32_0 : i32, i32
  }
}

</mosaic_0001>

<llo_original>
// kernel: gauge_net_forward.4
$region0: #{gauge_net_forward.4}
  #allocation0 [shape = 'u32[]', space=smem, size = 0x4, offset = 0x4, fixed_abs, tag = 'smem constant byte address 0x4 - core index']
  #allocation1 [shape = 'u32[72,128]{1,0:T(1,128)}', space=vmem, size = 0x9000, scoped, tag = 'internal scratch']
  %s0 = inlined_call_operand.vmem [shape: bf16[4,25,2048], index: 0, kind: input, shape index: {}]
  %s1 = inlined_call_operand.vmem [shape: bf16[16,25], index: 1, kind: input, shape index: {}]
  %s2 = inlined_call_operand.vmem [shape: f32[16,1], index: 2, kind: input, shape index: {}]
  %s3 = inlined_call_operand.vmem [shape: bf16[16,2048], index: 3, kind: output, shape index: {}]
  %s4 = sld [smem:[#allocation0]]
  $region87: #{gauge_net_forward.4} parent=0
    _
  %s6 = ssub.s32 1, %s4
  %s7 = scalar_select 0, %s6, %s4
  $region1: #{gauge_net_forward.4} parent=0
    #allocation2 [shape = 'u8[524288]{0}', space=vmem, size = 0x80000, scoped, tag = 'input window, operand 0']
    #allocation3 [shape = 'u8[65536]{0}', space=vmem, size = 0x10000, scoped, tag = 'output window, operand 0']
    loop: start=0, step=1, limit=4
    $region2: #{gauge_net_forward.4} parent=1 // loop_pre_header
      _
    $region3: #{gauge_net_forward.4} parent=1 // loop_header
      %s9 = sphi 0, %s13
      %p10 = scmp.ge.s32.totalorder %s9, 4
      %s19 = sphi 0, %s21
      %s22 = sphi 0, %s19
      %s23 = sphi 0, %s22
      %s39 = sphi 0, %s23
      %s43 = sphi 0, %s43
      %s45 = sphi 0, %s43
      %s46 = sphi 0, %s45
      %s60 = sphi 0, %s46
      %s64 = sphi 0, %s64
      %s66 = sphi 0, %s64
      %s67 = sphi 0, %s66
      %s81 = sphi 0, %s67
      %s87 = sphi 0, %s89
      %s90 = sphi 0, %s87
      %s91 = sphi 0, %s90
      %s107 = sphi 0, %s91
    $region4: #{gauge_net_forward.4} parent=1 // loop_header_branch
      %12 = sbr.rel (%p10) target = $region8
    $region5: #{gauge_net_forward.4} parent=1 // loop_body
      %s14 = ssub.s32 %s9, 1
      %s15 = ssub.s32 %s9, 2
      %s16 = sadd.s32 %s9, 1
      %s17 = ssub.s32 %s9, %s16
      %p18 = scmp.eq.s32.totalorder %s17, 0
      %s20 = sadd.s32 %s19, 1
      %s21 = scalar_select %p18, %s19, %s20
      %p24 = pneg %p18
      %p25 = scmp.eq.s32.totalorder %s9, 1
      %p26 = por %p24, %p25
      %p27 = scmp.ne.s32.totalorder %s19, %s22
      %p28 = scmp.eq.s32.totalorder %s9, 0
      %p29 = por %p27, %p28
      %p30 = scmp.ne.s32.totalorder %s19, %s22
      %p31 = scmp.eq.s32.totalorder %s14, 1
      %p32 = por %p30, %p31
      %p33 = scmp.ne.s32.totalorder %s22, %s23
      %p34 = scmp.eq.s32.totalorder %s14, 0
      %p35 = por %p33, %p34
      %p36 = scmp.ne.s32.totalorder %s22, %s23
      %p37 = scmp.eq.s32.totalorder %s15, 1
      %p38 = por %p36, %p37
      %p40 = scmp.ne.s32.totalorder %s23, %s39
      %p41 = scmp.eq.s32.totalorder %s15, 0
      %p42 = por %p40, %p41
      %s44 = sadd.s32 %s43, 1
      %p47 = scmp.eq.s32.totalorder %s9, 1
      %p48 = scmp.ne.s32.totalorder %s43, %s45
      %p49 = scmp.eq.s32.totalorder %s9, 0
      %p50 = por %p48, %p49
      %p51 = scmp.ne.s32.totalorder %s43, %s45
      %p52 = scmp.eq.s32.totalorder %s14, 1
      %p53 = por %p51, %p52
      %p54 = scmp.ne.s32.totalorder %s45, %s46
      %p55 = scmp.eq.s32.totalorder %s14, 0
      %p56 = por %p54, %p55
      %p57 = scmp.ne.s32.totalorder %s45, %s46
      %p58 = scmp.eq.s32.totalorder %s15, 1
      %p59 = por %p57, %p58
      %p61 = scmp.ne.s32.totalorder %s46, %s60
      %p62 = scmp.eq.s32.totalorder %s15, 0
      %p63 = por %p61, %p62
      %s65 = sadd.s32 %s64, 1
      %p68 = scmp.eq.s32.totalorder %s9, 1
      %p69 = scmp.ne.s32.totalorder %s64, %s66
      %p70 = scmp.eq.s32.totalorder %s9, 0
      %p71 = por %p69, %p70
      %p72 = scmp.ne.s32.totalorder %s64, %s66
      %p73 = scmp.eq.s32.totalorder %s14, 1
      %p74 = por %p72, %p73
      %p75 = scmp.ne.s32.totalorder %s66, %s67
      %p76 = scmp.eq.s32.totalorder %s14, 0
      %p77 = por %p75, %p76
      %p78 = scmp.ne.s32.totalorder %s66, %s67
      %p79 = scmp.eq.s32.totalorder %s15, 1
      %p80 = por %p78, %p79
      %p82 = scmp.ne.s32.totalorder %s67, %s81
      %p83 = scmp.eq.s32.totalorder %s15, 0
      %p84 = por %p82, %p83
      %s85 = ssub.s32 %s9, %s16
      %p86 = scmp.eq.s32.totalorder %s85, 0
      %s88 = sadd.s32 %s87, 1
      %s89 = scalar_select %p86, %s87, %s88
      %p92 = pneg %p86
      %p93 = scmp.eq.s32.totalorder %s9, 1
      %p94 = por %p92, %p93
      %p95 = scmp.ne.s32.totalorder %s87, %s90
      %p96 = scmp.eq.s32.totalorder %s9, 0
      %p97 = por %p95, %p96
      %p98 = scmp.ne.s32.totalorder %s87, %s90
      %p99 = scmp.eq.s32.totalorder %s14, 1
      %p100 = por %p98, %p99
      %p101 = scmp.ne.s32.totalorder %s90, %s91
      %p102 = scmp.eq.s32.totalorder %s14, 0
      %p103 = por %p101, %p102
      %p104 = scmp.ne.s32.totalorder %s90, %s91
      %p105 = scmp.eq.s32.totalorder %s15, 1
      %p106 = por %p104, %p105
      %p108 = scmp.ne.s32.totalorder %s91, %s107
      %p109 = scmp.eq.s32.totalorder %s15, 0
      %p110 = por %p108, %p109
      %p111 = scmp.le.s32.totalorder 1, %s9
      %p112 = scmp.lt.s32.totalorder %s9, 3
      %p113 = pnand %p111, %p112
      %p114 = pneg %p113
      // Predicated region
      $region9: #{gauge_net_forward.4} parent=5 // pred_check
        _
      $region10: #{gauge_net_forward.4} parent=5 // pred_check_branch
        %116 = sbr.rel (%p113) target = $region12
      $region11: #{gauge_net_forward.4} parent=5 // pred_region
        %s117 = ssub.s32 %s9, 1
        // Predicated region
        $region13: #{gauge_net_forward.4} parent=11 // pred_check
          %p118 = pneg %p56
        $region14: #{gauge_net_forward.4} parent=11 // pred_check_branch
          %120 = sbr.rel (%p118) target = $region16
        $region15: #{gauge_net_forward.4} parent=11 // pred_region
          _
        $region16: #{gauge_net_forward.4} parent=11 // pred_fallthru
          _
        // Predicated region
        $region17: #{gauge_net_forward.4} parent=11 // pred_check
          %p121 = pneg %p77
        $region18: #{gauge_net_forward.4} parent=11 // pred_check_branch
          %123 = sbr.rel (%p121) target = $region20
        $region19: #{gauge_net_forward.4} parent=11 // pred_region
          _
        $region20: #{gauge_net_forward.4} parent=11 // pred_fallthru
          _
      $region12: #{gauge_net_forward.4} parent=5 // pred_fallthru
        _
      %p124 = scmp.lt.s32.totalorder %s9, 2
      // Predicated region
      $region21: #{gauge_net_forward.4} parent=5 // pred_check
        %p125 = pneg %p124
      $region22: #{gauge_net_forward.4} parent=5 // pred_check_branch
        %127 = sbr.rel (%p125) target = $region24
      $region23: #{gauge_net_forward.4} parent=5 // pred_region
        // Predicated region
        $region25: #{gauge_net_forward.4} parent=23 // pred_check
          %p128 = pneg %p29
        $region26: #{gauge_net_forward.4} parent=23 // pred_check_branch
          %130 = sbr.rel (%p128) target = $region28
        $region27: #{gauge_net_forward.4} parent=23 // pred_region
          %s131 = sand.u32 %s19, 1
          %s132 = sand.u32 %s19, 1
          %s133 = smul.addr %s132, 512
          %s134 = scalar_lea.vmem [#allocation2], %s133
          %s135 = smul.u32 8, %s9
          %s136 = smul.addr %s135, 4
          %s137 = scalar_lea.vmem %s0, %s136
          // Predicated region
          $region29: #{gauge_net_forward.4} parent=27 // pred_check
            _
          $region30: #{gauge_net_forward.4} parent=27 // pred_check_branch
            %139 = sbr.rel (0) target = $region32
          $region31: #{gauge_net_forward.4} parent=27 // pred_region
            // Predicated region
            $region33: #{gauge_net_forward.4} parent=31 // pred_check
              _
            $region34: #{gauge_net_forward.4} parent=31 // pred_check_branch
              %141 = sbr.rel (0) target = $region36
            $region35: #{gauge_net_forward.4} parent=31 // pred_region
              loop: start=0, step=1, limit=1
              $region37: #{gauge_net_forward.4} parent=35 // loop_pre_header
                _
              $region38: #{gauge_net_forward.4} parent=35 // loop_header
                %s143 = sphi 0, %s147
                %p144 = scmp.ge.s32.totalorder %s143, 1
                %s148 = sphi %s137, %s137
                %s149 = sphi %s134, %s134
              $region39: #{gauge_net_forward.4} parent=35 // loop_header_branch
                %146 = sbr.rel (%p144) target = $region43
              $region40: #{gauge_net_forward.4} parent=35 // loop_body
                %v150 = vld [vmem:[%s148] sm:$0xff]
                %151 = vst [vmem:[%s149] sm:$0xff] %v150
                %v152 = vld [vmem:[%s148 + $0x8] sm:$0xff]
                %153 = vst [vmem:[%s149 + $0x8] sm:$0xff] %v152
                %v154 = vld [vmem:[%s148 + $0x10] sm:$0xff]
                %155 = vst [vmem:[%s149 + $0x10] sm:$0xff] %v154
                %v156 = vld [vmem:[%s148 + $0x18] sm:$0xff]
                %157 = vst [vmem:[%s149 + $0x18] sm:$0xff] %v156
                %v158 = vld [vmem:[%s148 + $0x40] sm:$0xff]
                %159 = vst [vmem:[%s149 + $0x20] sm:$0xff] %v158
                %v160 = vld [vmem:[%s148 + $0x48] sm:$0xff]
                %161 = vst [vmem:[%s149 + $0x28] sm:$0xff] %v160
                %v162 = vld [vmem:[%s148 + $0x50] sm:$0xff]
                %163 = vst [vmem:[%s149 + $0x30] sm:$0xff] %v162
                %v164 = vld [vmem:[%s148 + $0x58] sm:$0xff]
                %165 = vst [vmem:[%s149 + $0x38] sm:$0xff] %v164
                %v166 = vld [vmem:[%s148 + $0x80] sm:$0xff]
                %167 = vst [vmem:[%s149 + $0x40] sm:$0xff] %v166
                %v168 = vld [vmem:[%s148 + $0x88] sm:$0xff]
                %169 = vst [vmem:[%s149 + $0x48] sm:$0xff] %v168
                %v170 = vld [vmem:[%s148 + $0x90] sm:$0xff]
                %171 = vst [vmem:[%s149 + $0x50] sm:$0xff] %v170
                %v172 = vld [vmem:[%s148 + $0x98] sm:$0xff]
                %173 = vst [vmem:[%s149 + $0x58] sm:$0xff] %v172
                %v174 = vld [vmem:[%s148 + $0xc0] sm:$0xff]
                %175 = vst [vmem:[%s149 + $0x60] sm:$0xff] %v174
                %v176 = vld [vmem:[%s148 + $0xc8] sm:$0xff]
                %177 = vst [vmem:[%s149 + $0x68] sm:$0xff] %v176
                %v178 = vld [vmem:[%s148 + $0xd0] sm:$0xff]
                %179 = vst [vmem:[%s149 + $0x70] sm:$0xff] %v178
                %v180 = vld [vmem:[%s148 + $0xd8] sm:$0xff]
                %181 = vst [vmem:[%s149 + $0x78] sm:$0xff] %v180
                %v182 = vld [vmem:[%s148 + $0x100] sm:$0xff]
                %183 = vst [vmem:[%s149 + $0x80] sm:$0xff] %v182
                %v184 = vld [vmem:[%s148 + $0x108] sm:$0xff]
                %185 = vst [vmem:[%s149 + $0x88] sm:$0xff] %v184
                %v186 = vld [vmem:[%s148 + $0x110] sm:$0xff]
                %187 = vst [vmem:[%s149 + $0x90] sm:$0xff] %v186
                %v188 = vld [vmem:[%s148 + $0x118] sm:$0xff]
                %189 = vst [vmem:[%s149 + $0x98] sm:$0xff] %v188
                %v190 = vld [vmem:[%s148 + $0x140] sm:$0xff]
                %191 = vst [vmem:[%s149 + $0xa0] sm:$0xff] %v190
                %v192 = vld [vmem:[%s148 + $0x148] sm:$0xff]
                %193 = vst [vmem:[%s149 + $0xa8] sm:$0xff] %v192
                %v194 = vld [vmem:[%s148 + $0x150] sm:$0xff]
                %195 = vst [vmem:[%s149 + $0xb0] sm:$0xff] %v194
                %v196 = vld [vmem:[%s148 + $0x158] sm:$0xff]
                %197 = vst [vmem:[%s149 + $0xb8] sm:$0xff] %v196
                %v198 = vld [vmem:[%s148 + $0x180] sm:$0xff]
                %199 = vst [vmem:[%s149 + $0xc0] sm:$0xff] %v198
                %v200 = vld [vmem:[%s148 + $0x188] sm:$0xff]
                %201 = vst [vmem:[%s149 + $0xc8] sm:$0xff] %v200
                %v202 = vld [vmem:[%s148 + $0x190] sm:$0xff]
                %203 = vst [vmem:[%s149 + $0xd0] sm:$0xff] %v202
                %v204 = vld [vmem:[%s148 + $0x198] sm:$0xff]
                %205 = vst [vmem:[%s149 + $0xd8] sm:$0xff] %v204
                %v206 = vld [vmem:[%s148 + $0x1c0] sm:$0xff]
                %207 = vst [vmem:[%s149 + $0xe0] sm:$0xff] %v206
                %v208 = vld [vmem:[%s148 + $0x1c8] sm:$0xff]
                %209 = vst [vmem:[%s149 + $0xe8] sm:$0xff] %v208
                %v210 = vld [vmem:[%s148 + $0x1d0] sm:$0xff]
                %211 = vst [vmem:[%s149 + $0xf0] sm:$0xff] %v210
                %v212 = vld [vmem:[%s148 + $0x1d8] sm:$0xff]
                %213 = vst [vmem:[%s149 + $0xf8] sm:$0xff] %v212
                %v214 = vld [vmem:[%s148 + $0x200] sm:$0xff]
                %215 = vst [vmem:[%s149 + $0x100] sm:$0xff] %v214
                %v216 = vld [vmem:[%s148 + $0x208] sm:$0xff]
                %217 = vst [vmem:[%s149 + $0x108] sm:$0xff] %v216
                %v218 = vld [vmem:[%s148 + $0x210] sm:$0xff]
                %219 = vst [vmem:[%s149 + $0x110] sm:$0xff] %v218
                %v220 = vld [vmem:[%s148 + $0x218] sm:$0xff]
                %221 = vst [vmem:[%s149 + $0x118] sm:$0xff] %v220
                %v222 = vld [vmem:[%s148 + $0x240] sm:$0xff]
                %223 = vst [vmem:[%s149 + $0x120] sm:$0xff] %v222
                %v224 = vld [vmem:[%s148 + $0x248] sm:$0xff]
                %225 = vst [vmem:[%s149 + $0x128] sm:$0xff] %v224
                %v226 = vld [vmem:[%s148 + $0x250] sm:$0xff]
                %227 = vst [vmem:[%s149 + $0x130] sm:$0xff] %v226
                %v228 = vld [vmem:[%s148 + $0x258] sm:$0xff]
                %229 = vst [vmem:[%s149 + $0x138] sm:$0xff] %v228
                %v230 = vld [vmem:[%s148 + $0x280] sm:$0xff]
                %231 = vst [vmem:[%s149 + $0x140] sm:$0xff] %v230
                %v232 = vld [vmem:[%s148 + $0x288] sm:$0xff]
                %233 = vst [vmem:[%s149 + $0x148] sm:$0xff] %v232
                %v234 = vld [vmem:[%s148 + $0x290] sm:$0xff]
                %235 = vst [vmem:[%s149 + $0x150] sm:$0xff] %v234
                %v236 = vld [vmem:[%s148 + $0x298] sm:$0xff]
                %237 = vst [vmem:[%s149 + $0x158] sm:$0xff] %v236
                %v238 = vld [vmem:[%s148 + $0x2c0] sm:$0xff]
                %239 = vst [vmem:[%s149 + $0x160] sm:$0xff] %v238
                %v240 = vld [vmem:[%s148 + $0x2c8] sm:$0xff]
                %241 = vst [vmem:[%s149 + $0x168] sm:$0xff] %v240
                %v242 = vld [vmem:[%s148 + $0x2d0] sm:$0xff]
                %243 = vst [vmem:[%s149 + $0x170] sm:$0xff] %v242
                %v244 = vld [vmem:[%s148 + $0x2d8] sm:$0xff]
                %245 = vst [vmem:[%s149 + $0x178] sm:$0xff] %v244
                %v246 = vld [vmem:[%s148 + $0x300] sm:$0xff]
                %247 = vst [vmem:[%s149 + $0x180] sm:$0xff] %v246
                %v248 = vld [vmem:[%s148 + $0x308] sm:$0xff]
                %249 = vst [vmem:[%s149 + $0x188] sm:$0xff] %v248
                %v250 = vld [vmem:[%s148 + $0x310] sm:$0xff]
                %251 = vst [vmem:[%s149 + $0x190] sm:$0xff] %v250
                %v252 = vld [vmem:[%s148 + $0x318] sm:$0xff]
                %253 = vst [vmem:[%s149 + $0x198] sm:$0xff] %v252
                %v254 = vld [vmem:[%s148 + $0x340] sm:$0xff]
                %255 = vst [vmem:[%s149 + $0x1a0] sm:$0xff] %v254
                %v256 = vld [vmem:[%s148 + $0x348] sm:$0xff]
                %257 = vst [vmem:[%s149 + $0x1a8] sm:$0xff] %v256
                %v258 = vld [vmem:[%s148 + $0x350] sm:$0xff]
                %259 = vst [vmem:[%s149 + $0x1b0] sm:$0xff] %v258
                %v260 = vld [vmem:[%s148 + $0x358] sm:$0xff]
                %261 = vst [vmem:[%s149 + $0x1b8] sm:$0xff] %v260
                %v262 = vld [vmem:[%s148 + $0x380] sm:$0xff]
                %263 = vst [vmem:[%s149 + $0x1c0] sm:$0xff] %v262
                %v264 = vld [vmem:[%s148 + $0x388] sm:$0xff]
                %265 = vst [vmem:[%s149 + $0x1c8] sm:$0xff] %v264
                %v266 = vld [vmem:[%s148 + $0x390] sm:$0xff]
                %267 = vst [vmem:[%s149 + $0x1d0] sm:$0xff] %v266
                %v268 = vld [vmem:[%s148 + $0x398] sm:$0xff]
                %269 = vst [vmem:[%s149 + $0x1d8] sm:$0xff] %v268
                %v270 = vld [vmem:[%s148 + $0x3c0] sm:$0xff]
                %271 = vst [vmem:[%s149 + $0x1e0] sm:$0xff] %v270
                %v272 = vld [vmem:[%s148 + $0x3c8] sm:$0xff]
                %273 = vst [vmem:[%s149 + $0x1e8] sm:$0xff] %v272
                %v274 = vld [vmem:[%s148 + $0x3d0] sm:$0xff]
                %275 = vst [vmem:[%s149 + $0x1f0] sm:$0xff] %v274
                %v276 = vld [vmem:[%s148 + $0x3d8] sm:$0xff]
                %277 = vst [vmem:[%s149 + $0x1f8] sm:$0xff] %v276
              $region41: #{gauge_net_forward.4} parent=35 // loop_footer
                %s147 = sadd.s32 1, %s143
              $region42: #{gauge_net_forward.4} parent=35 // loop_footer_branch
                %142 = sbr.rel target = $region38
              $region43: #{gauge_net_forward.4} parent=35 // loop_exit
                _
            $region36: #{gauge_net_forward.4} parent=31 // pred_fallthru
              _
            // Predicated region
            $region44: #{gauge_net_forward.4} parent=31 // pred_check
              _
            $region45: #{gauge_net_forward.4} parent=31 // pred_check_branch
              %279 = sbr.rel target = $region47
            $region46: #{gauge_net_forward.4} parent=31 // pred_region
              _
            $region47: #{gauge_net_forward.4} parent=31 // pred_fallthru
              _
          $region32: #{gauge_net_forward.4} parent=27 // pred_fallthru
            _
          %280 = vnop
        $region28: #{gauge_net_forward.4} parent=23 // pred_fallthru
          _
      $region24: #{gauge_net_forward.4} parent=5 // pred_fallthru
        _
      %p281 = scmp.le.s32.totalorder 1, %s9
      %p282 = scmp.lt.s32.totalorder %s9, 3
      %p283 = pnand %p281, %p282
      %p284 = pneg %p283
      // Predicated region
      $region48: #{gauge_net_forward.4} parent=5 // pred_check
        _
      $region49: #{gauge_net_forward.4} parent=5 // pred_check_branch
        %286 = sbr.rel (%p283) target = $region51
      $region50: #{gauge_net_forward.4} parent=5 // pred_region
        %s287 = ssub.s32 %s9, 1
        %s288 = sand.u32 %s22, 1
        %s289 = sand.u32 %s22, 1
        %s290 = smul.addr %s289, 512
        %s291 = scalar_lea.vmem [#allocation2], %s290
        // Predicated region
        $region52: #{gauge_net_forward.4} parent=50 // pred_check
          %p292 = pneg %p35
        $region53: #{gauge_net_forward.4} parent=50 // pred_check_branch
          %294 = sbr.rel (%p292) target = $region55
        $region54: #{gauge_net_forward.4} parent=50 // pred_region
          _
        $region55: #{gauge_net_forward.4} parent=50 // pred_fallthru
          _
        %s295 = sand.u32 %s22, 1
        %s296 = sand.u32 %s22, 1
        %s297 = smul.addr %s296, 512
        %s298 = scalar_lea.vmem [#allocation2], %s297
        %p299 = pneg %p35
        %p300 = pneg %p32
        %p301 = pneg %p56
        %p302 = pneg %p53
        %p303 = pneg %p77
        %p304 = pneg %p74
        %p305 = pneg %p103
        %p306 = pneg %p100
        %s307 = sand.u32 %s90, 1
        %s308 = sand.u32 %s90, 1
        %s309 = smul.addr %s308, 64
        %s310 = scalar_lea.vmem [#allocation3], %s309
        %s311 = smul.u32 8, %s14
        %s312 = smul.u32 8, %s14
        %v314 = vld [vmem:[%s1] sm:$0xf]
        %v315 = vld [vmem:[%s1 + $0x4] sm:$0xf]
        %v316 = vld [vmem:[%s291] sm:$0xff]
        %v317 = vld [vmem:[%s291 + $0x8] sm:$0xff]
        %v318 = vld [vmem:[%s291 + $0x10] sm:$0xff]
        %v319 = vld [vmem:[%s291 + $0x18] sm:$0xff]
        %v320 = vld [vmem:[%s291 + $0x20] sm:$0xff]
        %v321 = vld [vmem:[%s291 + $0x28] sm:$0xff]
        %v322 = vld [vmem:[%s291 + $0x30] sm:$0xff]
        %v323 = vld [vmem:[%s291 + $0x38] sm:$0xff]
        %v324 = vld [vmem:[%s291 + $0x40] sm:$0xff]
        %v325 = vld [vmem:[%s291 + $0x48] sm:$0xff]
        %v326 = vld [vmem:[%s291 + $0x50] sm:$0xff]
        %v327 = vld [vmem:[%s291 + $0x58] sm:$0xff]
        %v328 = vld [vmem:[%s291 + $0x60] sm:$0x11]
        %v329 = vld [vmem:[%s291 + $0x68] sm:$0x11]
        %v330 = vld [vmem:[%s291 + $0x70] sm:$0x11]
        %v331 = vld [vmem:[%s291 + $0x78] sm:$0x11]
        %v334 = vunpack.c.l.b16 %v314
        %v335 = vunpack.c.l.b16 %v315
        %v336 = vpack.c.b16 %v335, %v334
        %v353 = vunpack.c.l.b16 %v316
        %v354 = vunpack.c.h.b16 %v316
        %v355 = vunpack.c.l.b16 %v317
        %v356 = vunpack.c.h.b16 %v317
        %v357 = vunpack.c.l.b16 %v318
        %v358 = vunpack.c.h.b16 %v318
        %v359 = vunpack.c.l.b16 %v319
        %v360 = vunpack.c.h.b16 %v319
        %v361 = vunpack.c.l.b16 %v320
        %v362 = vunpack.c.h.b16 %v320
        %v363 = vunpack.c.l.b16 %v321
        %v364 = vunpack.c.h.b16 %v321
        %v365 = vunpack.c.l.b16 %v322
        %v366 = vunpack.c.h.b16 %v322
        %v367 = vunpack.c.l.b16 %v323
        %v368 = vunpack.c.h.b16 %v323
        %v369 = vunpack.c.l.b16 %v324
        %v370 = vunpack.c.h.b16 %v324
        %v371 = vunpack.c.l.b16 %v325
        %v372 = vunpack.c.h.b16 %v325
        %v373 = vunpack.c.l.b16 %v326
        %v374 = vunpack.c.h.b16 %v326
        %v375 = vunpack.c.l.b16 %v327
        %v376 = vunpack.c.h.b16 %v327
        %v377 = vunpack.c.l.b16 %v328
        %v378 = vunpack.c.h.b16 %v328
        %v379 = vunpack.c.l.b16 %v329
        %v380 = vunpack.c.h.b16 %v329
        %v381 = vunpack.c.l.b16 %v330
        %v382 = vunpack.c.h.b16 %v330
        %v383 = vunpack.c.l.b16 %v331
        %v384 = vunpack.c.h.b16 %v331
        %v385 = vpack.c.b16 %v361, %v353
        %v386 = vpack.c.b16 %v362, %v354
        %v387 = vpack.c.b16 %v363, %v355
        %v388 = vpack.c.b16 %v364, %v356
        %v389 = vpack.c.b16 %v365, %v357
        %v390 = vpack.c.b16 %v366, %v358
        %v391 = vpack.c.b16 %v367, %v359
        %v392 = vpack.c.b16 %v368, %v360
        %v393 = vpack.c.b16 %v377, %v369
        %v394 = vpack.c.b16 %v378, %v370
        %v395 = vpack.c.b16 %v379, %v371
        %v396 = vpack.c.b16 %v380, %v372
        %v397 = vpack.c.b16 %v381, %v373
        %v398 = vpack.c.b16 %v382, %v374
        %v399 = vpack.c.b16 %v383, %v375
        %v400 = vpack.c.b16 %v384, %v376
        %vm409 = vcmask 203776
        %v411 = vsel %vm409, %v336, 0
        %vm413 = vcmask 1043456
        %vm414 = vcmask 1044480
        %v415 = vsel %vm413, 4294967295, 65535
        %v416 = vsel %vm414, %v415, 0
        %v418 = vand.u32 %v393, %v416
        %v421 = vand.u32 %v394, %v416
        %v424 = vand.u32 %v395, %v416
        %v427 = vand.u32 %v396, %v416
        %v430 = vand.u32 %v397, %v416
        %v433 = vand.u32 %v398, %v416
        %v436 = vand.u32 %v399, %v416
        %v439 = vand.u32 %v400, %v416
        %441 = vmatpush.bf16.msra.mxu0 0
        %442 = vmatpush.bf16.msra.mxu0 0
        %443 = vmatpush.bf16.msra.mxu0 0
        %444 = vmatpush.bf16.msra.mxu0 0
        %445 = vmatpush.bf16.msra.mxu0 0
        %446 = vmatpush.bf16.msra.mxu0 0
        %447 = vmatpush.bf16.msra.mxu0 %v418
        %448 = vmatpush.bf16.msra.mxu0 %v385
        %449 = vmatmul.bf16.gmra.mxu0 %v411
        %v450 = vpop.f32.mrf.mxu0
        %v451 = vadd.f32 0.0, %v450
        %v452 = vpop.f32.mrf.mxu0
        %v453 = vadd.f32 0.0, %v452
        %454 = vdwg.mxu0
        %455 = vmatpush.bf16.msra.mxu0 0
        %456 = vmatpush.bf16.msra.mxu0 0
        %457 = vmatpush.bf16.msra.mxu0 0
        %458 = vmatpush.bf16.msra.mxu0 0
        %459 = vmatpush.bf16.msra.mxu0 0
        %460 = vmatpush.bf16.msra.mxu0 0
        %461 = vmatpush.bf16.msra.mxu0 %v421
        %462 = vmatpush.bf16.msra.mxu0 %v386
        %463 = vmatmul.bf16.gmra.mxu0 %v411
        %v464 = vpop.f32.mrf.mxu0
        %v465 = vadd.f32 0.0, %v464
        %v466 = vpop.f32.mrf.mxu0
        %v467 = vadd.f32 0.0, %v466
        %468 = vdwg.mxu0
        %469 = vmatpush.bf16.msra.mxu0 0
        %470 = vmatpush.bf16.msra.mxu0 0
        %471 = vmatpush.bf16.msra.mxu0 0
        %472 = vmatpush.bf16.msra.mxu0 0
        %473 = vmatpush.bf16.msra.mxu0 0
        %474 = vmatpush.bf16.msra.mxu0 0
        %475 = vmatpush.bf16.msra.mxu0 %v424
        %476 = vmatpush.bf16.msra.mxu0 %v387
        %477 = vmatmul.bf16.gmra.mxu0 %v411
        %v478 = vpop.f32.mrf.mxu0
        %v479 = vadd.f32 0.0, %v478
        %v480 = vpop.f32.mrf.mxu0
        %v481 = vadd.f32 0.0, %v480
        %482 = vdwg.mxu0
        %483 = vmatpush.bf16.msra.mxu0 0
        %484 = vmatpush.bf16.msra.mxu0 0
        %485 = vmatpush.bf16.msra.mxu0 0
        %486 = vmatpush.bf16.msra.mxu0 0
        %487 = vmatpush.bf16.msra.mxu0 0
        %488 = vmatpush.bf16.msra.mxu0 0
        %489 = vmatpush.bf16.msra.mxu0 %v427
        %490 = vmatpush.bf16.msra.mxu0 %v388
        %491 = vmatmul.bf16.gmra.mxu0 %v411
        %v492 = vpop.f32.mrf.mxu0
        %v493 = vadd.f32 0.0, %v492
        %v494 = vpop.f32.mrf.mxu0
        %v495 = vadd.f32 0.0, %v494
        %496 = vdwg.mxu0
        %497 = vmatpush.bf16.msra.mxu0 0
        %498 = vmatpush.bf16.msra.mxu0 0
        %499 = vmatpush.bf16.msra.mxu0 0
        %500 = vmatpush.bf16.msra.mxu0 0
        %501 = vmatpush.bf16.msra.mxu0 0
        %502 = vmatpush.bf16.msra.mxu0 0
        %503 = vmatpush.bf16.msra.mxu0 %v430
        %504 = vmatpush.bf16.msra.mxu0 %v389
        %505 = vmatmul.bf16.gmra.mxu0 %v411
        %v506 = vpop.f32.mrf.mxu0
        %v507 = vadd.f32 0.0, %v506
        %v508 = vpop.f32.mrf.mxu0
        %v509 = vadd.f32 0.0, %v508
        %510 = vdwg.mxu0
        %511 = vmatpush.bf16.msra.mxu0 0
        %512 = vmatpush.bf16.msra.mxu0 0
        %513 = vmatpush.bf16.msra.mxu0 0
        %514 = vmatpush.bf16.msra.mxu0 0
        %515 = vmatpush.bf16.msra.mxu0 0
        %516 = vmatpush.bf16.msra.mxu0 0
        %517 = vmatpush.bf16.msra.mxu0 %v433
        %518 = vmatpush.bf16.msra.mxu0 %v390
        %519 = vmatmul.bf16.gmra.mxu0 %v411
        %v520 = vpop.f32.mrf.mxu0
        %v521 = vadd.f32 0.0, %v520
        %v522 = vpop.f32.mrf.mxu0
        %v523 = vadd.f32 0.0, %v522
        %524 = vdwg.mxu0
        %525 = vmatpush.bf16.msra.mxu0 0
        %526 = vmatpush.bf16.msra.mxu0 0
        %527 = vmatpush.bf16.msra.mxu0 0
        %528 = vmatpush.bf16.msra.mxu0 0
        %529 = vmatpush.bf16.msra.mxu0 0
        %530 = vmatpush.bf16.msra.mxu0 0
        %531 = vmatpush.bf16.msra.mxu0 %v436
        %532 = vmatpush.bf16.msra.mxu0 %v391
        %533 = vmatmul.bf16.gmra.mxu0 %v411
        %v534 = vpop.f32.mrf.mxu0
        %v535 = vadd.f32 0.0, %v534
        %v536 = vpop.f32.mrf.mxu0
        %v537 = vadd.f32 0.0, %v536
        %538 = vdwg.mxu0
        %539 = vmatpush.bf16.msra.mxu0 0
        %540 = vmatpush.bf16.msra.mxu0 0
        %541 = vmatpush.bf16.msra.mxu0 0
        %542 = vmatpush.bf16.msra.mxu0 0
        %543 = vmatpush.bf16.msra.mxu0 0
        %544 = vmatpush.bf16.msra.mxu0 0
        %545 = vmatpush.bf16.msra.mxu0 %v439
        %546 = vmatpush.bf16.msra.mxu0 %v392
        %547 = vmatmul.bf16.gmra.mxu0 %v411
        %v548 = vpop.f32.mrf.mxu0
        %v549 = vadd.f32 0.0, %v548
        %v550 = vpop.f32.mrf.mxu0
        %v551 = vadd.f32 0.0, %v550
        %552 = vdwg.mxu0
        %s553 = scalar_lea.vmem %s291, 128 [#allocation2]
        %v554 = vld [vmem:[%s553] sm:$0xff]
        %v555 = vld [vmem:[%s553 + $0x8] sm:$0xff]
        %v556 = vld [vmem:[%s553 + $0x10] sm:$0xff]
        %v557 = vld [vmem:[%s553 + $0x18] sm:$0xff]
        %v558 = vld [vmem:[%s553 + $0x20] sm:$0xff]
        %v559 = vld [vmem:[%s553 + $0x28] sm:$0xff]
        %v560 = vld [vmem:[%s553 + $0x30] sm:$0xff]
        %v561 = vld [vmem:[%s553 + $0x38] sm:$0xff]
        %v562 = vld [vmem:[%s553 + $0x40] sm:$0xff]
        %v563 = vld [vmem:[%s553 + $0x48] sm:$0xff]
        %v564 = vld [vmem:[%s553 + $0x50] sm:$0xff]
        %v565 = vld [vmem:[%s553 + $0x58] sm:$0xff]
        %v566 = vld [vmem:[%s553 + $0x60] sm:$0x11]
        %v567 = vld [vmem:[%s553 + $0x68] sm:$0x11]
        %v568 = vld [vmem:[%s553 + $0x70] sm:$0x11]
        %v569 = vld [vmem:[%s553 + $0x78] sm:$0x11]
        %v586 = vunpack.c.l.b16 %v554
        %v587 = vunpack.c.h.b16 %v554
        %v588 = vunpack.c.l.b16 %v555
        %v589 = vunpack.c.h.b16 %v555
        %v590 = vunpack.c.l.b16 %v556
        %v591 = vunpack.c.h.b16 %v556
        %v592 = vunpack.c.l.b16 %v557
        %v593 = vunpack.c.h.b16 %v557
        %v594 = vunpack.c.l.b16 %v558
        %v595 = vunpack.c.h.b16 %v558
        %v596 = vunpack.c.l.b16 %v559
        %v597 = vunpack.c.h.b16 %v559
        %v598 = vunpack.c.l.b16 %v560
        %v599 = vunpack.c.h.b16 %v560
        %v600 = vunpack.c.l.b16 %v561
        %v601 = vunpack.c.h.b16 %v561
        %v602 = vunpack.c.l.b16 %v562
        %v603 = vunpack.c.h.b16 %v562
        %v604 = vunpack.c.l.b16 %v563
        %v605 = vunpack.c.h.b16 %v563
        %v606 = vunpack.c.l.b16 %v564
        %v607 = vunpack.c.h.b16 %v564
        %v608 = vunpack.c.l.b16 %v565
        %v609 = vunpack.c.h.b16 %v565
        %v610 = vunpack.c.l.b16 %v566
        %v611 = vunpack.c.h.b16 %v566
        %v612 = vunpack.c.l.b16 %v567
        %v613 = vunpack.c.h.b16 %v567
        %v614 = vunpack.c.l.b16 %v568
        %v615 = vunpack.c.h.b16 %v568
        %v616 = vunpack.c.l.b16 %v569
        %v617 = vunpack.c.h.b16 %v569
        %v618 = vpack.c.b16 %v594, %v586
        %v619 = vpack.c.b16 %v595, %v587
        %v620 = vpack.c.b16 %v596, %v588
        %v621 = vpack.c.b16 %v597, %v589
        %v622 = vpack.c.b16 %v598, %v590
        %v623 = vpack.c.b16 %v599, %v591
        %v624 = vpack.c.b16 %v600, %v592
        %v625 = vpack.c.b16 %v601, %v593
        %v626 = vpack.c.b16 %v610, %v602
        %v627 = vpack.c.b16 %v611, %v603
        %v628 = vpack.c.b16 %v612, %v604
        %v629 = vpack.c.b16 %v613, %v605
        %v630 = vpack.c.b16 %v614, %v606
        %v631 = vpack.c.b16 %v615, %v607
        %v632 = vpack.c.b16 %v616, %v608
        %v633 = vpack.c.b16 %v617, %v609
        %v643 = vand.u32 %v626, %v416
        %v646 = vand.u32 %v627, %v416
        %v649 = vand.u32 %v628, %v416
        %v652 = vand.u32 %v629, %v416
        %v655 = vand.u32 %v630, %v416
        %v658 = vand.u32 %v631, %v416
        %v661 = vand.u32 %v632, %v416
        %v664 = vand.u32 %v633, %v416
        %666 = vmatpush.bf16.msra.mxu0 0
        %667 = vmatpush.bf16.msra.mxu0 0
        %668 = vmatpush.bf16.msra.mxu0 0
        %669 = vmatpush.bf16.msra.mxu0 0
        %670 = vmatpush.bf16.msra.mxu0 0
        %671 = vmatpush.bf16.msra.mxu0 0
        %672 = vmatpush.bf16.msra.mxu0 %v643
        %673 = vmatpush.bf16.msra.mxu0 %v618
        %674 = vmatmul.bf16.gmra.mxu0 %v411
        %v675 = vpop.f32.mrf.mxu0
        %v676 = vadd.f32 0.0, %v675
        %v677 = vpop.f32.mrf.mxu0
        %v678 = vadd.f32 0.0, %v677
        %679 = vdwg.mxu0
        %680 = vmatpush.bf16.msra.mxu0 0
        %681 = vmatpush.bf16.msra.mxu0 0
        %682 = vmatpush.bf16.msra.mxu0 0
        %683 = vmatpush.bf16.msra.mxu0 0
        %684 = vmatpush.bf16.msra.mxu0 0
        %685 = vmatpush.bf16.msra.mxu0 0
        %686 = vmatpush.bf16.msra.mxu0 %v646
        %687 = vmatpush.bf16.msra.mxu0 %v619
        %688 = vmatmul.bf16.gmra.mxu0 %v411
        %v689 = vpop.f32.mrf.mxu0
        %v690 = vadd.f32 0.0, %v689
        %v691 = vpop.f32.mrf.mxu0
        %v692 = vadd.f32 0.0, %v691
        %693 = vdwg.mxu0
        %694 = vmatpush.bf16.msra.mxu0 0
        %695 = vmatpush.bf16.msra.mxu0 0
        %696 = vmatpush.bf16.msra.mxu0 0
        %697 = vmatpush.bf16.msra.mxu0 0
        %698 = vmatpush.bf16.msra.mxu0 0
        %699 = vmatpush.bf16.msra.mxu0 0
        %700 = vmatpush.bf16.msra.mxu0 %v649
        %701 = vmatpush.bf16.msra.mxu0 %v620
        %702 = vmatmul.bf16.gmra.mxu0 %v411
        %v703 = vpop.f32.mrf.mxu0
        %v704 = vadd.f32 0.0, %v703
        %v705 = vpop.f32.mrf.mxu0
        %v706 = vadd.f32 0.0, %v705
        %707 = vdwg.mxu0
        %708 = vmatpush.bf16.msra.mxu0 0
        %709 = vmatpush.bf16.msra.mxu0 0
        %710 = vmatpush.bf16.msra.mxu0 0
        %711 = vmatpush.bf16.msra.mxu0 0
        %712 = vmatpush.bf16.msra.mxu0 0
        %713 = vmatpush.bf16.msra.mxu0 0
        %714 = vmatpush.bf16.msra.mxu0 %v652
        %715 = vmatpush.bf16.msra.mxu0 %v621
        %716 = vmatmul.bf16.gmra.mxu0 %v411
        %v717 = vpop.f32.mrf.mxu0
        %v718 = vadd.f32 0.0, %v717
        %v719 = vpop.f32.mrf.mxu0
        %v720 = vadd.f32 0.0, %v719
        %721 = vdwg.mxu0
        %722 = vmatpush.bf16.msra.mxu0 0
        %723 = vmatpush.bf16.msra.mxu0 0
        %724 = vmatpush.bf16.msra.mxu0 0
        %725 = vmatpush.bf16.msra.mxu0 0
        %726 = vmatpush.bf16.msra.mxu0 0
        %727 = vmatpush.bf16.msra.mxu0 0
        %728 = vmatpush.bf16.msra.mxu0 %v655
        %729 = vmatpush.bf16.msra.mxu0 %v622
        %730 = vmatmul.bf16.gmra.mxu0 %v411
        %v731 = vpop.f32.mrf.mxu0
        %v732 = vadd.f32 0.0, %v731
        %v733 = vpop.f32.mrf.mxu0
        %v734 = vadd.f32 0.0, %v733
        %735 = vdwg.mxu0
        %736 = vmatpush.bf16.msra.mxu0 0
        %737 = vmatpush.bf16.msra.mxu0 0
        %738 = vmatpush.bf16.msra.mxu0 0
        %739 = vmatpush.bf16.msra.mxu0 0
        %740 = vmatpush.bf16.msra.mxu0 0
        %741 = vmatpush.bf16.msra.mxu0 0
        %742 = vmatpush.bf16.msra.mxu0 %v658
        %743 = vmatpush.bf16.msra.mxu0 %v623
        %744 = vmatmul.bf16.gmra.mxu0 %v411
        %v745 = vpop.f32.mrf.mxu0
        %v746 = vadd.f32 0.0, %v745
        %v747 = vpop.f32.mrf.mxu0
        %v748 = vadd.f32 0.0, %v747
        %749 = vdwg.mxu0
        %750 = vmatpush.bf16.msra.mxu0 0
        %751 = vmatpush.bf16.msra.mxu0 0
        %752 = vmatpush.bf16.msra.mxu0 0
        %753 = vmatpush.bf16.msra.mxu0 0
        %754 = vmatpush.bf16.msra.mxu0 0
        %755 = vmatpush.bf16.msra.mxu0 0
        %756 = vmatpush.bf16.msra.mxu0 %v661
        %757 = vmatpush.bf16.msra.mxu0 %v624
        %758 = vmatmul.bf16.gmra.mxu0 %v411
        %v759 = vpop.f32.mrf.mxu0
        %v760 = vadd.f32 0.0, %v759
        %v761 = vpop.f32.mrf.mxu0
        %v762 = vadd.f32 0.0, %v761
        %763 = vdwg.mxu0
        %764 = vmatpush.bf16.msra.mxu0 0
        %765 = vmatpush.bf16.msra.mxu0 0
        %766 = vmatpush.bf16.msra.mxu0 0
        %767 = vmatpush.bf16.msra.mxu0 0
        %768 = vmatpush.bf16.msra.mxu0 0
        %769 = vmatpush.bf16.msra.mxu0 0
        %770 = vmatpush.bf16.msra.mxu0 %v664
        %771 = vmatpush.bf16.msra.mxu0 %v625
        %772 = vmatmul.bf16.gmra.mxu0 %v411
        %v773 = vpop.f32.mrf.mxu0
        %v774 = vadd.f32 0.0, %v773
        %v775 = vpop.f32.mrf.mxu0
        %v776 = vadd.f32 0.0, %v775
        %777 = vdwg.mxu0
        %v778 = vmax.f32 %v451, %v676
        %v779 = vmax.f32 %v465, %v690
        %v780 = vmax.f32 %v479, %v704
        %v781 = vmax.f32 %v493, %v718
        %v782 = vmax.f32 %v507, %v732
        %v783 = vmax.f32 %v521, %v746
        %v784 = vmax.f32 %v535, %v760
        %v785 = vmax.f32 %v549, %v774
        %v786 = vmax.f32 %v453, %v678
        %v787 = vmax.f32 %v467, %v692
        %v788 = vmax.f32 %v481, %v706
        %v789 = vmax.f32 %v495, %v720
        %v790 = vmax.f32 %v509, %v734
        %v791 = vmax.f32 %v523, %v748
        %v792 = vmax.f32 %v537, %v762
        %v793 = vmax.f32 %v551, %v776
        %s794 = scalar_lea.vmem %s291, 256 [#allocation2]
        %v795 = vld [vmem:[%s794] sm:$0xff]
        %v796 = vld [vmem:[%s794 + $0x8] sm:$0xff]
        %v797 = vld [vmem:[%s794 + $0x10] sm:$0xff]
        %v798 = vld [vmem:[%s794 + $0x18] sm:$0xff]
        %v799 = vld [vmem:[%s794 + $0x20] sm:$0xff]
        %v800 = vld [vmem:[%s794 + $0x28] sm:$0xff]
        %v801 = vld [vmem:[%s794 + $0x30] sm:$0xff]
        %v802 = vld [vmem:[%s794 + $0x38] sm:$0xff]
        %v803 = vld [vmem:[%s794 + $0x40] sm:$0xff]
        %v804 = vld [vmem:[%s794 + $0x48] sm:$0xff]
        %v805 = vld [vmem:[%s794 + $0x50] sm:$0xff]
        %v806 = vld [vmem:[%s794 + $0x58] sm:$0xff]
        %v807 = vld [vmem:[%s794 + $0x60] sm:$0x11]
        %v808 = vld [vmem:[%s794 + $0x68] sm:$0x11]
        %v809 = vld [vmem:[%s794 + $0x70] sm:$0x11]
        %v810 = vld [vmem:[%s794 + $0x78] sm:$0x11]
        %v827 = vunpack.c.l.b16 %v795
        %v828 = vunpack.c.h.b16 %v795
        %v829 = vunpack.c.l.b16 %v796
        %v830 = vunpack.c.h.b16 %v796
        %v831 = vunpack.c.l.b16 %v797
        %v832 = vunpack.c.h.b16 %v797
        %v833 = vunpack.c.l.b16 %v798
        %v834 = vunpack.c.h.b16 %v798
        %v835 = vunpack.c.l.b16 %v799
        %v836 = vunpack.c.h.b16 %v799
        %v837 = vunpack.c.l.b16 %v800
        %v838 = vunpack.c.h.b16 %v800
        %v839 = vunpack.c.l.b16 %v801
        %v840 = vunpack.c.h.b16 %v801
        %v841 = vunpack.c.l.b16 %v802
        %v842 = vunpack.c.h.b16 %v802
        %v843 = vunpack.c.l.b16 %v803
        %v844 = vunpack.c.h.b16 %v803
        %v845 = vunpack.c.l.b16 %v804
        %v846 = vunpack.c.h.b16 %v804
        %v847 = vunpack.c.l.b16 %v805
        %v848 = vunpack.c.h.b16 %v805
        %v849 = vunpack.c.l.b16 %v806
        %v850 = vunpack.c.h.b16 %v806
        %v851 = vunpack.c.l.b16 %v807
        %v852 = vunpack.c.h.b16 %v807
        %v853 = vunpack.c.l.b16 %v808
        %v854 = vunpack.c.h.b16 %v808
        %v855 = vunpack.c.l.b16 %v809
        %v856 = vunpack.c.h.b16 %v809
        %v857 = vunpack.c.l.b16 %v810
        %v858 = vunpack.c.h.b16 %v810
        %v859 = vpack.c.b16 %v835, %v827
        %v860 = vpack.c.b16 %v836, %v828
        %v861 = vpack.c.b16 %v837, %v829
        %v862 = vpack.c.b16 %v838, %v830
        %v863 = vpack.c.b16 %v839, %v831
        %v864 = vpack.c.b16 %v840, %v832
        %v865 = vpack.c.b16 %v841, %v833
        %v866 = vpack.c.b16 %v842, %v834
        %v867 = vpack.c.b16 %v851, %v843
        %v868 = vpack.c.b16 %v852, %v844
        %v869 = vpack.c.b16 %v853, %v845
        %v870 = vpack.c.b16 %v854, %v846
        %v871 = vpack.c.b16 %v855, %v847
        %v872 = vpack.c.b16 %v856, %v848
        %v873 = vpack.c.b16 %v857, %v849
        %v874 = vpack.c.b16 %v858, %v850
        %v884 = vand.u32 %v867, %v416
        %v887 = vand.u32 %v868, %v416
        %v890 = vand.u32 %v869, %v416
        %v893 = vand.u32 %v870, %v416
        %v896 = vand.u32 %v871, %v416
        %v899 = vand.u32 %v872, %v416
        %v902 = vand.u32 %v873, %v416
        %v905 = vand.u32 %v874, %v416
        %907 = vmatpush.bf16.msra.mxu0 0
        %908 = vmatpush.bf16.msra.mxu0 0
        %909 = vmatpush.bf16.msra.mxu0 0
        %910 = vmatpush.bf16.msra.mxu0 0
        %911 = vmatpush.bf16.msra.mxu0 0
        %912 = vmatpush.bf16.msra.mxu0 0
        %913 = vmatpush.bf16.msra.mxu0 %v884
        %914 = vmatpush.bf16.msra.mxu0 %v859
        %915 = vmatmul.bf16.gmra.mxu0 %v411
        %v916 = vpop.f32.mrf.mxu0
        %v917 = vadd.f32 0.0, %v916
        %v918 = vpop.f32.mrf.mxu0
        %v919 = vadd.f32 0.0, %v918
        %920 = vdwg.mxu0
        %921 = vmatpush.bf16.msra.mxu0 0
        %922 = vmatpush.bf16.msra.mxu0 0
        %923 = vmatpush.bf16.msra.mxu0 0
        %924 = vmatpush.bf16.msra.mxu0 0
        %925 = vmatpush.bf16.msra.mxu0 0
        %926 = vmatpush.bf16.msra.mxu0 0
        %927 = vmatpush.bf16.msra.mxu0 %v887
        %928 = vmatpush.bf16.msra.mxu0 %v860
        %929 = vmatmul.bf16.gmra.mxu0 %v411
        %v930 = vpop.f32.mrf.mxu0
        %v931 = vadd.f32 0.0, %v930
        %v932 = vpop.f32.mrf.mxu0
        %v933 = vadd.f32 0.0, %v932
        %934 = vdwg.mxu0
        %935 = vmatpush.bf16.msra.mxu0 0
        %936 = vmatpush.bf16.msra.mxu0 0
        %937 = vmatpush.bf16.msra.mxu0 0
        %938 = vmatpush.bf16.msra.mxu0 0
        %939 = vmatpush.bf16.msra.mxu0 0
        %940 = vmatpush.bf16.msra.mxu0 0
        %941 = vmatpush.bf16.msra.mxu0 %v890
        %942 = vmatpush.bf16.msra.mxu0 %v861
        %943 = vmatmul.bf16.gmra.mxu0 %v411
        %v944 = vpop.f32.mrf.mxu0
        %v945 = vadd.f32 0.0, %v944
        %v946 = vpop.f32.mrf.mxu0
        %v947 = vadd.f32 0.0, %v946
        %948 = vdwg.mxu0
        %949 = vmatpush.bf16.msra.mxu0 0
        %950 = vmatpush.bf16.msra.mxu0 0
        %951 = vmatpush.bf16.msra.mxu0 0
        %952 = vmatpush.bf16.msra.mxu0 0
        %953 = vmatpush.bf16.msra.mxu0 0
        %954 = vmatpush.bf16.msra.mxu0 0
        %955 = vmatpush.bf16.msra.mxu0 %v893
        %956 = vmatpush.bf16.msra.mxu0 %v862
        %957 = vmatmul.bf16.gmra.mxu0 %v411
        %v958 = vpop.f32.mrf.mxu0
        %v959 = vadd.f32 0.0, %v958
        %v960 = vpop.f32.mrf.mxu0
        %v961 = vadd.f32 0.0, %v960
        %962 = vdwg.mxu0
        %963 = vmatpush.bf16.msra.mxu0 0
        %964 = vmatpush.bf16.msra.mxu0 0
        %965 = vmatpush.bf16.msra.mxu0 0
        %966 = vmatpush.bf16.msra.mxu0 0
        %967 = vmatpush.bf16.msra.mxu0 0
        %968 = vmatpush.bf16.msra.mxu0 0
        %969 = vmatpush.bf16.msra.mxu0 %v896
        %970 = vmatpush.bf16.msra.mxu0 %v863
        %971 = vmatmul.bf16.gmra.mxu0 %v411
        %v972 = vpop.f32.mrf.mxu0
        %v973 = vadd.f32 0.0, %v972
        %v974 = vpop.f32.mrf.mxu0
        %v975 = vadd.f32 0.0, %v974
        %976 = vdwg.mxu0
        %977 = vmatpush.bf16.msra.mxu0 0
        %978 = vmatpush.bf16.msra.mxu0 0
        %979 = vmatpush.bf16.msra.mxu0 0
        %980 = vmatpush.bf16.msra.mxu0 0
        %981 = vmatpush.bf16.msra.mxu0 0
        %982 = vmatpush.bf16.msra.mxu0 0
        %983 = vmatpush.bf16.msra.mxu0 %v899
        %984 = vmatpush.bf16.msra.mxu0 %v864
        %985 = vmatmul.bf16.gmra.mxu0 %v411
        %v986 = vpop.f32.mrf.mxu0
        %v987 = vadd.f32 0.0, %v986
        %v988 = vpop.f32.mrf.mxu0
        %v989 = vadd.f32 0.0, %v988
        %990 = vdwg.mxu0
        %991 = vmatpush.bf16.msra.mxu0 0
        %992 = vmatpush.bf16.msra.mxu0 0
        %993 = vmatpush.bf16.msra.mxu0 0
        %994 = vmatpush.bf16.msra.mxu0 0
        %995 = vmatpush.bf16.msra.mxu0 0
        %996 = vmatpush.bf16.msra.mxu0 0
        %997 = vmatpush.bf16.msra.mxu0 %v902
        %998 = vmatpush.bf16.msra.mxu0 %v865
        %999 = vmatmul.bf16.gmra.mxu0 %v411
        %v1000 = vpop.f32.mrf.mxu0
        %v1001 = vadd.f32 0.0, %v1000
        %v1002 = vpop.f32.mrf.mxu0
        %v1003 = vadd.f32 0.0, %v1002
        %1004 = vdwg.mxu0
        %1005 = vmatpush.bf16.msra.mxu0 0
        %1006 = vmatpush.bf16.msra.mxu0 0
        %1007 = vmatpush.bf16.msra.mxu0 0
        %1008 = vmatpush.bf16.msra.mxu0 0
        %1009 = vmatpush.bf16.msra.mxu0 0
        %1010 = vmatpush.bf16.msra.mxu0 0
        %1011 = vmatpush.bf16.msra.mxu0 %v905
        %1012 = vmatpush.bf16.msra.mxu0 %v866
        %1013 = vmatmul.bf16.gmra.mxu0 %v411
        %v1014 = vpop.f32.mrf.mxu0
        %v1015 = vadd.f32 0.0, %v1014
        %v1016 = vpop.f32.mrf.mxu0
        %v1017 = vadd.f32 0.0, %v1016
        %1018 = vdwg.mxu0
        %v1019 = vmax.f32 %v778, %v917
        %v1020 = vmax.f32 %v779, %v931
        %v1021 = vmax.f32 %v780, %v945
        %v1022 = vmax.f32 %v781, %v959
        %v1023 = vmax.f32 %v782, %v973
        %v1024 = vmax.f32 %v783, %v987
        %v1025 = vmax.f32 %v784, %v1001
        %v1026 = vmax.f32 %v785, %v1015
        %v1027 = vmax.f32 %v786, %v919
        %v1028 = vmax.f32 %v787, %v933
        %v1029 = vmax.f32 %v788, %v947
        %v1030 = vmax.f32 %v789, %v961
        %v1031 = vmax.f32 %v790, %v975
        %v1032 = vmax.f32 %v791, %v989
        %v1033 = vmax.f32 %v792, %v1003
        %v1034 = vmax.f32 %v793, %v1017
        %s1035 = scalar_lea.vmem %s291, 384 [#allocation2]
        %v1036 = vld [vmem:[%s1035] sm:$0xff]
        %v1037 = vld [vmem:[%s1035 + $0x8] sm:$0xff]
        %v1038 = vld [vmem:[%s1035 + $0x10] sm:$0xff]
        %v1039 = vld [vmem:[%s1035 + $0x18] sm:$0xff]
        %v1040 = vld [vmem:[%s1035 + $0x20] sm:$0xff]
        %v1041 = vld [vmem:[%s1035 + $0x28] sm:$0xff]
        %v1042 = vld [vmem:[%s1035 + $0x30] sm:$0xff]
        %v1043 = vld [vmem:[%s1035 + $0x38] sm:$0xff]
        %v1044 = vld [vmem:[%s1035 + $0x40] sm:$0xff]
        %v1045 = vld [vmem:[%s1035 + $0x48] sm:$0xff]
        %v1046 = vld [vmem:[%s1035 + $0x50] sm:$0xff]
        %v1047 = vld [vmem:[%s1035 + $0x58] sm:$0xff]
        %v1048 = vld [vmem:[%s1035 + $0x60] sm:$0x11]
        %v1049 = vld [vmem:[%s1035 + $0x68] sm:$0x11]
        %v1050 = vld [vmem:[%s1035 + $0x70] sm:$0x11]
        %v1051 = vld [vmem:[%s1035 + $0x78] sm:$0x11]
        %v1068 = vunpack.c.l.b16 %v1036
        %v1069 = vunpack.c.h.b16 %v1036
        %v1070 = vunpack.c.l.b16 %v1037
        %v1071 = vunpack.c.h.b16 %v1037
        %v1072 = vunpack.c.l.b16 %v1038
        %v1073 = vunpack.c.h.b16 %v1038
        %v1074 = vunpack.c.l.b16 %v1039
        %v1075 = vunpack.c.h.b16 %v1039
        %v1076 = vunpack.c.l.b16 %v1040
        %v1077 = vunpack.c.h.b16 %v1040
        %v1078 = vunpack.c.l.b16 %v1041
        %v1079 = vunpack.c.h.b16 %v1041
        %v1080 = vunpack.c.l.b16 %v1042
        %v1081 = vunpack.c.h.b16 %v1042
        %v1082 = vunpack.c.l.b16 %v1043
        %v1083 = vunpack.c.h.b16 %v1043
        %v1084 = vunpack.c.l.b16 %v1044
        %v1085 = vunpack.c.h.b16 %v1044
        %v1086 = vunpack.c.l.b16 %v1045
        %v1087 = vunpack.c.h.b16 %v1045
        %v1088 = vunpack.c.l.b16 %v1046
        %v1089 = vunpack.c.h.b16 %v1046
        %v1090 = vunpack.c.l.b16 %v1047
        %v1091 = vunpack.c.h.b16 %v1047
        %v1092 = vunpack.c.l.b16 %v1048
        %v1093 = vunpack.c.h.b16 %v1048
        %v1094 = vunpack.c.l.b16 %v1049
        %v1095 = vunpack.c.h.b16 %v1049
        %v1096 = vunpack.c.l.b16 %v1050
        %v1097 = vunpack.c.h.b16 %v1050
        %v1098 = vunpack.c.l.b16 %v1051
        %v1099 = vunpack.c.h.b16 %v1051
        %v1100 = vpack.c.b16 %v1076, %v1068
        %v1101 = vpack.c.b16 %v1077, %v1069
        %v1102 = vpack.c.b16 %v1078, %v1070
        %v1103 = vpack.c.b16 %v1079, %v1071
        %v1104 = vpack.c.b16 %v1080, %v1072
        %v1105 = vpack.c.b16 %v1081, %v1073
        %v1106 = vpack.c.b16 %v1082, %v1074
        %v1107 = vpack.c.b16 %v1083, %v1075
        %v1108 = vpack.c.b16 %v1092, %v1084
        %v1109 = vpack.c.b16 %v1093, %v1085
        %v1110 = vpack.c.b16 %v1094, %v1086
        %v1111 = vpack.c.b16 %v1095, %v1087
        %v1112 = vpack.c.b16 %v1096, %v1088
        %v1113 = vpack.c.b16 %v1097, %v1089
        %v1114 = vpack.c.b16 %v1098, %v1090
        %v1115 = vpack.c.b16 %v1099, %v1091
        %v1125 = vand.u32 %v1108, %v416
        %v1128 = vand.u32 %v1109, %v416
        %v1131 = vand.u32 %v1110, %v416
        %v1134 = vand.u32 %v1111, %v416
        %v1137 = vand.u32 %v1112, %v416
        %v1140 = vand.u32 %v1113, %v416
        %v1143 = vand.u32 %v1114, %v416
        %v1146 = vand.u32 %v1115, %v416
        %1148 = vmatpush.bf16.msra.mxu0 0
        %1149 = vmatpush.bf16.msra.mxu0 0
        %1150 = vmatpush.bf16.msra.mxu0 0
        %1151 = vmatpush.bf16.msra.mxu0 0
        %1152 = vmatpush.bf16.msra.mxu0 0
        %1153 = vmatpush.bf16.msra.mxu0 0
        %1154 = vmatpush.bf16.msra.mxu0 %v1125
        %1155 = vmatpush.bf16.msra.mxu0 %v1100
        %1156 = vmatmul.bf16.gmra.mxu0 %v411
        %v1157 = vpop.f32.mrf.mxu0
        %v1158 = vadd.f32 0.0, %v1157
        %v1159 = vpop.f32.mrf.mxu0
        %v1160 = vadd.f32 0.0, %v1159
        %1161 = vdwg.mxu0
        %1162 = vmatpush.bf16.msra.mxu0 0
        %1163 = vmatpush.bf16.msra.mxu0 0
        %1164 = vmatpush.bf16.msra.mxu0 0
        %1165 = vmatpush.bf16.msra.mxu0 0
        %1166 = vmatpush.bf16.msra.mxu0 0
        %1167 = vmatpush.bf16.msra.mxu0 0
        %1168 = vmatpush.bf16.msra.mxu0 %v1128
        %1169 = vmatpush.bf16.msra.mxu0 %v1101
        %1170 = vmatmul.bf16.gmra.mxu0 %v411
        %v1171 = vpop.f32.mrf.mxu0
        %v1172 = vadd.f32 0.0, %v1171
        %v1173 = vpop.f32.mrf.mxu0
        %v1174 = vadd.f32 0.0, %v1173
        %1175 = vdwg.mxu0
        %1176 = vmatpush.bf16.msra.mxu0 0
        %1177 = vmatpush.bf16.msra.mxu0 0
        %1178 = vmatpush.bf16.msra.mxu0 0
        %1179 = vmatpush.bf16.msra.mxu0 0
        %1180 = vmatpush.bf16.msra.mxu0 0
        %1181 = vmatpush.bf16.msra.mxu0 0
        %1182 = vmatpush.bf16.msra.mxu0 %v1131
        %1183 = vmatpush.bf16.msra.mxu0 %v1102
        %1184 = vmatmul.bf16.gmra.mxu0 %v411
        %v1185 = vpop.f32.mrf.mxu0
        %v1186 = vadd.f32 0.0, %v1185
        %v1187 = vpop.f32.mrf.mxu0
        %v1188 = vadd.f32 0.0, %v1187
        %1189 = vdwg.mxu0
        %1190 = vmatpush.bf16.msra.mxu0 0
        %1191 = vmatpush.bf16.msra.mxu0 0
        %1192 = vmatpush.bf16.msra.mxu0 0
        %1193 = vmatpush.bf16.msra.mxu0 0
        %1194 = vmatpush.bf16.msra.mxu0 0
        %1195 = vmatpush.bf16.msra.mxu0 0
        %1196 = vmatpush.bf16.msra.mxu0 %v1134
        %1197 = vmatpush.bf16.msra.mxu0 %v1103
        %1198 = vmatmul.bf16.gmra.mxu0 %v411
        %v1199 = vpop.f32.mrf.mxu0
        %v1200 = vadd.f32 0.0, %v1199
        %v1201 = vpop.f32.mrf.mxu0
        %v1202 = vadd.f32 0.0, %v1201
        %1203 = vdwg.mxu0
        %1204 = vmatpush.bf16.msra.mxu0 0
        %1205 = vmatpush.bf16.msra.mxu0 0
        %1206 = vmatpush.bf16.msra.mxu0 0
        %1207 = vmatpush.bf16.msra.mxu0 0
        %1208 = vmatpush.bf16.msra.mxu0 0
        %1209 = vmatpush.bf16.msra.mxu0 0
        %1210 = vmatpush.bf16.msra.mxu0 %v1137
        %1211 = vmatpush.bf16.msra.mxu0 %v1104
        %1212 = vmatmul.bf16.gmra.mxu0 %v411
        %v1213 = vpop.f32.mrf.mxu0
        %v1214 = vadd.f32 0.0, %v1213
        %v1215 = vpop.f32.mrf.mxu0
        %v1216 = vadd.f32 0.0, %v1215
        %1217 = vdwg.mxu0
        %1218 = vmatpush.bf16.msra.mxu0 0
        %1219 = vmatpush.bf16.msra.mxu0 0
        %1220 = vmatpush.bf16.msra.mxu0 0
        %1221 = vmatpush.bf16.msra.mxu0 0
        %1222 = vmatpush.bf16.msra.mxu0 0
        %1223 = vmatpush.bf16.msra.mxu0 0
        %1224 = vmatpush.bf16.msra.mxu0 %v1140
        %1225 = vmatpush.bf16.msra.mxu0 %v1105
        %1226 = vmatmul.bf16.gmra.mxu0 %v411
        %v1227 = vpop.f32.mrf.mxu0
        %v1228 = vadd.f32 0.0, %v1227
        %v1229 = vpop.f32.mrf.mxu0
        %v1230 = vadd.f32 0.0, %v1229
        %1231 = vdwg.mxu0
        %1232 = vmatpush.bf16.msra.mxu0 0
        %1233 = vmatpush.bf16.msra.mxu0 0
        %1234 = vmatpush.bf16.msra.mxu0 0
        %1235 = vmatpush.bf16.msra.mxu0 0
        %1236 = vmatpush.bf16.msra.mxu0 0
        %1237 = vmatpush.bf16.msra.mxu0 0
        %1238 = vmatpush.bf16.msra.mxu0 %v1143
        %1239 = vmatpush.bf16.msra.mxu0 %v1106
        %1240 = vmatmul.bf16.gmra.mxu0 %v411
        %v1241 = vpop.f32.mrf.mxu0
        %v1242 = vadd.f32 0.0, %v1241
        %v1243 = vpop.f32.mrf.mxu0
        %v1244 = vadd.f32 0.0, %v1243
        %1245 = vdwg.mxu0
        %1246 = vmatpush.bf16.msra.mxu0 0
        %1247 = vmatpush.bf16.msra.mxu0 0
        %1248 = vmatpush.bf16.msra.mxu0 0
        %1249 = vmatpush.bf16.msra.mxu0 0
        %1250 = vmatpush.bf16.msra.mxu0 0
        %1251 = vmatpush.bf16.msra.mxu0 0
        %1252 = vmatpush.bf16.msra.mxu0 %v1146
        %1253 = vmatpush.bf16.msra.mxu0 %v1107
        %1254 = vmatmul.bf16.gmra.mxu0 %v411
        %v1255 = vpop.f32.mrf.mxu0
        %v1256 = vadd.f32 0.0, %v1255
        %v1257 = vpop.f32.mrf.mxu0
        %v1258 = vadd.f32 0.0, %v1257
        %1259 = vdwg.mxu0
        %v1260 = vmax.f32 %v1019, %v1158
        %v1261 = vmax.f32 %v1020, %v1172
        %v1262 = vmax.f32 %v1021, %v1186
        %v1263 = vmax.f32 %v1022, %v1200
        %v1264 = vmax.f32 %v1023, %v1214
        %v1265 = vmax.f32 %v1024, %v1228
        %v1266 = vmax.f32 %v1025, %v1242
        %v1267 = vmax.f32 %v1026, %v1256
        %v1268 = vmax.f32 %v1027, %v1160
        %v1269 = vmax.f32 %v1028, %v1174
        %v1270 = vmax.f32 %v1029, %v1188
        %v1271 = vmax.f32 %v1030, %v1202
        %v1272 = vmax.f32 %v1031, %v1216
        %v1273 = vmax.f32 %v1032, %v1230
        %v1274 = vmax.f32 %v1033, %v1244
        %v1275 = vmax.f32 %v1034, %v1258
        %v1276 = vld [vmem:[%s2] sm:$0xff]
        %v1277 = vld [vmem:[%s2 + $0x8] sm:$0xff]
        %1279 = vset.pattern.permute.xlu0 0
        %1280 = vperm.xlu0 %1279, %v1276
        %v1281 = vpop.permute.xlu0 %1280
        %1284 = vset.pattern.permute.xlu0 0
        %1285 = vperm.xlu0 %1284, %v1277
        %v1286 = vpop.permute.xlu0 %1285
        %v1288 = vadd.f32 %v1260, %v1281
        %v1289 = vadd.f32 %v1261, %v1281
        %v1290 = vadd.f32 %v1262, %v1281
        %v1291 = vadd.f32 %v1263, %v1281
        %v1292 = vadd.f32 %v1264, %v1281
        %v1293 = vadd.f32 %v1265, %v1281
        %v1294 = vadd.f32 %v1266, %v1281
        %v1295 = vadd.f32 %v1267, %v1281
        %v1296 = vadd.f32 %v1268, %v1286
        %v1297 = vadd.f32 %v1269, %v1286
        %v1298 = vadd.f32 %v1270, %v1286
        %v1299 = vadd.f32 %v1271, %v1286
        %v1300 = vadd.f32 %v1272, %v1286
        %v1301 = vadd.f32 %v1273, %v1286
        %v1302 = vadd.f32 %v1274, %v1286
        %v1303 = vadd.f32 %v1275, %v1286
        %v1304 = vmax.f32 %v1288, 0.0
        %v1305 = vmax.f32 %v1289, 0.0
        %v1306 = vmax.f32 %v1290, 0.0
        %v1307 = vmax.f32 %v1291, 0.0
        %v1308 = vmax.f32 %v1292, 0.0
        %v1309 = vmax.f32 %v1293, 0.0
        %v1310 = vmax.f32 %v1294, 0.0
        %v1311 = vmax.f32 %v1295, 0.0
        %v1312 = vmax.f32 %v1296, 0.0
        %v1313 = vmax.f32 %v1297, 0.0
        %v1314 = vmax.f32 %v1298, 0.0
        %v1315 = vmax.f32 %v1299, 0.0
        %v1316 = vmax.f32 %v1300, 0.0
        %v1317 = vmax.f32 %v1301, 0.0
        %v1318 = vmax.f32 %v1302, 0.0
        %v1319 = vmax.f32 %v1303, 0.0
        %v1320 = vpack.c.bf16 %v1305, %v1304
        %v1321 = vpack.c.bf16 %v1307, %v1306
        %v1322 = vpack.c.bf16 %v1309, %v1308
        %v1323 = vpack.c.bf16 %v1311, %v1310
        %v1324 = vpack.c.bf16 %v1313, %v1312
        %v1325 = vpack.c.bf16 %v1315, %v1314
        %v1326 = vpack.c.bf16 %v1317, %v1316
        %v1327 = vpack.c.bf16 %v1319, %v1318
        %1328 = vst [vmem:[%s310] sm:$0xff] %v1320
        %1329 = vst [vmem:[%s310 + $0x8] sm:$0xff] %v1321
        %1330 = vst [vmem:[%s310 + $0x10] sm:$0xff] %v1322
        %1331 = vst [vmem:[%s310 + $0x18] sm:$0xff] %v1323
        %1332 = vst [vmem:[%s310 + $0x20] sm:$0xff] %v1324
        %1333 = vst [vmem:[%s310 + $0x28] sm:$0xff] %v1325
        %1334 = vst [vmem:[%s310 + $0x30] sm:$0xff] %v1326
        %1335 = vst [vmem:[%s310 + $0x38] sm:$0xff] %v1327
        %s1336 = sand.u32 %s90, 1
        %s1337 = sand.u32 %s90, 1
        %s1338 = smul.addr %s1337, 64
        %s1339 = scalar_lea.vmem [#allocation3], %s1338
        // Predicated region
        $region56: #{gauge_net_forward.4} parent=50 // pred_check
          %p1340 = pneg %p100
        $region57: #{gauge_net_forward.4} parent=50 // pred_check_branch
          %1342 = sbr.rel (%p1340) target = $region59
        $region58: #{gauge_net_forward.4} parent=50 // pred_region
          %s1343 = smul.u32 8, %s14
          %s1344 = smul.addr %s1343, 4
          %s1345 = scalar_lea.vmem %s3, %s1344
          // Predicated region
          $region60: #{gauge_net_forward.4} parent=58 // pred_check
            _
          $region61: #{gauge_net_forward.4} parent=58 // pred_check_branch
            %1347 = sbr.rel (0) target = $region63
          $region62: #{gauge_net_forward.4} parent=58 // pred_region
            // Predicated region
            $region64: #{gauge_net_forward.4} parent=62 // pred_check
              _
            $region65: #{gauge_net_forward.4} parent=62 // pred_check_branch
              %1349 = sbr.rel (0) target = $region67
            $region66: #{gauge_net_forward.4} parent=62 // pred_region
              loop: start=0, step=1, limit=1
              $region68: #{gauge_net_forward.4} parent=66 // loop_pre_header
                _
              $region69: #{gauge_net_forward.4} parent=66 // loop_header
                %s1351 = sphi 0, %s1355
                %p1352 = scmp.ge.s32.totalorder %s1351, 1
                %s1356 = sphi %s1339, %s1339
                %s1357 = sphi %s1345, %s1345
              $region70: #{gauge_net_forward.4} parent=66 // loop_header_branch
                %1354 = sbr.rel (%p1352) target = $region74
              $region71: #{gauge_net_forward.4} parent=66 // loop_body
                %v1358 = vld [vmem:[%s1356] sm:$0xff]
                %1359 = vst [vmem:[%s1357] sm:$0xff] %v1358
                %v1360 = vld [vmem:[%s1356 + $0x8] sm:$0xff]
                %1361 = vst [vmem:[%s1357 + $0x8] sm:$0xff] %v1360
                %v1362 = vld [vmem:[%s1356 + $0x10] sm:$0xff]
                %1363 = vst [vmem:[%s1357 + $0x10] sm:$0xff] %v1362
                %v1364 = vld [vmem:[%s1356 + $0x18] sm:$0xff]
                %1365 = vst [vmem:[%s1357 + $0x18] sm:$0xff] %v1364
                %v1366 = vld [vmem:[%s1356 + $0x20] sm:$0xff]
                %1367 = vst [vmem:[%s1357 + $0x40] sm:$0xff] %v1366
                %v1368 = vld [vmem:[%s1356 + $0x28] sm:$0xff]
                %1369 = vst [vmem:[%s1357 + $0x48] sm:$0xff] %v1368
                %v1370 = vld [vmem:[%s1356 + $0x30] sm:$0xff]
                %1371 = vst [vmem:[%s1357 + $0x50] sm:$0xff] %v1370
                %v1372 = vld [vmem:[%s1356 + $0x38] sm:$0xff]
                %1373 = vst [vmem:[%s1357 + $0x58] sm:$0xff] %v1372
              $region72: #{gauge_net_forward.4} parent=66 // loop_footer
                %s1355 = sadd.s32 1, %s1351
              $region73: #{gauge_net_forward.4} parent=66 // loop_footer_branch
                %1350 = sbr.rel target = $region69
              $region74: #{gauge_net_forward.4} parent=66 // loop_exit
                _
            $region67: #{gauge_net_forward.4} parent=62 // pred_fallthru
              _
            // Predicated region
            $region75: #{gauge_net_forward.4} parent=62 // pred_check
              _
            $region76: #{gauge_net_forward.4} parent=62 // pred_check_branch
              %1375 = sbr.rel target = $region78
            $region77: #{gauge_net_forward.4} parent=62 // pred_region
              _
            $region78: #{gauge_net_forward.4} parent=62 // pred_fallthru
              _
          $region63: #{gauge_net_forward.4} parent=58 // pred_fallthru
            _
          %1376 = vnop
        $region59: #{gauge_net_forward.4} parent=50 // pred_fallthru
          _
      $region51: #{gauge_net_forward.4} parent=5 // pred_fallthru
        _
      %p1377 = scmp.le.s32.totalorder 2, %s9
      // Predicated region
      $region79: #{gauge_net_forward.4} parent=5 // pred_check
        %p1378 = pneg %p1377
      $region80: #{gauge_net_forward.4} parent=5 // pred_check_branch
        %1380 = sbr.rel (%p1378) target = $region82
      $region81: #{gauge_net_forward.4} parent=5 // pred_region
        %s1381 = ssub.s32 %s9, 2
        // Predicated region
        $region83: #{gauge_net_forward.4} parent=81 // pred_check
          %p1382 = pneg %p106
        $region84: #{gauge_net_forward.4} parent=81 // pred_check_branch
          %1384 = sbr.rel (%p1382) target = $region86
        $region85: #{gauge_net_forward.4} parent=81 // pred_region
          %s1385 = sand.u32 %s91, 1
          %s1386 = sand.u32 %s91, 1
          %s1387 = smul.addr %s1386, 64
          %s1388 = scalar_lea.vmem [#allocation3], %s1387
        $region86: #{gauge_net_forward.4} parent=81 // pred_fallthru
          _
      $region82: #{gauge_net_forward.4} parent=5 // pred_fallthru
        _
    $region6: #{gauge_net_forward.4} parent=1 // loop_footer
      %s13 = sadd.s32 1, %s9
    $region7: #{gauge_net_forward.4} parent=1 // loop_footer_branch
      %8 = sbr.rel target = $region3
    $region8: #{gauge_net_forward.4} parent=1 // loop_exit
      _

// kernel: gauge_net_forward.5
$region0: #{gauge_net_forward.5}
  #allocation0 [shape = 'u32[]', space=smem, size = 0x4, offset = 0x4, fixed_abs, tag = 'smem constant byte address 0x4 - core index']
  #allocation1 [shape = 'u32[72,128]{1,0:T(1,128)}', space=vmem, size = 0x9000, scoped, tag = 'internal scratch']
  %s0 = inlined_call_operand.vmem [shape: bf16[4,400,512], index: 0, kind: input, shape index: {}]
  %s1 = inlined_call_operand.vmem [shape: bf16[32,400], index: 1, kind: input, shape index: {}]
  %s2 = inlined_call_operand.vmem [shape: f32[32,1], index: 2, kind: input, shape index: {}]
  %s3 = inlined_call_operand.vmem [shape: bf16[32,512], index: 3, kind: output, shape index: {}]
  %s4 = sld [smem:[#allocation0]]
  $region117: #{gauge_net_forward.5} parent=0
    _
  %s6 = ssub.s32 1, %s4
  %s7 = scalar_select 0, %s6, %s4
  $region1: #{gauge_net_forward.5} parent=0
    #allocation2 [shape = 'u8[1638400]{0}', space=vmem, size = 0x190000, scoped, tag = 'input window, operand 0']
    #allocation3 [shape = 'u8[32768]{0}', space=vmem, size = 0x8000, scoped, tag = 'output window, operand 0']
    loop: start=0, step=1, limit=4
    $region2: #{gauge_net_forward.5} parent=1 // loop_pre_header
      _
    $region3: #{gauge_net_forward.5} parent=1 // loop_header
      %s9 = sphi 0, %s13
      %p10 = scmp.ge.s32.totalorder %s9, 4
      %s19 = sphi 0, %s21
      %s22 = sphi 0, %s19
      %s23 = sphi 0, %s22
      %s39 = sphi 0, %s23
      %s43 = sphi 0, %s43
      %s45 = sphi 0, %s43
      %s46 = sphi 0, %s45
      %s60 = sphi 0, %s46
      %s64 = sphi 0, %s64
      %s66 = sphi 0, %s64
      %s67 = sphi 0, %s66
      %s81 = sphi 0, %s67
      %s87 = sphi 0, %s89
      %s90 = sphi 0, %s87
      %s91 = sphi 0, %s90
      %s107 = sphi 0, %s91
    $region4: #{gauge_net_forward.5} parent=1 // loop_header_branch
      %12 = sbr.rel (%p10) target = $region8
    $region5: #{gauge_net_forward.5} parent=1 // loop_body
      %s14 = ssub.s32 %s9, 1
      %s15 = ssub.s32 %s9, 2
      %s16 = sadd.s32 %s9, 1
      %s17 = ssub.s32 %s9, %s16
      %p18 = scmp.eq.s32.totalorder %s17, 0
      %s20 = sadd.s32 %s19, 1
      %s21 = scalar_select %p18, %s19, %s20
      %p24 = pneg %p18
      %p25 = scmp.eq.s32.totalorder %s9, 1
      %p26 = por %p24, %p25
      %p27 = scmp.ne.s32.totalorder %s19, %s22
      %p28 = scmp.eq.s32.totalorder %s9, 0
      %p29 = por %p27, %p28
      %p30 = scmp.ne.s32.totalorder %s19, %s22
      %p31 = scmp.eq.s32.totalorder %s14, 1
      %p32 = por %p30, %p31
      %p33 = scmp.ne.s32.totalorder %s22, %s23
      %p34 = scmp.eq.s32.totalorder %s14, 0
      %p35 = por %p33, %p34
      %p36 = scmp.ne.s32.totalorder %s22, %s23
      %p37 = scmp.eq.s32.totalorder %s15, 1
      %p38 = por %p36, %p37
      %p40 = scmp.ne.s32.totalorder %s23, %s39
      %p41 = scmp.eq.s32.totalorder %s15, 0
      %p42 = por %p40, %p41
      %s44 = sadd.s32 %s43, 1
      %p47 = scmp.eq.s32.totalorder %s9, 1
      %p48 = scmp.ne.s32.totalorder %s43, %s45
      %p49 = scmp.eq.s32.totalorder %s9, 0
      %p50 = por %p48, %p49
      %p51 = scmp.ne.s32.totalorder %s43, %s45
      %p52 = scmp.eq.s32.totalorder %s14, 1
      %p53 = por %p51, %p52
      %p54 = scmp.ne.s32.totalorder %s45, %s46
      %p55 = scmp.eq.s32.totalorder %s14, 0
      %p56 = por %p54, %p55
      %p57 = scmp.ne.s32.totalorder %s45, %s46
      %p58 = scmp.eq.s32.totalorder %s15, 1
      %p59 = por %p57, %p58
      %p61 = scmp.ne.s32.totalorder %s46, %s60
      %p62 = scmp.eq.s32.totalorder %s15, 0
      %p63 = por %p61, %p62
      %s65 = sadd.s32 %s64, 1
      %p68 = scmp.eq.s32.totalorder %s9, 1
      %p69 = scmp.ne.s32.totalorder %s64, %s66
      %p70 = scmp.eq.s32.totalorder %s9, 0
      %p71 = por %p69, %p70
      %p72 = scmp.ne.s32.totalorder %s64, %s66
      %p73 = scmp.eq.s32.totalorder %s14, 1
      %p74 = por %p72, %p73
      %p75 = scmp.ne.s32.totalorder %s66, %s67
      %p76 = scmp.eq.s32.totalorder %s14, 0
      %p77 = por %p75, %p76
      %p78 = scmp.ne.s32.totalorder %s66, %s67
      %p79 = scmp.eq.s32.totalorder %s15, 1
      %p80 = por %p78, %p79
      %p82 = scmp.ne.s32.totalorder %s67, %s81
      %p83 = scmp.eq.s32.totalorder %s15, 0
      %p84 = por %p82, %p83
      %s85 = ssub.s32 %s9, %s16
      %p86 = scmp.eq.s32.totalorder %s85, 0
      %s88 = sadd.s32 %s87, 1
      %s89 = scalar_select %p86, %s87, %s88
      %p92 = pneg %p86
      %p93 = scmp.eq.s32.totalorder %s9, 1
      %p94 = por %p92, %p93
      %p95 = scmp.ne.s32.totalorder %s87, %s90
      %p96 = scmp.eq.s32.totalorder %s9, 0
      %p97 = por %p95, %p96
      %p98 = scmp.ne.s32.totalorder %s87, %s90
      %p99 = scmp.eq.s32.totalorder %s14, 1
      %p100 = por %p98, %p99
      %p101 = scmp.ne.s32.totalorder %s90, %s91
      %p102 = scmp.eq.s32.totalorder %s14, 0
      %p103 = por %p101, %p102
      %p104 = scmp.ne.s32.totalorder %s90, %s91
      %p105 = scmp.eq.s32.totalorder %s15, 1
      %p106 = por %p104, %p105
      %p108 = scmp.ne.s32.totalorder %s91, %s107
      %p109 = scmp.eq.s32.totalorder %s15, 0
      %p110 = por %p108, %p109
      %p111 = scmp.le.s32.totalorder 1, %s9
      %p112 = scmp.lt.s32.totalorder %s9, 3
      %p113 = pnand %p111, %p112
      %p114 = pneg %p113
      // Predicated region
      $region9: #{gauge_net_forward.5} parent=5 // pred_check
        _
      $region10: #{gauge_net_forward.5} parent=5 // pred_check_branch
        %116 = sbr.rel (%p113) target = $region12
      $region11: #{gauge_net_forward.5} parent=5 // pred_region
        %s117 = ssub.s32 %s9, 1
        // Predicated region
        $region13: #{gauge_net_forward.5} parent=11 // pred_check
          %p118 = pneg %p56
        $region14: #{gauge_net_forward.5} parent=11 // pred_check_branch
          %120 = sbr.rel (%p118) target = $region16
        $region15: #{gauge_net_forward.5} parent=11 // pred_region
          _
        $region16: #{gauge_net_forward.5} parent=11 // pred_fallthru
          _
        // Predicated region
        $region17: #{gauge_net_forward.5} parent=11 // pred_check
          %p121 = pneg %p77
        $region18: #{gauge_net_forward.5} parent=11 // pred_check_branch
          %123 = sbr.rel (%p121) target = $region20
        $region19: #{gauge_net_forward.5} parent=11 // pred_region
          _
        $region20: #{gauge_net_forward.5} parent=11 // pred_fallthru
          _
      $region12: #{gauge_net_forward.5} parent=5 // pred_fallthru
        _
      %p124 = scmp.lt.s32.totalorder %s9, 2
      // Predicated region
      $region21: #{gauge_net_forward.5} parent=5 // pred_check
        %p125 = pneg %p124
      $region22: #{gauge_net_forward.5} parent=5 // pred_check_branch
        %127 = sbr.rel (%p125) target = $region24
      $region23: #{gauge_net_forward.5} parent=5 // pred_region
        // Predicated region
        $region25: #{gauge_net_forward.5} parent=23 // pred_check
          %p128 = pneg %p29
        $region26: #{gauge_net_forward.5} parent=23 // pred_check_branch
          %130 = sbr.rel (%p128) target = $region28
        $region27: #{gauge_net_forward.5} parent=23 // pred_region
          %s131 = sand.u32 %s19, 1
          %s132 = sand.u32 %s19, 1
          %s133 = smul.addr %s132, 1600
          %s134 = scalar_lea.vmem [#allocation2], %s133
          %s135 = smul.u32 2, %s9
          %s136 = smul.addr %s135, 4
          %s137 = scalar_lea.vmem %s0, %s136
          // Predicated region
          $region29: #{gauge_net_forward.5} parent=27 // pred_check
            _
          $region30: #{gauge_net_forward.5} parent=27 // pred_check_branch
            %139 = sbr.rel (0) target = $region32
          $region31: #{gauge_net_forward.5} parent=27 // pred_region
            // Predicated region
            $region33: #{gauge_net_forward.5} parent=31 // pred_check
              _
            $region34: #{gauge_net_forward.5} parent=31 // pred_check_branch
              %141 = sbr.rel (0) target = $region36
            $region35: #{gauge_net_forward.5} parent=31 // pred_region
              // Predicated region
              $region48: #{gauge_net_forward.5} parent=35 // pred_check
                _
              $region49: #{gauge_net_forward.5} parent=35 // pred_check_branch
                %555 = sbr.rel (0) target = $region51
              $region50: #{gauge_net_forward.5} parent=35 // pred_region
                loop: start=0, step=1, limit=1
                $region52: #{gauge_net_forward.5} parent=50 // loop_pre_header
                  _
                $region53: #{gauge_net_forward.5} parent=50 // loop_header
                  %s557 = sphi 0, %s561
                  %p558 = scmp.ge.s32.totalorder %s557, 1
                  %s562 = sphi %s137, %s137
                  %s563 = sphi %s134, %s134
                $region54: #{gauge_net_forward.5} parent=50 // loop_header_branch
                  %560 = sbr.rel (%p558) target = $region58
                $region55: #{gauge_net_forward.5} parent=50 // loop_body
                  %v564 = vld [vmem:[%s562] sm:$0xff]
                  %565 = vst [vmem:[%s563] sm:$0xff] %v564
                  %v566 = vld [vmem:[%s562 + $0x10] sm:$0xff]
                  %567 = vst [vmem:[%s563 + $0x8] sm:$0xff] %v566
                  %v568 = vld [vmem:[%s562 + $0x20] sm:$0xff]
                  %569 = vst [vmem:[%s563 + $0x10] sm:$0xff] %v568
                  %v570 = vld [vmem:[%s562 + $0x30] sm:$0xff]
                  %571 = vst [vmem:[%s563 + $0x18] sm:$0xff] %v570
                  %v572 = vld [vmem:[%s562 + $0x40] sm:$0xff]
                  %573 = vst [vmem:[%s563 + $0x20] sm:$0xff] %v572
                  %v574 = vld [vmem:[%s562 + $0x50] sm:$0xff]
                  %575 = vst [vmem:[%s563 + $0x28] sm:$0xff] %v574
                  %v576 = vld [vmem:[%s562 + $0x60] sm:$0xff]
                  %577 = vst [vmem:[%s563 + $0x30] sm:$0xff] %v576
                  %v578 = vld [vmem:[%s562 + $0x70] sm:$0xff]
                  %579 = vst [vmem:[%s563 + $0x38] sm:$0xff] %v578
                  %v580 = vld [vmem:[%s562 + $0x80] sm:$0xff]
                  %581 = vst [vmem:[%s563 + $0x40] sm:$0xff] %v580
                  %v582 = vld [vmem:[%s562 + $0x90] sm:$0xff]
                  %583 = vst [vmem:[%s563 + $0x48] sm:$0xff] %v582
                  %v584 = vld [vmem:[%s562 + $0xa0] sm:$0xff]
                  %585 = vst [vmem:[%s563 + $0x50] sm:$0xff] %v584
                  %v586 = vld [vmem:[%s562 + $0xb0] sm:$0xff]
                  %587 = vst [vmem:[%s563 + $0x58] sm:$0xff] %v586
                  %v588 = vld [vmem:[%s562 + $0xc0] sm:$0xff]
                  %589 = vst [vmem:[%s563 + $0x60] sm:$0xff] %v588
                  %v590 = vld [vmem:[%s562 + $0xd0] sm:$0xff]
                  %591 = vst [vmem:[%s563 + $0x68] sm:$0xff] %v590
                  %v592 = vld [vmem:[%s562 + $0xe0] sm:$0xff]
                  %593 = vst [vmem:[%s563 + $0x70] sm:$0xff] %v592
                  %v594 = vld [vmem:[%s562 + $0xf0] sm:$0xff]
                  %595 = vst [vmem:[%s563 + $0x78] sm:$0xff] %v594
                  %v596 = vld [vmem:[%s562 + $0x100] sm:$0xff]
                  %597 = vst [vmem:[%s563 + $0x80] sm:$0xff] %v596
                  %v598 = vld [vmem:[%s562 + $0x110] sm:$0xff]
                  %599 = vst [vmem:[%s563 + $0x88] sm:$0xff] %v598
                  %v600 = vld [vmem:[%s562 + $0x120] sm:$0xff]
                  %601 = vst [vmem:[%s563 + $0x90] sm:$0xff] %v600
                  %v602 = vld [vmem:[%s562 + $0x130] sm:$0xff]
                  %603 = vst [vmem:[%s563 + $0x98] sm:$0xff] %v602
                  %v604 = vld [vmem:[%s562 + $0x140] sm:$0xff]
                  %605 = vst [vmem:[%s563 + $0xa0] sm:$0xff] %v604
                  %v606 = vld [vmem:[%s562 + $0x150] sm:$0xff]
                  %607 = vst [vmem:[%s563 + $0xa8] sm:$0xff] %v606
                  %v608 = vld [vmem:[%s562 + $0x160] sm:$0xff]
                  %609 = vst [vmem:[%s563 + $0xb0] sm:$0xff] %v608
                  %v610 = vld [vmem:[%s562 + $0x170] sm:$0xff]
                  %611 = vst [vmem:[%s563 + $0xb8] sm:$0xff] %v610
                  %v612 = vld [vmem:[%s562 + $0x180] sm:$0xff]
                  %613 = vst [vmem:[%s563 + $0xc0] sm:$0xff] %v612
                  %v614 = vld [vmem:[%s562 + $0x190] sm:$0xff]
                  %615 = vst [vmem:[%s563 + $0xc8] sm:$0xff] %v614
                  %v616 = vld [vmem:[%s562 + $0x1a0] sm:$0xff]
                  %617 = vst [vmem:[%s563 + $0xd0] sm:$0xff] %v616
                  %v618 = vld [vmem:[%s562 + $0x1b0] sm:$0xff]
                  %619 = vst [vmem:[%s563 + $0xd8] sm:$0xff] %v618
                  %v620 = vld [vmem:[%s562 + $0x1c0] sm:$0xff]
                  %621 = vst [vmem:[%s563 + $0xe0] sm:$0xff] %v620
                  %v622 = vld [vmem:[%s562 + $0x1d0] sm:$0xff]
                  %623 = vst [vmem:[%s563 + $0xe8] sm:$0xff] %v622
                  %v624 = vld [vmem:[%s562 + $0x1e0] sm:$0xff]
                  %625 = vst [vmem:[%s563 + $0xf0] sm:$0xff] %v624
                  %v626 = vld [vmem:[%s562 + $0x1f0] sm:$0xff]
                  %627 = vst [vmem:[%s563 + $0xf8] sm:$0xff] %v626
                  %v628 = vld [vmem:[%s562 + $0x200] sm:$0xff]
                  %629 = vst [vmem:[%s563 + $0x100] sm:$0xff] %v628
                  %v630 = vld [vmem:[%s562 + $0x210] sm:$0xff]
                  %631 = vst [vmem:[%s563 + $0x108] sm:$0xff] %v630
                  %v632 = vld [vmem:[%s562 + $0x220] sm:$0xff]
                  %633 = vst [vmem:[%s563 + $0x110] sm:$0xff] %v632
                  %v634 = vld [vmem:[%s562 + $0x230] sm:$0xff]
                  %635 = vst [vmem:[%s563 + $0x118] sm:$0xff] %v634
                  %v636 = vld [vmem:[%s562 + $0x240] sm:$0xff]
                  %637 = vst [vmem:[%s563 + $0x120] sm:$0xff] %v636
                  %v638 = vld [vmem:[%s562 + $0x250] sm:$0xff]
                  %639 = vst [vmem:[%s563 + $0x128] sm:$0xff] %v638
                  %v640 = vld [vmem:[%s562 + $0x260] sm:$0xff]
                  %641 = vst [vmem:[%s563 + $0x130] sm:$0xff] %v640
                  %v642 = vld [vmem:[%s562 + $0x270] sm:$0xff]
                  %643 = vst [vmem:[%s563 + $0x138] sm:$0xff] %v642
                  %v644 = vld [vmem:[%s562 + $0x280] sm:$0xff]
                  %645 = vst [vmem:[%s563 + $0x140] sm:$0xff] %v644
                  %v646 = vld [vmem:[%s562 + $0x290] sm:$0xff]
                  %647 = vst [vmem:[%s563 + $0x148] sm:$0xff] %v646
                  %v648 = vld [vmem:[%s562 + $0x2a0] sm:$0xff]
                  %649 = vst [vmem:[%s563 + $0x150] sm:$0xff] %v648
                  %v650 = vld [vmem:[%s562 + $0x2b0] sm:$0xff]
                  %651 = vst [vmem:[%s563 + $0x158] sm:$0xff] %v650
                  %v652 = vld [vmem:[%s562 + $0x2c0] sm:$0xff]
                  %653 = vst [vmem:[%s563 + $0x160] sm:$0xff] %v652
                  %v654 = vld [vmem:[%s562 + $0x2d0] sm:$0xff]
                  %655 = vst [vmem:[%s563 + $0x168] sm:$0xff] %v654
                  %v656 = vld [vmem:[%s562 + $0x2e0] sm:$0xff]
                  %657 = vst [vmem:[%s563 + $0x170] sm:$0xff] %v656
                  %v658 = vld [vmem:[%s562 + $0x2f0] sm:$0xff]
                  %659 = vst [vmem:[%s563 + $0x178] sm:$0xff] %v658
                  %v660 = vld [vmem:[%s562 + $0x300] sm:$0xff]
                  %661 = vst [vmem:[%s563 + $0x180] sm:$0xff] %v660
                  %v662 = vld [vmem:[%s562 + $0x310] sm:$0xff]
                  %663 = vst [vmem:[%s563 + $0x188] sm:$0xff] %v662
                  %v664 = vld [vmem:[%s562 + $0x320] sm:$0xff]
                  %665 = vst [vmem:[%s563 + $0x190] sm:$0xff] %v664
                  %v666 = vld [vmem:[%s562 + $0x330] sm:$0xff]
                  %667 = vst [vmem:[%s563 + $0x198] sm:$0xff] %v666
                  %v668 = vld [vmem:[%s562 + $0x340] sm:$0xff]
                  %669 = vst [vmem:[%s563 + $0x1a0] sm:$0xff] %v668
                  %v670 = vld [vmem:[%s562 + $0x350] sm:$0xff]
                  %671 = vst [vmem:[%s563 + $0x1a8] sm:$0xff] %v670
                  %v672 = vld [vmem:[%s562 + $0x360] sm:$0xff]
                  %673 = vst [vmem:[%s563 + $0x1b0] sm:$0xff] %v672
                  %v674 = vld [vmem:[%s562 + $0x370] sm:$0xff]
                  %675 = vst [vmem:[%s563 + $0x1b8] sm:$0xff] %v674
                  %v676 = vld [vmem:[%s562 + $0x380] sm:$0xff]
                  %677 = vst [vmem:[%s563 + $0x1c0] sm:$0xff] %v676
                  %v678 = vld [vmem:[%s562 + $0x390] sm:$0xff]
                  %679 = vst [vmem:[%s563 + $0x1c8] sm:$0xff] %v678
                  %v680 = vld [vmem:[%s562 + $0x3a0] sm:$0xff]
                  %681 = vst [vmem:[%s563 + $0x1d0] sm:$0xff] %v680
                  %v682 = vld [vmem:[%s562 + $0x3b0] sm:$0xff]
                  %683 = vst [vmem:[%s563 + $0x1d8] sm:$0xff] %v682
                  %v684 = vld [vmem:[%s562 + $0x3c0] sm:$0xff]
                  %685 = vst [vmem:[%s563 + $0x1e0] sm:$0xff] %v684
                  %v686 = vld [vmem:[%s562 + $0x3d0] sm:$0xff]
                  %687 = vst [vmem:[%s563 + $0x1e8] sm:$0xff] %v686
                  %v688 = vld [vmem:[%s562 + $0x3e0] sm:$0xff]
                  %689 = vst [vmem:[%s563 + $0x1f0] sm:$0xff] %v688
                  %v690 = vld [vmem:[%s562 + $0x3f0] sm:$0xff]
                  %691 = vst [vmem:[%s563 + $0x1f8] sm:$0xff] %v690
                  %v692 = vld [vmem:[%s562 + $0x400] sm:$0xff]
                  %693 = vst [vmem:[%s563 + $0x200] sm:$0xff] %v692
                  %v694 = vld [vmem:[%s562 + $0x410] sm:$0xff]
                  %695 = vst [vmem:[%s563 + $0x208] sm:$0xff] %v694
                  %v696 = vld [vmem:[%s562 + $0x420] sm:$0xff]
                  %697 = vst [vmem:[%s563 + $0x210] sm:$0xff] %v696
                  %v698 = vld [vmem:[%s562 + $0x430] sm:$0xff]
                  %699 = vst [vmem:[%s563 + $0x218] sm:$0xff] %v698
                  %v700 = vld [vmem:[%s562 + $0x440] sm:$0xff]
                  %701 = vst [vmem:[%s563 + $0x220] sm:$0xff] %v700
                  %v702 = vld [vmem:[%s562 + $0x450] sm:$0xff]
                  %703 = vst [vmem:[%s563 + $0x228] sm:$0xff] %v702
                  %v704 = vld [vmem:[%s562 + $0x460] sm:$0xff]
                  %705 = vst [vmem:[%s563 + $0x230] sm:$0xff] %v704
                  %v706 = vld [vmem:[%s562 + $0x470] sm:$0xff]
                  %707 = vst [vmem:[%s563 + $0x238] sm:$0xff] %v706
                  %v708 = vld [vmem:[%s562 + $0x480] sm:$0xff]
                  %709 = vst [vmem:[%s563 + $0x240] sm:$0xff] %v708
                  %v710 = vld [vmem:[%s562 + $0x490] sm:$0xff]
                  %711 = vst [vmem:[%s563 + $0x248] sm:$0xff] %v710
                  %v712 = vld [vmem:[%s562 + $0x4a0] sm:$0xff]
                  %713 = vst [vmem:[%s563 + $0x250] sm:$0xff] %v712
                  %v714 = vld [vmem:[%s562 + $0x4b0] sm:$0xff]
                  %715 = vst [vmem:[%s563 + $0x258] sm:$0xff] %v714
                  %v716 = vld [vmem:[%s562 + $0x4c0] sm:$0xff]
                  %717 = vst [vmem:[%s563 + $0x260] sm:$0xff] %v716
                  %v718 = vld [vmem:[%s562 + $0x4d0] sm:$0xff]
                  %719 = vst [vmem:[%s563 + $0x268] sm:$0xff] %v718
                  %v720 = vld [vmem:[%s562 + $0x4e0] sm:$0xff]
                  %721 = vst [vmem:[%s563 + $0x270] sm:$0xff] %v720
                  %v722 = vld [vmem:[%s562 + $0x4f0] sm:$0xff]
                  %723 = vst [vmem:[%s563 + $0x278] sm:$0xff] %v722
                  %v724 = vld [vmem:[%s562 + $0x500] sm:$0xff]
                  %725 = vst [vmem:[%s563 + $0x280] sm:$0xff] %v724
                  %v726 = vld [vmem:[%s562 + $0x510] sm:$0xff]
                  %727 = vst [vmem:[%s563 + $0x288] sm:$0xff] %v726
                  %v728 = vld [vmem:[%s562 + $0x520] sm:$0xff]
                  %729 = vst [vmem:[%s563 + $0x290] sm:$0xff] %v728
                  %v730 = vld [vmem:[%s562 + $0x530] sm:$0xff]
                  %731 = vst [vmem:[%s563 + $0x298] sm:$0xff] %v730
                  %v732 = vld [vmem:[%s562 + $0x540] sm:$0xff]
                  %733 = vst [vmem:[%s563 + $0x2a0] sm:$0xff] %v732
                  %v734 = vld [vmem:[%s562 + $0x550] sm:$0xff]
                  %735 = vst [vmem:[%s563 + $0x2a8] sm:$0xff] %v734
                  %v736 = vld [vmem:[%s562 + $0x560] sm:$0xff]
                  %737 = vst [vmem:[%s563 + $0x2b0] sm:$0xff] %v736
                  %v738 = vld [vmem:[%s562 + $0x570] sm:$0xff]
                  %739 = vst [vmem:[%s563 + $0x2b8] sm:$0xff] %v738
                  %v740 = vld [vmem:[%s562 + $0x580] sm:$0xff]
                  %741 = vst [vmem:[%s563 + $0x2c0] sm:$0xff] %v740
                  %v742 = vld [vmem:[%s562 + $0x590] sm:$0xff]
                  %743 = vst [vmem:[%s563 + $0x2c8] sm:$0xff] %v742
                  %v744 = vld [vmem:[%s562 + $0x5a0] sm:$0xff]
                  %745 = vst [vmem:[%s563 + $0x2d0] sm:$0xff] %v744
                  %v746 = vld [vmem:[%s562 + $0x5b0] sm:$0xff]
                  %747 = vst [vmem:[%s563 + $0x2d8] sm:$0xff] %v746
                  %v748 = vld [vmem:[%s562 + $0x5c0] sm:$0xff]
                  %749 = vst [vmem:[%s563 + $0x2e0] sm:$0xff] %v748
                  %v750 = vld [vmem:[%s562 + $0x5d0] sm:$0xff]
                  %751 = vst [vmem:[%s563 + $0x2e8] sm:$0xff] %v750
                  %v752 = vld [vmem:[%s562 + $0x5e0] sm:$0xff]
                  %753 = vst [vmem:[%s563 + $0x2f0] sm:$0xff] %v752
                  %v754 = vld [vmem:[%s562 + $0x5f0] sm:$0xff]
                  %755 = vst [vmem:[%s563 + $0x2f8] sm:$0xff] %v754
                  %v756 = vld [vmem:[%s562 + $0x600] sm:$0xff]
                  %757 = vst [vmem:[%s563 + $0x300] sm:$0xff] %v756
                  %v758 = vld [vmem:[%s562 + $0x610] sm:$0xff]
                  %759 = vst [vmem:[%s563 + $0x308] sm:$0xff] %v758
                  %v760 = vld [vmem:[%s562 + $0x620] sm:$0xff]
                  %761 = vst [vmem:[%s563 + $0x310] sm:$0xff] %v760
                  %v762 = vld [vmem:[%s562 + $0x630] sm:$0xff]
                  %763 = vst [vmem:[%s563 + $0x318] sm:$0xff] %v762
                  %v764 = vld [vmem:[%s562 + $0x640] sm:$0xff]
                  %765 = vst [vmem:[%s563 + $0x320] sm:$0xff] %v764
                  %v766 = vld [vmem:[%s562 + $0x650] sm:$0xff]
                  %767 = vst [vmem:[%s563 + $0x328] sm:$0xff] %v766
                  %v768 = vld [vmem:[%s562 + $0x660] sm:$0xff]
                  %769 = vst [vmem:[%s563 + $0x330] sm:$0xff] %v768
                  %v770 = vld [vmem:[%s562 + $0x670] sm:$0xff]
                  %771 = vst [vmem:[%s563 + $0x338] sm:$0xff] %v770
                  %v772 = vld [vmem:[%s562 + $0x680] sm:$0xff]
                  %773 = vst [vmem:[%s563 + $0x340] sm:$0xff] %v772
                  %v774 = vld [vmem:[%s562 + $0x690] sm:$0xff]
                  %775 = vst [vmem:[%s563 + $0x348] sm:$0xff] %v774
                  %v776 = vld [vmem:[%s562 + $0x6a0] sm:$0xff]
                  %777 = vst [vmem:[%s563 + $0x350] sm:$0xff] %v776
                  %v778 = vld [vmem:[%s562 + $0x6b0] sm:$0xff]
                  %779 = vst [vmem:[%s563 + $0x358] sm:$0xff] %v778
                  %v780 = vld [vmem:[%s562 + $0x6c0] sm:$0xff]
                  %781 = vst [vmem:[%s563 + $0x360] sm:$0xff] %v780
                  %v782 = vld [vmem:[%s562 + $0x6d0] sm:$0xff]
                  %783 = vst [vmem:[%s563 + $0x368] sm:$0xff] %v782
                  %v784 = vld [vmem:[%s562 + $0x6e0] sm:$0xff]
                  %785 = vst [vmem:[%s563 + $0x370] sm:$0xff] %v784
                  %v786 = vld [vmem:[%s562 + $0x6f0] sm:$0xff]
                  %787 = vst [vmem:[%s563 + $0x378] sm:$0xff] %v786
                  %v788 = vld [vmem:[%s562 + $0x700] sm:$0xff]
                  %789 = vst [vmem:[%s563 + $0x380] sm:$0xff] %v788
                  %v790 = vld [vmem:[%s562 + $0x710] sm:$0xff]
                  %791 = vst [vmem:[%s563 + $0x388] sm:$0xff] %v790
                  %v792 = vld [vmem:[%s562 + $0x720] sm:$0xff]
                  %793 = vst [vmem:[%s563 + $0x390] sm:$0xff] %v792
                  %v794 = vld [vmem:[%s562 + $0x730] sm:$0xff]
                  %795 = vst [vmem:[%s563 + $0x398] sm:$0xff] %v794
                  %v796 = vld [vmem:[%s562 + $0x740] sm:$0xff]
                  %797 = vst [vmem:[%s563 + $0x3a0] sm:$0xff] %v796
                  %v798 = vld [vmem:[%s562 + $0x750] sm:$0xff]
                  %799 = vst [vmem:[%s563 + $0x3a8] sm:$0xff] %v798
                  %v800 = vld [vmem:[%s562 + $0x760] sm:$0xff]
                  %801 = vst [vmem:[%s563 + $0x3b0] sm:$0xff] %v800
                  %v802 = vld [vmem:[%s562 + $0x770] sm:$0xff]
                  %803 = vst [vmem:[%s563 + $0x3b8] sm:$0xff] %v802
                  %v804 = vld [vmem:[%s562 + $0x780] sm:$0xff]
                  %805 = vst [vmem:[%s563 + $0x3c0] sm:$0xff] %v804
                  %v806 = vld [vmem:[%s562 + $0x790] sm:$0xff]
                  %807 = vst [vmem:[%s563 + $0x3c8] sm:$0xff] %v806
                  %v808 = vld [vmem:[%s562 + $0x7a0] sm:$0xff]
                  %809 = vst [vmem:[%s563 + $0x3d0] sm:$0xff] %v808
                  %v810 = vld [vmem:[%s562 + $0x7b0] sm:$0xff]
                  %811 = vst [vmem:[%s563 + $0x3d8] sm:$0xff] %v810
                  %v812 = vld [vmem:[%s562 + $0x7c0] sm:$0xff]
                  %813 = vst [vmem:[%s563 + $0x3e0] sm:$0xff] %v812
                  %v814 = vld [vmem:[%s562 + $0x7d0] sm:$0xff]
                  %815 = vst [vmem:[%s563 + $0x3e8] sm:$0xff] %v814
                  %v816 = vld [vmem:[%s562 + $0x7e0] sm:$0xff]
                  %817 = vst [vmem:[%s563 + $0x3f0] sm:$0xff] %v816
                  %v818 = vld [vmem:[%s562 + $0x7f0] sm:$0xff]
                  %819 = vst [vmem:[%s563 + $0x3f8] sm:$0xff] %v818
                  %v820 = vld [vmem:[%s562 + $0x800] sm:$0xff]
                  %821 = vst [vmem:[%s563 + $0x400] sm:$0xff] %v820
                  %v822 = vld [vmem:[%s562 + $0x810] sm:$0xff]
                  %823 = vst [vmem:[%s563 + $0x408] sm:$0xff] %v822
                  %v824 = vld [vmem:[%s562 + $0x820] sm:$0xff]
                  %825 = vst [vmem:[%s563 + $0x410] sm:$0xff] %v824
                  %v826 = vld [vmem:[%s562 + $0x830] sm:$0xff]
                  %827 = vst [vmem:[%s563 + $0x418] sm:$0xff] %v826
                  %v828 = vld [vmem:[%s562 + $0x840] sm:$0xff]
                  %829 = vst [vmem:[%s563 + $0x420] sm:$0xff] %v828
                  %v830 = vld [vmem:[%s562 + $0x850] sm:$0xff]
                  %831 = vst [vmem:[%s563 + $0x428] sm:$0xff] %v830
                  %v832 = vld [vmem:[%s562 + $0x860] sm:$0xff]
                  %833 = vst [vmem:[%s563 + $0x430] sm:$0xff] %v832
                  %v834 = vld [vmem:[%s562 + $0x870] sm:$0xff]
                  %835 = vst [vmem:[%s563 + $0x438] sm:$0xff] %v834
                  %v836 = vld [vmem:[%s562 + $0x880] sm:$0xff]
                  %837 = vst [vmem:[%s563 + $0x440] sm:$0xff] %v836
                  %v838 = vld [vmem:[%s562 + $0x890] sm:$0xff]
                  %839 = vst [vmem:[%s563 + $0x448] sm:$0xff] %v838
                  %v840 = vld [vmem:[%s562 + $0x8a0] sm:$0xff]
                  %841 = vst [vmem:[%s563 + $0x450] sm:$0xff] %v840
                  %v842 = vld [vmem:[%s562 + $0x8b0] sm:$0xff]
                  %843 = vst [vmem:[%s563 + $0x458] sm:$0xff] %v842
                  %v844 = vld [vmem:[%s562 + $0x8c0] sm:$0xff]
                  %845 = vst [vmem:[%s563 + $0x460] sm:$0xff] %v844
                  %v846 = vld [vmem:[%s562 + $0x8d0] sm:$0xff]
                  %847 = vst [vmem:[%s563 + $0x468] sm:$0xff] %v846
                  %v848 = vld [vmem:[%s562 + $0x8e0] sm:$0xff]
                  %849 = vst [vmem:[%s563 + $0x470] sm:$0xff] %v848
                  %v850 = vld [vmem:[%s562 + $0x8f0] sm:$0xff]
                  %851 = vst [vmem:[%s563 + $0x478] sm:$0xff] %v850
                  %v852 = vld [vmem:[%s562 + $0x900] sm:$0xff]
                  %853 = vst [vmem:[%s563 + $0x480] sm:$0xff] %v852
                  %v854 = vld [vmem:[%s562 + $0x910] sm:$0xff]
                  %855 = vst [vmem:[%s563 + $0x488] sm:$0xff] %v854
                  %v856 = vld [vmem:[%s562 + $0x920] sm:$0xff]
                  %857 = vst [vmem:[%s563 + $0x490] sm:$0xff] %v856
                  %v858 = vld [vmem:[%s562 + $0x930] sm:$0xff]
                  %859 = vst [vmem:[%s563 + $0x498] sm:$0xff] %v858
                  %v860 = vld [vmem:[%s562 + $0x940] sm:$0xff]
                  %861 = vst [vmem:[%s563 + $0x4a0] sm:$0xff] %v860
                  %v862 = vld [vmem:[%s562 + $0x950] sm:$0xff]
                  %863 = vst [vmem:[%s563 + $0x4a8] sm:$0xff] %v862
                  %v864 = vld [vmem:[%s562 + $0x960] sm:$0xff]
                  %865 = vst [vmem:[%s563 + $0x4b0] sm:$0xff] %v864
                  %v866 = vld [vmem:[%s562 + $0x970] sm:$0xff]
                  %867 = vst [vmem:[%s563 + $0x4b8] sm:$0xff] %v866
                  %v868 = vld [vmem:[%s562 + $0x980] sm:$0xff]
                  %869 = vst [vmem:[%s563 + $0x4c0] sm:$0xff] %v868
                  %v870 = vld [vmem:[%s562 + $0x990] sm:$0xff]
                  %871 = vst [vmem:[%s563 + $0x4c8] sm:$0xff] %v870
                  %v872 = vld [vmem:[%s562 + $0x9a0] sm:$0xff]
                  %873 = vst [vmem:[%s563 + $0x4d0] sm:$0xff] %v872
                  %v874 = vld [vmem:[%s562 + $0x9b0] sm:$0xff]
                  %875 = vst [vmem:[%s563 + $0x4d8] sm:$0xff] %v874
                  %v876 = vld [vmem:[%s562 + $0x9c0] sm:$0xff]
                  %877 = vst [vmem:[%s563 + $0x4e0] sm:$0xff] %v876
                  %v878 = vld [vmem:[%s562 + $0x9d0] sm:$0xff]
                  %879 = vst [vmem:[%s563 + $0x4e8] sm:$0xff] %v878
                  %v880 = vld [vmem:[%s562 + $0x9e0] sm:$0xff]
                  %881 = vst [vmem:[%s563 + $0x4f0] sm:$0xff] %v880
                  %v882 = vld [vmem:[%s562 + $0x9f0] sm:$0xff]
                  %883 = vst [vmem:[%s563 + $0x4f8] sm:$0xff] %v882
                  %v884 = vld [vmem:[%s562 + $0xa00] sm:$0xff]
                  %885 = vst [vmem:[%s563 + $0x500] sm:$0xff] %v884
                  %v886 = vld [vmem:[%s562 + $0xa10] sm:$0xff]
                  %887 = vst [vmem:[%s563 + $0x508] sm:$0xff] %v886
                  %v888 = vld [vmem:[%s562 + $0xa20] sm:$0xff]
                  %889 = vst [vmem:[%s563 + $0x510] sm:$0xff] %v888
                  %v890 = vld [vmem:[%s562 + $0xa30] sm:$0xff]
                  %891 = vst [vmem:[%s563 + $0x518] sm:$0xff] %v890
                  %v892 = vld [vmem:[%s562 + $0xa40] sm:$0xff]
                  %893 = vst [vmem:[%s563 + $0x520] sm:$0xff] %v892
                  %v894 = vld [vmem:[%s562 + $0xa50] sm:$0xff]
                  %895 = vst [vmem:[%s563 + $0x528] sm:$0xff] %v894
                  %v896 = vld [vmem:[%s562 + $0xa60] sm:$0xff]
                  %897 = vst [vmem:[%s563 + $0x530] sm:$0xff] %v896
                  %v898 = vld [vmem:[%s562 + $0xa70] sm:$0xff]
                  %899 = vst [vmem:[%s563 + $0x538] sm:$0xff] %v898
                  %v900 = vld [vmem:[%s562 + $0xa80] sm:$0xff]
                  %901 = vst [vmem:[%s563 + $0x540] sm:$0xff] %v900
                  %v902 = vld [vmem:[%s562 + $0xa90] sm:$0xff]
                  %903 = vst [vmem:[%s563 + $0x548] sm:$0xff] %v902
                  %v904 = vld [vmem:[%s562 + $0xaa0] sm:$0xff]
                  %905 = vst [vmem:[%s563 + $0x550] sm:$0xff] %v904
                  %v906 = vld [vmem:[%s562 + $0xab0] sm:$0xff]
                  %907 = vst [vmem:[%s563 + $0x558] sm:$0xff] %v906
                  %v908 = vld [vmem:[%s562 + $0xac0] sm:$0xff]
                  %909 = vst [vmem:[%s563 + $0x560] sm:$0xff] %v908
                  %v910 = vld [vmem:[%s562 + $0xad0] sm:$0xff]
                  %911 = vst [vmem:[%s563 + $0x568] sm:$0xff] %v910
                  %v912 = vld [vmem:[%s562 + $0xae0] sm:$0xff]
                  %913 = vst [vmem:[%s563 + $0x570] sm:$0xff] %v912
                  %v914 = vld [vmem:[%s562 + $0xaf0] sm:$0xff]
                  %915 = vst [vmem:[%s563 + $0x578] sm:$0xff] %v914
                  %v916 = vld [vmem:[%s562 + $0xb00] sm:$0xff]
                  %917 = vst [vmem:[%s563 + $0x580] sm:$0xff] %v916
                  %v918 = vld [vmem:[%s562 + $0xb10] sm:$0xff]
                  %919 = vst [vmem:[%s563 + $0x588] sm:$0xff] %v918
                  %v920 = vld [vmem:[%s562 + $0xb20] sm:$0xff]
                  %921 = vst [vmem:[%s563 + $0x590] sm:$0xff] %v920
                  %v922 = vld [vmem:[%s562 + $0xb30] sm:$0xff]
                  %923 = vst [vmem:[%s563 + $0x598] sm:$0xff] %v922
                  %v924 = vld [vmem:[%s562 + $0xb40] sm:$0xff]
                  %925 = vst [vmem:[%s563 + $0x5a0] sm:$0xff] %v924
                  %v926 = vld [vmem:[%s562 + $0xb50] sm:$0xff]
                  %927 = vst [vmem:[%s563 + $0x5a8] sm:$0xff] %v926
                  %v928 = vld [vmem:[%s562 + $0xb60] sm:$0xff]
                  %929 = vst [vmem:[%s563 + $0x5b0] sm:$0xff] %v928
                  %v930 = vld [vmem:[%s562 + $0xb70] sm:$0xff]
                  %931 = vst [vmem:[%s563 + $0x5b8] sm:$0xff] %v930
                  %v932 = vld [vmem:[%s562 + $0xb80] sm:$0xff]
                  %933 = vst [vmem:[%s563 + $0x5c0] sm:$0xff] %v932
                  %v934 = vld [vmem:[%s562 + $0xb90] sm:$0xff]
                  %935 = vst [vmem:[%s563 + $0x5c8] sm:$0xff] %v934
                  %v936 = vld [vmem:[%s562 + $0xba0] sm:$0xff]
                  %937 = vst [vmem:[%s563 + $0x5d0] sm:$0xff] %v936
                  %v938 = vld [vmem:[%s562 + $0xbb0] sm:$0xff]
                  %939 = vst [vmem:[%s563 + $0x5d8] sm:$0xff] %v938
                  %v940 = vld [vmem:[%s562 + $0xbc0] sm:$0xff]
                  %941 = vst [vmem:[%s563 + $0x5e0] sm:$0xff] %v940
                  %v942 = vld [vmem:[%s562 + $0xbd0] sm:$0xff]
                  %943 = vst [vmem:[%s563 + $0x5e8] sm:$0xff] %v942
                  %v944 = vld [vmem:[%s562 + $0xbe0] sm:$0xff]
                  %945 = vst [vmem:[%s563 + $0x5f0] sm:$0xff] %v944
                  %v946 = vld [vmem:[%s562 + $0xbf0] sm:$0xff]
                  %947 = vst [vmem:[%s563 + $0x5f8] sm:$0xff] %v946
                  %v948 = vld [vmem:[%s562 + $0xc00] sm:$0xff]
                  %949 = vst [vmem:[%s563 + $0x600] sm:$0xff] %v948
                  %v950 = vld [vmem:[%s562 + $0xc10] sm:$0xff]
                  %951 = vst [vmem:[%s563 + $0x608] sm:$0xff] %v950
                  %v952 = vld [vmem:[%s562 + $0xc20] sm:$0xff]
                  %953 = vst [vmem:[%s563 + $0x610] sm:$0xff] %v952
                  %v954 = vld [vmem:[%s562 + $0xc30] sm:$0xff]
                  %955 = vst [vmem:[%s563 + $0x618] sm:$0xff] %v954
                  %v956 = vld [vmem:[%s562 + $0xc40] sm:$0xff]
                  %957 = vst [vmem:[%s563 + $0x620] sm:$0xff] %v956
                  %v958 = vld [vmem:[%s562 + $0xc50] sm:$0xff]
                  %959 = vst [vmem:[%s563 + $0x628] sm:$0xff] %v958
                  %v960 = vld [vmem:[%s562 + $0xc60] sm:$0xff]
                  %961 = vst [vmem:[%s563 + $0x630] sm:$0xff] %v960
                  %v962 = vld [vmem:[%s562 + $0xc70] sm:$0xff]
                  %963 = vst [vmem:[%s563 + $0x638] sm:$0xff] %v962
                $region56: #{gauge_net_forward.5} parent=50 // loop_footer
                  %s561 = sadd.s32 1, %s557
                $region57: #{gauge_net_forward.5} parent=50 // loop_footer_branch
                  %556 = sbr.rel target = $region53
                $region58: #{gauge_net_forward.5} parent=50 // loop_exit
                  _
              $region51: #{gauge_net_forward.5} parent=35 // pred_fallthru
                _
              // Predicated region
              $region59: #{gauge_net_forward.5} parent=35 // pred_check
                _
              $region60: #{gauge_net_forward.5} parent=35 // pred_check_branch
                %965 = sbr.rel target = $region62
              $region61: #{gauge_net_forward.5} parent=35 // pred_region
                _
              $region62: #{gauge_net_forward.5} parent=35 // pred_fallthru
                _
            $region36: #{gauge_net_forward.5} parent=31 // pred_fallthru
              _
            // Predicated region
            $region37: #{gauge_net_forward.5} parent=31 // pred_check
              _
            $region38: #{gauge_net_forward.5} parent=31 // pred_check_branch
              %143 = sbr.rel target = $region40
            $region39: #{gauge_net_forward.5} parent=31 // pred_region
              %s145 = ssub.s32 256, 1
              loop: start=0, step=1, limit=1
              $region41: #{gauge_net_forward.5} parent=39 // loop_pre_header
                _
              $region42: #{gauge_net_forward.5} parent=39 // loop_header
                %s147 = sphi 0, %s151
                %p148 = scmp.ge.s32.totalorder %s147, 1
                %s152 = sphi %s137, %s137
                %s153 = sphi %s134, %s134
              $region43: #{gauge_net_forward.5} parent=39 // loop_header_branch
                %150 = sbr.rel (%p148) target = $region47
              $region44: #{gauge_net_forward.5} parent=39 // loop_body
                %v154 = vld [vmem:[%s152] sm:%s145]
                %155 = vst [vmem:[%s153] sm:%s145] %v154
                %v156 = vld [vmem:[%s152 + $0x10] sm:%s145]
                %157 = vst [vmem:[%s153 + $0x8] sm:%s145] %v156
                %v158 = vld [vmem:[%s152 + $0x20] sm:%s145]
                %159 = vst [vmem:[%s153 + $0x10] sm:%s145] %v158
                %v160 = vld [vmem:[%s152 + $0x30] sm:%s145]
                %161 = vst [vmem:[%s153 + $0x18] sm:%s145] %v160
                %v162 = vld [vmem:[%s152 + $0x40] sm:%s145]
                %163 = vst [vmem:[%s153 + $0x20] sm:%s145] %v162
                %v164 = vld [vmem:[%s152 + $0x50] sm:%s145]
                %165 = vst [vmem:[%s153 + $0x28] sm:%s145] %v164
                %v166 = vld [vmem:[%s152 + $0x60] sm:%s145]
                %167 = vst [vmem:[%s153 + $0x30] sm:%s145] %v166
                %v168 = vld [vmem:[%s152 + $0x70] sm:%s145]
                %169 = vst [vmem:[%s153 + $0x38] sm:%s145] %v168
                %v170 = vld [vmem:[%s152 + $0x80] sm:%s145]
                %171 = vst [vmem:[%s153 + $0x40] sm:%s145] %v170
                %v172 = vld [vmem:[%s152 + $0x90] sm:%s145]
                %173 = vst [vmem:[%s153 + $0x48] sm:%s145] %v172
                %v174 = vld [vmem:[%s152 + $0xa0] sm:%s145]
                %175 = vst [vmem:[%s153 + $0x50] sm:%s145] %v174
                %v176 = vld [vmem:[%s152 + $0xb0] sm:%s145]
                %177 = vst [vmem:[%s153 + $0x58] sm:%s145] %v176
                %v178 = vld [vmem:[%s152 + $0xc0] sm:%s145]
                %179 = vst [vmem:[%s153 + $0x60] sm:%s145] %v178
                %v180 = vld [vmem:[%s152 + $0xd0] sm:%s145]
                %181 = vst [vmem:[%s153 + $0x68] sm:%s145] %v180
                %v182 = vld [vmem:[%s152 + $0xe0] sm:%s145]
                %183 = vst [vmem:[%s153 + $0x70] sm:%s145] %v182
                %v184 = vld [vmem:[%s152 + $0xf0] sm:%s145]
                %185 = vst [vmem:[%s153 + $0x78] sm:%s145] %v184
                %v186 = vld [vmem:[%s152 + $0x100] sm:%s145]
                %187 = vst [vmem:[%s153 + $0x80] sm:%s145] %v186
                %v188 = vld [vmem:[%s152 + $0x110] sm:%s145]
                %189 = vst [vmem:[%s153 + $0x88] sm:%s145] %v188
                %v190 = vld [vmem:[%s152 + $0x120] sm:%s145]
                %191 = vst [vmem:[%s153 + $0x90] sm:%s145] %v190
                %v192 = vld [vmem:[%s152 + $0x130] sm:%s145]
                %193 = vst [vmem:[%s153 + $0x98] sm:%s145] %v192
                %v194 = vld [vmem:[%s152 + $0x140] sm:%s145]
                %195 = vst [vmem:[%s153 + $0xa0] sm:%s145] %v194
                %v196 = vld [vmem:[%s152 + $0x150] sm:%s145]
                %197 = vst [vmem:[%s153 + $0xa8] sm:%s145] %v196
                %v198 = vld [vmem:[%s152 + $0x160] sm:%s145]
                %199 = vst [vmem:[%s153 + $0xb0] sm:%s145] %v198
                %v200 = vld [vmem:[%s152 + $0x170] sm:%s145]
                %201 = vst [vmem:[%s153 + $0xb8] sm:%s145] %v200
                %v202 = vld [vmem:[%s152 + $0x180] sm:%s145]
                %203 = vst [vmem:[%s153 + $0xc0] sm:%s145] %v202
                %v204 = vld [vmem:[%s152 + $0x190] sm:%s145]
                %205 = vst [vmem:[%s153 + $0xc8] sm:%s145] %v204
                %v206 = vld [vmem:[%s152 + $0x1a0] sm:%s145]
                %207 = vst [vmem:[%s153 + $0xd0] sm:%s145] %v206
                %v208 = vld [vmem:[%s152 + $0x1b0] sm:%s145]
                %209 = vst [vmem:[%s153 + $0xd8] sm:%s145] %v208
                %v210 = vld [vmem:[%s152 + $0x1c0] sm:%s145]
                %211 = vst [vmem:[%s153 + $0xe0] sm:%s145] %v210
                %v212 = vld [vmem:[%s152 + $0x1d0] sm:%s145]
                %213 = vst [vmem:[%s153 + $0xe8] sm:%s145] %v212
                %v214 = vld [vmem:[%s152 + $0x1e0] sm:%s145]
                %215 = vst [vmem:[%s153 + $0xf0] sm:%s145] %v214
                %v216 = vld [vmem:[%s152 + $0x1f0] sm:%s145]
                %217 = vst [vmem:[%s153 + $0xf8] sm:%s145] %v216
                %v218 = vld [vmem:[%s152 + $0x200] sm:%s145]
                %219 = vst [vmem:[%s153 + $0x100] sm:%s145] %v218
                %v220 = vld [vmem:[%s152 + $0x210] sm:%s145]
                %221 = vst [vmem:[%s153 + $0x108] sm:%s145] %v220
                %v222 = vld [vmem:[%s152 + $0x220] sm:%s145]
                %223 = vst [vmem:[%s153 + $0x110] sm:%s145] %v222
                %v224 = vld [vmem:[%s152 + $0x230] sm:%s145]
                %225 = vst [vmem:[%s153 + $0x118] sm:%s145] %v224
                %v226 = vld [vmem:[%s152 + $0x240] sm:%s145]
                %227 = vst [vmem:[%s153 + $0x120] sm:%s145] %v226
                %v228 = vld [vmem:[%s152 + $0x250] sm:%s145]
                %229 = vst [vmem:[%s153 + $0x128] sm:%s145] %v228
                %v230 = vld [vmem:[%s152 + $0x260] sm:%s145]
                %231 = vst [vmem:[%s153 + $0x130] sm:%s145] %v230
                %v232 = vld [vmem:[%s152 + $0x270] sm:%s145]
                %233 = vst [vmem:[%s153 + $0x138] sm:%s145] %v232
                %v234 = vld [vmem:[%s152 + $0x280] sm:%s145]
                %235 = vst [vmem:[%s153 + $0x140] sm:%s145] %v234
                %v236 = vld [vmem:[%s152 + $0x290] sm:%s145]
                %237 = vst [vmem:[%s153 + $0x148] sm:%s145] %v236
                %v238 = vld [vmem:[%s152 + $0x2a0] sm:%s145]
                %239 = vst [vmem:[%s153 + $0x150] sm:%s145] %v238
                %v240 = vld [vmem:[%s152 + $0x2b0] sm:%s145]
                %241 = vst [vmem:[%s153 + $0x158] sm:%s145] %v240
                %v242 = vld [vmem:[%s152 + $0x2c0] sm:%s145]
                %243 = vst [vmem:[%s153 + $0x160] sm:%s145] %v242
                %v244 = vld [vmem:[%s152 + $0x2d0] sm:%s145]
                %245 = vst [vmem:[%s153 + $0x168] sm:%s145] %v244
                %v246 = vld [vmem:[%s152 + $0x2e0] sm:%s145]
                %247 = vst [vmem:[%s153 + $0x170] sm:%s145] %v246
                %v248 = vld [vmem:[%s152 + $0x2f0] sm:%s145]
                %249 = vst [vmem:[%s153 + $0x178] sm:%s145] %v248
                %v250 = vld [vmem:[%s152 + $0x300] sm:%s145]
                %251 = vst [vmem:[%s153 + $0x180] sm:%s145] %v250
                %v252 = vld [vmem:[%s152 + $0x310] sm:%s145]
                %253 = vst [vmem:[%s153 + $0x188] sm:%s145] %v252
                %v254 = vld [vmem:[%s152 + $0x320] sm:%s145]
                %255 = vst [vmem:[%s153 + $0x190] sm:%s145] %v254
                %v256 = vld [vmem:[%s152 + $0x330] sm:%s145]
                %257 = vst [vmem:[%s153 + $0x198] sm:%s145] %v256
                %v258 = vld [vmem:[%s152 + $0x340] sm:%s145]
                %259 = vst [vmem:[%s153 + $0x1a0] sm:%s145] %v258
                %v260 = vld [vmem:[%s152 + $0x350] sm:%s145]
                %261 = vst [vmem:[%s153 + $0x1a8] sm:%s145] %v260
                %v262 = vld [vmem:[%s152 + $0x360] sm:%s145]
                %263 = vst [vmem:[%s153 + $0x1b0] sm:%s145] %v262
                %v264 = vld [vmem:[%s152 + $0x370] sm:%s145]
                %265 = vst [vmem:[%s153 + $0x1b8] sm:%s145] %v264
                %v266 = vld [vmem:[%s152 + $0x380] sm:%s145]
                %267 = vst [vmem:[%s153 + $0x1c0] sm:%s145] %v266
                %v268 = vld [vmem:[%s152 + $0x390] sm:%s145]
                %269 = vst [vmem:[%s153 + $0x1c8] sm:%s145] %v268
                %v270 = vld [vmem:[%s152 + $0x3a0] sm:%s145]
                %271 = vst [vmem:[%s153 + $0x1d0] sm:%s145] %v270
                %v272 = vld [vmem:[%s152 + $0x3b0] sm:%s145]
                %273 = vst [vmem:[%s153 + $0x1d8] sm:%s145] %v272
                %v274 = vld [vmem:[%s152 + $0x3c0] sm:%s145]
                %275 = vst [vmem:[%s153 + $0x1e0] sm:%s145] %v274
                %v276 = vld [vmem:[%s152 + $0x3d0] sm:%s145]
                %277 = vst [vmem:[%s153 + $0x1e8] sm:%s145] %v276
                %v278 = vld [vmem:[%s152 + $0x3e0] sm:%s145]
                %279 = vst [vmem:[%s153 + $0x1f0] sm:%s145] %v278
                %v280 = vld [vmem:[%s152 + $0x3f0] sm:%s145]
                %281 = vst [vmem:[%s153 + $0x1f8] sm:%s145] %v280
                %v282 = vld [vmem:[%s152 + $0x400] sm:%s145]
                %283 = vst [vmem:[%s153 + $0x200] sm:%s145] %v282
                %v284 = vld [vmem:[%s152 + $0x410] sm:%s145]
                %285 = vst [vmem:[%s153 + $0x208] sm:%s145] %v284
                %v286 = vld [vmem:[%s152 + $0x420] sm:%s145]
                %287 = vst [vmem:[%s153 + $0x210] sm:%s145] %v286
                %v288 = vld [vmem:[%s152 + $0x430] sm:%s145]
                %289 = vst [vmem:[%s153 + $0x218] sm:%s145] %v288
                %v290 = vld [vmem:[%s152 + $0x440] sm:%s145]
                %291 = vst [vmem:[%s153 + $0x220] sm:%s145] %v290
                %v292 = vld [vmem:[%s152 + $0x450] sm:%s145]
                %293 = vst [vmem:[%s153 + $0x228] sm:%s145] %v292
                %v294 = vld [vmem:[%s152 + $0x460] sm:%s145]
                %295 = vst [vmem:[%s153 + $0x230] sm:%s145] %v294
                %v296 = vld [vmem:[%s152 + $0x470] sm:%s145]
                %297 = vst [vmem:[%s153 + $0x238] sm:%s145] %v296
                %v298 = vld [vmem:[%s152 + $0x480] sm:%s145]
                %299 = vst [vmem:[%s153 + $0x240] sm:%s145] %v298
                %v300 = vld [vmem:[%s152 + $0x490] sm:%s145]
                %301 = vst [vmem:[%s153 + $0x248] sm:%s145] %v300
                %v302 = vld [vmem:[%s152 + $0x4a0] sm:%s145]
                %303 = vst [vmem:[%s153 + $0x250] sm:%s145] %v302
                %v304 = vld [vmem:[%s152 + $0x4b0] sm:%s145]
                %305 = vst [vmem:[%s153 + $0x258] sm:%s145] %v304
                %v306 = vld [vmem:[%s152 + $0x4c0] sm:%s145]
                %307 = vst [vmem:[%s153 + $0x260] sm:%s145] %v306
                %v308 = vld [vmem:[%s152 + $0x4d0] sm:%s145]
                %309 = vst [vmem:[%s153 + $0x268] sm:%s145] %v308
                %v310 = vld [vmem:[%s152 + $0x4e0] sm:%s145]
                %311 = vst [vmem:[%s153 + $0x270] sm:%s145] %v310
                %v312 = vld [vmem:[%s152 + $0x4f0] sm:%s145]
                %313 = vst [vmem:[%s153 + $0x278] sm:%s145] %v312
                %v314 = vld [vmem:[%s152 + $0x500] sm:%s145]
                %315 = vst [vmem:[%s153 + $0x280] sm:%s145] %v314
                %v316 = vld [vmem:[%s152 + $0x510] sm:%s145]
                %317 = vst [vmem:[%s153 + $0x288] sm:%s145] %v316
                %v318 = vld [vmem:[%s152 + $0x520] sm:%s145]
                %319 = vst [vmem:[%s153 + $0x290] sm:%s145] %v318
                %v320 = vld [vmem:[%s152 + $0x530] sm:%s145]
                %321 = vst [vmem:[%s153 + $0x298] sm:%s145] %v320
                %v322 = vld [vmem:[%s152 + $0x540] sm:%s145]
                %323 = vst [vmem:[%s153 + $0x2a0] sm:%s145] %v322
                %v324 = vld [vmem:[%s152 + $0x550] sm:%s145]
                %325 = vst [vmem:[%s153 + $0x2a8] sm:%s145] %v324
                %v326 = vld [vmem:[%s152 + $0x560] sm:%s145]
                %327 = vst [vmem:[%s153 + $0x2b0] sm:%s145] %v326
                %v328 = vld [vmem:[%s152 + $0x570] sm:%s145]
                %329 = vst [vmem:[%s153 + $0x2b8] sm:%s145] %v328
                %v330 = vld [vmem:[%s152 + $0x580] sm:%s145]
                %331 = vst [vmem:[%s153 + $0x2c0] sm:%s145] %v330
                %v332 = vld [vmem:[%s152 + $0x590] sm:%s145]
                %333 = vst [vmem:[%s153 + $0x2c8] sm:%s145] %v332
                %v334 = vld [vmem:[%s152 + $0x5a0] sm:%s145]
                %335 = vst [vmem:[%s153 + $0x2d0] sm:%s145] %v334
                %v336 = vld [vmem:[%s152 + $0x5b0] sm:%s145]
                %337 = vst [vmem:[%s153 + $0x2d8] sm:%s145] %v336
                %v338 = vld [vmem:[%s152 + $0x5c0] sm:%s145]
                %339 = vst [vmem:[%s153 + $0x2e0] sm:%s145] %v338
                %v340 = vld [vmem:[%s152 + $0x5d0] sm:%s145]
                %341 = vst [vmem:[%s153 + $0x2e8] sm:%s145] %v340
                %v342 = vld [vmem:[%s152 + $0x5e0] sm:%s145]
                %343 = vst [vmem:[%s153 + $0x2f0] sm:%s145] %v342
                %v344 = vld [vmem:[%s152 + $0x5f0] sm:%s145]
                %345 = vst [vmem:[%s153 + $0x2f8] sm:%s145] %v344
                %v346 = vld [vmem:[%s152 + $0x600] sm:%s145]
                %347 = vst [vmem:[%s153 + $0x300] sm:%s145] %v346
                %v348 = vld [vmem:[%s152 + $0x610] sm:%s145]
                %349 = vst [vmem:[%s153 + $0x308] sm:%s145] %v348
                %v350 = vld [vmem:[%s152 + $0x620] sm:%s145]
                %351 = vst [vmem:[%s153 + $0x310] sm:%s145] %v350
                %v352 = vld [vmem:[%s152 + $0x630] sm:%s145]
                %353 = vst [vmem:[%s153 + $0x318] sm:%s145] %v352
                %v354 = vld [vmem:[%s152 + $0x640] sm:%s145]
                %355 = vst [vmem:[%s153 + $0x320] sm:%s145] %v354
                %v356 = vld [vmem:[%s152 + $0x650] sm:%s145]
                %357 = vst [vmem:[%s153 + $0x328] sm:%s145] %v356
                %v358 = vld [vmem:[%s152 + $0x660] sm:%s145]
                %359 = vst [vmem:[%s153 + $0x330] sm:%s145] %v358
                %v360 = vld [vmem:[%s152 + $0x670] sm:%s145]
                %361 = vst [vmem:[%s153 + $0x338] sm:%s145] %v360
                %v362 = vld [vmem:[%s152 + $0x680] sm:%s145]
                %363 = vst [vmem:[%s153 + $0x340] sm:%s145] %v362
                %v364 = vld [vmem:[%s152 + $0x690] sm:%s145]
                %365 = vst [vmem:[%s153 + $0x348] sm:%s145] %v364
                %v366 = vld [vmem:[%s152 + $0x6a0] sm:%s145]
                %367 = vst [vmem:[%s153 + $0x350] sm:%s145] %v366
                %v368 = vld [vmem:[%s152 + $0x6b0] sm:%s145]
                %369 = vst [vmem:[%s153 + $0x358] sm:%s145] %v368
                %v370 = vld [vmem:[%s152 + $0x6c0] sm:%s145]
                %371 = vst [vmem:[%s153 + $0x360] sm:%s145] %v370
                %v372 = vld [vmem:[%s152 + $0x6d0] sm:%s145]
                %373 = vst [vmem:[%s153 + $0x368] sm:%s145] %v372
                %v374 = vld [vmem:[%s152 + $0x6e0] sm:%s145]
                %375 = vst [vmem:[%s153 + $0x370] sm:%s145] %v374
                %v376 = vld [vmem:[%s152 + $0x6f0] sm:%s145]
                %377 = vst [vmem:[%s153 + $0x378] sm:%s145] %v376
                %v378 = vld [vmem:[%s152 + $0x700] sm:%s145]
                %379 = vst [vmem:[%s153 + $0x380] sm:%s145] %v378
                %v380 = vld [vmem:[%s152 + $0x710] sm:%s145]
                %381 = vst [vmem:[%s153 + $0x388] sm:%s145] %v380
                %v382 = vld [vmem:[%s152 + $0x720] sm:%s145]
                %383 = vst [vmem:[%s153 + $0x390] sm:%s145] %v382
                %v384 = vld [vmem:[%s152 + $0x730] sm:%s145]
                %385 = vst [vmem:[%s153 + $0x398] sm:%s145] %v384
                %v386 = vld [vmem:[%s152 + $0x740] sm:%s145]
                %387 = vst [vmem:[%s153 + $0x3a0] sm:%s145] %v386
                %v388 = vld [vmem:[%s152 + $0x750] sm:%s145]
                %389 = vst [vmem:[%s153 + $0x3a8] sm:%s145] %v388
                %v390 = vld [vmem:[%s152 + $0x760] sm:%s145]
                %391 = vst [vmem:[%s153 + $0x3b0] sm:%s145] %v390
                %v392 = vld [vmem:[%s152 + $0x770] sm:%s145]
                %393 = vst [vmem:[%s153 + $0x3b8] sm:%s145] %v392
                %v394 = vld [vmem:[%s152 + $0x780] sm:%s145]
                %395 = vst [vmem:[%s153 + $0x3c0] sm:%s145] %v394
                %v396 = vld [vmem:[%s152 + $0x790] sm:%s145]
                %397 = vst [vmem:[%s153 + $0x3c8] sm:%s145] %v396
                %v398 = vld [vmem:[%s152 + $0x7a0] sm:%s145]
                %399 = vst [vmem:[%s153 + $0x3d0] sm:%s145] %v398
                %v400 = vld [vmem:[%s152 + $0x7b0] sm:%s145]
                %401 = vst [vmem:[%s153 + $0x3d8] sm:%s145] %v400
                %v402 = vld [vmem:[%s152 + $0x7c0] sm:%s145]
                %403 = vst [vmem:[%s153 + $0x3e0] sm:%s145] %v402
                %v404 = vld [vmem:[%s152 + $0x7d0] sm:%s145]
                %405 = vst [vmem:[%s153 + $0x3e8] sm:%s145] %v404
                %v406 = vld [vmem:[%s152 + $0x7e0] sm:%s145]
                %407 = vst [vmem:[%s153 + $0x3f0] sm:%s145] %v406
                %v408 = vld [vmem:[%s152 + $0x7f0] sm:%s145]
                %409 = vst [vmem:[%s153 + $0x3f8] sm:%s145] %v408
                %v410 = vld [vmem:[%s152 + $0x800] sm:%s145]
                %411 = vst [vmem:[%s153 + $0x400] sm:%s145] %v410
                %v412 = vld [vmem:[%s152 + $0x810] sm:%s145]
                %413 = vst [vmem:[%s153 + $0x408] sm:%s145] %v412
                %v414 = vld [vmem:[%s152 + $0x820] sm:%s145]
                %415 = vst [vmem:[%s153 + $0x410] sm:%s145] %v414
                %v416 = vld [vmem:[%s152 + $0x830] sm:%s145]
                %417 = vst [vmem:[%s153 + $0x418] sm:%s145] %v416
                %v418 = vld [vmem:[%s152 + $0x840] sm:%s145]
                %419 = vst [vmem:[%s153 + $0x420] sm:%s145] %v418
                %v420 = vld [vmem:[%s152 + $0x850] sm:%s145]
                %421 = vst [vmem:[%s153 + $0x428] sm:%s145] %v420
                %v422 = vld [vmem:[%s152 + $0x860] sm:%s145]
                %423 = vst [vmem:[%s153 + $0x430] sm:%s145] %v422
                %v424 = vld [vmem:[%s152 + $0x870] sm:%s145]
                %425 = vst [vmem:[%s153 + $0x438] sm:%s145] %v424
                %v426 = vld [vmem:[%s152 + $0x880] sm:%s145]
                %427 = vst [vmem:[%s153 + $0x440] sm:%s145] %v426
                %v428 = vld [vmem:[%s152 + $0x890] sm:%s145]
                %429 = vst [vmem:[%s153 + $0x448] sm:%s145] %v428
                %v430 = vld [vmem:[%s152 + $0x8a0] sm:%s145]
                %431 = vst [vmem:[%s153 + $0x450] sm:%s145] %v430
                %v432 = vld [vmem:[%s152 + $0x8b0] sm:%s145]
                %433 = vst [vmem:[%s153 + $0x458] sm:%s145] %v432
                %v434 = vld [vmem:[%s152 + $0x8c0] sm:%s145]
                %435 = vst [vmem:[%s153 + $0x460] sm:%s145] %v434
                %v436 = vld [vmem:[%s152 + $0x8d0] sm:%s145]
                %437 = vst [vmem:[%s153 + $0x468] sm:%s145] %v436
                %v438 = vld [vmem:[%s152 + $0x8e0] sm:%s145]
                %439 = vst [vmem:[%s153 + $0x470] sm:%s145] %v438
                %v440 = vld [vmem:[%s152 + $0x8f0] sm:%s145]
                %441 = vst [vmem:[%s153 + $0x478] sm:%s145] %v440
                %v442 = vld [vmem:[%s152 + $0x900] sm:%s145]
                %443 = vst [vmem:[%s153 + $0x480] sm:%s145] %v442
                %v444 = vld [vmem:[%s152 + $0x910] sm:%s145]
                %445 = vst [vmem:[%s153 + $0x488] sm:%s145] %v444
                %v446 = vld [vmem:[%s152 + $0x920] sm:%s145]
                %447 = vst [vmem:[%s153 + $0x490] sm:%s145] %v446
                %v448 = vld [vmem:[%s152 + $0x930] sm:%s145]
                %449 = vst [vmem:[%s153 + $0x498] sm:%s145] %v448
                %v450 = vld [vmem:[%s152 + $0x940] sm:%s145]
                %451 = vst [vmem:[%s153 + $0x4a0] sm:%s145] %v450
                %v452 = vld [vmem:[%s152 + $0x950] sm:%s145]
                %453 = vst [vmem:[%s153 + $0x4a8] sm:%s145] %v452
                %v454 = vld [vmem:[%s152 + $0x960] sm:%s145]
                %455 = vst [vmem:[%s153 + $0x4b0] sm:%s145] %v454
                %v456 = vld [vmem:[%s152 + $0x970] sm:%s145]
                %457 = vst [vmem:[%s153 + $0x4b8] sm:%s145] %v456
                %v458 = vld [vmem:[%s152 + $0x980] sm:%s145]
                %459 = vst [vmem:[%s153 + $0x4c0] sm:%s145] %v458
                %v460 = vld [vmem:[%s152 + $0x990] sm:%s145]
                %461 = vst [vmem:[%s153 + $0x4c8] sm:%s145] %v460
                %v462 = vld [vmem:[%s152 + $0x9a0] sm:%s145]
                %463 = vst [vmem:[%s153 + $0x4d0] sm:%s145] %v462
                %v464 = vld [vmem:[%s152 + $0x9b0] sm:%s145]
                %465 = vst [vmem:[%s153 + $0x4d8] sm:%s145] %v464
                %v466 = vld [vmem:[%s152 + $0x9c0] sm:%s145]
                %467 = vst [vmem:[%s153 + $0x4e0] sm:%s145] %v466
                %v468 = vld [vmem:[%s152 + $0x9d0] sm:%s145]
                %469 = vst [vmem:[%s153 + $0x4e8] sm:%s145] %v468
                %v470 = vld [vmem:[%s152 + $0x9e0] sm:%s145]
                %471 = vst [vmem:[%s153 + $0x4f0] sm:%s145] %v470
                %v472 = vld [vmem:[%s152 + $0x9f0] sm:%s145]
                %473 = vst [vmem:[%s153 + $0x4f8] sm:%s145] %v472
                %v474 = vld [vmem:[%s152 + $0xa00] sm:%s145]
                %475 = vst [vmem:[%s153 + $0x500] sm:%s145] %v474
                %v476 = vld [vmem:[%s152 + $0xa10] sm:%s145]
                %477 = vst [vmem:[%s153 + $0x508] sm:%s145] %v476
                %v478 = vld [vmem:[%s152 + $0xa20] sm:%s145]
                %479 = vst [vmem:[%s153 + $0x510] sm:%s145] %v478
                %v480 = vld [vmem:[%s152 + $0xa30] sm:%s145]
                %481 = vst [vmem:[%s153 + $0x518] sm:%s145] %v480
                %v482 = vld [vmem:[%s152 + $0xa40] sm:%s145]
                %483 = vst [vmem:[%s153 + $0x520] sm:%s145] %v482
                %v484 = vld [vmem:[%s152 + $0xa50] sm:%s145]
                %485 = vst [vmem:[%s153 + $0x528] sm:%s145] %v484
                %v486 = vld [vmem:[%s152 + $0xa60] sm:%s145]
                %487 = vst [vmem:[%s153 + $0x530] sm:%s145] %v486
                %v488 = vld [vmem:[%s152 + $0xa70] sm:%s145]
                %489 = vst [vmem:[%s153 + $0x538] sm:%s145] %v488
                %v490 = vld [vmem:[%s152 + $0xa80] sm:%s145]
                %491 = vst [vmem:[%s153 + $0x540] sm:%s145] %v490
                %v492 = vld [vmem:[%s152 + $0xa90] sm:%s145]
                %493 = vst [vmem:[%s153 + $0x548] sm:%s145] %v492
                %v494 = vld [vmem:[%s152 + $0xaa0] sm:%s145]
                %495 = vst [vmem:[%s153 + $0x550] sm:%s145] %v494
                %v496 = vld [vmem:[%s152 + $0xab0] sm:%s145]
                %497 = vst [vmem:[%s153 + $0x558] sm:%s145] %v496
                %v498 = vld [vmem:[%s152 + $0xac0] sm:%s145]
                %499 = vst [vmem:[%s153 + $0x560] sm:%s145] %v498
                %v500 = vld [vmem:[%s152 + $0xad0] sm:%s145]
                %501 = vst [vmem:[%s153 + $0x568] sm:%s145] %v500
                %v502 = vld [vmem:[%s152 + $0xae0] sm:%s145]
                %503 = vst [vmem:[%s153 + $0x570] sm:%s145] %v502
                %v504 = vld [vmem:[%s152 + $0xaf0] sm:%s145]
                %505 = vst [vmem:[%s153 + $0x578] sm:%s145] %v504
                %v506 = vld [vmem:[%s152 + $0xb00] sm:%s145]
                %507 = vst [vmem:[%s153 + $0x580] sm:%s145] %v506
                %v508 = vld [vmem:[%s152 + $0xb10] sm:%s145]
                %509 = vst [vmem:[%s153 + $0x588] sm:%s145] %v508
                %v510 = vld [vmem:[%s152 + $0xb20] sm:%s145]
                %511 = vst [vmem:[%s153 + $0x590] sm:%s145] %v510
                %v512 = vld [vmem:[%s152 + $0xb30] sm:%s145]
                %513 = vst [vmem:[%s153 + $0x598] sm:%s145] %v512
                %v514 = vld [vmem:[%s152 + $0xb40] sm:%s145]
                %515 = vst [vmem:[%s153 + $0x5a0] sm:%s145] %v514
                %v516 = vld [vmem:[%s152 + $0xb50] sm:%s145]
                %517 = vst [vmem:[%s153 + $0x5a8] sm:%s145] %v516
                %v518 = vld [vmem:[%s152 + $0xb60] sm:%s145]
                %519 = vst [vmem:[%s153 + $0x5b0] sm:%s145] %v518
                %v520 = vld [vmem:[%s152 + $0xb70] sm:%s145]
                %521 = vst [vmem:[%s153 + $0x5b8] sm:%s145] %v520
                %v522 = vld [vmem:[%s152 + $0xb80] sm:%s145]
                %523 = vst [vmem:[%s153 + $0x5c0] sm:%s145] %v522
                %v524 = vld [vmem:[%s152 + $0xb90] sm:%s145]
                %525 = vst [vmem:[%s153 + $0x5c8] sm:%s145] %v524
                %v526 = vld [vmem:[%s152 + $0xba0] sm:%s145]
                %527 = vst [vmem:[%s153 + $0x5d0] sm:%s145] %v526
                %v528 = vld [vmem:[%s152 + $0xbb0] sm:%s145]
                %529 = vst [vmem:[%s153 + $0x5d8] sm:%s145] %v528
                %v530 = vld [vmem:[%s152 + $0xbc0] sm:%s145]
                %531 = vst [vmem:[%s153 + $0x5e0] sm:%s145] %v530
                %v532 = vld [vmem:[%s152 + $0xbd0] sm:%s145]
                %533 = vst [vmem:[%s153 + $0x5e8] sm:%s145] %v532
                %v534 = vld [vmem:[%s152 + $0xbe0] sm:%s145]
                %535 = vst [vmem:[%s153 + $0x5f0] sm:%s145] %v534
                %v536 = vld [vmem:[%s152 + $0xbf0] sm:%s145]
                %537 = vst [vmem:[%s153 + $0x5f8] sm:%s145] %v536
                %v538 = vld [vmem:[%s152 + $0xc00] sm:%s145]
                %539 = vst [vmem:[%s153 + $0x600] sm:%s145] %v538
                %v540 = vld [vmem:[%s152 + $0xc10] sm:%s145]
                %541 = vst [vmem:[%s153 + $0x608] sm:%s145] %v540
                %v542 = vld [vmem:[%s152 + $0xc20] sm:%s145]
                %543 = vst [vmem:[%s153 + $0x610] sm:%s145] %v542
                %v544 = vld [vmem:[%s152 + $0xc30] sm:%s145]
                %545 = vst [vmem:[%s153 + $0x618] sm:%s145] %v544
                %v546 = vld [vmem:[%s152 + $0xc40] sm:%s145]
                %547 = vst [vmem:[%s153 + $0x620] sm:%s145] %v546
                %v548 = vld [vmem:[%s152 + $0xc50] sm:%s145]
                %549 = vst [vmem:[%s153 + $0x628] sm:%s145] %v548
                %v550 = vld [vmem:[%s152 + $0xc60] sm:%s145]
                %551 = vst [vmem:[%s153 + $0x630] sm:%s145] %v550
                %v552 = vld [vmem:[%s152 + $0xc70] sm:%s145]
                %553 = vst [vmem:[%s153 + $0x638] sm:%s145] %v552
              $region45: #{gauge_net_forward.5} parent=39 // loop_footer
                %s151 = sadd.s32 1, %s147
              $region46: #{gauge_net_forward.5} parent=39 // loop_footer_branch
                %146 = sbr.rel target = $region42
              $region47: #{gauge_net_forward.5} parent=39 // loop_exit
                _
            $region40: #{gauge_net_forward.5} parent=31 // pred_fallthru
              _
          $region32: #{gauge_net_forward.5} parent=27 // pred_fallthru
            _
          %966 = vnop
        $region28: #{gauge_net_forward.5} parent=23 // pred_fallthru
          _
      $region24: #{gauge_net_forward.5} parent=5 // pred_fallthru
        _
      %p967 = scmp.le.s32.totalorder 1, %s9
      %p968 = scmp.lt.s32.totalorder %s9, 3
      %p969 = pnand %p967, %p968
      %p970 = pneg %p969
      // Predicated region
      $region63: #{gauge_net_forward.5} parent=5 // pred_check
        _
      $region64: #{gauge_net_forward.5} parent=5 // pred_check_branch
        %972 = sbr.rel (%p969) target = $region66
      $region65: #{gauge_net_forward.5} parent=5 // pred_region
        %s973 = ssub.s32 %s9, 1
        %s974 = sand.u32 %s22, 1
        %s975 = sand.u32 %s22, 1
        %s976 = smul.addr %s975, 1600
        %s977 = scalar_lea.vmem [#allocation2], %s976
        // Predicated region
        $region67: #{gauge_net_forward.5} parent=65 // pred_check
          %p978 = pneg %p35
        $region68: #{gauge_net_forward.5} parent=65 // pred_check_branch
          %980 = sbr.rel (%p978) target = $region70
        $region69: #{gauge_net_forward.5} parent=65 // pred_region
          _
        $region70: #{gauge_net_forward.5} parent=65 // pred_fallthru
          _
        %s981 = sand.u32 %s22, 1
        %s982 = sand.u32 %s22, 1
        %s983 = smul.addr %s982, 1600
        %s984 = scalar_lea.vmem [#allocation2], %s983
        %p985 = pneg %p35
        %p986 = pneg %p32
        %p987 = pneg %p56
        %p988 = pneg %p53
        %p989 = pneg %p77
        %p990 = pneg %p74
        %p991 = pneg %p103
        %p992 = pneg %p100
        %s993 = sand.u32 %s90, 1
        %s994 = sand.u32 %s90, 1
        %s995 = smul.addr %s994, 32
        %s996 = scalar_lea.vmem [#allocation3], %s995
        %s997 = smul.u32 2, %s14
        %s998 = smul.u32 2, %s14
        %v1000 = vld [vmem:[%s1] sm:$0xff]
        %v1001 = vld [vmem:[%s1 + $0x8] sm:$0xff]
        %v1002 = vld [vmem:[%s1 + $0x10] sm:$0xff]
        %v1003 = vld [vmem:[%s1 + $0x18] sm:$0xff]
        %v1004 = vld [vmem:[%s1 + $0x20] sm:$0xff]
        %v1005 = vld [vmem:[%s1 + $0x28] sm:$0xff]
        %v1006 = vld [vmem:[%s1 + $0x30] sm:$0xff]
        %v1007 = vld [vmem:[%s1 + $0x38] sm:$0xff]
        %v1008 = vld [vmem:[%s977] sm:$0xff]
        %v1009 = vld [vmem:[%s977 + $0x8] sm:$0xff]
        %v1010 = vld [vmem:[%s977 + $0x10] sm:$0xff]
        %v1011 = vld [vmem:[%s977 + $0x18] sm:$0xff]
        %v1012 = vld [vmem:[%s977 + $0x20] sm:$0xff]
        %v1013 = vld [vmem:[%s977 + $0x28] sm:$0xff]
        %v1014 = vld [vmem:[%s977 + $0x30] sm:$0xff]
        %v1015 = vld [vmem:[%s977 + $0x38] sm:$0xff]
        %v1016 = vld [vmem:[%s977 + $0x40] sm:$0xff]
        %v1017 = vld [vmem:[%s977 + $0x48] sm:$0xff]
        %v1018 = vld [vmem:[%s977 + $0x50] sm:$0xff]
        %v1019 = vld [vmem:[%s977 + $0x58] sm:$0xff]
        %v1020 = vld [vmem:[%s977 + $0x60] sm:$0xff]
        %v1021 = vld [vmem:[%s977 + $0x68] sm:$0xff]
        %v1022 = vld [vmem:[%s977 + $0x70] sm:$0xff]
        %v1023 = vld [vmem:[%s977 + $0x78] sm:$0xff]
        %v1024 = vld [vmem:[%s977 + $0x80] sm:$0xff]
        %v1025 = vld [vmem:[%s977 + $0x88] sm:$0xff]
        %v1026 = vld [vmem:[%s977 + $0x90] sm:$0xff]
        %v1027 = vld [vmem:[%s977 + $0x98] sm:$0xff]
        %v1028 = vld [vmem:[%s977 + $0xa0] sm:$0xff]
        %v1029 = vld [vmem:[%s977 + $0xa8] sm:$0xff]
        %v1030 = vld [vmem:[%s977 + $0xb0] sm:$0xff]
        %v1031 = vld [vmem:[%s977 + $0xb8] sm:$0xff]
        %v1032 = vld [vmem:[%s977 + $0xc0] sm:$0xff]
        %v1033 = vld [vmem:[%s977 + $0xc8] sm:$0xff]
        %v1034 = vld [vmem:[%s977 + $0xd0] sm:$0xff]
        %v1035 = vld [vmem:[%s977 + $0xd8] sm:$0xff]
        %v1036 = vld [vmem:[%s977 + $0xe0] sm:$0xff]
        %v1037 = vld [vmem:[%s977 + $0xe8] sm:$0xff]
        %v1038 = vld [vmem:[%s977 + $0xf0] sm:$0xff]
        %v1039 = vld [vmem:[%s977 + $0xf8] sm:$0xff]
        %v1040 = vld [vmem:[%s977 + $0x100] sm:$0xff]
        %v1041 = vld [vmem:[%s977 + $0x108] sm:$0xff]
        %v1042 = vld [vmem:[%s977 + $0x110] sm:$0xff]
        %v1043 = vld [vmem:[%s977 + $0x118] sm:$0xff]
        %v1044 = vld [vmem:[%s977 + $0x120] sm:$0xff]
        %v1045 = vld [vmem:[%s977 + $0x128] sm:$0xff]
        %v1046 = vld [vmem:[%s977 + $0x130] sm:$0xff]
        %v1047 = vld [vmem:[%s977 + $0x138] sm:$0xff]
        %v1048 = vld [vmem:[%s977 + $0x140] sm:$0xff]
        %v1049 = vld [vmem:[%s977 + $0x148] sm:$0xff]
        %v1050 = vld [vmem:[%s977 + $0x150] sm:$0xff]
        %v1051 = vld [vmem:[%s977 + $0x158] sm:$0xff]
        %v1052 = vld [vmem:[%s977 + $0x160] sm:$0xff]
        %v1053 = vld [vmem:[%s977 + $0x168] sm:$0xff]
        %v1054 = vld [vmem:[%s977 + $0x170] sm:$0xff]
        %v1055 = vld [vmem:[%s977 + $0x178] sm:$0xff]
        %v1056 = vld [vmem:[%s977 + $0x180] sm:$0xff]
        %v1057 = vld [vmem:[%s977 + $0x188] sm:$0xff]
        %v1066 = vunpack.c.l.b16 %v1000
        %v1067 = vunpack.c.h.b16 %v1000
        %v1068 = vunpack.c.l.b16 %v1001
        %v1069 = vunpack.c.h.b16 %v1001
        %v1070 = vunpack.c.l.b16 %v1002
        %v1071 = vunpack.c.h.b16 %v1002
        %v1072 = vunpack.c.l.b16 %v1003
        %v1073 = vunpack.c.h.b16 %v1003
        %v1074 = vunpack.c.l.b16 %v1004
        %v1075 = vunpack.c.h.b16 %v1004
        %v1076 = vunpack.c.l.b16 %v1005
        %v1077 = vunpack.c.h.b16 %v1005
        %v1078 = vunpack.c.l.b16 %v1006
        %v1079 = vunpack.c.h.b16 %v1006
        %v1080 = vunpack.c.l.b16 %v1007
        %v1081 = vunpack.c.h.b16 %v1007
        %v1082 = vpack.c.b16 %v1070, %v1066
        %v1083 = vpack.c.b16 %v1071, %v1067
        %v1084 = vpack.c.b16 %v1072, %v1068
        %v1085 = vpack.c.b16 %v1073, %v1069
        %v1086 = vpack.c.b16 %v1078, %v1074
        %v1087 = vpack.c.b16 %v1079, %v1075
        %v1088 = vpack.c.b16 %v1080, %v1076
        %v1089 = vpack.c.b16 %v1081, %v1077
        %v1146 = vunpack.c.l.b16 %v1008
        %v1147 = vunpack.c.h.b16 %v1008
        %v1148 = vunpack.c.l.b16 %v1009
        %v1149 = vunpack.c.h.b16 %v1009
        %v1150 = vunpack.c.l.b16 %v1010
        %v1151 = vunpack.c.h.b16 %v1010
        %v1152 = vunpack.c.l.b16 %v1011
        %v1153 = vunpack.c.h.b16 %v1011
        %v1154 = vunpack.c.l.b16 %v1012
        %v1155 = vunpack.c.h.b16 %v1012
        %v1156 = vunpack.c.l.b16 %v1013
        %v1157 = vunpack.c.h.b16 %v1013
        %v1158 = vunpack.c.l.b16 %v1014
        %v1159 = vunpack.c.h.b16 %v1014
        %v1160 = vunpack.c.l.b16 %v1015
        %v1161 = vunpack.c.h.b16 %v1015
        %v1162 = vunpack.c.l.b16 %v1016
        %v1163 = vunpack.c.h.b16 %v1016
        %v1164 = vunpack.c.l.b16 %v1017
        %v1165 = vunpack.c.h.b16 %v1017
        %v1166 = vunpack.c.l.b16 %v1018
        %v1167 = vunpack.c.h.b16 %v1018
        %v1168 = vunpack.c.l.b16 %v1019
        %v1169 = vunpack.c.h.b16 %v1019
        %v1170 = vunpack.c.l.b16 %v1020
        %v1171 = vunpack.c.h.b16 %v1020
        %v1172 = vunpack.c.l.b16 %v1021
        %v1173 = vunpack.c.h.b16 %v1021
        %v1174 = vunpack.c.l.b16 %v1022
        %v1175 = vunpack.c.h.b16 %v1022
        %v1176 = vunpack.c.l.b16 %v1023
        %v1177 = vunpack.c.h.b16 %v1023
        %v1178 = vunpack.c.l.b16 %v1024
        %v1179 = vunpack.c.h.b16 %v1024
        %v1180 = vunpack.c.l.b16 %v1025
        %v1181 = vunpack.c.h.b16 %v1025
        %v1182 = vunpack.c.l.b16 %v1026
        %v1183 = vunpack.c.h.b16 %v1026
        %v1184 = vunpack.c.l.b16 %v1027
        %v1185 = vunpack.c.h.b16 %v1027
        %v1186 = vunpack.c.l.b16 %v1028
        %v1187 = vunpack.c.h.b16 %v1028
        %v1188 = vunpack.c.l.b16 %v1029
        %v1189 = vunpack.c.h.b16 %v1029
        %v1190 = vunpack.c.l.b16 %v1030
        %v1191 = vunpack.c.h.b16 %v1030
        %v1192 = vunpack.c.l.b16 %v1031
        %v1193 = vunpack.c.h.b16 %v1031
        %v1194 = vunpack.c.l.b16 %v1032
        %v1195 = vunpack.c.h.b16 %v1032
        %v1196 = vunpack.c.l.b16 %v1033
        %v1197 = vunpack.c.h.b16 %v1033
        %v1198 = vunpack.c.l.b16 %v1034
        %v1199 = vunpack.c.h.b16 %v1034
        %v1200 = vunpack.c.l.b16 %v1035
        %v1201 = vunpack.c.h.b16 %v1035
        %v1202 = vunpack.c.l.b16 %v1036
        %v1203 = vunpack.c.h.b16 %v1036
        %v1204 = vunpack.c.l.b16 %v1037
        %v1205 = vunpack.c.h.b16 %v1037
        %v1206 = vunpack.c.l.b16 %v1038
        %v1207 = vunpack.c.h.b16 %v1038
        %v1208 = vunpack.c.l.b16 %v1039
        %v1209 = vunpack.c.h.b16 %v1039
        %v1210 = vunpack.c.l.b16 %v1040
        %v1211 = vunpack.c.h.b16 %v1040
        %v1212 = vunpack.c.l.b16 %v1041
        %v1213 = vunpack.c.h.b16 %v1041
        %v1214 = vunpack.c.l.b16 %v1042
        %v1215 = vunpack.c.h.b16 %v1042
        %v1216 = vunpack.c.l.b16 %v1043
        %v1217 = vunpack.c.h.b16 %v1043
        %v1218 = vunpack.c.l.b16 %v1044
        %v1219 = vunpack.c.h.b16 %v1044
        %v1220 = vunpack.c.l.b16 %v1045
        %v1221 = vunpack.c.h.b16 %v1045
        %v1222 = vunpack.c.l.b16 %v1046
        %v1223 = vunpack.c.h.b16 %v1046
        %v1224 = vunpack.c.l.b16 %v1047
        %v1225 = vunpack.c.h.b16 %v1047
        %v1226 = vunpack.c.l.b16 %v1048
        %v1227 = vunpack.c.h.b16 %v1048
        %v1228 = vunpack.c.l.b16 %v1049
        %v1229 = vunpack.c.h.b16 %v1049
        %v1230 = vunpack.c.l.b16 %v1050
        %v1231 = vunpack.c.h.b16 %v1050
        %v1232 = vunpack.c.l.b16 %v1051
        %v1233 = vunpack.c.h.b16 %v1051
        %v1234 = vunpack.c.l.b16 %v1052
        %v1235 = vunpack.c.h.b16 %v1052
        %v1236 = vunpack.c.l.b16 %v1053
        %v1237 = vunpack.c.h.b16 %v1053
        %v1238 = vunpack.c.l.b16 %v1054
        %v1239 = vunpack.c.h.b16 %v1054
        %v1240 = vunpack.c.l.b16 %v1055
        %v1241 = vunpack.c.h.b16 %v1055
        %v1242 = vunpack.c.l.b16 %v1056
        %v1243 = vunpack.c.h.b16 %v1056
        %v1244 = vunpack.c.l.b16 %v1057
        %v1245 = vunpack.c.h.b16 %v1057
        %v1246 = vpack.c.b16 %v1148, %v1146
        %v1247 = vpack.c.b16 %v1149, %v1147
        %v1248 = vpack.c.b16 %v1152, %v1150
        %v1249 = vpack.c.b16 %v1153, %v1151
        %v1250 = vpack.c.b16 %v1156, %v1154
        %v1251 = vpack.c.b16 %v1157, %v1155
        %v1252 = vpack.c.b16 %v1160, %v1158
        %v1253 = vpack.c.b16 %v1161, %v1159
        %v1254 = vpack.c.b16 %v1164, %v1162
        %v1255 = vpack.c.b16 %v1165, %v1163
        %v1256 = vpack.c.b16 %v1168, %v1166
        %v1257 = vpack.c.b16 %v1169, %v1167
        %v1258 = vpack.c.b16 %v1172, %v1170
        %v1259 = vpack.c.b16 %v1173, %v1171
        %v1260 = vpack.c.b16 %v1176, %v1174
        %v1261 = vpack.c.b16 %v1177, %v1175
        %v1262 = vpack.c.b16 %v1180, %v1178
        %v1263 = vpack.c.b16 %v1181, %v1179
        %v1264 = vpack.c.b16 %v1184, %v1182
        %v1265 = vpack.c.b16 %v1185, %v1183
        %v1266 = vpack.c.b16 %v1188, %v1186
        %v1267 = vpack.c.b16 %v1189, %v1187
        %v1268 = vpack.c.b16 %v1192, %v1190
        %v1269 = vpack.c.b16 %v1193, %v1191
        %v1270 = vpack.c.b16 %v1196, %v1194
        %v1271 = vpack.c.b16 %v1197, %v1195
        %v1272 = vpack.c.b16 %v1200, %v1198
        %v1273 = vpack.c.b16 %v1201, %v1199
        %v1274 = vpack.c.b16 %v1204, %v1202
        %v1275 = vpack.c.b16 %v1205, %v1203
        %v1276 = vpack.c.b16 %v1208, %v1206
        %v1277 = vpack.c.b16 %v1209, %v1207
        %v1278 = vpack.c.b16 %v1212, %v1210
        %v1279 = vpack.c.b16 %v1213, %v1211
        %v1280 = vpack.c.b16 %v1216, %v1214
        %v1281 = vpack.c.b16 %v1217, %v1215
        %v1282 = vpack.c.b16 %v1220, %v1218
        %v1283 = vpack.c.b16 %v1221, %v1219
        %v1284 = vpack.c.b16 %v1224, %v1222
        %v1285 = vpack.c.b16 %v1225, %v1223
        %v1286 = vpack.c.b16 %v1228, %v1226
        %v1287 = vpack.c.b16 %v1229, %v1227
        %v1288 = vpack.c.b16 %v1232, %v1230
        %v1289 = vpack.c.b16 %v1233, %v1231
        %v1290 = vpack.c.b16 %v1236, %v1234
        %v1291 = vpack.c.b16 %v1237, %v1235
        %v1292 = vpack.c.b16 %v1240, %v1238
        %v1293 = vpack.c.b16 %v1241, %v1239
        %v1294 = vpack.c.b16 %v1244, %v1242
        %v1295 = vpack.c.b16 %v1245, %v1243
        %vm1346 = vcmask 130048
        %v1348 = vsel %vm1346, %v1085, 0
        %v1351 = vsel %vm1346, %v1089, 0
        %1353 = vmatpush.bf16.msra.mxu0 %v1260
        %1354 = vmatpush.bf16.msra.mxu0 %v1258
        %1355 = vmatpush.bf16.msra.mxu0 %v1256
        %1356 = vmatpush.bf16.msra.mxu0 %v1254
        %1357 = vmatpush.bf16.msra.mxu0 %v1252
        %1358 = vmatpush.bf16.msra.mxu0 %v1250
        %1359 = vmatpush.bf16.msra.mxu0 %v1248
        %1360 = vmatpush.bf16.msra.mxu0 %v1246
        %1361 = vmatmul.bf16.gmra.mxu0 %v1082
        %v1362 = vpop.f32.mrf.mxu0
        %v1363 = vadd.f32 0.0, %v1362
        %v1364 = vpop.f32.mrf.mxu0
        %v1365 = vadd.f32 0.0, %v1364
        %1366 = vmatmul.bf16.gmra.mxu0 %v1086
        %v1367 = vpop.f32.mrf.mxu0
        %v1368 = vadd.f32 0.0, %v1367
        %v1369 = vpop.f32.mrf.mxu0
        %v1370 = vadd.f32 0.0, %v1369
        %1371 = vdwg.mxu0
        %1372 = vmatpush.bf16.msra.mxu0 %v1276
        %1373 = vmatpush.bf16.msra.mxu0 %v1274
        %1374 = vmatpush.bf16.msra.mxu0 %v1272
        %1375 = vmatpush.bf16.msra.mxu0 %v1270
        %1376 = vmatpush.bf16.msra.mxu0 %v1268
        %1377 = vmatpush.bf16.msra.mxu0 %v1266
        %1378 = vmatpush.bf16.msra.mxu0 %v1264
        %1379 = vmatpush.bf16.msra.mxu0 %v1262
        %1380 = vmatmul.bf16.gmra.mxu0 %v1083
        %v1381 = vpop.f32.mrf.mxu0
        %v1382 = vadd.f32 %v1363, %v1381
        %v1383 = vpop.f32.mrf.mxu0
        %v1384 = vadd.f32 %v1365, %v1383
        %1385 = vmatmul.bf16.gmra.mxu0 %v1087
        %v1386 = vpop.f32.mrf.mxu0
        %v1387 = vadd.f32 %v1368, %v1386
        %v1388 = vpop.f32.mrf.mxu0
        %v1389 = vadd.f32 %v1370, %v1388
        %1390 = vdwg.mxu0
        %1391 = vmatpush.bf16.msra.mxu0 %v1292
        %1392 = vmatpush.bf16.msra.mxu0 %v1290
        %1393 = vmatpush.bf16.msra.mxu0 %v1288
        %1394 = vmatpush.bf16.msra.mxu0 %v1286
        %1395 = vmatpush.bf16.msra.mxu0 %v1284
        %1396 = vmatpush.bf16.msra.mxu0 %v1282
        %1397 = vmatpush.bf16.msra.mxu0 %v1280
        %1398 = vmatpush.bf16.msra.mxu0 %v1278
        %1399 = vmatmul.bf16.gmra.mxu0 %v1084
        %v1400 = vpop.f32.mrf.mxu0
        %v1401 = vadd.f32 %v1382, %v1400
        %v1402 = vpop.f32.mrf.mxu0
        %v1403 = vadd.f32 %v1384, %v1402
        %1404 = vmatmul.bf16.gmra.mxu0 %v1088
        %v1405 = vpop.f32.mrf.mxu0
        %v1406 = vadd.f32 %v1387, %v1405
        %v1407 = vpop.f32.mrf.mxu0
        %v1408 = vadd.f32 %v1389, %v1407
        %1409 = vdwg.mxu0
        %1410 = vmatpush.bf16.msra.mxu0 0
        %1411 = vmatpush.bf16.msra.mxu0 0
        %1412 = vmatpush.bf16.msra.mxu0 0
        %1413 = vmatpush.bf16.msra.mxu0 0
        %1414 = vmatpush.bf16.msra.mxu0 0
        %1415 = vmatpush.bf16.msra.mxu0 0
        %1416 = vmatpush.bf16.msra.mxu0 0
        %1417 = vmatpush.bf16.msra.mxu0 %v1294
        %1418 = vmatmul.bf16.gmra.mxu0 %v1348
        %v1419 = vpop.f32.mrf.mxu0
        %v1420 = vadd.f32 %v1401, %v1419
        %v1421 = vpop.f32.mrf.mxu0
        %v1422 = vadd.f32 %v1403, %v1421
        %1423 = vmatmul.bf16.gmra.mxu0 %v1351
        %v1424 = vpop.f32.mrf.mxu0
        %v1425 = vadd.f32 %v1406, %v1424
        %v1426 = vpop.f32.mrf.mxu0
        %v1427 = vadd.f32 %v1408, %v1426
        %1428 = vdwg.mxu0
        %1429 = vmatpush.bf16.msra.mxu0 %v1261
        %1430 = vmatpush.bf16.msra.mxu0 %v1259
        %1431 = vmatpush.bf16.msra.mxu0 %v1257
        %1432 = vmatpush.bf16.msra.mxu0 %v1255
        %1433 = vmatpush.bf16.msra.mxu0 %v1253
        %1434 = vmatpush.bf16.msra.mxu0 %v1251
        %1435 = vmatpush.bf16.msra.mxu0 %v1249
        %1436 = vmatpush.bf16.msra.mxu0 %v1247
        %1437 = vmatmul.bf16.gmra.mxu0 %v1082
        %v1438 = vpop.f32.mrf.mxu0
        %v1439 = vadd.f32 0.0, %v1438
        %v1440 = vpop.f32.mrf.mxu0
        %v1441 = vadd.f32 0.0, %v1440
        %1442 = vmatmul.bf16.gmra.mxu0 %v1086
        %v1443 = vpop.f32.mrf.mxu0
        %v1444 = vadd.f32 0.0, %v1443
        %v1445 = vpop.f32.mrf.mxu0
        %v1446 = vadd.f32 0.0, %v1445
        %1447 = vdwg.mxu0
        %1448 = vmatpush.bf16.msra.mxu0 %v1277
        %1449 = vmatpush.bf16.msra.mxu0 %v1275
        %1450 = vmatpush.bf16.msra.mxu0 %v1273
        %1451 = vmatpush.bf16.msra.mxu0 %v1271
        %1452 = vmatpush.bf16.msra.mxu0 %v1269
        %1453 = vmatpush.bf16.msra.mxu0 %v1267
        %1454 = vmatpush.bf16.msra.mxu0 %v1265
        %1455 = vmatpush.bf16.msra.mxu0 %v1263
        %1456 = vmatmul.bf16.gmra.mxu0 %v1083
        %v1457 = vpop.f32.mrf.mxu0
        %v1458 = vadd.f32 %v1439, %v1457
        %v1459 = vpop.f32.mrf.mxu0
        %v1460 = vadd.f32 %v1441, %v1459
        %1461 = vmatmul.bf16.gmra.mxu0 %v1087
        %v1462 = vpop.f32.mrf.mxu0
        %v1463 = vadd.f32 %v1444, %v1462
        %v1464 = vpop.f32.mrf.mxu0
        %v1465 = vadd.f32 %v1446, %v1464
        %1466 = vdwg.mxu0
        %1467 = vmatpush.bf16.msra.mxu0 %v1293
        %1468 = vmatpush.bf16.msra.mxu0 %v1291
        %1469 = vmatpush.bf16.msra.mxu0 %v1289
        %1470 = vmatpush.bf16.msra.mxu0 %v1287
        %1471 = vmatpush.bf16.msra.mxu0 %v1285
        %1472 = vmatpush.bf16.msra.mxu0 %v1283
        %1473 = vmatpush.bf16.msra.mxu0 %v1281
        %1474 = vmatpush.bf16.msra.mxu0 %v1279
        %1475 = vmatmul.bf16.gmra.mxu0 %v1084
        %v1476 = vpop.f32.mrf.mxu0
        %v1477 = vadd.f32 %v1458, %v1476
        %v1478 = vpop.f32.mrf.mxu0
        %v1479 = vadd.f32 %v1460, %v1478
        %1480 = vmatmul.bf16.gmra.mxu0 %v1088
        %v1481 = vpop.f32.mrf.mxu0
        %v1482 = vadd.f32 %v1463, %v1481
        %v1483 = vpop.f32.mrf.mxu0
        %v1484 = vadd.f32 %v1465, %v1483
        %1485 = vdwg.mxu0
        %1486 = vmatpush.bf16.msra.mxu0 0
        %1487 = vmatpush.bf16.msra.mxu0 0
        %1488 = vmatpush.bf16.msra.mxu0 0
        %1489 = vmatpush.bf16.msra.mxu0 0
        %1490 = vmatpush.bf16.msra.mxu0 0
        %1491 = vmatpush.bf16.msra.mxu0 0
        %1492 = vmatpush.bf16.msra.mxu0 0
        %1493 = vmatpush.bf16.msra.mxu0 %v1295
        %1494 = vmatmul.bf16.gmra.mxu0 %v1348
        %v1495 = vpop.f32.mrf.mxu0
        %v1496 = vadd.f32 %v1477, %v1495
        %v1497 = vpop.f32.mrf.mxu0
        %v1498 = vadd.f32 %v1479, %v1497
        %1499 = vmatmul.bf16.gmra.mxu0 %v1351
        %v1500 = vpop.f32.mrf.mxu0
        %v1501 = vadd.f32 %v1482, %v1500
        %v1502 = vpop.f32.mrf.mxu0
        %v1503 = vadd.f32 %v1484, %v1502
        %1504 = vdwg.mxu0
        %s1505 = scalar_lea.vmem %s977, 400 [#allocation2]
        %v1506 = vld [vmem:[%s1505] sm:$0xff]
        %v1507 = vld [vmem:[%s1505 + $0x8] sm:$0xff]
        %v1508 = vld [vmem:[%s1505 + $0x10] sm:$0xff]
        %v1509 = vld [vmem:[%s1505 + $0x18] sm:$0xff]
        %v1510 = vld [vmem:[%s1505 + $0x20] sm:$0xff]
        %v1511 = vld [vmem:[%s1505 + $0x28] sm:$0xff]
        %v1512 = vld [vmem:[%s1505 + $0x30] sm:$0xff]
        %v1513 = vld [vmem:[%s1505 + $0x38] sm:$0xff]
        %v1514 = vld [vmem:[%s1505 + $0x40] sm:$0xff]
        %v1515 = vld [vmem:[%s1505 + $0x48] sm:$0xff]
        %v1516 = vld [vmem:[%s1505 + $0x50] sm:$0xff]
        %v1517 = vld [vmem:[%s1505 + $0x58] sm:$0xff]
        %v1518 = vld [vmem:[%s1505 + $0x60] sm:$0xff]
        %v1519 = vld [vmem:[%s1505 + $0x68] sm:$0xff]
        %v1520 = vld [vmem:[%s1505 + $0x70] sm:$0xff]
        %v1521 = vld [vmem:[%s1505 + $0x78] sm:$0xff]
        %v1522 = vld [vmem:[%s1505 + $0x80] sm:$0xff]
        %v1523 = vld [vmem:[%s1505 + $0x88] sm:$0xff]
        %v1524 = vld [vmem:[%s1505 + $0x90] sm:$0xff]
        %v1525 = vld [vmem:[%s1505 + $0x98] sm:$0xff]
        %v1526 = vld [vmem:[%s1505 + $0xa0] sm:$0xff]
        %v1527 = vld [vmem:[%s1505 + $0xa8] sm:$0xff]
        %v1528 = vld [vmem:[%s1505 + $0xb0] sm:$0xff]
        %v1529 = vld [vmem:[%s1505 + $0xb8] sm:$0xff]
        %v1530 = vld [vmem:[%s1505 + $0xc0] sm:$0xff]
        %v1531 = vld [vmem:[%s1505 + $0xc8] sm:$0xff]
        %v1532 = vld [vmem:[%s1505 + $0xd0] sm:$0xff]
        %v1533 = vld [vmem:[%s1505 + $0xd8] sm:$0xff]
        %v1534 = vld [vmem:[%s1505 + $0xe0] sm:$0xff]
        %v1535 = vld [vmem:[%s1505 + $0xe8] sm:$0xff]
        %v1536 = vld [vmem:[%s1505 + $0xf0] sm:$0xff]
        %v1537 = vld [vmem:[%s1505 + $0xf8] sm:$0xff]
        %v1538 = vld [vmem:[%s1505 + $0x100] sm:$0xff]
        %v1539 = vld [vmem:[%s1505 + $0x108] sm:$0xff]
        %v1540 = vld [vmem:[%s1505 + $0x110] sm:$0xff]
        %v1541 = vld [vmem:[%s1505 + $0x118] sm:$0xff]
        %v1542 = vld [vmem:[%s1505 + $0x120] sm:$0xff]
        %v1543 = vld [vmem:[%s1505 + $0x128] sm:$0xff]
        %v1544 = vld [vmem:[%s1505 + $0x130] sm:$0xff]
        %v1545 = vld [vmem:[%s1505 + $0x138] sm:$0xff]
        %v1546 = vld [vmem:[%s1505 + $0x140] sm:$0xff]
        %v1547 = vld [vmem:[%s1505 + $0x148] sm:$0xff]
        %v1548 = vld [vmem:[%s1505 + $0x150] sm:$0xff]
        %v1549 = vld [vmem:[%s1505 + $0x158] sm:$0xff]
        %v1550 = vld [vmem:[%s1505 + $0x160] sm:$0xff]
        %v1551 = vld [vmem:[%s1505 + $0x168] sm:$0xff]
        %v1552 = vld [vmem:[%s1505 + $0x170] sm:$0xff]
        %v1553 = vld [vmem:[%s1505 + $0x178] sm:$0xff]
        %v1554 = vld [vmem:[%s1505 + $0x180] sm:$0xff]
        %v1555 = vld [vmem:[%s1505 + $0x188] sm:$0xff]
        %v1606 = vunpack.c.l.b16 %v1506
        %v1607 = vunpack.c.h.b16 %v1506
        %v1608 = vunpack.c.l.b16 %v1507
        %v1609 = vunpack.c.h.b16 %v1507
        %v1610 = vunpack.c.l.b16 %v1508
        %v1611 = vunpack.c.h.b16 %v1508
        %v1612 = vunpack.c.l.b16 %v1509
        %v1613 = vunpack.c.h.b16 %v1509
        %v1614 = vunpack.c.l.b16 %v1510
        %v1615 = vunpack.c.h.b16 %v1510
        %v1616 = vunpack.c.l.b16 %v1511
        %v1617 = vunpack.c.h.b16 %v1511
        %v1618 = vunpack.c.l.b16 %v1512
        %v1619 = vunpack.c.h.b16 %v1512
        %v1620 = vunpack.c.l.b16 %v1513
        %v1621 = vunpack.c.h.b16 %v1513
        %v1622 = vunpack.c.l.b16 %v1514
        %v1623 = vunpack.c.h.b16 %v1514
        %v1624 = vunpack.c.l.b16 %v1515
        %v1625 = vunpack.c.h.b16 %v1515
        %v1626 = vunpack.c.l.b16 %v1516
        %v1627 = vunpack.c.h.b16 %v1516
        %v1628 = vunpack.c.l.b16 %v1517
        %v1629 = vunpack.c.h.b16 %v1517
        %v1630 = vunpack.c.l.b16 %v1518
        %v1631 = vunpack.c.h.b16 %v1518
        %v1632 = vunpack.c.l.b16 %v1519
        %v1633 = vunpack.c.h.b16 %v1519
        %v1634 = vunpack.c.l.b16 %v1520
        %v1635 = vunpack.c.h.b16 %v1520
        %v1636 = vunpack.c.l.b16 %v1521
        %v1637 = vunpack.c.h.b16 %v1521
        %v1638 = vunpack.c.l.b16 %v1522
        %v1639 = vunpack.c.h.b16 %v1522
        %v1640 = vunpack.c.l.b16 %v1523
        %v1641 = vunpack.c.h.b16 %v1523
        %v1642 = vunpack.c.l.b16 %v1524
        %v1643 = vunpack.c.h.b16 %v1524
        %v1644 = vunpack.c.l.b16 %v1525
        %v1645 = vunpack.c.h.b16 %v1525
        %v1646 = vunpack.c.l.b16 %v1526
        %v1647 = vunpack.c.h.b16 %v1526
        %v1648 = vunpack.c.l.b16 %v1527
        %v1649 = vunpack.c.h.b16 %v1527
        %v1650 = vunpack.c.l.b16 %v1528
        %v1651 = vunpack.c.h.b16 %v1528
        %v1652 = vunpack.c.l.b16 %v1529
        %v1653 = vunpack.c.h.b16 %v1529
        %v1654 = vunpack.c.l.b16 %v1530
        %v1655 = vunpack.c.h.b16 %v1530
        %v1656 = vunpack.c.l.b16 %v1531
        %v1657 = vunpack.c.h.b16 %v1531
        %v1658 = vunpack.c.l.b16 %v1532
        %v1659 = vunpack.c.h.b16 %v1532
        %v1660 = vunpack.c.l.b16 %v1533
        %v1661 = vunpack.c.h.b16 %v1533
        %v1662 = vunpack.c.l.b16 %v1534
        %v1663 = vunpack.c.h.b16 %v1534
        %v1664 = vunpack.c.l.b16 %v1535
        %v1665 = vunpack.c.h.b16 %v1535
        %v1666 = vunpack.c.l.b16 %v1536
        %v1667 = vunpack.c.h.b16 %v1536
        %v1668 = vunpack.c.l.b16 %v1537
        %v1669 = vunpack.c.h.b16 %v1537
        %v1670 = vunpack.c.l.b16 %v1538
        %v1671 = vunpack.c.h.b16 %v1538
        %v1672 = vunpack.c.l.b16 %v1539
        %v1673 = vunpack.c.h.b16 %v1539
        %v1674 = vunpack.c.l.b16 %v1540
        %v1675 = vunpack.c.h.b16 %v1540
        %v1676 = vunpack.c.l.b16 %v1541
        %v1677 = vunpack.c.h.b16 %v1541
        %v1678 = vunpack.c.l.b16 %v1542
        %v1679 = vunpack.c.h.b16 %v1542
        %v1680 = vunpack.c.l.b16 %v1543
        %v1681 = vunpack.c.h.b16 %v1543
        %v1682 = vunpack.c.l.b16 %v1544
        %v1683 = vunpack.c.h.b16 %v1544
        %v1684 = vunpack.c.l.b16 %v1545
        %v1685 = vunpack.c.h.b16 %v1545
        %v1686 = vunpack.c.l.b16 %v1546
        %v1687 = vunpack.c.h.b16 %v1546
        %v1688 = vunpack.c.l.b16 %v1547
        %v1689 = vunpack.c.h.b16 %v1547
        %v1690 = vunpack.c.l.b16 %v1548
        %v1691 = vunpack.c.h.b16 %v1548
        %v1692 = vunpack.c.l.b16 %v1549
        %v1693 = vunpack.c.h.b16 %v1549
        %v1694 = vunpack.c.l.b16 %v1550
        %v1695 = vunpack.c.h.b16 %v1550
        %v1696 = vunpack.c.l.b16 %v1551
        %v1697 = vunpack.c.h.b16 %v1551
        %v1698 = vunpack.c.l.b16 %v1552
        %v1699 = vunpack.c.h.b16 %v1552
        %v1700 = vunpack.c.l.b16 %v1553
        %v1701 = vunpack.c.h.b16 %v1553
        %v1702 = vunpack.c.l.b16 %v1554
        %v1703 = vunpack.c.h.b16 %v1554
        %v1704 = vunpack.c.l.b16 %v1555
        %v1705 = vunpack.c.h.b16 %v1555
        %v1706 = vpack.c.b16 %v1608, %v1606
        %v1707 = vpack.c.b16 %v1609, %v1607
        %v1708 = vpack.c.b16 %v1612, %v1610
        %v1709 = vpack.c.b16 %v1613, %v1611
        %v1710 = vpack.c.b16 %v1616, %v1614
        %v1711 = vpack.c.b16 %v1617, %v1615
        %v1712 = vpack.c.b16 %v1620, %v1618
        %v1713 = vpack.c.b16 %v1621, %v1619
        %v1714 = vpack.c.b16 %v1624, %v1622
        %v1715 = vpack.c.b16 %v1625, %v1623
        %v1716 = vpack.c.b16 %v1628, %v1626
        %v1717 = vpack.c.b16 %v1629, %v1627
        %v1718 = vpack.c.b16 %v1632, %v1630
        %v1719 = vpack.c.b16 %v1633, %v1631
        %v1720 = vpack.c.b16 %v1636, %v1634
        %v1721 = vpack.c.b16 %v1637, %v1635
        %v1722 = vpack.c.b16 %v1640, %v1638
        %v1723 = vpack.c.b16 %v1641, %v1639
        %v1724 = vpack.c.b16 %v1644, %v1642
        %v1725 = vpack.c.b16 %v1645, %v1643
        %v1726 = vpack.c.b16 %v1648, %v1646
        %v1727 = vpack.c.b16 %v1649, %v1647
        %v1728 = vpack.c.b16 %v1652, %v1650
        %v1729 = vpack.c.b16 %v1653, %v1651
        %v1730 = vpack.c.b16 %v1656, %v1654
        %v1731 = vpack.c.b16 %v1657, %v1655
        %v1732 = vpack.c.b16 %v1660, %v1658
        %v1733 = vpack.c.b16 %v1661, %v1659
        %v1734 = vpack.c.b16 %v1664, %v1662
        %v1735 = vpack.c.b16 %v1665, %v1663
        %v1736 = vpack.c.b16 %v1668, %v1666
        %v1737 = vpack.c.b16 %v1669, %v1667
        %v1738 = vpack.c.b16 %v1672, %v1670
        %v1739 = vpack.c.b16 %v1673, %v1671
        %v1740 = vpack.c.b16 %v1676, %v1674
        %v1741 = vpack.c.b16 %v1677, %v1675
        %v1742 = vpack.c.b16 %v1680, %v1678
        %v1743 = vpack.c.b16 %v1681, %v1679
        %v1744 = vpack.c.b16 %v1684, %v1682
        %v1745 = vpack.c.b16 %v1685, %v1683
        %v1746 = vpack.c.b16 %v1688, %v1686
        %v1747 = vpack.c.b16 %v1689, %v1687
        %v1748 = vpack.c.b16 %v1692, %v1690
        %v1749 = vpack.c.b16 %v1693, %v1691
        %v1750 = vpack.c.b16 %v1696, %v1694
        %v1751 = vpack.c.b16 %v1697, %v1695
        %v1752 = vpack.c.b16 %v1700, %v1698
        %v1753 = vpack.c.b16 %v1701, %v1699
        %v1754 = vpack.c.b16 %v1704, %v1702
        %v1755 = vpack.c.b16 %v1705, %v1703
        %1806 = vmatpush.bf16.msra.mxu0 %v1720
        %1807 = vmatpush.bf16.msra.mxu0 %v1718
        %1808 = vmatpush.bf16.msra.mxu0 %v1716
        %1809 = vmatpush.bf16.msra.mxu0 %v1714
        %1810 = vmatpush.bf16.msra.mxu0 %v1712
        %1811 = vmatpush.bf16.msra.mxu0 %v1710
        %1812 = vmatpush.bf16.msra.mxu0 %v1708
        %1813 = vmatpush.bf16.msra.mxu0 %v1706
        %1814 = vmatmul.bf16.gmra.mxu0 %v1082
        %v1815 = vpop.f32.mrf.mxu0
        %v1816 = vadd.f32 0.0, %v1815
        %v1817 = vpop.f32.mrf.mxu0
        %v1818 = vadd.f32 0.0, %v1817
        %1819 = vmatmul.bf16.gmra.mxu0 %v1086
        %v1820 = vpop.f32.mrf.mxu0
        %v1821 = vadd.f32 0.0, %v1820
        %v1822 = vpop.f32.mrf.mxu0
        %v1823 = vadd.f32 0.0, %v1822
        %1824 = vdwg.mxu0
        %1825 = vmatpush.bf16.msra.mxu0 %v1736
        %1826 = vmatpush.bf16.msra.mxu0 %v1734
        %1827 = vmatpush.bf16.msra.mxu0 %v1732
        %1828 = vmatpush.bf16.msra.mxu0 %v1730
        %1829 = vmatpush.bf16.msra.mxu0 %v1728
        %1830 = vmatpush.bf16.msra.mxu0 %v1726
        %1831 = vmatpush.bf16.msra.mxu0 %v1724
        %1832 = vmatpush.bf16.msra.mxu0 %v1722
        %1833 = vmatmul.bf16.gmra.mxu0 %v1083
        %v1834 = vpop.f32.mrf.mxu0
        %v1835 = vadd.f32 %v1816, %v1834
        %v1836 = vpop.f32.mrf.mxu0
        %v1837 = vadd.f32 %v1818, %v1836
        %1838 = vmatmul.bf16.gmra.mxu0 %v1087
        %v1839 = vpop.f32.mrf.mxu0
        %v1840 = vadd.f32 %v1821, %v1839
        %v1841 = vpop.f32.mrf.mxu0
        %v1842 = vadd.f32 %v1823, %v1841
        %1843 = vdwg.mxu0
        %1844 = vmatpush.bf16.msra.mxu0 %v1752
        %1845 = vmatpush.bf16.msra.mxu0 %v1750
        %1846 = vmatpush.bf16.msra.mxu0 %v1748
        %1847 = vmatpush.bf16.msra.mxu0 %v1746
        %1848 = vmatpush.bf16.msra.mxu0 %v1744
        %1849 = vmatpush.bf16.msra.mxu0 %v1742
        %1850 = vmatpush.bf16.msra.mxu0 %v1740
        %1851 = vmatpush.bf16.msra.mxu0 %v1738
        %1852 = vmatmul.bf16.gmra.mxu0 %v1084
        %v1853 = vpop.f32.mrf.mxu0
        %v1854 = vadd.f32 %v1835, %v1853
        %v1855 = vpop.f32.mrf.mxu0
        %v1856 = vadd.f32 %v1837, %v1855
        %1857 = vmatmul.bf16.gmra.mxu0 %v1088
        %v1858 = vpop.f32.mrf.mxu0
        %v1859 = vadd.f32 %v1840, %v1858
        %v1860 = vpop.f32.mrf.mxu0
        %v1861 = vadd.f32 %v1842, %v1860
        %1862 = vdwg.mxu0
        %1863 = vmatpush.bf16.msra.mxu0 0
        %1864 = vmatpush.bf16.msra.mxu0 0
        %1865 = vmatpush.bf16.msra.mxu0 0
        %1866 = vmatpush.bf16.msra.mxu0 0
        %1867 = vmatpush.bf16.msra.mxu0 0
        %1868 = vmatpush.bf16.msra.mxu0 0
        %1869 = vmatpush.bf16.msra.mxu0 0
        %1870 = vmatpush.bf16.msra.mxu0 %v1754
        %1871 = vmatmul.bf16.gmra.mxu0 %v1348
        %v1872 = vpop.f32.mrf.mxu0
        %v1873 = vadd.f32 %v1854, %v1872
        %v1874 = vpop.f32.mrf.mxu0
        %v1875 = vadd.f32 %v1856, %v1874
        %1876 = vmatmul.bf16.gmra.mxu0 %v1351
        %v1877 = vpop.f32.mrf.mxu0
        %v1878 = vadd.f32 %v1859, %v1877
        %v1879 = vpop.f32.mrf.mxu0
        %v1880 = vadd.f32 %v1861, %v1879
        %1881 = vdwg.mxu0
        %1882 = vmatpush.bf16.msra.mxu0 %v1721
        %1883 = vmatpush.bf16.msra.mxu0 %v1719
        %1884 = vmatpush.bf16.msra.mxu0 %v1717
        %1885 = vmatpush.bf16.msra.mxu0 %v1715
        %1886 = vmatpush.bf16.msra.mxu0 %v1713
        %1887 = vmatpush.bf16.msra.mxu0 %v1711
        %1888 = vmatpush.bf16.msra.mxu0 %v1709
        %1889 = vmatpush.bf16.msra.mxu0 %v1707
        %1890 = vmatmul.bf16.gmra.mxu0 %v1082
        %v1891 = vpop.f32.mrf.mxu0
        %v1892 = vadd.f32 0.0, %v1891
        %v1893 = vpop.f32.mrf.mxu0
        %v1894 = vadd.f32 0.0, %v1893
        %1895 = vmatmul.bf16.gmra.mxu0 %v1086
        %v1896 = vpop.f32.mrf.mxu0
        %v1897 = vadd.f32 0.0, %v1896
        %v1898 = vpop.f32.mrf.mxu0
        %v1899 = vadd.f32 0.0, %v1898
        %1900 = vdwg.mxu0
        %1901 = vmatpush.bf16.msra.mxu0 %v1737
        %1902 = vmatpush.bf16.msra.mxu0 %v1735
        %1903 = vmatpush.bf16.msra.mxu0 %v1733
        %1904 = vmatpush.bf16.msra.mxu0 %v1731
        %1905 = vmatpush.bf16.msra.mxu0 %v1729
        %1906 = vmatpush.bf16.msra.mxu0 %v1727
        %1907 = vmatpush.bf16.msra.mxu0 %v1725
        %1908 = vmatpush.bf16.msra.mxu0 %v1723
        %1909 = vmatmul.bf16.gmra.mxu0 %v1083
        %v1910 = vpop.f32.mrf.mxu0
        %v1911 = vadd.f32 %v1892, %v1910
        %v1912 = vpop.f32.mrf.mxu0
        %v1913 = vadd.f32 %v1894, %v1912
        %1914 = vmatmul.bf16.gmra.mxu0 %v1087
        %v1915 = vpop.f32.mrf.mxu0
        %v1916 = vadd.f32 %v1897, %v1915
        %v1917 = vpop.f32.mrf.mxu0
        %v1918 = vadd.f32 %v1899, %v1917
        %1919 = vdwg.mxu0
        %1920 = vmatpush.bf16.msra.mxu0 %v1753
        %1921 = vmatpush.bf16.msra.mxu0 %v1751
        %1922 = vmatpush.bf16.msra.mxu0 %v1749
        %1923 = vmatpush.bf16.msra.mxu0 %v1747
        %1924 = vmatpush.bf16.msra.mxu0 %v1745
        %1925 = vmatpush.bf16.msra.mxu0 %v1743
        %1926 = vmatpush.bf16.msra.mxu0 %v1741
        %1927 = vmatpush.bf16.msra.mxu0 %v1739
        %1928 = vmatmul.bf16.gmra.mxu0 %v1084
        %v1929 = vpop.f32.mrf.mxu0
        %v1930 = vadd.f32 %v1911, %v1929
        %v1931 = vpop.f32.mrf.mxu0
        %v1932 = vadd.f32 %v1913, %v1931
        %1933 = vmatmul.bf16.gmra.mxu0 %v1088
        %v1934 = vpop.f32.mrf.mxu0
        %v1935 = vadd.f32 %v1916, %v1934
        %v1936 = vpop.f32.mrf.mxu0
        %v1937 = vadd.f32 %v1918, %v1936
        %1938 = vdwg.mxu0
        %1939 = vmatpush.bf16.msra.mxu0 0
        %1940 = vmatpush.bf16.msra.mxu0 0
        %1941 = vmatpush.bf16.msra.mxu0 0
        %1942 = vmatpush.bf16.msra.mxu0 0
        %1943 = vmatpush.bf16.msra.mxu0 0
        %1944 = vmatpush.bf16.msra.mxu0 0
        %1945 = vmatpush.bf16.msra.mxu0 0
        %1946 = vmatpush.bf16.msra.mxu0 %v1755
        %1947 = vmatmul.bf16.gmra.mxu0 %v1348
        %v1948 = vpop.f32.mrf.mxu0
        %v1949 = vadd.f32 %v1930, %v1948
        %v1950 = vpop.f32.mrf.mxu0
        %v1951 = vadd.f32 %v1932, %v1950
        %1952 = vmatmul.bf16.gmra.mxu0 %v1351
        %v1953 = vpop.f32.mrf.mxu0
        %v1954 = vadd.f32 %v1935, %v1953
        %v1955 = vpop.f32.mrf.mxu0
        %v1956 = vadd.f32 %v1937, %v1955
        %1957 = vdwg.mxu0
        %v1958 = vmax.f32 %v1420, %v1873
        %v1959 = vmax.f32 %v1496, %v1949
        %v1960 = vmax.f32 %v1422, %v1875
        %v1961 = vmax.f32 %v1498, %v1951
        %v1962 = vmax.f32 %v1425, %v1878
        %v1963 = vmax.f32 %v1501, %v1954
        %v1964 = vmax.f32 %v1427, %v1880
        %v1965 = vmax.f32 %v1503, %v1956
        %s1966 = scalar_lea.vmem %s977, 800 [#allocation2]
        %v1967 = vld [vmem:[%s1966] sm:$0xff]
        %v1968 = vld [vmem:[%s1966 + $0x8] sm:$0xff]
        %v1969 = vld [vmem:[%s1966 + $0x10] sm:$0xff]
        %v1970 = vld [vmem:[%s1966 + $0x18] sm:$0xff]
        %v1971 = vld [vmem:[%s1966 + $0x20] sm:$0xff]
        %v1972 = vld [vmem:[%s1966 + $0x28] sm:$0xff]
        %v1973 = vld [vmem:[%s1966 + $0x30] sm:$0xff]
        %v1974 = vld [vmem:[%s1966 + $0x38] sm:$0xff]
        %v1975 = vld [vmem:[%s1966 + $0x40] sm:$0xff]
        %v1976 = vld [vmem:[%s1966 + $0x48] sm:$0xff]
        %v1977 = vld [vmem:[%s1966 + $0x50] sm:$0xff]
        %v1978 = vld [vmem:[%s1966 + $0x58] sm:$0xff]
        %v1979 = vld [vmem:[%s1966 + $0x60] sm:$0xff]
        %v1980 = vld [vmem:[%s1966 + $0x68] sm:$0xff]
        %v1981 = vld [vmem:[%s1966 + $0x70] sm:$0xff]
        %v1982 = vld [vmem:[%s1966 + $0x78] sm:$0xff]
        %v1983 = vld [vmem:[%s1966 + $0x80] sm:$0xff]
        %v1984 = vld [vmem:[%s1966 + $0x88] sm:$0xff]
        %v1985 = vld [vmem:[%s1966 + $0x90] sm:$0xff]
        %v1986 = vld [vmem:[%s1966 + $0x98] sm:$0xff]
        %v1987 = vld [vmem:[%s1966 + $0xa0] sm:$0xff]
        %v1988 = vld [vmem:[%s1966 + $0xa8] sm:$0xff]
        %v1989 = vld [vmem:[%s1966 + $0xb0] sm:$0xff]
        %v1990 = vld [vmem:[%s1966 + $0xb8] sm:$0xff]
        %v1991 = vld [vmem:[%s1966 + $0xc0] sm:$0xff]
        %v1992 = vld [vmem:[%s1966 + $0xc8] sm:$0xff]
        %v1993 = vld [vmem:[%s1966 + $0xd0] sm:$0xff]
        %v1994 = vld [vmem:[%s1966 + $0xd8] sm:$0xff]
        %v1995 = vld [vmem:[%s1966 + $0xe0] sm:$0xff]
        %v1996 = vld [vmem:[%s1966 + $0xe8] sm:$0xff]
        %v1997 = vld [vmem:[%s1966 + $0xf0] sm:$0xff]
        %v1998 = vld [vmem:[%s1966 + $0xf8] sm:$0xff]
        %v1999 = vld [vmem:[%s1966 + $0x100] sm:$0xff]
        %v2000 = vld [vmem:[%s1966 + $0x108] sm:$0xff]
        %v2001 = vld [vmem:[%s1966 + $0x110] sm:$0xff]
        %v2002 = vld [vmem:[%s1966 + $0x118] sm:$0xff]
        %v2003 = vld [vmem:[%s1966 + $0x120] sm:$0xff]
        %v2004 = vld [vmem:[%s1966 + $0x128] sm:$0xff]
        %v2005 = vld [vmem:[%s1966 + $0x130] sm:$0xff]
        %v2006 = vld [vmem:[%s1966 + $0x138] sm:$0xff]
        %v2007 = vld [vmem:[%s1966 + $0x140] sm:$0xff]
        %v2008 = vld [vmem:[%s1966 + $0x148] sm:$0xff]
        %v2009 = vld [vmem:[%s1966 + $0x150] sm:$0xff]
        %v2010 = vld [vmem:[%s1966 + $0x158] sm:$0xff]
        %v2011 = vld [vmem:[%s1966 + $0x160] sm:$0xff]
        %v2012 = vld [vmem:[%s1966 + $0x168] sm:$0xff]
        %v2013 = vld [vmem:[%s1966 + $0x170] sm:$0xff]
        %v2014 = vld [vmem:[%s1966 + $0x178] sm:$0xff]
        %v2015 = vld [vmem:[%s1966 + $0x180] sm:$0xff]
        %v2016 = vld [vmem:[%s1966 + $0x188] sm:$0xff]
        %v2067 = vunpack.c.l.b16 %v1967
        %v2068 = vunpack.c.h.b16 %v1967
        %v2069 = vunpack.c.l.b16 %v1968
        %v2070 = vunpack.c.h.b16 %v1968
        %v2071 = vunpack.c.l.b16 %v1969
        %v2072 = vunpack.c.h.b16 %v1969
        %v2073 = vunpack.c.l.b16 %v1970
        %v2074 = vunpack.c.h.b16 %v1970
        %v2075 = vunpack.c.l.b16 %v1971
        %v2076 = vunpack.c.h.b16 %v1971
        %v2077 = vunpack.c.l.b16 %v1972
        %v2078 = vunpack.c.h.b16 %v1972
        %v2079 = vunpack.c.l.b16 %v1973
        %v2080 = vunpack.c.h.b16 %v1973
        %v2081 = vunpack.c.l.b16 %v1974
        %v2082 = vunpack.c.h.b16 %v1974
        %v2083 = vunpack.c.l.b16 %v1975
        %v2084 = vunpack.c.h.b16 %v1975
        %v2085 = vunpack.c.l.b16 %v1976
        %v2086 = vunpack.c.h.b16 %v1976
        %v2087 = vunpack.c.l.b16 %v1977
        %v2088 = vunpack.c.h.b16 %v1977
        %v2089 = vunpack.c.l.b16 %v1978
        %v2090 = vunpack.c.h.b16 %v1978
        %v2091 = vunpack.c.l.b16 %v1979
        %v2092 = vunpack.c.h.b16 %v1979
        %v2093 = vunpack.c.l.b16 %v1980
        %v2094 = vunpack.c.h.b16 %v1980
        %v2095 = vunpack.c.l.b16 %v1981
        %v2096 = vunpack.c.h.b16 %v1981
        %v2097 = vunpack.c.l.b16 %v1982
        %v2098 = vunpack.c.h.b16 %v1982
        %v2099 = vunpack.c.l.b16 %v1983
        %v2100 = vunpack.c.h.b16 %v1983
        %v2101 = vunpack.c.l.b16 %v1984
        %v2102 = vunpack.c.h.b16 %v1984
        %v2103 = vunpack.c.l.b16 %v1985
        %v2104 = vunpack.c.h.b16 %v1985
        %v2105 = vunpack.c.l.b16 %v1986
        %v2106 = vunpack.c.h.b16 %v1986
        %v2107 = vunpack.c.l.b16 %v1987
        %v2108 = vunpack.c.h.b16 %v1987
        %v2109 = vunpack.c.l.b16 %v1988
        %v2110 = vunpack.c.h.b16 %v1988
        %v2111 = vunpack.c.l.b16 %v1989
        %v2112 = vunpack.c.h.b16 %v1989
        %v2113 = vunpack.c.l.b16 %v1990
        %v2114 = vunpack.c.h.b16 %v1990
        %v2115 = vunpack.c.l.b16 %v1991
        %v2116 = vunpack.c.h.b16 %v1991
        %v2117 = vunpack.c.l.b16 %v1992
        %v2118 = vunpack.c.h.b16 %v1992
        %v2119 = vunpack.c.l.b16 %v1993
        %v2120 = vunpack.c.h.b16 %v1993
        %v2121 = vunpack.c.l.b16 %v1994
        %v2122 = vunpack.c.h.b16 %v1994
        %v2123 = vunpack.c.l.b16 %v1995
        %v2124 = vunpack.c.h.b16 %v1995
        %v2125 = vunpack.c.l.b16 %v1996
        %v2126 = vunpack.c.h.b16 %v1996
        %v2127 = vunpack.c.l.b16 %v1997
        %v2128 = vunpack.c.h.b16 %v1997
        %v2129 = vunpack.c.l.b16 %v1998
        %v2130 = vunpack.c.h.b16 %v1998
        %v2131 = vunpack.c.l.b16 %v1999
        %v2132 = vunpack.c.h.b16 %v1999
        %v2133 = vunpack.c.l.b16 %v2000
        %v2134 = vunpack.c.h.b16 %v2000
        %v2135 = vunpack.c.l.b16 %v2001
        %v2136 = vunpack.c.h.b16 %v2001
        %v2137 = vunpack.c.l.b16 %v2002
        %v2138 = vunpack.c.h.b16 %v2002
        %v2139 = vunpack.c.l.b16 %v2003
        %v2140 = vunpack.c.h.b16 %v2003
        %v2141 = vunpack.c.l.b16 %v2004
        %v2142 = vunpack.c.h.b16 %v2004
        %v2143 = vunpack.c.l.b16 %v2005
        %v2144 = vunpack.c.h.b16 %v2005
        %v2145 = vunpack.c.l.b16 %v2006
        %v2146 = vunpack.c.h.b16 %v2006
        %v2147 = vunpack.c.l.b16 %v2007
        %v2148 = vunpack.c.h.b16 %v2007
        %v2149 = vunpack.c.l.b16 %v2008
        %v2150 = vunpack.c.h.b16 %v2008
        %v2151 = vunpack.c.l.b16 %v2009
        %v2152 = vunpack.c.h.b16 %v2009
        %v2153 = vunpack.c.l.b16 %v2010
        %v2154 = vunpack.c.h.b16 %v2010
        %v2155 = vunpack.c.l.b16 %v2011
        %v2156 = vunpack.c.h.b16 %v2011
        %v2157 = vunpack.c.l.b16 %v2012
        %v2158 = vunpack.c.h.b16 %v2012
        %v2159 = vunpack.c.l.b16 %v2013
        %v2160 = vunpack.c.h.b16 %v2013
        %v2161 = vunpack.c.l.b16 %v2014
        %v2162 = vunpack.c.h.b16 %v2014
        %v2163 = vunpack.c.l.b16 %v2015
        %v2164 = vunpack.c.h.b16 %v2015
        %v2165 = vunpack.c.l.b16 %v2016
        %v2166 = vunpack.c.h.b16 %v2016
        %v2167 = vpack.c.b16 %v2069, %v2067
        %v2168 = vpack.c.b16 %v2070, %v2068
        %v2169 = vpack.c.b16 %v2073, %v2071
        %v2170 = vpack.c.b16 %v2074, %v2072
        %v2171 = vpack.c.b16 %v2077, %v2075
        %v2172 = vpack.c.b16 %v2078, %v2076
        %v2173 = vpack.c.b16 %v2081, %v2079
        %v2174 = vpack.c.b16 %v2082, %v2080
        %v2175 = vpack.c.b16 %v2085, %v2083
        %v2176 = vpack.c.b16 %v2086, %v2084
        %v2177 = vpack.c.b16 %v2089, %v2087
        %v2178 = vpack.c.b16 %v2090, %v2088
        %v2179 = vpack.c.b16 %v2093, %v2091
        %v2180 = vpack.c.b16 %v2094, %v2092
        %v2181 = vpack.c.b16 %v2097, %v2095
        %v2182 = vpack.c.b16 %v2098, %v2096
        %v2183 = vpack.c.b16 %v2101, %v2099
        %v2184 = vpack.c.b16 %v2102, %v2100
        %v2185 = vpack.c.b16 %v2105, %v2103
        %v2186 = vpack.c.b16 %v2106, %v2104
        %v2187 = vpack.c.b16 %v2109, %v2107
        %v2188 = vpack.c.b16 %v2110, %v2108
        %v2189 = vpack.c.b16 %v2113, %v2111
        %v2190 = vpack.c.b16 %v2114, %v2112
        %v2191 = vpack.c.b16 %v2117, %v2115
        %v2192 = vpack.c.b16 %v2118, %v2116
        %v2193 = vpack.c.b16 %v2121, %v2119
        %v2194 = vpack.c.b16 %v2122, %v2120
        %v2195 = vpack.c.b16 %v2125, %v2123
        %v2196 = vpack.c.b16 %v2126, %v2124
        %v2197 = vpack.c.b16 %v2129, %v2127
        %v2198 = vpack.c.b16 %v2130, %v2128
        %v2199 = vpack.c.b16 %v2133, %v2131
        %v2200 = vpack.c.b16 %v2134, %v2132
        %v2201 = vpack.c.b16 %v2137, %v2135
        %v2202 = vpack.c.b16 %v2138, %v2136
        %v2203 = vpack.c.b16 %v2141, %v2139
        %v2204 = vpack.c.b16 %v2142, %v2140
        %v2205 = vpack.c.b16 %v2145, %v2143
        %v2206 = vpack.c.b16 %v2146, %v2144
        %v2207 = vpack.c.b16 %v2149, %v2147
        %v2208 = vpack.c.b16 %v2150, %v2148
        %v2209 = vpack.c.b16 %v2153, %v2151
        %v2210 = vpack.c.b16 %v2154, %v2152
        %v2211 = vpack.c.b16 %v2157, %v2155
        %v2212 = vpack.c.b16 %v2158, %v2156
        %v2213 = vpack.c.b16 %v2161, %v2159
        %v2214 = vpack.c.b16 %v2162, %v2160
        %v2215 = vpack.c.b16 %v2165, %v2163
        %v2216 = vpack.c.b16 %v2166, %v2164
        %2267 = vmatpush.bf16.msra.mxu0 %v2181
        %2268 = vmatpush.bf16.msra.mxu0 %v2179
        %2269 = vmatpush.bf16.msra.mxu0 %v2177
        %2270 = vmatpush.bf16.msra.mxu0 %v2175
        %2271 = vmatpush.bf16.msra.mxu0 %v2173
        %2272 = vmatpush.bf16.msra.mxu0 %v2171
        %2273 = vmatpush.bf16.msra.mxu0 %v2169
        %2274 = vmatpush.bf16.msra.mxu0 %v2167
        %2275 = vmatmul.bf16.gmra.mxu0 %v1082
        %v2276 = vpop.f32.mrf.mxu0
        %v2277 = vadd.f32 0.0, %v2276
        %v2278 = vpop.f32.mrf.mxu0
        %v2279 = vadd.f32 0.0, %v2278
        %2280 = vmatmul.bf16.gmra.mxu0 %v1086
        %v2281 = vpop.f32.mrf.mxu0
        %v2282 = vadd.f32 0.0, %v2281
        %v2283 = vpop.f32.mrf.mxu0
        %v2284 = vadd.f32 0.0, %v2283
        %2285 = vdwg.mxu0
        %2286 = vmatpush.bf16.msra.mxu0 %v2197
        %2287 = vmatpush.bf16.msra.mxu0 %v2195
        %2288 = vmatpush.bf16.msra.mxu0 %v2193
        %2289 = vmatpush.bf16.msra.mxu0 %v2191
        %2290 = vmatpush.bf16.msra.mxu0 %v2189
        %2291 = vmatpush.bf16.msra.mxu0 %v2187
        %2292 = vmatpush.bf16.msra.mxu0 %v2185
        %2293 = vmatpush.bf16.msra.mxu0 %v2183
        %2294 = vmatmul.bf16.gmra.mxu0 %v1083
        %v2295 = vpop.f32.mrf.mxu0
        %v2296 = vadd.f32 %v2277, %v2295
        %v2297 = vpop.f32.mrf.mxu0
        %v2298 = vadd.f32 %v2279, %v2297
        %2299 = vmatmul.bf16.gmra.mxu0 %v1087
        %v2300 = vpop.f32.mrf.mxu0
        %v2301 = vadd.f32 %v2282, %v2300
        %v2302 = vpop.f32.mrf.mxu0
        %v2303 = vadd.f32 %v2284, %v2302
        %2304 = vdwg.mxu0
        %2305 = vmatpush.bf16.msra.mxu0 %v2213
        %2306 = vmatpush.bf16.msra.mxu0 %v2211
        %2307 = vmatpush.bf16.msra.mxu0 %v2209
        %2308 = vmatpush.bf16.msra.mxu0 %v2207
        %2309 = vmatpush.bf16.msra.mxu0 %v2205
        %2310 = vmatpush.bf16.msra.mxu0 %v2203
        %2311 = vmatpush.bf16.msra.mxu0 %v2201
        %2312 = vmatpush.bf16.msra.mxu0 %v2199
        %2313 = vmatmul.bf16.gmra.mxu0 %v1084
        %v2314 = vpop.f32.mrf.mxu0
        %v2315 = vadd.f32 %v2296, %v2314
        %v2316 = vpop.f32.mrf.mxu0
        %v2317 = vadd.f32 %v2298, %v2316
        %2318 = vmatmul.bf16.gmra.mxu0 %v1088
        %v2319 = vpop.f32.mrf.mxu0
        %v2320 = vadd.f32 %v2301, %v2319
        %v2321 = vpop.f32.mrf.mxu0
        %v2322 = vadd.f32 %v2303, %v2321
        %2323 = vdwg.mxu0
        %2324 = vmatpush.bf16.msra.mxu0 0
        %2325 = vmatpush.bf16.msra.mxu0 0
        %2326 = vmatpush.bf16.msra.mxu0 0
        %2327 = vmatpush.bf16.msra.mxu0 0
        %2328 = vmatpush.bf16.msra.mxu0 0
        %2329 = vmatpush.bf16.msra.mxu0 0
        %2330 = vmatpush.bf16.msra.mxu0 0
        %2331 = vmatpush.bf16.msra.mxu0 %v2215
        %2332 = vmatmul.bf16.gmra.mxu0 %v1348
        %v2333 = vpop.f32.mrf.mxu0
        %v2334 = vadd.f32 %v2315, %v2333
        %v2335 = vpop.f32.mrf.mxu0
        %v2336 = vadd.f32 %v2317, %v2335
        %2337 = vmatmul.bf16.gmra.mxu0 %v1351
        %v2338 = vpop.f32.mrf.mxu0
        %v2339 = vadd.f32 %v2320, %v2338
        %v2340 = vpop.f32.mrf.mxu0
        %v2341 = vadd.f32 %v2322, %v2340
        %2342 = vdwg.mxu0
        %2343 = vmatpush.bf16.msra.mxu0 %v2182
        %2344 = vmatpush.bf16.msra.mxu0 %v2180
        %2345 = vmatpush.bf16.msra.mxu0 %v2178
        %2346 = vmatpush.bf16.msra.mxu0 %v2176
        %2347 = vmatpush.bf16.msra.mxu0 %v2174
        %2348 = vmatpush.bf16.msra.mxu0 %v2172
        %2349 = vmatpush.bf16.msra.mxu0 %v2170
        %2350 = vmatpush.bf16.msra.mxu0 %v2168
        %2351 = vmatmul.bf16.gmra.mxu0 %v1082
        %v2352 = vpop.f32.mrf.mxu0
        %v2353 = vadd.f32 0.0, %v2352
        %v2354 = vpop.f32.mrf.mxu0
        %v2355 = vadd.f32 0.0, %v2354
        %2356 = vmatmul.bf16.gmra.mxu0 %v1086
        %v2357 = vpop.f32.mrf.mxu0
        %v2358 = vadd.f32 0.0, %v2357
        %v2359 = vpop.f32.mrf.mxu0
        %v2360 = vadd.f32 0.0, %v2359
        %2361 = vdwg.mxu0
        %2362 = vmatpush.bf16.msra.mxu0 %v2198
        %2363 = vmatpush.bf16.msra.mxu0 %v2196
        %2364 = vmatpush.bf16.msra.mxu0 %v2194
        %2365 = vmatpush.bf16.msra.mxu0 %v2192
        %2366 = vmatpush.bf16.msra.mxu0 %v2190
        %2367 = vmatpush.bf16.msra.mxu0 %v2188
        %2368 = vmatpush.bf16.msra.mxu0 %v2186
        %2369 = vmatpush.bf16.msra.mxu0 %v2184
        %2370 = vmatmul.bf16.gmra.mxu0 %v1083
        %v2371 = vpop.f32.mrf.mxu0
        %v2372 = vadd.f32 %v2353, %v2371
        %v2373 = vpop.f32.mrf.mxu0
        %v2374 = vadd.f32 %v2355, %v2373
        %2375 = vmatmul.bf16.gmra.mxu0 %v1087
        %v2376 = vpop.f32.mrf.mxu0
        %v2377 = vadd.f32 %v2358, %v2376
        %v2378 = vpop.f32.mrf.mxu0
        %v2379 = vadd.f32 %v2360, %v2378
        %2380 = vdwg.mxu0
        %2381 = vmatpush.bf16.msra.mxu0 %v2214
        %2382 = vmatpush.bf16.msra.mxu0 %v2212
        %2383 = vmatpush.bf16.msra.mxu0 %v2210
        %2384 = vmatpush.bf16.msra.mxu0 %v2208
        %2385 = vmatpush.bf16.msra.mxu0 %v2206
        %2386 = vmatpush.bf16.msra.mxu0 %v2204
        %2387 = vmatpush.bf16.msra.mxu0 %v2202
        %2388 = vmatpush.bf16.msra.mxu0 %v2200
        %2389 = vmatmul.bf16.gmra.mxu0 %v1084
        %v2390 = vpop.f32.mrf.mxu0
        %v2391 = vadd.f32 %v2372, %v2390
        %v2392 = vpop.f32.mrf.mxu0
        %v2393 = vadd.f32 %v2374, %v2392
        %2394 = vmatmul.bf16.gmra.mxu0 %v1088
        %v2395 = vpop.f32.mrf.mxu0
        %v2396 = vadd.f32 %v2377, %v2395
        %v2397 = vpop.f32.mrf.mxu0
        %v2398 = vadd.f32 %v2379, %v2397
        %2399 = vdwg.mxu0
        %2400 = vmatpush.bf16.msra.mxu0 0
        %2401 = vmatpush.bf16.msra.mxu0 0
        %2402 = vmatpush.bf16.msra.mxu0 0
        %2403 = vmatpush.bf16.msra.mxu0 0
        %2404 = vmatpush.bf16.msra.mxu0 0
        %2405 = vmatpush.bf16.msra.mxu0 0
        %2406 = vmatpush.bf16.msra.mxu0 0
        %2407 = vmatpush.bf16.msra.mxu0 %v2216
        %2408 = vmatmul.bf16.gmra.mxu0 %v1348
        %v2409 = vpop.f32.mrf.mxu0
        %v2410 = vadd.f32 %v2391, %v2409
        %v2411 = vpop.f32.mrf.mxu0
        %v2412 = vadd.f32 %v2393, %v2411
        %2413 = vmatmul.bf16.gmra.mxu0 %v1351
        %v2414 = vpop.f32.mrf.mxu0
        %v2415 = vadd.f32 %v2396, %v2414
        %v2416 = vpop.f32.mrf.mxu0
        %v2417 = vadd.f32 %v2398, %v2416
        %2418 = vdwg.mxu0
        %v2419 = vmax.f32 %v1958, %v2334
        %v2420 = vmax.f32 %v1959, %v2410
        %v2421 = vmax.f32 %v1960, %v2336
        %v2422 = vmax.f32 %v1961, %v2412
        %v2423 = vmax.f32 %v1962, %v2339
        %v2424 = vmax.f32 %v1963, %v2415
        %v2425 = vmax.f32 %v1964, %v2341
        %v2426 = vmax.f32 %v1965, %v2417
        %s2427 = scalar_lea.vmem %s977, 1200 [#allocation2]
        %v2428 = vld [vmem:[%s2427] sm:$0xff]
        %v2429 = vld [vmem:[%s2427 + $0x8] sm:$0xff]
        %v2430 = vld [vmem:[%s2427 + $0x10] sm:$0xff]
        %v2431 = vld [vmem:[%s2427 + $0x18] sm:$0xff]
        %v2432 = vld [vmem:[%s2427 + $0x20] sm:$0xff]
        %v2433 = vld [vmem:[%s2427 + $0x28] sm:$0xff]
        %v2434 = vld [vmem:[%s2427 + $0x30] sm:$0xff]
        %v2435 = vld [vmem:[%s2427 + $0x38] sm:$0xff]
        %v2436 = vld [vmem:[%s2427 + $0x40] sm:$0xff]
        %v2437 = vld [vmem:[%s2427 + $0x48] sm:$0xff]
        %v2438 = vld [vmem:[%s2427 + $0x50] sm:$0xff]
        %v2439 = vld [vmem:[%s2427 + $0x58] sm:$0xff]
        %v2440 = vld [vmem:[%s2427 + $0x60] sm:$0xff]
        %v2441 = vld [vmem:[%s2427 + $0x68] sm:$0xff]
        %v2442 = vld [vmem:[%s2427 + $0x70] sm:$0xff]
        %v2443 = vld [vmem:[%s2427 + $0x78] sm:$0xff]
        %v2444 = vld [vmem:[%s2427 + $0x80] sm:$0xff]
        %v2445 = vld [vmem:[%s2427 + $0x88] sm:$0xff]
        %v2446 = vld [vmem:[%s2427 + $0x90] sm:$0xff]
        %v2447 = vld [vmem:[%s2427 + $0x98] sm:$0xff]
        %v2448 = vld [vmem:[%s2427 + $0xa0] sm:$0xff]
        %v2449 = vld [vmem:[%s2427 + $0xa8] sm:$0xff]
        %v2450 = vld [vmem:[%s2427 + $0xb0] sm:$0xff]
        %v2451 = vld [vmem:[%s2427 + $0xb8] sm:$0xff]
        %v2452 = vld [vmem:[%s2427 + $0xc0] sm:$0xff]
        %v2453 = vld [vmem:[%s2427 + $0xc8] sm:$0xff]
        %v2454 = vld [vmem:[%s2427 + $0xd0] sm:$0xff]
        %v2455 = vld [vmem:[%s2427 + $0xd8] sm:$0xff]
        %v2456 = vld [vmem:[%s2427 + $0xe0] sm:$0xff]
        %v2457 = vld [vmem:[%s2427 + $0xe8] sm:$0xff]
        %v2458 = vld [vmem:[%s2427 + $0xf0] sm:$0xff]
        %v2459 = vld [vmem:[%s2427 + $0xf8] sm:$0xff]
        %v2460 = vld [vmem:[%s2427 + $0x100] sm:$0xff]
        %v2461 = vld [vmem:[%s2427 + $0x108] sm:$0xff]
        %v2462 = vld [vmem:[%s2427 + $0x110] sm:$0xff]
        %v2463 = vld [vmem:[%s2427 + $0x118] sm:$0xff]
        %v2464 = vld [vmem:[%s2427 + $0x120] sm:$0xff]
        %v2465 = vld [vmem:[%s2427 + $0x128] sm:$0xff]
        %v2466 = vld [vmem:[%s2427 + $0x130] sm:$0xff]
        %v2467 = vld [vmem:[%s2427 + $0x138] sm:$0xff]
        %v2468 = vld [vmem:[%s2427 + $0x140] sm:$0xff]
        %v2469 = vld [vmem:[%s2427 + $0x148] sm:$0xff]
        %v2470 = vld [vmem:[%s2427 + $0x150] sm:$0xff]
        %v2471 = vld [vmem:[%s2427 + $0x158] sm:$0xff]
        %v2472 = vld [vmem:[%s2427 + $0x160] sm:$0xff]
        %v2473 = vld [vmem:[%s2427 + $0x168] sm:$0xff]
        %v2474 = vld [vmem:[%s2427 + $0x170] sm:$0xff]
        %v2475 = vld [vmem:[%s2427 + $0x178] sm:$0xff]
        %v2476 = vld [vmem:[%s2427 + $0x180] sm:$0xff]
        %v2477 = vld [vmem:[%s2427 + $0x188] sm:$0xff]
        %v2528 = vunpack.c.l.b16 %v2428
        %v2529 = vunpack.c.h.b16 %v2428
        %v2530 = vunpack.c.l.b16 %v2429
        %v2531 = vunpack.c.h.b16 %v2429
        %v2532 = vunpack.c.l.b16 %v2430
        %v2533 = vunpack.c.h.b16 %v2430
        %v2534 = vunpack.c.l.b16 %v2431
        %v2535 = vunpack.c.h.b16 %v2431
        %v2536 = vunpack.c.l.b16 %v2432
        %v2537 = vunpack.c.h.b16 %v2432
        %v2538 = vunpack.c.l.b16 %v2433
        %v2539 = vunpack.c.h.b16 %v2433
        %v2540 = vunpack.c.l.b16 %v2434
        %v2541 = vunpack.c.h.b16 %v2434
        %v2542 = vunpack.c.l.b16 %v2435
        %v2543 = vunpack.c.h.b16 %v2435
        %v2544 = vunpack.c.l.b16 %v2436
        %v2545 = vunpack.c.h.b16 %v2436
        %v2546 = vunpack.c.l.b16 %v2437
        %v2547 = vunpack.c.h.b16 %v2437
        %v2548 = vunpack.c.l.b16 %v2438
        %v2549 = vunpack.c.h.b16 %v2438
        %v2550 = vunpack.c.l.b16 %v2439
        %v2551 = vunpack.c.h.b16 %v2439
        %v2552 = vunpack.c.l.b16 %v2440
        %v2553 = vunpack.c.h.b16 %v2440
        %v2554 = vunpack.c.l.b16 %v2441
        %v2555 = vunpack.c.h.b16 %v2441
        %v2556 = vunpack.c.l.b16 %v2442
        %v2557 = vunpack.c.h.b16 %v2442
        %v2558 = vunpack.c.l.b16 %v2443
        %v2559 = vunpack.c.h.b16 %v2443
        %v2560 = vunpack.c.l.b16 %v2444
        %v2561 = vunpack.c.h.b16 %v2444
        %v2562 = vunpack.c.l.b16 %v2445
        %v2563 = vunpack.c.h.b16 %v2445
        %v2564 = vunpack.c.l.b16 %v2446
        %v2565 = vunpack.c.h.b16 %v2446
        %v2566 = vunpack.c.l.b16 %v2447
        %v2567 = vunpack.c.h.b16 %v2447
        %v2568 = vunpack.c.l.b16 %v2448
        %v2569 = vunpack.c.h.b16 %v2448
        %v2570 = vunpack.c.l.b16 %v2449
        %v2571 = vunpack.c.h.b16 %v2449
        %v2572 = vunpack.c.l.b16 %v2450
        %v2573 = vunpack.c.h.b16 %v2450
        %v2574 = vunpack.c.l.b16 %v2451
        %v2575 = vunpack.c.h.b16 %v2451
        %v2576 = vunpack.c.l.b16 %v2452
        %v2577 = vunpack.c.h.b16 %v2452
        %v2578 = vunpack.c.l.b16 %v2453
        %v2579 = vunpack.c.h.b16 %v2453
        %v2580 = vunpack.c.l.b16 %v2454
        %v2581 = vunpack.c.h.b16 %v2454
        %v2582 = vunpack.c.l.b16 %v2455
        %v2583 = vunpack.c.h.b16 %v2455
        %v2584 = vunpack.c.l.b16 %v2456
        %v2585 = vunpack.c.h.b16 %v2456
        %v2586 = vunpack.c.l.b16 %v2457
        %v2587 = vunpack.c.h.b16 %v2457
        %v2588 = vunpack.c.l.b16 %v2458
        %v2589 = vunpack.c.h.b16 %v2458
        %v2590 = vunpack.c.l.b16 %v2459
        %v2591 = vunpack.c.h.b16 %v2459
        %v2592 = vunpack.c.l.b16 %v2460
        %v2593 = vunpack.c.h.b16 %v2460
        %v2594 = vunpack.c.l.b16 %v2461
        %v2595 = vunpack.c.h.b16 %v2461
        %v2596 = vunpack.c.l.b16 %v2462
        %v2597 = vunpack.c.h.b16 %v2462
        %v2598 = vunpack.c.l.b16 %v2463
        %v2599 = vunpack.c.h.b16 %v2463
        %v2600 = vunpack.c.l.b16 %v2464
        %v2601 = vunpack.c.h.b16 %v2464
        %v2602 = vunpack.c.l.b16 %v2465
        %v2603 = vunpack.c.h.b16 %v2465
        %v2604 = vunpack.c.l.b16 %v2466
        %v2605 = vunpack.c.h.b16 %v2466
        %v2606 = vunpack.c.l.b16 %v2467
        %v2607 = vunpack.c.h.b16 %v2467
        %v2608 = vunpack.c.l.b16 %v2468
        %v2609 = vunpack.c.h.b16 %v2468
        %v2610 = vunpack.c.l.b16 %v2469
        %v2611 = vunpack.c.h.b16 %v2469
        %v2612 = vunpack.c.l.b16 %v2470
        %v2613 = vunpack.c.h.b16 %v2470
        %v2614 = vunpack.c.l.b16 %v2471
        %v2615 = vunpack.c.h.b16 %v2471
        %v2616 = vunpack.c.l.b16 %v2472
        %v2617 = vunpack.c.h.b16 %v2472
        %v2618 = vunpack.c.l.b16 %v2473
        %v2619 = vunpack.c.h.b16 %v2473
        %v2620 = vunpack.c.l.b16 %v2474
        %v2621 = vunpack.c.h.b16 %v2474
        %v2622 = vunpack.c.l.b16 %v2475
        %v2623 = vunpack.c.h.b16 %v2475
        %v2624 = vunpack.c.l.b16 %v2476
        %v2625 = vunpack.c.h.b16 %v2476
        %v2626 = vunpack.c.l.b16 %v2477
        %v2627 = vunpack.c.h.b16 %v2477
        %v2628 = vpack.c.b16 %v2530, %v2528
        %v2629 = vpack.c.b16 %v2531, %v2529
        %v2630 = vpack.c.b16 %v2534, %v2532
        %v2631 = vpack.c.b16 %v2535, %v2533
        %v2632 = vpack.c.b16 %v2538, %v2536
        %v2633 = vpack.c.b16 %v2539, %v2537
        %v2634 = vpack.c.b16 %v2542, %v2540
        %v2635 = vpack.c.b16 %v2543, %v2541
        %v2636 = vpack.c.b16 %v2546, %v2544
        %v2637 = vpack.c.b16 %v2547, %v2545
        %v2638 = vpack.c.b16 %v2550, %v2548
        %v2639 = vpack.c.b16 %v2551, %v2549
        %v2640 = vpack.c.b16 %v2554, %v2552
        %v2641 = vpack.c.b16 %v2555, %v2553
        %v2642 = vpack.c.b16 %v2558, %v2556
        %v2643 = vpack.c.b16 %v2559, %v2557
        %v2644 = vpack.c.b16 %v2562, %v2560
        %v2645 = vpack.c.b16 %v2563, %v2561
        %v2646 = vpack.c.b16 %v2566, %v2564
        %v2647 = vpack.c.b16 %v2567, %v2565
        %v2648 = vpack.c.b16 %v2570, %v2568
        %v2649 = vpack.c.b16 %v2571, %v2569
        %v2650 = vpack.c.b16 %v2574, %v2572
        %v2651 = vpack.c.b16 %v2575, %v2573
        %v2652 = vpack.c.b16 %v2578, %v2576
        %v2653 = vpack.c.b16 %v2579, %v2577
        %v2654 = vpack.c.b16 %v2582, %v2580
        %v2655 = vpack.c.b16 %v2583, %v2581
        %v2656 = vpack.c.b16 %v2586, %v2584
        %v2657 = vpack.c.b16 %v2587, %v2585
        %v2658 = vpack.c.b16 %v2590, %v2588
        %v2659 = vpack.c.b16 %v2591, %v2589
        %v2660 = vpack.c.b16 %v2594, %v2592
        %v2661 = vpack.c.b16 %v2595, %v2593
        %v2662 = vpack.c.b16 %v2598, %v2596
        %v2663 = vpack.c.b16 %v2599, %v2597
        %v2664 = vpack.c.b16 %v2602, %v2600
        %v2665 = vpack.c.b16 %v2603, %v2601
        %v2666 = vpack.c.b16 %v2606, %v2604
        %v2667 = vpack.c.b16 %v2607, %v2605
        %v2668 = vpack.c.b16 %v2610, %v2608
        %v2669 = vpack.c.b16 %v2611, %v2609
        %v2670 = vpack.c.b16 %v2614, %v2612
        %v2671 = vpack.c.b16 %v2615, %v2613
        %v2672 = vpack.c.b16 %v2618, %v2616
        %v2673 = vpack.c.b16 %v2619, %v2617
        %v2674 = vpack.c.b16 %v2622, %v2620
        %v2675 = vpack.c.b16 %v2623, %v2621
        %v2676 = vpack.c.b16 %v2626, %v2624
        %v2677 = vpack.c.b16 %v2627, %v2625
        %2728 = vmatpush.bf16.msra.mxu0 %v2642
        %2729 = vmatpush.bf16.msra.mxu0 %v2640
        %2730 = vmatpush.bf16.msra.mxu0 %v2638
        %2731 = vmatpush.bf16.msra.mxu0 %v2636
        %2732 = vmatpush.bf16.msra.mxu0 %v2634
        %2733 = vmatpush.bf16.msra.mxu0 %v2632
        %2734 = vmatpush.bf16.msra.mxu0 %v2630
        %2735 = vmatpush.bf16.msra.mxu0 %v2628
        %2736 = vmatmul.bf16.gmra.mxu0 %v1082
        %v2737 = vpop.f32.mrf.mxu0
        %v2738 = vadd.f32 0.0, %v2737
        %v2739 = vpop.f32.mrf.mxu0
        %v2740 = vadd.f32 0.0, %v2739
        %2741 = vmatmul.bf16.gmra.mxu0 %v1086
        %v2742 = vpop.f32.mrf.mxu0
        %v2743 = vadd.f32 0.0, %v2742
        %v2744 = vpop.f32.mrf.mxu0
        %v2745 = vadd.f32 0.0, %v2744
        %2746 = vdwg.mxu0
        %2747 = vmatpush.bf16.msra.mxu0 %v2658
        %2748 = vmatpush.bf16.msra.mxu0 %v2656
        %2749 = vmatpush.bf16.msra.mxu0 %v2654
        %2750 = vmatpush.bf16.msra.mxu0 %v2652
        %2751 = vmatpush.bf16.msra.mxu0 %v2650
        %2752 = vmatpush.bf16.msra.mxu0 %v2648
        %2753 = vmatpush.bf16.msra.mxu0 %v2646
        %2754 = vmatpush.bf16.msra.mxu0 %v2644
        %2755 = vmatmul.bf16.gmra.mxu0 %v1083
        %v2756 = vpop.f32.mrf.mxu0
        %v2757 = vadd.f32 %v2738, %v2756
        %v2758 = vpop.f32.mrf.mxu0
        %v2759 = vadd.f32 %v2740, %v2758
        %2760 = vmatmul.bf16.gmra.mxu0 %v1087
        %v2761 = vpop.f32.mrf.mxu0
        %v2762 = vadd.f32 %v2743, %v2761
        %v2763 = vpop.f32.mrf.mxu0
        %v2764 = vadd.f32 %v2745, %v2763
        %2765 = vdwg.mxu0
        %2766 = vmatpush.bf16.msra.mxu0 %v2674
        %2767 = vmatpush.bf16.msra.mxu0 %v2672
        %2768 = vmatpush.bf16.msra.mxu0 %v2670
        %2769 = vmatpush.bf16.msra.mxu0 %v2668
        %2770 = vmatpush.bf16.msra.mxu0 %v2666
        %2771 = vmatpush.bf16.msra.mxu0 %v2664
        %2772 = vmatpush.bf16.msra.mxu0 %v2662
        %2773 = vmatpush.bf16.msra.mxu0 %v2660
        %2774 = vmatmul.bf16.gmra.mxu0 %v1084
        %v2775 = vpop.f32.mrf.mxu0
        %v2776 = vadd.f32 %v2757, %v2775
        %v2777 = vpop.f32.mrf.mxu0
        %v2778 = vadd.f32 %v2759, %v2777
        %2779 = vmatmul.bf16.gmra.mxu0 %v1088
        %v2780 = vpop.f32.mrf.mxu0
        %v2781 = vadd.f32 %v2762, %v2780
        %v2782 = vpop.f32.mrf.mxu0
        %v2783 = vadd.f32 %v2764, %v2782
        %2784 = vdwg.mxu0
        %2785 = vmatpush.bf16.msra.mxu0 0
        %2786 = vmatpush.bf16.msra.mxu0 0
        %2787 = vmatpush.bf16.msra.mxu0 0
        %2788 = vmatpush.bf16.msra.mxu0 0
        %2789 = vmatpush.bf16.msra.mxu0 0
        %2790 = vmatpush.bf16.msra.mxu0 0
        %2791 = vmatpush.bf16.msra.mxu0 0
        %2792 = vmatpush.bf16.msra.mxu0 %v2676
        %2793 = vmatmul.bf16.gmra.mxu0 %v1348
        %v2794 = vpop.f32.mrf.mxu0
        %v2795 = vadd.f32 %v2776, %v2794
        %v2796 = vpop.f32.mrf.mxu0
        %v2797 = vadd.f32 %v2778, %v2796
        %2798 = vmatmul.bf16.gmra.mxu0 %v1351
        %v2799 = vpop.f32.mrf.mxu0
        %v2800 = vadd.f32 %v2781, %v2799
        %v2801 = vpop.f32.mrf.mxu0
        %v2802 = vadd.f32 %v2783, %v2801
        %2803 = vdwg.mxu0
        %2804 = vmatpush.bf16.msra.mxu0 %v2643
        %2805 = vmatpush.bf16.msra.mxu0 %v2641
        %2806 = vmatpush.bf16.msra.mxu0 %v2639
        %2807 = vmatpush.bf16.msra.mxu0 %v2637
        %2808 = vmatpush.bf16.msra.mxu0 %v2635
        %2809 = vmatpush.bf16.msra.mxu0 %v2633
        %2810 = vmatpush.bf16.msra.mxu0 %v2631
        %2811 = vmatpush.bf16.msra.mxu0 %v2629
        %2812 = vmatmul.bf16.gmra.mxu0 %v1082
        %v2813 = vpop.f32.mrf.mxu0
        %v2814 = vadd.f32 0.0, %v2813
        %v2815 = vpop.f32.mrf.mxu0
        %v2816 = vadd.f32 0.0, %v2815
        %2817 = vmatmul.bf16.gmra.mxu0 %v1086
        %v2818 = vpop.f32.mrf.mxu0
        %v2819 = vadd.f32 0.0, %v2818
        %v2820 = vpop.f32.mrf.mxu0
        %v2821 = vadd.f32 0.0, %v2820
        %2822 = vdwg.mxu0
        %2823 = vmatpush.bf16.msra.mxu0 %v2659
        %2824 = vmatpush.bf16.msra.mxu0 %v2657
        %2825 = vmatpush.bf16.msra.mxu0 %v2655
        %2826 = vmatpush.bf16.msra.mxu0 %v2653
        %2827 = vmatpush.bf16.msra.mxu0 %v2651
        %2828 = vmatpush.bf16.msra.mxu0 %v2649
        %2829 = vmatpush.bf16.msra.mxu0 %v2647
        %2830 = vmatpush.bf16.msra.mxu0 %v2645
        %2831 = vmatmul.bf16.gmra.mxu0 %v1083
        %v2832 = vpop.f32.mrf.mxu0
        %v2833 = vadd.f32 %v2814, %v2832
        %v2834 = vpop.f32.mrf.mxu0
        %v2835 = vadd.f32 %v2816, %v2834
        %2836 = vmatmul.bf16.gmra.mxu0 %v1087
        %v2837 = vpop.f32.mrf.mxu0
        %v2838 = vadd.f32 %v2819, %v2837
        %v2839 = vpop.f32.mrf.mxu0
        %v2840 = vadd.f32 %v2821, %v2839
        %2841 = vdwg.mxu0
        %2842 = vmatpush.bf16.msra.mxu0 %v2675
        %2843 = vmatpush.bf16.msra.mxu0 %v2673
        %2844 = vmatpush.bf16.msra.mxu0 %v2671
        %2845 = vmatpush.bf16.msra.mxu0 %v2669
        %2846 = vmatpush.bf16.msra.mxu0 %v2667
        %2847 = vmatpush.bf16.msra.mxu0 %v2665
        %2848 = vmatpush.bf16.msra.mxu0 %v2663
        %2849 = vmatpush.bf16.msra.mxu0 %v2661
        %2850 = vmatmul.bf16.gmra.mxu0 %v1084
        %v2851 = vpop.f32.mrf.mxu0
        %v2852 = vadd.f32 %v2833, %v2851
        %v2853 = vpop.f32.mrf.mxu0
        %v2854 = vadd.f32 %v2835, %v2853
        %2855 = vmatmul.bf16.gmra.mxu0 %v1088
        %v2856 = vpop.f32.mrf.mxu0
        %v2857 = vadd.f32 %v2838, %v2856
        %v2858 = vpop.f32.mrf.mxu0
        %v2859 = vadd.f32 %v2840, %v2858
        %2860 = vdwg.mxu0
        %2861 = vmatpush.bf16.msra.mxu0 0
        %2862 = vmatpush.bf16.msra.mxu0 0
        %2863 = vmatpush.bf16.msra.mxu0 0
        %2864 = vmatpush.bf16.msra.mxu0 0
        %2865 = vmatpush.bf16.msra.mxu0 0
        %2866 = vmatpush.bf16.msra.mxu0 0
        %2867 = vmatpush.bf16.msra.mxu0 0
        %2868 = vmatpush.bf16.msra.mxu0 %v2677
        %2869 = vmatmul.bf16.gmra.mxu0 %v1348
        %v2870 = vpop.f32.mrf.mxu0
        %v2871 = vadd.f32 %v2852, %v2870
        %v2872 = vpop.f32.mrf.mxu0
        %v2873 = vadd.f32 %v2854, %v2872
        %2874 = vmatmul.bf16.gmra.mxu0 %v1351
        %v2875 = vpop.f32.mrf.mxu0
        %v2876 = vadd.f32 %v2857, %v2875
        %v2877 = vpop.f32.mrf.mxu0
        %v2878 = vadd.f32 %v2859, %v2877
        %2879 = vdwg.mxu0
        %v2880 = vmax.f32 %v2419, %v2795
        %v2881 = vmax.f32 %v2420, %v2871
        %v2882 = vmax.f32 %v2421, %v2797
        %v2883 = vmax.f32 %v2422, %v2873
        %v2884 = vmax.f32 %v2423, %v2800
        %v2885 = vmax.f32 %v2424, %v2876
        %v2886 = vmax.f32 %v2425, %v2802
        %v2887 = vmax.f32 %v2426, %v2878
        %v2888 = vld [vmem:[%s2] sm:$0xff]
        %v2889 = vld [vmem:[%s2 + $0x8] sm:$0xff]
        %v2890 = vld [vmem:[%s2 + $0x10] sm:$0xff]
        %v2891 = vld [vmem:[%s2 + $0x18] sm:$0xff]
        %2893 = vset.pattern.permute.xlu0 0
        %2894 = vperm.xlu0 %2893, %v2888
        %v2895 = vpop.permute.xlu0 %2894
        %2898 = vset.pattern.permute.xlu0 0
        %2899 = vperm.xlu0 %2898, %v2889
        %v2900 = vpop.permute.xlu0 %2899
        %2903 = vset.pattern.permute.xlu0 0
        %2904 = vperm.xlu0 %2903, %v2890
        %v2905 = vpop.permute.xlu0 %2904
        %2908 = vset.pattern.permute.xlu0 0
        %2909 = vperm.xlu0 %2908, %v2891
        %v2910 = vpop.permute.xlu0 %2909
        %v2912 = vadd.f32 %v2880, %v2895
        %v2913 = vadd.f32 %v2881, %v2895
        %v2914 = vadd.f32 %v2882, %v2900
        %v2915 = vadd.f32 %v2883, %v2900
        %v2916 = vadd.f32 %v2884, %v2905
        %v2917 = vadd.f32 %v2885, %v2905
        %v2918 = vadd.f32 %v2886, %v2910
        %v2919 = vadd.f32 %v2887, %v2910
        %v2920 = vmax.f32 %v2912, 0.0
        %v2921 = vmax.f32 %v2913, 0.0
        %v2922 = vmax.f32 %v2914, 0.0
        %v2923 = vmax.f32 %v2915, 0.0
        %v2924 = vmax.f32 %v2916, 0.0
        %v2925 = vmax.f32 %v2917, 0.0
        %v2926 = vmax.f32 %v2918, 0.0
        %v2927 = vmax.f32 %v2919, 0.0
        %v2928 = vpack.c.bf16 %v2921, %v2920
        %v2929 = vpack.c.bf16 %v2923, %v2922
        %v2930 = vpack.c.bf16 %v2925, %v2924
        %v2931 = vpack.c.bf16 %v2927, %v2926
        %2932 = vst [vmem:[%s996] sm:$0xff] %v2928
        %2933 = vst [vmem:[%s996 + $0x8] sm:$0xff] %v2929
        %2934 = vst [vmem:[%s996 + $0x10] sm:$0xff] %v2930
        %2935 = vst [vmem:[%s996 + $0x18] sm:$0xff] %v2931
        %s2936 = sand.u32 %s90, 1
        %s2937 = sand.u32 %s90, 1
        %s2938 = smul.addr %s2937, 32
        %s2939 = scalar_lea.vmem [#allocation3], %s2938
        // Predicated region
        $region71: #{gauge_net_forward.5} parent=65 // pred_check
          %p2940 = pneg %p100
        $region72: #{gauge_net_forward.5} parent=65 // pred_check_branch
          %2942 = sbr.rel (%p2940) target = $region74
        $region73: #{gauge_net_forward.5} parent=65 // pred_region
          %s2943 = smul.u32 2, %s14
          %s2944 = smul.addr %s2943, 4
          %s2945 = scalar_lea.vmem %s3, %s2944
          // Predicated region
          $region75: #{gauge_net_forward.5} parent=73 // pred_check
            _
          $region76: #{gauge_net_forward.5} parent=73 // pred_check_branch
            %2947 = sbr.rel (0) target = $region78
          $region77: #{gauge_net_forward.5} parent=73 // pred_region
            // Predicated region
            $region79: #{gauge_net_forward.5} parent=77 // pred_check
              _
            $region80: #{gauge_net_forward.5} parent=77 // pred_check_branch
              %2949 = sbr.rel (0) target = $region82
            $region81: #{gauge_net_forward.5} parent=77 // pred_region
              // Predicated region
              $region94: #{gauge_net_forward.5} parent=81 // pred_check
                _
              $region95: #{gauge_net_forward.5} parent=81 // pred_check_branch
                %2971 = sbr.rel (0) target = $region97
              $region96: #{gauge_net_forward.5} parent=81 // pred_region
                loop: start=0, step=1, limit=1
                $region98: #{gauge_net_forward.5} parent=96 // loop_pre_header
                  _
                $region99: #{gauge_net_forward.5} parent=96 // loop_header
                  %s2973 = sphi 0, %s2977
                  %p2974 = scmp.ge.s32.totalorder %s2973, 1
                  %s2978 = sphi %s2939, %s2939
                  %s2979 = sphi %s2945, %s2945
                $region100: #{gauge_net_forward.5} parent=96 // loop_header_branch
                  %2976 = sbr.rel (%p2974) target = $region104
                $region101: #{gauge_net_forward.5} parent=96 // loop_body
                  %v2980 = vld [vmem:[%s2978] sm:$0xff]
                  %2981 = vst [vmem:[%s2979] sm:$0xff] %v2980
                  %v2982 = vld [vmem:[%s2978 + $0x8] sm:$0xff]
                  %2983 = vst [vmem:[%s2979 + $0x10] sm:$0xff] %v2982
                  %v2984 = vld [vmem:[%s2978 + $0x10] sm:$0xff]
                  %2985 = vst [vmem:[%s2979 + $0x20] sm:$0xff] %v2984
                  %v2986 = vld [vmem:[%s2978 + $0x18] sm:$0xff]
                  %2987 = vst [vmem:[%s2979 + $0x30] sm:$0xff] %v2986
                $region102: #{gauge_net_forward.5} parent=96 // loop_footer
                  %s2977 = sadd.s32 1, %s2973
                $region103: #{gauge_net_forward.5} parent=96 // loop_footer_branch
                  %2972 = sbr.rel target = $region99
                $region104: #{gauge_net_forward.5} parent=96 // loop_exit
                  _
              $region97: #{gauge_net_forward.5} parent=81 // pred_fallthru
                _
              // Predicated region
              $region105: #{gauge_net_forward.5} parent=81 // pred_check
                _
              $region106: #{gauge_net_forward.5} parent=81 // pred_check_branch
                %2989 = sbr.rel target = $region108
              $region107: #{gauge_net_forward.5} parent=81 // pred_region
                _
              $region108: #{gauge_net_forward.5} parent=81 // pred_fallthru
                _
            $region82: #{gauge_net_forward.5} parent=77 // pred_fallthru
              _
            // Predicated region
            $region83: #{gauge_net_forward.5} parent=77 // pred_check
              _
            $region84: #{gauge_net_forward.5} parent=77 // pred_check_branch
              %2951 = sbr.rel target = $region86
            $region85: #{gauge_net_forward.5} parent=77 // pred_region
              %s2953 = ssub.s32 256, 1
              loop: start=0, step=1, limit=1
              $region87: #{gauge_net_forward.5} parent=85 // loop_pre_header
                _
              $region88: #{gauge_net_forward.5} parent=85 // loop_header
                %s2955 = sphi 0, %s2959
                %p2956 = scmp.ge.s32.totalorder %s2955, 1
                %s2960 = sphi %s2939, %s2939
                %s2961 = sphi %s2945, %s2945
              $region89: #{gauge_net_forward.5} parent=85 // loop_header_branch
                %2958 = sbr.rel (%p2956) target = $region93
              $region90: #{gauge_net_forward.5} parent=85 // loop_body
                %v2962 = vld [vmem:[%s2960] sm:%s2953]
                %2963 = vst [vmem:[%s2961] sm:%s2953] %v2962
                %v2964 = vld [vmem:[%s2960 + $0x8] sm:%s2953]
                %2965 = vst [vmem:[%s2961 + $0x10] sm:%s2953] %v2964
                %v2966 = vld [vmem:[%s2960 + $0x10] sm:%s2953]
                %2967 = vst [vmem:[%s2961 + $0x20] sm:%s2953] %v2966
                %v2968 = vld [vmem:[%s2960 + $0x18] sm:%s2953]
                %2969 = vst [vmem:[%s2961 + $0x30] sm:%s2953] %v2968
              $region91: #{gauge_net_forward.5} parent=85 // loop_footer
                %s2959 = sadd.s32 1, %s2955
              $region92: #{gauge_net_forward.5} parent=85 // loop_footer_branch
                %2954 = sbr.rel target = $region88
              $region93: #{gauge_net_forward.5} parent=85 // loop_exit
                _
            $region86: #{gauge_net_forward.5} parent=77 // pred_fallthru
              _
          $region78: #{gauge_net_forward.5} parent=73 // pred_fallthru
            _
          %2990 = vnop
        $region74: #{gauge_net_forward.5} parent=65 // pred_fallthru
          _
      $region66: #{gauge_net_forward.5} parent=5 // pred_fallthru
        _
      %p2991 = scmp.le.s32.totalorder 2, %s9
      // Predicated region
      $region109: #{gauge_net_forward.5} parent=5 // pred_check
        %p2992 = pneg %p2991
      $region110: #{gauge_net_forward.5} parent=5 // pred_check_branch
        %2994 = sbr.rel (%p2992) target = $region112
      $region111: #{gauge_net_forward.5} parent=5 // pred_region
        %s2995 = ssub.s32 %s9, 2
        // Predicated region
        $region113: #{gauge_net_forward.5} parent=111 // pred_check
          %p2996 = pneg %p106
        $region114: #{gauge_net_forward.5} parent=111 // pred_check_branch
          %2998 = sbr.rel (%p2996) target = $region116
        $region115: #{gauge_net_forward.5} parent=111 // pred_region
          %s2999 = sand.u32 %s91, 1
          %s3000 = sand.u32 %s91, 1
          %s3001 = smul.addr %s3000, 32
          %s3002 = scalar_lea.vmem [#allocation3], %s3001
        $region116: #{gauge_net_forward.5} parent=111 // pred_fallthru
          _
      $region112: #{gauge_net_forward.5} parent=5 // pred_fallthru
        _
    $region6: #{gauge_net_forward.5} parent=1 // loop_footer
      %s13 = sadd.s32 1, %s9
    $region7: #{gauge_net_forward.5} parent=1 // loop_footer_branch
      %8 = sbr.rel target = $region3
    $region8: #{gauge_net_forward.5} parent=1 // loop_exit
      _

// kernel: gauge_net_forward.6
$region0: #{gauge_net_forward.6}
  #allocation0 [shape = 'u32[]', space=smem, size = 0x4, offset = 0x4, fixed_abs, tag = 'smem constant byte address 0x4 - core index']
  #allocation1 [shape = 'u32[72,128]{1,0:T(1,128)}', space=vmem, size = 0x9000, scoped, tag = 'internal scratch']
  %s0 = inlined_call_operand.vmem [shape: bf16[4,800,128], index: 0, kind: input, shape index: {}]
  %s1 = inlined_call_operand.vmem [shape: bf16[64,800], index: 1, kind: input, shape index: {}]
  %s2 = inlined_call_operand.vmem [shape: f32[64,1], index: 2, kind: input, shape index: {}]
  %s3 = inlined_call_operand.vmem [shape: bf16[64,128], index: 3, kind: output, shape index: {}]
  %s4 = sld [smem:[#allocation0]]
  $region22: #{gauge_net_forward.6} parent=0
    _
  %s6 = ssub.s32 1, %s4
  %s7 = scalar_select 0, %s6, %s4
  // Predicated region
  $region2: #{gauge_net_forward.6} parent=0 // pred_check
    _
  $region3: #{gauge_net_forward.6} parent=0 // pred_check_branch
    %9 = sbr.rel (0) target = $region5
  $region4: #{gauge_net_forward.6} parent=0 // pred_region
    _
  $region5: #{gauge_net_forward.6} parent=0 // pred_fallthru
    _
  // Predicated region
  $region6: #{gauge_net_forward.6} parent=0 // pred_check
    _
  $region7: #{gauge_net_forward.6} parent=0 // pred_check_branch
    %11 = sbr.rel (0) target = $region9
  $region8: #{gauge_net_forward.6} parent=0 // pred_region
    _
  $region9: #{gauge_net_forward.6} parent=0 // pred_fallthru
    _
  // Predicated region
  $region10: #{gauge_net_forward.6} parent=0 // pred_check
    _
  $region11: #{gauge_net_forward.6} parent=0 // pred_check_branch
    %13 = sbr.rel (0) target = $region13
  $region12: #{gauge_net_forward.6} parent=0 // pred_region
    _
  $region13: #{gauge_net_forward.6} parent=0 // pred_fallthru
    _
  %v15 = vld [vmem:[%s1] sm:$0xff]
  %v16 = vld [vmem:[%s1 + $0x8] sm:$0xff]
  %v17 = vld [vmem:[%s1 + $0x10] sm:$0xff]
  %v18 = vld [vmem:[%s1 + $0x18] sm:$0xf]
  %v19 = vld [vmem:[%s1 + $0x1c] sm:$0xff]
  %v20 = vld [vmem:[%s1 + $0x24] sm:$0xff]
  %v21 = vld [vmem:[%s1 + $0x2c] sm:$0xff]
  %v22 = vld [vmem:[%s1 + $0x34] sm:$0xf]
  %v23 = vld [vmem:[%s1 + $0x38] sm:$0xff]
  %v24 = vld [vmem:[%s1 + $0x40] sm:$0xff]
  %v25 = vld [vmem:[%s1 + $0x48] sm:$0xff]
  %v26 = vld [vmem:[%s1 + $0x50] sm:$0xf]
  %v27 = vld [vmem:[%s1 + $0x54] sm:$0xff]
  %v28 = vld [vmem:[%s1 + $0x5c] sm:$0xff]
  %v29 = vld [vmem:[%s1 + $0x64] sm:$0xff]
  %v30 = vld [vmem:[%s1 + $0x6c] sm:$0xf]
  %v31 = vld [vmem:[%s1 + $0x70] sm:$0xff]
  %v32 = vld [vmem:[%s1 + $0x78] sm:$0xff]
  %v33 = vld [vmem:[%s1 + $0x80] sm:$0xff]
  %v34 = vld [vmem:[%s1 + $0x88] sm:$0xf]
  %v35 = vld [vmem:[%s1 + $0x8c] sm:$0xff]
  %v36 = vld [vmem:[%s1 + $0x94] sm:$0xff]
  %v37 = vld [vmem:[%s1 + $0x9c] sm:$0xff]
  %v38 = vld [vmem:[%s1 + $0xa4] sm:$0xf]
  %v39 = vld [vmem:[%s1 + $0xa8] sm:$0xff]
  %v40 = vld [vmem:[%s1 + $0xb0] sm:$0xff]
  %v41 = vld [vmem:[%s1 + $0xb8] sm:$0xff]
  %v42 = vld [vmem:[%s1 + $0xc0] sm:$0xf]
  %v43 = vld [vmem:[%s1 + $0xc4] sm:$0xff]
  %v44 = vld [vmem:[%s1 + $0xcc] sm:$0xff]
  %v45 = vld [vmem:[%s1 + $0xd4] sm:$0xff]
  %v46 = vld [vmem:[%s1 + $0xdc] sm:$0xf]
  %v47 = vld [vmem:[%s0] sm:$0xf]
  %v48 = vld [vmem:[%s0 + $0x4] sm:$0xf]
  %v49 = vld [vmem:[%s0 + $0x8] sm:$0xf]
  %v50 = vld [vmem:[%s0 + $0xc] sm:$0xf]
  %v51 = vld [vmem:[%s0 + $0x10] sm:$0xf]
  %v52 = vld [vmem:[%s0 + $0x14] sm:$0xf]
  %v53 = vld [vmem:[%s0 + $0x18] sm:$0xf]
  %v54 = vld [vmem:[%s0 + $0x1c] sm:$0xf]
  %v55 = vld [vmem:[%s0 + $0x20] sm:$0xf]
  %v56 = vld [vmem:[%s0 + $0x24] sm:$0xf]
  %v57 = vld [vmem:[%s0 + $0x28] sm:$0xf]
  %v58 = vld [vmem:[%s0 + $0x2c] sm:$0xf]
  %v59 = vld [vmem:[%s0 + $0x30] sm:$0xf]
  %v60 = vld [vmem:[%s0 + $0x34] sm:$0xf]
  %v61 = vld [vmem:[%s0 + $0x38] sm:$0xf]
  %v62 = vld [vmem:[%s0 + $0x3c] sm:$0xf]
  %v63 = vld [vmem:[%s0 + $0x40] sm:$0xf]
  %v64 = vld [vmem:[%s0 + $0x44] sm:$0xf]
  %v65 = vld [vmem:[%s0 + $0x48] sm:$0xf]
  %v66 = vld [vmem:[%s0 + $0x4c] sm:$0xf]
  %v67 = vld [vmem:[%s0 + $0x50] sm:$0xf]
  %v68 = vld [vmem:[%s0 + $0x54] sm:$0xf]
  %v69 = vld [vmem:[%s0 + $0x58] sm:$0xf]
  %v70 = vld [vmem:[%s0 + $0x5c] sm:$0xf]
  %v71 = vld [vmem:[%s0 + $0x60] sm:$0xf]
  %v72 = vld [vmem:[%s0 + $0x64] sm:$0xf]
  %v73 = vld [vmem:[%s0 + $0x68] sm:$0xf]
  %v74 = vld [vmem:[%s0 + $0x6c] sm:$0xf]
  %v75 = vld [vmem:[%s0 + $0x70] sm:$0xf]
  %v76 = vld [vmem:[%s0 + $0x74] sm:$0xf]
  %v77 = vld [vmem:[%s0 + $0x78] sm:$0xf]
  %v78 = vld [vmem:[%s0 + $0x7c] sm:$0xf]
  %v79 = vld [vmem:[%s0 + $0x80] sm:$0xf]
  %v80 = vld [vmem:[%s0 + $0x84] sm:$0xf]
  %v81 = vld [vmem:[%s0 + $0x88] sm:$0xf]
  %v82 = vld [vmem:[%s0 + $0x8c] sm:$0xf]
  %v83 = vld [vmem:[%s0 + $0x90] sm:$0xf]
  %v84 = vld [vmem:[%s0 + $0x94] sm:$0xf]
  %v85 = vld [vmem:[%s0 + $0x98] sm:$0xf]
  %v86 = vld [vmem:[%s0 + $0x9c] sm:$0xf]
  %v87 = vld [vmem:[%s0 + $0xa0] sm:$0xf]
  %v88 = vld [vmem:[%s0 + $0xa4] sm:$0xf]
  %v89 = vld [vmem:[%s0 + $0xa8] sm:$0xf]
  %v90 = vld [vmem:[%s0 + $0xac] sm:$0xf]
  %v91 = vld [vmem:[%s0 + $0xb0] sm:$0xf]
  %v92 = vld [vmem:[%s0 + $0xb4] sm:$0xf]
  %v93 = vld [vmem:[%s0 + $0xb8] sm:$0xf]
  %v94 = vld [vmem:[%s0 + $0xbc] sm:$0xf]
  %v95 = vld [vmem:[%s0 + $0xc0] sm:$0xf]
  %v96 = vld [vmem:[%s0 + $0xc4] sm:$0xf]
  %v97 = vld [vmem:[%s0 + $0xc8] sm:$0xf]
  %v98 = vld [vmem:[%s0 + $0xcc] sm:$0xf]
  %v99 = vld [vmem:[%s0 + $0xd0] sm:$0xf]
  %v100 = vld [vmem:[%s0 + $0xd4] sm:$0xf]
  %v101 = vld [vmem:[%s0 + $0xd8] sm:$0xf]
  %v102 = vld [vmem:[%s0 + $0xdc] sm:$0xf]
  %v103 = vld [vmem:[%s0 + $0xe0] sm:$0xf]
  %v104 = vld [vmem:[%s0 + $0xe4] sm:$0xf]
  %v105 = vld [vmem:[%s0 + $0xe8] sm:$0xf]
  %v106 = vld [vmem:[%s0 + $0xec] sm:$0xf]
  %v107 = vld [vmem:[%s0 + $0xf0] sm:$0xf]
  %v108 = vld [vmem:[%s0 + $0xf4] sm:$0xf]
  %v109 = vld [vmem:[%s0 + $0xf8] sm:$0xf]
  %v110 = vld [vmem:[%s0 + $0xfc] sm:$0xf]
  %v111 = vld [vmem:[%s0 + $0x100] sm:$0xf]
  %v112 = vld [vmem:[%s0 + $0x104] sm:$0xf]
  %v113 = vld [vmem:[%s0 + $0x108] sm:$0xf]
  %v114 = vld [vmem:[%s0 + $0x10c] sm:$0xf]
  %v115 = vld [vmem:[%s0 + $0x110] sm:$0xf]
  %v116 = vld [vmem:[%s0 + $0x114] sm:$0xf]
  %v117 = vld [vmem:[%s0 + $0x118] sm:$0xf]
  %v118 = vld [vmem:[%s0 + $0x11c] sm:$0xf]
  %v119 = vld [vmem:[%s0 + $0x120] sm:$0xf]
  %v120 = vld [vmem:[%s0 + $0x124] sm:$0xf]
  %v121 = vld [vmem:[%s0 + $0x128] sm:$0xf]
  %v122 = vld [vmem:[%s0 + $0x12c] sm:$0xf]
  %v123 = vld [vmem:[%s0 + $0x130] sm:$0xf]
  %v124 = vld [vmem:[%s0 + $0x134] sm:$0xf]
  %v125 = vld [vmem:[%s0 + $0x138] sm:$0xf]
  %v126 = vld [vmem:[%s0 + $0x13c] sm:$0xf]
  %v127 = vld [vmem:[%s0 + $0x140] sm:$0xf]
  %v128 = vld [vmem:[%s0 + $0x144] sm:$0xf]
  %v129 = vld [vmem:[%s0 + $0x148] sm:$0xf]
  %v130 = vld [vmem:[%s0 + $0x14c] sm:$0xf]
  %v131 = vld [vmem:[%s0 + $0x150] sm:$0xf]
  %v132 = vld [vmem:[%s0 + $0x154] sm:$0xf]
  %v133 = vld [vmem:[%s0 + $0x158] sm:$0xf]
  %v134 = vld [vmem:[%s0 + $0x15c] sm:$0xf]
  %v135 = vld [vmem:[%s0 + $0x160] sm:$0xf]
  %v136 = vld [vmem:[%s0 + $0x164] sm:$0xf]
  %v137 = vld [vmem:[%s0 + $0x168] sm:$0xf]
  %v138 = vld [vmem:[%s0 + $0x16c] sm:$0xf]
  %v139 = vld [vmem:[%s0 + $0x170] sm:$0xf]
  %v140 = vld [vmem:[%s0 + $0x174] sm:$0xf]
  %v141 = vld [vmem:[%s0 + $0x178] sm:$0xf]
  %v142 = vld [vmem:[%s0 + $0x17c] sm:$0xf]
  %v143 = vld [vmem:[%s0 + $0x180] sm:$0xf]
  %v144 = vld [vmem:[%s0 + $0x184] sm:$0xf]
  %v145 = vld [vmem:[%s0 + $0x188] sm:$0xf]
  %v146 = vld [vmem:[%s0 + $0x18c] sm:$0xf]
  %v179 = vunpack.c.l.b16 %v15
  %v180 = vunpack.c.h.b16 %v15
  %v181 = vunpack.c.l.b16 %v16
  %v182 = vunpack.c.h.b16 %v16
  %v183 = vunpack.c.l.b16 %v17
  %v184 = vunpack.c.h.b16 %v17
  %v185 = vunpack.c.l.b16 %v18
  %v186 = vunpack.c.l.b16 %v19
  %v187 = vunpack.c.h.b16 %v19
  %v188 = vunpack.c.l.b16 %v20
  %v189 = vunpack.c.h.b16 %v20
  %v190 = vunpack.c.l.b16 %v21
  %v191 = vunpack.c.h.b16 %v21
  %v192 = vunpack.c.l.b16 %v22
  %v193 = vunpack.c.l.b16 %v23
  %v194 = vunpack.c.h.b16 %v23
  %v195 = vunpack.c.l.b16 %v24
  %v196 = vunpack.c.h.b16 %v24
  %v197 = vunpack.c.l.b16 %v25
  %v198 = vunpack.c.h.b16 %v25
  %v199 = vunpack.c.l.b16 %v26
  %v200 = vunpack.c.l.b16 %v27
  %v201 = vunpack.c.h.b16 %v27
  %v202 = vunpack.c.l.b16 %v28
  %v203 = vunpack.c.h.b16 %v28
  %v204 = vunpack.c.l.b16 %v29
  %v205 = vunpack.c.h.b16 %v29
  %v206 = vunpack.c.l.b16 %v30
  %v207 = vunpack.c.l.b16 %v31
  %v208 = vunpack.c.h.b16 %v31
  %v209 = vunpack.c.l.b16 %v32
  %v210 = vunpack.c.h.b16 %v32
  %v211 = vunpack.c.l.b16 %v33
  %v212 = vunpack.c.h.b16 %v33
  %v213 = vunpack.c.l.b16 %v34
  %v214 = vunpack.c.l.b16 %v35
  %v215 = vunpack.c.h.b16 %v35
  %v216 = vunpack.c.l.b16 %v36
  %v217 = vunpack.c.h.b16 %v36
  %v218 = vunpack.c.l.b16 %v37
  %v219 = vunpack.c.h.b16 %v37
  %v220 = vunpack.c.l.b16 %v38
  %v221 = vunpack.c.l.b16 %v39
  %v222 = vunpack.c.h.b16 %v39
  %v223 = vunpack.c.l.b16 %v40
  %v224 = vunpack.c.h.b16 %v40
  %v225 = vunpack.c.l.b16 %v41
  %v226 = vunpack.c.h.b16 %v41
  %v227 = vunpack.c.l.b16 %v42
  %v228 = vunpack.c.l.b16 %v43
  %v229 = vunpack.c.h.b16 %v43
  %v230 = vunpack.c.l.b16 %v44
  %v231 = vunpack.c.h.b16 %v44
  %v232 = vunpack.c.l.b16 %v45
  %v233 = vunpack.c.h.b16 %v45
  %v234 = vunpack.c.l.b16 %v46
  %v235 = vpack.c.b16 %v186, %v179
  %v236 = vpack.c.b16 %v187, %v180
  %v237 = vpack.c.b16 %v188, %v181
  %v238 = vpack.c.b16 %v189, %v182
  %v239 = vpack.c.b16 %v190, %v183
  %v240 = vpack.c.b16 %v191, %v184
  %v241 = vpack.c.b16 %v192, %v185
  %v242 = vpack.c.b16 %v200, %v193
  %v243 = vpack.c.b16 %v201, %v194
  %v244 = vpack.c.b16 %v202, %v195
  %v245 = vpack.c.b16 %v203, %v196
  %v246 = vpack.c.b16 %v204, %v197
  %v247 = vpack.c.b16 %v205, %v198
  %v248 = vpack.c.b16 %v206, %v199
  %v249 = vpack.c.b16 %v214, %v207
  %v250 = vpack.c.b16 %v215, %v208
  %v251 = vpack.c.b16 %v216, %v209
  %v252 = vpack.c.b16 %v217, %v210
  %v253 = vpack.c.b16 %v218, %v211
  %v254 = vpack.c.b16 %v219, %v212
  %v255 = vpack.c.b16 %v220, %v213
  %v256 = vpack.c.b16 %v228, %v221
  %v257 = vpack.c.b16 %v229, %v222
  %v258 = vpack.c.b16 %v230, %v223
  %v259 = vpack.c.b16 %v231, %v224
  %v260 = vpack.c.b16 %v232, %v225
  %v261 = vpack.c.b16 %v233, %v226
  %v262 = vpack.c.b16 %v234, %v227
  %v387 = vunpack.c.l.b16 %v47
  %v388 = vunpack.c.l.b16 %v48
  %v389 = vunpack.c.l.b16 %v49
  %v390 = vunpack.c.l.b16 %v50
  %v391 = vunpack.c.l.b16 %v51
  %v392 = vunpack.c.l.b16 %v52
  %v393 = vunpack.c.l.b16 %v53
  %v394 = vunpack.c.l.b16 %v54
  %v395 = vunpack.c.l.b16 %v55
  %v396 = vunpack.c.l.b16 %v56
  %v397 = vunpack.c.l.b16 %v57
  %v398 = vunpack.c.l.b16 %v58
  %v399 = vunpack.c.l.b16 %v59
  %v400 = vunpack.c.l.b16 %v60
  %v401 = vunpack.c.l.b16 %v61
  %v402 = vunpack.c.l.b16 %v62
  %v403 = vunpack.c.l.b16 %v63
  %v404 = vunpack.c.l.b16 %v64
  %v405 = vunpack.c.l.b16 %v65
  %v406 = vunpack.c.l.b16 %v66
  %v407 = vunpack.c.l.b16 %v67
  %v408 = vunpack.c.l.b16 %v68
  %v409 = vunpack.c.l.b16 %v69
  %v410 = vunpack.c.l.b16 %v70
  %v411 = vunpack.c.l.b16 %v71
  %v412 = vunpack.c.l.b16 %v72
  %v413 = vunpack.c.l.b16 %v73
  %v414 = vunpack.c.l.b16 %v74
  %v415 = vunpack.c.l.b16 %v75
  %v416 = vunpack.c.l.b16 %v76
  %v417 = vunpack.c.l.b16 %v77
  %v418 = vunpack.c.l.b16 %v78
  %v419 = vunpack.c.l.b16 %v79
  %v420 = vunpack.c.l.b16 %v80
  %v421 = vunpack.c.l.b16 %v81
  %v422 = vunpack.c.l.b16 %v82
  %v423 = vunpack.c.l.b16 %v83
  %v424 = vunpack.c.l.b16 %v84
  %v425 = vunpack.c.l.b16 %v85
  %v426 = vunpack.c.l.b16 %v86
  %v427 = vunpack.c.l.b16 %v87
  %v428 = vunpack.c.l.b16 %v88
  %v429 = vunpack.c.l.b16 %v89
  %v430 = vunpack.c.l.b16 %v90
  %v431 = vunpack.c.l.b16 %v91
  %v432 = vunpack.c.l.b16 %v92
  %v433 = vunpack.c.l.b16 %v93
  %v434 = vunpack.c.l.b16 %v94
  %v435 = vunpack.c.l.b16 %v95
  %v436 = vunpack.c.l.b16 %v96
  %v437 = vunpack.c.l.b16 %v97
  %v438 = vunpack.c.l.b16 %v98
  %v439 = vunpack.c.l.b16 %v99
  %v440 = vunpack.c.l.b16 %v100
  %v441 = vunpack.c.l.b16 %v101
  %v442 = vunpack.c.l.b16 %v102
  %v443 = vunpack.c.l.b16 %v103
  %v444 = vunpack.c.l.b16 %v104
  %v445 = vunpack.c.l.b16 %v105
  %v446 = vunpack.c.l.b16 %v106
  %v447 = vunpack.c.l.b16 %v107
  %v448 = vunpack.c.l.b16 %v108
  %v449 = vunpack.c.l.b16 %v109
  %v450 = vunpack.c.l.b16 %v110
  %v451 = vunpack.c.l.b16 %v111
  %v452 = vunpack.c.l.b16 %v112
  %v453 = vunpack.c.l.b16 %v113
  %v454 = vunpack.c.l.b16 %v114
  %v455 = vunpack.c.l.b16 %v115
  %v456 = vunpack.c.l.b16 %v116
  %v457 = vunpack.c.l.b16 %v117
  %v458 = vunpack.c.l.b16 %v118
  %v459 = vunpack.c.l.b16 %v119
  %v460 = vunpack.c.l.b16 %v120
  %v461 = vunpack.c.l.b16 %v121
  %v462 = vunpack.c.l.b16 %v122
  %v463 = vunpack.c.l.b16 %v123
  %v464 = vunpack.c.l.b16 %v124
  %v465 = vunpack.c.l.b16 %v125
  %v466 = vunpack.c.l.b16 %v126
  %v467 = vunpack.c.l.b16 %v127
  %v468 = vunpack.c.l.b16 %v128
  %v469 = vunpack.c.l.b16 %v129
  %v470 = vunpack.c.l.b16 %v130
  %v471 = vunpack.c.l.b16 %v131
  %v472 = vunpack.c.l.b16 %v132
  %v473 = vunpack.c.l.b16 %v133
  %v474 = vunpack.c.l.b16 %v134
  %v475 = vunpack.c.l.b16 %v135
  %v476 = vunpack.c.l.b16 %v136
  %v477 = vunpack.c.l.b16 %v137
  %v478 = vunpack.c.l.b16 %v138
  %v479 = vunpack.c.l.b16 %v139
  %v480 = vunpack.c.l.b16 %v140
  %v481 = vunpack.c.l.b16 %v141
  %v482 = vunpack.c.l.b16 %v142
  %v483 = vunpack.c.l.b16 %v143
  %v484 = vunpack.c.l.b16 %v144
  %v485 = vunpack.c.l.b16 %v145
  %v486 = vunpack.c.l.b16 %v146
  %v487 = vpack.c.b16 %v388, %v387
  %v488 = vpack.c.b16 %v390, %v389
  %v489 = vpack.c.b16 %v392, %v391
  %v490 = vpack.c.b16 %v394, %v393
  %v491 = vpack.c.b16 %v396, %v395
  %v492 = vpack.c.b16 %v398, %v397
  %v493 = vpack.c.b16 %v400, %v399
  %v494 = vpack.c.b16 %v402, %v401
  %v495 = vpack.c.b16 %v404, %v403
  %v496 = vpack.c.b16 %v406, %v405
  %v497 = vpack.c.b16 %v408, %v407
  %v498 = vpack.c.b16 %v410, %v409
  %v499 = vpack.c.b16 %v412, %v411
  %v500 = vpack.c.b16 %v414, %v413
  %v501 = vpack.c.b16 %v416, %v415
  %v502 = vpack.c.b16 %v418, %v417
  %v503 = vpack.c.b16 %v420, %v419
  %v504 = vpack.c.b16 %v422, %v421
  %v505 = vpack.c.b16 %v424, %v423
  %v506 = vpack.c.b16 %v426, %v425
  %v507 = vpack.c.b16 %v428, %v427
  %v508 = vpack.c.b16 %v430, %v429
  %v509 = vpack.c.b16 %v432, %v431
  %v510 = vpack.c.b16 %v434, %v433
  %v511 = vpack.c.b16 %v436, %v435
  %v512 = vpack.c.b16 %v438, %v437
  %v513 = vpack.c.b16 %v440, %v439
  %v514 = vpack.c.b16 %v442, %v441
  %v515 = vpack.c.b16 %v444, %v443
  %v516 = vpack.c.b16 %v446, %v445
  %v517 = vpack.c.b16 %v448, %v447
  %v518 = vpack.c.b16 %v450, %v449
  %v519 = vpack.c.b16 %v452, %v451
  %v520 = vpack.c.b16 %v454, %v453
  %v521 = vpack.c.b16 %v456, %v455
  %v522 = vpack.c.b16 %v458, %v457
  %v523 = vpack.c.b16 %v460, %v459
  %v524 = vpack.c.b16 %v462, %v461
  %v525 = vpack.c.b16 %v464, %v463
  %v526 = vpack.c.b16 %v466, %v465
  %v527 = vpack.c.b16 %v468, %v467
  %v528 = vpack.c.b16 %v470, %v469
  %v529 = vpack.c.b16 %v472, %v471
  %v530 = vpack.c.b16 %v474, %v473
  %v531 = vpack.c.b16 %v476, %v475
  %v532 = vpack.c.b16 %v478, %v477
  %v533 = vpack.c.b16 %v480, %v479
  %v534 = vpack.c.b16 %v482, %v481
  %v535 = vpack.c.b16 %v484, %v483
  %v536 = vpack.c.b16 %v486, %v485
  %vm587 = vcmask 261120
  %v589 = vsel %vm587, %v241, 0
  %v592 = vsel %vm587, %v248, 0
  %v595 = vsel %vm587, %v255, 0
  %v598 = vsel %vm587, %v262, 0
  %600 = vmatpush.bf16.msra.mxu0 %v494
  %601 = vmatpush.bf16.msra.mxu0 %v493
  %602 = vmatpush.bf16.msra.mxu0 %v492
  %603 = vmatpush.bf16.msra.mxu0 %v491
  %604 = vmatpush.bf16.msra.mxu0 %v490
  %605 = vmatpush.bf16.msra.mxu0 %v489
  %606 = vmatpush.bf16.msra.mxu0 %v488
  %607 = vmatpush.bf16.msra.mxu0 %v487
  %608 = vmatmul.bf16.gmra.mxu0 %v235
  %v609 = vpop.f32.mrf.mxu0
  %v610 = vadd.f32 0.0, %v609
  %v611 = vpop.f32.mrf.mxu0
  %v612 = vadd.f32 0.0, %v611
  %613 = vmatmul.bf16.gmra.mxu0 %v242
  %v614 = vpop.f32.mrf.mxu0
  %v615 = vadd.f32 0.0, %v614
  %v616 = vpop.f32.mrf.mxu0
  %v617 = vadd.f32 0.0, %v616
  %618 = vmatmul.bf16.gmra.mxu0 %v249
  %v619 = vpop.f32.mrf.mxu0
  %v620 = vadd.f32 0.0, %v619
  %v621 = vpop.f32.mrf.mxu0
  %v622 = vadd.f32 0.0, %v621
  %623 = vmatmul.bf16.gmra.mxu0 %v256
  %v624 = vpop.f32.mrf.mxu0
  %v625 = vadd.f32 0.0, %v624
  %v626 = vpop.f32.mrf.mxu0
  %v627 = vadd.f32 0.0, %v626
  %628 = vdwg.mxu0
  %629 = vmatpush.bf16.msra.mxu0 %v502
  %630 = vmatpush.bf16.msra.mxu0 %v501
  %631 = vmatpush.bf16.msra.mxu0 %v500
  %632 = vmatpush.bf16.msra.mxu0 %v499
  %633 = vmatpush.bf16.msra.mxu0 %v498
  %634 = vmatpush.bf16.msra.mxu0 %v497
  %635 = vmatpush.bf16.msra.mxu0 %v496
  %636 = vmatpush.bf16.msra.mxu0 %v495
  %637 = vmatmul.bf16.gmra.mxu0 %v236
  %v638 = vpop.f32.mrf.mxu0
  %v639 = vadd.f32 %v610, %v638
  %v640 = vpop.f32.mrf.mxu0
  %v641 = vadd.f32 %v612, %v640
  %642 = vmatmul.bf16.gmra.mxu0 %v243
  %v643 = vpop.f32.mrf.mxu0
  %v644 = vadd.f32 %v615, %v643
  %v645 = vpop.f32.mrf.mxu0
  %v646 = vadd.f32 %v617, %v645
  %647 = vmatmul.bf16.gmra.mxu0 %v250
  %v648 = vpop.f32.mrf.mxu0
  %v649 = vadd.f32 %v620, %v648
  %v650 = vpop.f32.mrf.mxu0
  %v651 = vadd.f32 %v622, %v650
  %652 = vmatmul.bf16.gmra.mxu0 %v257
  %v653 = vpop.f32.mrf.mxu0
  %v654 = vadd.f32 %v625, %v653
  %v655 = vpop.f32.mrf.mxu0
  %v656 = vadd.f32 %v627, %v655
  %657 = vdwg.mxu0
  %658 = vmatpush.bf16.msra.mxu0 %v510
  %659 = vmatpush.bf16.msra.mxu0 %v509
  %660 = vmatpush.bf16.msra.mxu0 %v508
  %661 = vmatpush.bf16.msra.mxu0 %v507
  %662 = vmatpush.bf16.msra.mxu0 %v506
  %663 = vmatpush.bf16.msra.mxu0 %v505
  %664 = vmatpush.bf16.msra.mxu0 %v504
  %665 = vmatpush.bf16.msra.mxu0 %v503
  %666 = vmatmul.bf16.gmra.mxu0 %v237
  %v667 = vpop.f32.mrf.mxu0
  %v668 = vadd.f32 %v639, %v667
  %v669 = vpop.f32.mrf.mxu0
  %v670 = vadd.f32 %v641, %v669
  %671 = vmatmul.bf16.gmra.mxu0 %v244
  %v672 = vpop.f32.mrf.mxu0
  %v673 = vadd.f32 %v644, %v672
  %v674 = vpop.f32.mrf.mxu0
  %v675 = vadd.f32 %v646, %v674
  %676 = vmatmul.bf16.gmra.mxu0 %v251
  %v677 = vpop.f32.mrf.mxu0
  %v678 = vadd.f32 %v649, %v677
  %v679 = vpop.f32.mrf.mxu0
  %v680 = vadd.f32 %v651, %v679
  %681 = vmatmul.bf16.gmra.mxu0 %v258
  %v682 = vpop.f32.mrf.mxu0
  %v683 = vadd.f32 %v654, %v682
  %v684 = vpop.f32.mrf.mxu0
  %v685 = vadd.f32 %v656, %v684
  %686 = vdwg.mxu0
  %687 = vmatpush.bf16.msra.mxu0 %v518
  %688 = vmatpush.bf16.msra.mxu0 %v517
  %689 = vmatpush.bf16.msra.mxu0 %v516
  %690 = vmatpush.bf16.msra.mxu0 %v515
  %691 = vmatpush.bf16.msra.mxu0 %v514
  %692 = vmatpush.bf16.msra.mxu0 %v513
  %693 = vmatpush.bf16.msra.mxu0 %v512
  %694 = vmatpush.bf16.msra.mxu0 %v511
  %695 = vmatmul.bf16.gmra.mxu0 %v238
  %v696 = vpop.f32.mrf.mxu0
  %v697 = vadd.f32 %v668, %v696
  %v698 = vpop.f32.mrf.mxu0
  %v699 = vadd.f32 %v670, %v698
  %700 = vmatmul.bf16.gmra.mxu0 %v245
  %v701 = vpop.f32.mrf.mxu0
  %v702 = vadd.f32 %v673, %v701
  %v703 = vpop.f32.mrf.mxu0
  %v704 = vadd.f32 %v675, %v703
  %705 = vmatmul.bf16.gmra.mxu0 %v252
  %v706 = vpop.f32.mrf.mxu0
  %v707 = vadd.f32 %v678, %v706
  %v708 = vpop.f32.mrf.mxu0
  %v709 = vadd.f32 %v680, %v708
  %710 = vmatmul.bf16.gmra.mxu0 %v259
  %v711 = vpop.f32.mrf.mxu0
  %v712 = vadd.f32 %v683, %v711
  %v713 = vpop.f32.mrf.mxu0
  %v714 = vadd.f32 %v685, %v713
  %715 = vdwg.mxu0
  %716 = vmatpush.bf16.msra.mxu0 %v526
  %717 = vmatpush.bf16.msra.mxu0 %v525
  %718 = vmatpush.bf16.msra.mxu0 %v524
  %719 = vmatpush.bf16.msra.mxu0 %v523
  %720 = vmatpush.bf16.msra.mxu0 %v522
  %721 = vmatpush.bf16.msra.mxu0 %v521
  %722 = vmatpush.bf16.msra.mxu0 %v520
  %723 = vmatpush.bf16.msra.mxu0 %v519
  %724 = vmatmul.bf16.gmra.mxu0 %v239
  %v725 = vpop.f32.mrf.mxu0
  %v726 = vadd.f32 %v697, %v725
  %v727 = vpop.f32.mrf.mxu0
  %v728 = vadd.f32 %v699, %v727
  %729 = vmatmul.bf16.gmra.mxu0 %v246
  %v730 = vpop.f32.mrf.mxu0
  %v731 = vadd.f32 %v702, %v730
  %v732 = vpop.f32.mrf.mxu0
  %v733 = vadd.f32 %v704, %v732
  %734 = vmatmul.bf16.gmra.mxu0 %v253
  %v735 = vpop.f32.mrf.mxu0
  %v736 = vadd.f32 %v707, %v735
  %v737 = vpop.f32.mrf.mxu0
  %v738 = vadd.f32 %v709, %v737
  %739 = vmatmul.bf16.gmra.mxu0 %v260
  %v740 = vpop.f32.mrf.mxu0
  %v741 = vadd.f32 %v712, %v740
  %v742 = vpop.f32.mrf.mxu0
  %v743 = vadd.f32 %v714, %v742
  %744 = vdwg.mxu0
  %745 = vmatpush.bf16.msra.mxu0 %v534
  %746 = vmatpush.bf16.msra.mxu0 %v533
  %747 = vmatpush.bf16.msra.mxu0 %v532
  %748 = vmatpush.bf16.msra.mxu0 %v531
  %749 = vmatpush.bf16.msra.mxu0 %v530
  %750 = vmatpush.bf16.msra.mxu0 %v529
  %751 = vmatpush.bf16.msra.mxu0 %v528
  %752 = vmatpush.bf16.msra.mxu0 %v527
  %753 = vmatmul.bf16.gmra.mxu0 %v240
  %v754 = vpop.f32.mrf.mxu0
  %v755 = vadd.f32 %v726, %v754
  %v756 = vpop.f32.mrf.mxu0
  %v757 = vadd.f32 %v728, %v756
  %758 = vmatmul.bf16.gmra.mxu0 %v247
  %v759 = vpop.f32.mrf.mxu0
  %v760 = vadd.f32 %v731, %v759
  %v761 = vpop.f32.mrf.mxu0
  %v762 = vadd.f32 %v733, %v761
  %763 = vmatmul.bf16.gmra.mxu0 %v254
  %v764 = vpop.f32.mrf.mxu0
  %v765 = vadd.f32 %v736, %v764
  %v766 = vpop.f32.mrf.mxu0
  %v767 = vadd.f32 %v738, %v766
  %768 = vmatmul.bf16.gmra.mxu0 %v261
  %v769 = vpop.f32.mrf.mxu0
  %v770 = vadd.f32 %v741, %v769
  %v771 = vpop.f32.mrf.mxu0
  %v772 = vadd.f32 %v743, %v771
  %773 = vdwg.mxu0
  %774 = vmatpush.bf16.msra.mxu0 0
  %775 = vmatpush.bf16.msra.mxu0 0
  %776 = vmatpush.bf16.msra.mxu0 0
  %777 = vmatpush.bf16.msra.mxu0 0
  %778 = vmatpush.bf16.msra.mxu0 0
  %779 = vmatpush.bf16.msra.mxu0 0
  %780 = vmatpush.bf16.msra.mxu0 %v536
  %781 = vmatpush.bf16.msra.mxu0 %v535
  %782 = vmatmul.bf16.gmra.mxu0 %v589
  %v783 = vpop.f32.mrf.mxu0
  %v784 = vadd.f32 %v755, %v783
  %v785 = vpop.f32.mrf.mxu0
  %v786 = vadd.f32 %v757, %v785
  %787 = vmatmul.bf16.gmra.mxu0 %v592
  %v788 = vpop.f32.mrf.mxu0
  %v789 = vadd.f32 %v760, %v788
  %v790 = vpop.f32.mrf.mxu0
  %v791 = vadd.f32 %v762, %v790
  %792 = vmatmul.bf16.gmra.mxu0 %v595
  %v793 = vpop.f32.mrf.mxu0
  %v794 = vadd.f32 %v765, %v793
  %v795 = vpop.f32.mrf.mxu0
  %v796 = vadd.f32 %v767, %v795
  %797 = vmatmul.bf16.gmra.mxu0 %v598
  %v798 = vpop.f32.mrf.mxu0
  %v799 = vadd.f32 %v770, %v798
  %v800 = vpop.f32.mrf.mxu0
  %v801 = vadd.f32 %v772, %v800
  %802 = vdwg.mxu0
  %s803 = scalar_lea.vmem %s0, 400
  %v804 = vld [vmem:[%s803] sm:$0xf]
  %v805 = vld [vmem:[%s803 + $0x4] sm:$0xf]
  %v806 = vld [vmem:[%s803 + $0x8] sm:$0xf]
  %v807 = vld [vmem:[%s803 + $0xc] sm:$0xf]
  %v808 = vld [vmem:[%s803 + $0x10] sm:$0xf]
  %v809 = vld [vmem:[%s803 + $0x14] sm:$0xf]
  %v810 = vld [vmem:[%s803 + $0x18] sm:$0xf]
  %v811 = vld [vmem:[%s803 + $0x1c] sm:$0xf]
  %v812 = vld [vmem:[%s803 + $0x20] sm:$0xf]
  %v813 = vld [vmem:[%s803 + $0x24] sm:$0xf]
  %v814 = vld [vmem:[%s803 + $0x28] sm:$0xf]
  %v815 = vld [vmem:[%s803 + $0x2c] sm:$0xf]
  %v816 = vld [vmem:[%s803 + $0x30] sm:$0xf]
  %v817 = vld [vmem:[%s803 + $0x34] sm:$0xf]
  %v818 = vld [vmem:[%s803 + $0x38] sm:$0xf]
  %v819 = vld [vmem:[%s803 + $0x3c] sm:$0xf]
  %v820 = vld [vmem:[%s803 + $0x40] sm:$0xf]
  %v821 = vld [vmem:[%s803 + $0x44] sm:$0xf]
  %v822 = vld [vmem:[%s803 + $0x48] sm:$0xf]
  %v823 = vld [vmem:[%s803 + $0x4c] sm:$0xf]
  %v824 = vld [vmem:[%s803 + $0x50] sm:$0xf]
  %v825 = vld [vmem:[%s803 + $0x54] sm:$0xf]
  %v826 = vld [vmem:[%s803 + $0x58] sm:$0xf]
  %v827 = vld [vmem:[%s803 + $0x5c] sm:$0xf]
  %v828 = vld [vmem:[%s803 + $0x60] sm:$0xf]
  %v829 = vld [vmem:[%s803 + $0x64] sm:$0xf]
  %v830 = vld [vmem:[%s803 + $0x68] sm:$0xf]
  %v831 = vld [vmem:[%s803 + $0x6c] sm:$0xf]
  %v832 = vld [vmem:[%s803 + $0x70] sm:$0xf]
  %v833 = vld [vmem:[%s803 + $0x74] sm:$0xf]
  %v834 = vld [vmem:[%s803 + $0x78] sm:$0xf]
  %v835 = vld [vmem:[%s803 + $0x7c] sm:$0xf]
  %v836 = vld [vmem:[%s803 + $0x80] sm:$0xf]
  %v837 = vld [vmem:[%s803 + $0x84] sm:$0xf]
  %v838 = vld [vmem:[%s803 + $0x88] sm:$0xf]
  %v839 = vld [vmem:[%s803 + $0x8c] sm:$0xf]
  %v840 = vld [vmem:[%s803 + $0x90] sm:$0xf]
  %v841 = vld [vmem:[%s803 + $0x94] sm:$0xf]
  %v842 = vld [vmem:[%s803 + $0x98] sm:$0xf]
  %v843 = vld [vmem:[%s803 + $0x9c] sm:$0xf]
  %v844 = vld [vmem:[%s803 + $0xa0] sm:$0xf]
  %v845 = vld [vmem:[%s803 + $0xa4] sm:$0xf]
  %v846 = vld [vmem:[%s803 + $0xa8] sm:$0xf]
  %v847 = vld [vmem:[%s803 + $0xac] sm:$0xf]
  %v848 = vld [vmem:[%s803 + $0xb0] sm:$0xf]
  %v849 = vld [vmem:[%s803 + $0xb4] sm:$0xf]
  %v850 = vld [vmem:[%s803 + $0xb8] sm:$0xf]
  %v851 = vld [vmem:[%s803 + $0xbc] sm:$0xf]
  %v852 = vld [vmem:[%s803 + $0xc0] sm:$0xf]
  %v853 = vld [vmem:[%s803 + $0xc4] sm:$0xf]
  %v854 = vld [vmem:[%s803 + $0xc8] sm:$0xf]
  %v855 = vld [vmem:[%s803 + $0xcc] sm:$0xf]
  %v856 = vld [vmem:[%s803 + $0xd0] sm:$0xf]
  %v857 = vld [vmem:[%s803 + $0xd4] sm:$0xf]
  %v858 = vld [vmem:[%s803 + $0xd8] sm:$0xf]
  %v859 = vld [vmem:[%s803 + $0xdc] sm:$0xf]
  %v860 = vld [vmem:[%s803 + $0xe0] sm:$0xf]
  %v861 = vld [vmem:[%s803 + $0xe4] sm:$0xf]
  %v862 = vld [vmem:[%s803 + $0xe8] sm:$0xf]
  %v863 = vld [vmem:[%s803 + $0xec] sm:$0xf]
  %v864 = vld [vmem:[%s803 + $0xf0] sm:$0xf]
  %v865 = vld [vmem:[%s803 + $0xf4] sm:$0xf]
  %v866 = vld [vmem:[%s803 + $0xf8] sm:$0xf]
  %v867 = vld [vmem:[%s803 + $0xfc] sm:$0xf]
  %v868 = vld [vmem:[%s803 + $0x100] sm:$0xf]
  %v869 = vld [vmem:[%s803 + $0x104] sm:$0xf]
  %v870 = vld [vmem:[%s803 + $0x108] sm:$0xf]
  %v871 = vld [vmem:[%s803 + $0x10c] sm:$0xf]
  %v872 = vld [vmem:[%s803 + $0x110] sm:$0xf]
  %v873 = vld [vmem:[%s803 + $0x114] sm:$0xf]
  %v874 = vld [vmem:[%s803 + $0x118] sm:$0xf]
  %v875 = vld [vmem:[%s803 + $0x11c] sm:$0xf]
  %v876 = vld [vmem:[%s803 + $0x120] sm:$0xf]
  %v877 = vld [vmem:[%s803 + $0x124] sm:$0xf]
  %v878 = vld [vmem:[%s803 + $0x128] sm:$0xf]
  %v879 = vld [vmem:[%s803 + $0x12c] sm:$0xf]
  %v880 = vld [vmem:[%s803 + $0x130] sm:$0xf]
  %v881 = vld [vmem:[%s803 + $0x134] sm:$0xf]
  %v882 = vld [vmem:[%s803 + $0x138] sm:$0xf]
  %v883 = vld [vmem:[%s803 + $0x13c] sm:$0xf]
  %v884 = vld [vmem:[%s803 + $0x140] sm:$0xf]
  %v885 = vld [vmem:[%s803 + $0x144] sm:$0xf]
  %v886 = vld [vmem:[%s803 + $0x148] sm:$0xf]
  %v887 = vld [vmem:[%s803 + $0x14c] sm:$0xf]
  %v888 = vld [vmem:[%s803 + $0x150] sm:$0xf]
  %v889 = vld [vmem:[%s803 + $0x154] sm:$0xf]
  %v890 = vld [vmem:[%s803 + $0x158] sm:$0xf]
  %v891 = vld [vmem:[%s803 + $0x15c] sm:$0xf]
  %v892 = vld [vmem:[%s803 + $0x160] sm:$0xf]
  %v893 = vld [vmem:[%s803 + $0x164] sm:$0xf]
  %v894 = vld [vmem:[%s803 + $0x168] sm:$0xf]
  %v895 = vld [vmem:[%s803 + $0x16c] sm:$0xf]
  %v896 = vld [vmem:[%s803 + $0x170] sm:$0xf]
  %v897 = vld [vmem:[%s803 + $0x174] sm:$0xf]
  %v898 = vld [vmem:[%s803 + $0x178] sm:$0xf]
  %v899 = vld [vmem:[%s803 + $0x17c] sm:$0xf]
  %v900 = vld [vmem:[%s803 + $0x180] sm:$0xf]
  %v901 = vld [vmem:[%s803 + $0x184] sm:$0xf]
  %v902 = vld [vmem:[%s803 + $0x188] sm:$0xf]
  %v903 = vld [vmem:[%s803 + $0x18c] sm:$0xf]
  %v1004 = vunpack.c.l.b16 %v804
  %v1005 = vunpack.c.l.b16 %v805
  %v1006 = vunpack.c.l.b16 %v806
  %v1007 = vunpack.c.l.b16 %v807
  %v1008 = vunpack.c.l.b16 %v808
  %v1009 = vunpack.c.l.b16 %v809
  %v1010 = vunpack.c.l.b16 %v810
  %v1011 = vunpack.c.l.b16 %v811
  %v1012 = vunpack.c.l.b16 %v812
  %v1013 = vunpack.c.l.b16 %v813
  %v1014 = vunpack.c.l.b16 %v814
  %v1015 = vunpack.c.l.b16 %v815
  %v1016 = vunpack.c.l.b16 %v816
  %v1017 = vunpack.c.l.b16 %v817
  %v1018 = vunpack.c.l.b16 %v818
  %v1019 = vunpack.c.l.b16 %v819
  %v1020 = vunpack.c.l.b16 %v820
  %v1021 = vunpack.c.l.b16 %v821
  %v1022 = vunpack.c.l.b16 %v822
  %v1023 = vunpack.c.l.b16 %v823
  %v1024 = vunpack.c.l.b16 %v824
  %v1025 = vunpack.c.l.b16 %v825
  %v1026 = vunpack.c.l.b16 %v826
  %v1027 = vunpack.c.l.b16 %v827
  %v1028 = vunpack.c.l.b16 %v828
  %v1029 = vunpack.c.l.b16 %v829
  %v1030 = vunpack.c.l.b16 %v830
  %v1031 = vunpack.c.l.b16 %v831
  %v1032 = vunpack.c.l.b16 %v832
  %v1033 = vunpack.c.l.b16 %v833
  %v1034 = vunpack.c.l.b16 %v834
  %v1035 = vunpack.c.l.b16 %v835
  %v1036 = vunpack.c.l.b16 %v836
  %v1037 = vunpack.c.l.b16 %v837
  %v1038 = vunpack.c.l.b16 %v838
  %v1039 = vunpack.c.l.b16 %v839
  %v1040 = vunpack.c.l.b16 %v840
  %v1041 = vunpack.c.l.b16 %v841
  %v1042 = vunpack.c.l.b16 %v842
  %v1043 = vunpack.c.l.b16 %v843
  %v1044 = vunpack.c.l.b16 %v844
  %v1045 = vunpack.c.l.b16 %v845
  %v1046 = vunpack.c.l.b16 %v846
  %v1047 = vunpack.c.l.b16 %v847
  %v1048 = vunpack.c.l.b16 %v848
  %v1049 = vunpack.c.l.b16 %v849
  %v1050 = vunpack.c.l.b16 %v850
  %v1051 = vunpack.c.l.b16 %v851
  %v1052 = vunpack.c.l.b16 %v852
  %v1053 = vunpack.c.l.b16 %v853
  %v1054 = vunpack.c.l.b16 %v854
  %v1055 = vunpack.c.l.b16 %v855
  %v1056 = vunpack.c.l.b16 %v856
  %v1057 = vunpack.c.l.b16 %v857
  %v1058 = vunpack.c.l.b16 %v858
  %v1059 = vunpack.c.l.b16 %v859
  %v1060 = vunpack.c.l.b16 %v860
  %v1061 = vunpack.c.l.b16 %v861
  %v1062 = vunpack.c.l.b16 %v862
  %v1063 = vunpack.c.l.b16 %v863
  %v1064 = vunpack.c.l.b16 %v864
  %v1065 = vunpack.c.l.b16 %v865
  %v1066 = vunpack.c.l.b16 %v866
  %v1067 = vunpack.c.l.b16 %v867
  %v1068 = vunpack.c.l.b16 %v868
  %v1069 = vunpack.c.l.b16 %v869
  %v1070 = vunpack.c.l.b16 %v870
  %v1071 = vunpack.c.l.b16 %v871
  %v1072 = vunpack.c.l.b16 %v872
  %v1073 = vunpack.c.l.b16 %v873
  %v1074 = vunpack.c.l.b16 %v874
  %v1075 = vunpack.c.l.b16 %v875
  %v1076 = vunpack.c.l.b16 %v876
  %v1077 = vunpack.c.l.b16 %v877
  %v1078 = vunpack.c.l.b16 %v878
  %v1079 = vunpack.c.l.b16 %v879
  %v1080 = vunpack.c.l.b16 %v880
  %v1081 = vunpack.c.l.b16 %v881
  %v1082 = vunpack.c.l.b16 %v882
  %v1083 = vunpack.c.l.b16 %v883
  %v1084 = vunpack.c.l.b16 %v884
  %v1085 = vunpack.c.l.b16 %v885
  %v1086 = vunpack.c.l.b16 %v886
  %v1087 = vunpack.c.l.b16 %v887
  %v1088 = vunpack.c.l.b16 %v888
  %v1089 = vunpack.c.l.b16 %v889
  %v1090 = vunpack.c.l.b16 %v890
  %v1091 = vunpack.c.l.b16 %v891
  %v1092 = vunpack.c.l.b16 %v892
  %v1093 = vunpack.c.l.b16 %v893
  %v1094 = vunpack.c.l.b16 %v894
  %v1095 = vunpack.c.l.b16 %v895
  %v1096 = vunpack.c.l.b16 %v896
  %v1097 = vunpack.c.l.b16 %v897
  %v1098 = vunpack.c.l.b16 %v898
  %v1099 = vunpack.c.l.b16 %v899
  %v1100 = vunpack.c.l.b16 %v900
  %v1101 = vunpack.c.l.b16 %v901
  %v1102 = vunpack.c.l.b16 %v902
  %v1103 = vunpack.c.l.b16 %v903
  %v1104 = vpack.c.b16 %v1005, %v1004
  %v1105 = vpack.c.b16 %v1007, %v1006
  %v1106 = vpack.c.b16 %v1009, %v1008
  %v1107 = vpack.c.b16 %v1011, %v1010
  %v1108 = vpack.c.b16 %v1013, %v1012
  %v1109 = vpack.c.b16 %v1015, %v1014
  %v1110 = vpack.c.b16 %v1017, %v1016
  %v1111 = vpack.c.b16 %v1019, %v1018
  %v1112 = vpack.c.b16 %v1021, %v1020
  %v1113 = vpack.c.b16 %v1023, %v1022
  %v1114 = vpack.c.b16 %v1025, %v1024
  %v1115 = vpack.c.b16 %v1027, %v1026
  %v1116 = vpack.c.b16 %v1029, %v1028
  %v1117 = vpack.c.b16 %v1031, %v1030
  %v1118 = vpack.c.b16 %v1033, %v1032
  %v1119 = vpack.c.b16 %v1035, %v1034
  %v1120 = vpack.c.b16 %v1037, %v1036
  %v1121 = vpack.c.b16 %v1039, %v1038
  %v1122 = vpack.c.b16 %v1041, %v1040
  %v1123 = vpack.c.b16 %v1043, %v1042
  %v1124 = vpack.c.b16 %v1045, %v1044
  %v1125 = vpack.c.b16 %v1047, %v1046
  %v1126 = vpack.c.b16 %v1049, %v1048
  %v1127 = vpack.c.b16 %v1051, %v1050
  %v1128 = vpack.c.b16 %v1053, %v1052
  %v1129 = vpack.c.b16 %v1055, %v1054
  %v1130 = vpack.c.b16 %v1057, %v1056
  %v1131 = vpack.c.b16 %v1059, %v1058
  %v1132 = vpack.c.b16 %v1061, %v1060
  %v1133 = vpack.c.b16 %v1063, %v1062
  %v1134 = vpack.c.b16 %v1065, %v1064
  %v1135 = vpack.c.b16 %v1067, %v1066
  %v1136 = vpack.c.b16 %v1069, %v1068
  %v1137 = vpack.c.b16 %v1071, %v1070
  %v1138 = vpack.c.b16 %v1073, %v1072
  %v1139 = vpack.c.b16 %v1075, %v1074
  %v1140 = vpack.c.b16 %v1077, %v1076
  %v1141 = vpack.c.b16 %v1079, %v1078
  %v1142 = vpack.c.b16 %v1081, %v1080
  %v1143 = vpack.c.b16 %v1083, %v1082
  %v1144 = vpack.c.b16 %v1085, %v1084
  %v1145 = vpack.c.b16 %v1087, %v1086
  %v1146 = vpack.c.b16 %v1089, %v1088
  %v1147 = vpack.c.b16 %v1091, %v1090
  %v1148 = vpack.c.b16 %v1093, %v1092
  %v1149 = vpack.c.b16 %v1095, %v1094
  %v1150 = vpack.c.b16 %v1097, %v1096
  %v1151 = vpack.c.b16 %v1099, %v1098
  %v1152 = vpack.c.b16 %v1101, %v1100
  %v1153 = vpack.c.b16 %v1103, %v1102
  %1204 = vmatpush.bf16.msra.mxu0 %v1111
  %1205 = vmatpush.bf16.msra.mxu0 %v1110
  %1206 = vmatpush.bf16.msra.mxu0 %v1109
  %1207 = vmatpush.bf16.msra.mxu0 %v1108
  %1208 = vmatpush.bf16.msra.mxu0 %v1107
  %1209 = vmatpush.bf16.msra.mxu0 %v1106
  %1210 = vmatpush.bf16.msra.mxu0 %v1105
  %1211 = vmatpush.bf16.msra.mxu0 %v1104
  %1212 = vmatmul.bf16.gmra.mxu0 %v235
  %v1213 = vpop.f32.mrf.mxu0
  %v1214 = vadd.f32 0.0, %v1213
  %v1215 = vpop.f32.mrf.mxu0
  %v1216 = vadd.f32 0.0, %v1215
  %1217 = vmatmul.bf16.gmra.mxu0 %v242
  %v1218 = vpop.f32.mrf.mxu0
  %v1219 = vadd.f32 0.0, %v1218
  %v1220 = vpop.f32.mrf.mxu0
  %v1221 = vadd.f32 0.0, %v1220
  %1222 = vmatmul.bf16.gmra.mxu0 %v249
  %v1223 = vpop.f32.mrf.mxu0
  %v1224 = vadd.f32 0.0, %v1223
  %v1225 = vpop.f32.mrf.mxu0
  %v1226 = vadd.f32 0.0, %v1225
  %1227 = vmatmul.bf16.gmra.mxu0 %v256
  %v1228 = vpop.f32.mrf.mxu0
  %v1229 = vadd.f32 0.0, %v1228
  %v1230 = vpop.f32.mrf.mxu0
  %v1231 = vadd.f32 0.0, %v1230
  %1232 = vdwg.mxu0
  %1233 = vmatpush.bf16.msra.mxu0 %v1119
  %1234 = vmatpush.bf16.msra.mxu0 %v1118
  %1235 = vmatpush.bf16.msra.mxu0 %v1117
  %1236 = vmatpush.bf16.msra.mxu0 %v1116
  %1237 = vmatpush.bf16.msra.mxu0 %v1115
  %1238 = vmatpush.bf16.msra.mxu0 %v1114
  %1239 = vmatpush.bf16.msra.mxu0 %v1113
  %1240 = vmatpush.bf16.msra.mxu0 %v1112
  %1241 = vmatmul.bf16.gmra.mxu0 %v236
  %v1242 = vpop.f32.mrf.mxu0
  %v1243 = vadd.f32 %v1214, %v1242
  %v1244 = vpop.f32.mrf.mxu0
  %v1245 = vadd.f32 %v1216, %v1244
  %1246 = vmatmul.bf16.gmra.mxu0 %v243
  %v1247 = vpop.f32.mrf.mxu0
  %v1248 = vadd.f32 %v1219, %v1247
  %v1249 = vpop.f32.mrf.mxu0
  %v1250 = vadd.f32 %v1221, %v1249
  %1251 = vmatmul.bf16.gmra.mxu0 %v250
  %v1252 = vpop.f32.mrf.mxu0
  %v1253 = vadd.f32 %v1224, %v1252
  %v1254 = vpop.f32.mrf.mxu0
  %v1255 = vadd.f32 %v1226, %v1254
  %1256 = vmatmul.bf16.gmra.mxu0 %v257
  %v1257 = vpop.f32.mrf.mxu0
  %v1258 = vadd.f32 %v1229, %v1257
  %v1259 = vpop.f32.mrf.mxu0
  %v1260 = vadd.f32 %v1231, %v1259
  %1261 = vdwg.mxu0
  %1262 = vmatpush.bf16.msra.mxu0 %v1127
  %1263 = vmatpush.bf16.msra.mxu0 %v1126
  %1264 = vmatpush.bf16.msra.mxu0 %v1125
  %1265 = vmatpush.bf16.msra.mxu0 %v1124
  %1266 = vmatpush.bf16.msra.mxu0 %v1123
  %1267 = vmatpush.bf16.msra.mxu0 %v1122
  %1268 = vmatpush.bf16.msra.mxu0 %v1121
  %1269 = vmatpush.bf16.msra.mxu0 %v1120
  %1270 = vmatmul.bf16.gmra.mxu0 %v237
  %v1271 = vpop.f32.mrf.mxu0
  %v1272 = vadd.f32 %v1243, %v1271
  %v1273 = vpop.f32.mrf.mxu0
  %v1274 = vadd.f32 %v1245, %v1273
  %1275 = vmatmul.bf16.gmra.mxu0 %v244
  %v1276 = vpop.f32.mrf.mxu0
  %v1277 = vadd.f32 %v1248, %v1276
  %v1278 = vpop.f32.mrf.mxu0
  %v1279 = vadd.f32 %v1250, %v1278
  %1280 = vmatmul.bf16.gmra.mxu0 %v251
  %v1281 = vpop.f32.mrf.mxu0
  %v1282 = vadd.f32 %v1253, %v1281
  %v1283 = vpop.f32.mrf.mxu0
  %v1284 = vadd.f32 %v1255, %v1283
  %1285 = vmatmul.bf16.gmra.mxu0 %v258
  %v1286 = vpop.f32.mrf.mxu0
  %v1287 = vadd.f32 %v1258, %v1286
  %v1288 = vpop.f32.mrf.mxu0
  %v1289 = vadd.f32 %v1260, %v1288
  %1290 = vdwg.mxu0
  %1291 = vmatpush.bf16.msra.mxu0 %v1135
  %1292 = vmatpush.bf16.msra.mxu0 %v1134
  %1293 = vmatpush.bf16.msra.mxu0 %v1133
  %1294 = vmatpush.bf16.msra.mxu0 %v1132
  %1295 = vmatpush.bf16.msra.mxu0 %v1131
  %1296 = vmatpush.bf16.msra.mxu0 %v1130
  %1297 = vmatpush.bf16.msra.mxu0 %v1129
  %1298 = vmatpush.bf16.msra.mxu0 %v1128
  %1299 = vmatmul.bf16.gmra.mxu0 %v238
  %v1300 = vpop.f32.mrf.mxu0
  %v1301 = vadd.f32 %v1272, %v1300
  %v1302 = vpop.f32.mrf.mxu0
  %v1303 = vadd.f32 %v1274, %v1302
  %1304 = vmatmul.bf16.gmra.mxu0 %v245
  %v1305 = vpop.f32.mrf.mxu0
  %v1306 = vadd.f32 %v1277, %v1305
  %v1307 = vpop.f32.mrf.mxu0
  %v1308 = vadd.f32 %v1279, %v1307
  %1309 = vmatmul.bf16.gmra.mxu0 %v252
  %v1310 = vpop.f32.mrf.mxu0
  %v1311 = vadd.f32 %v1282, %v1310
  %v1312 = vpop.f32.mrf.mxu0
  %v1313 = vadd.f32 %v1284, %v1312
  %1314 = vmatmul.bf16.gmra.mxu0 %v259
  %v1315 = vpop.f32.mrf.mxu0
  %v1316 = vadd.f32 %v1287, %v1315
  %v1317 = vpop.f32.mrf.mxu0
  %v1318 = vadd.f32 %v1289, %v1317
  %1319 = vdwg.mxu0
  %1320 = vmatpush.bf16.msra.mxu0 %v1143
  %1321 = vmatpush.bf16.msra.mxu0 %v1142
  %1322 = vmatpush.bf16.msra.mxu0 %v1141
  %1323 = vmatpush.bf16.msra.mxu0 %v1140
  %1324 = vmatpush.bf16.msra.mxu0 %v1139
  %1325 = vmatpush.bf16.msra.mxu0 %v1138
  %1326 = vmatpush.bf16.msra.mxu0 %v1137
  %1327 = vmatpush.bf16.msra.mxu0 %v1136
  %1328 = vmatmul.bf16.gmra.mxu0 %v239
  %v1329 = vpop.f32.mrf.mxu0
  %v1330 = vadd.f32 %v1301, %v1329
  %v1331 = vpop.f32.mrf.mxu0
  %v1332 = vadd.f32 %v1303, %v1331
  %1333 = vmatmul.bf16.gmra.mxu0 %v246
  %v1334 = vpop.f32.mrf.mxu0
  %v1335 = vadd.f32 %v1306, %v1334
  %v1336 = vpop.f32.mrf.mxu0
  %v1337 = vadd.f32 %v1308, %v1336
  %1338 = vmatmul.bf16.gmra.mxu0 %v253
  %v1339 = vpop.f32.mrf.mxu0
  %v1340 = vadd.f32 %v1311, %v1339
  %v1341 = vpop.f32.mrf.mxu0
  %v1342 = vadd.f32 %v1313, %v1341
  %1343 = vmatmul.bf16.gmra.mxu0 %v260
  %v1344 = vpop.f32.mrf.mxu0
  %v1345 = vadd.f32 %v1316, %v1344
  %v1346 = vpop.f32.mrf.mxu0
  %v1347 = vadd.f32 %v1318, %v1346
  %1348 = vdwg.mxu0
  %1349 = vmatpush.bf16.msra.mxu0 %v1151
  %1350 = vmatpush.bf16.msra.mxu0 %v1150
  %1351 = vmatpush.bf16.msra.mxu0 %v1149
  %1352 = vmatpush.bf16.msra.mxu0 %v1148
  %1353 = vmatpush.bf16.msra.mxu0 %v1147
  %1354 = vmatpush.bf16.msra.mxu0 %v1146
  %1355 = vmatpush.bf16.msra.mxu0 %v1145
  %1356 = vmatpush.bf16.msra.mxu0 %v1144
  %1357 = vmatmul.bf16.gmra.mxu0 %v240
  %v1358 = vpop.f32.mrf.mxu0
  %v1359 = vadd.f32 %v1330, %v1358
  %v1360 = vpop.f32.mrf.mxu0
  %v1361 = vadd.f32 %v1332, %v1360
  %1362 = vmatmul.bf16.gmra.mxu0 %v247
  %v1363 = vpop.f32.mrf.mxu0
  %v1364 = vadd.f32 %v1335, %v1363
  %v1365 = vpop.f32.mrf.mxu0
  %v1366 = vadd.f32 %v1337, %v1365
  %1367 = vmatmul.bf16.gmra.mxu0 %v254
  %v1368 = vpop.f32.mrf.mxu0
  %v1369 = vadd.f32 %v1340, %v1368
  %v1370 = vpop.f32.mrf.mxu0
  %v1371 = vadd.f32 %v1342, %v1370
  %1372 = vmatmul.bf16.gmra.mxu0 %v261
  %v1373 = vpop.f32.mrf.mxu0
  %v1374 = vadd.f32 %v1345, %v1373
  %v1375 = vpop.f32.mrf.mxu0
  %v1376 = vadd.f32 %v1347, %v1375
  %1377 = vdwg.mxu0
  %1378 = vmatpush.bf16.msra.mxu0 0
  %1379 = vmatpush.bf16.msra.mxu0 0
  %1380 = vmatpush.bf16.msra.mxu0 0
  %1381 = vmatpush.bf16.msra.mxu0 0
  %1382 = vmatpush.bf16.msra.mxu0 0
  %1383 = vmatpush.bf16.msra.mxu0 0
  %1384 = vmatpush.bf16.msra.mxu0 %v1153
  %1385 = vmatpush.bf16.msra.mxu0 %v1152
  %1386 = vmatmul.bf16.gmra.mxu0 %v589
  %v1387 = vpop.f32.mrf.mxu0
  %v1388 = vadd.f32 %v1359, %v1387
  %v1389 = vpop.f32.mrf.mxu0
  %v1390 = vadd.f32 %v1361, %v1389
  %1391 = vmatmul.bf16.gmra.mxu0 %v592
  %v1392 = vpop.f32.mrf.mxu0
  %v1393 = vadd.f32 %v1364, %v1392
  %v1394 = vpop.f32.mrf.mxu0
  %v1395 = vadd.f32 %v1366, %v1394
  %1396 = vmatmul.bf16.gmra.mxu0 %v595
  %v1397 = vpop.f32.mrf.mxu0
  %v1398 = vadd.f32 %v1369, %v1397
  %v1399 = vpop.f32.mrf.mxu0
  %v1400 = vadd.f32 %v1371, %v1399
  %1401 = vmatmul.bf16.gmra.mxu0 %v598
  %v1402 = vpop.f32.mrf.mxu0
  %v1403 = vadd.f32 %v1374, %v1402
  %v1404 = vpop.f32.mrf.mxu0
  %v1405 = vadd.f32 %v1376, %v1404
  %1406 = vdwg.mxu0
  %v1407 = vmax.f32 %v784, %v1388
  %v1408 = vmax.f32 %v786, %v1390
  %v1409 = vmax.f32 %v789, %v1393
  %v1410 = vmax.f32 %v791, %v1395
  %v1411 = vmax.f32 %v794, %v1398
  %v1412 = vmax.f32 %v796, %v1400
  %v1413 = vmax.f32 %v799, %v1403
  %v1414 = vmax.f32 %v801, %v1405
  %s1415 = scalar_lea.vmem %s0, 800
  %v1416 = vld [vmem:[%s1415] sm:$0xf]
  %v1417 = vld [vmem:[%s1415 + $0x4] sm:$0xf]
  %v1418 = vld [vmem:[%s1415 + $0x8] sm:$0xf]
  %v1419 = vld [vmem:[%s1415 + $0xc] sm:$0xf]
  %v1420 = vld [vmem:[%s1415 + $0x10] sm:$0xf]
  %v1421 = vld [vmem:[%s1415 + $0x14] sm:$0xf]
  %v1422 = vld [vmem:[%s1415 + $0x18] sm:$0xf]
  %v1423 = vld [vmem:[%s1415 + $0x1c] sm:$0xf]
  %v1424 = vld [vmem:[%s1415 + $0x20] sm:$0xf]
  %v1425 = vld [vmem:[%s1415 + $0x24] sm:$0xf]
  %v1426 = vld [vmem:[%s1415 + $0x28] sm:$0xf]
  %v1427 = vld [vmem:[%s1415 + $0x2c] sm:$0xf]
  %v1428 = vld [vmem:[%s1415 + $0x30] sm:$0xf]
  %v1429 = vld [vmem:[%s1415 + $0x34] sm:$0xf]
  %v1430 = vld [vmem:[%s1415 + $0x38] sm:$0xf]
  %v1431 = vld [vmem:[%s1415 + $0x3c] sm:$0xf]
  %v1432 = vld [vmem:[%s1415 + $0x40] sm:$0xf]
  %v1433 = vld [vmem:[%s1415 + $0x44] sm:$0xf]
  %v1434 = vld [vmem:[%s1415 + $0x48] sm:$0xf]
  %v1435 = vld [vmem:[%s1415 + $0x4c] sm:$0xf]
  %v1436 = vld [vmem:[%s1415 + $0x50] sm:$0xf]
  %v1437 = vld [vmem:[%s1415 + $0x54] sm:$0xf]
  %v1438 = vld [vmem:[%s1415 + $0x58] sm:$0xf]
  %v1439 = vld [vmem:[%s1415 + $0x5c] sm:$0xf]
  %v1440 = vld [vmem:[%s1415 + $0x60] sm:$0xf]
  %v1441 = vld [vmem:[%s1415 + $0x64] sm:$0xf]
  %v1442 = vld [vmem:[%s1415 + $0x68] sm:$0xf]
  %v1443 = vld [vmem:[%s1415 + $0x6c] sm:$0xf]
  %v1444 = vld [vmem:[%s1415 + $0x70] sm:$0xf]
  %v1445 = vld [vmem:[%s1415 + $0x74] sm:$0xf]
  %v1446 = vld [vmem:[%s1415 + $0x78] sm:$0xf]
  %v1447 = vld [vmem:[%s1415 + $0x7c] sm:$0xf]
  %v1448 = vld [vmem:[%s1415 + $0x80] sm:$0xf]
  %v1449 = vld [vmem:[%s1415 + $0x84] sm:$0xf]
  %v1450 = vld [vmem:[%s1415 + $0x88] sm:$0xf]
  %v1451 = vld [vmem:[%s1415 + $0x8c] sm:$0xf]
  %v1452 = vld [vmem:[%s1415 + $0x90] sm:$0xf]
  %v1453 = vld [vmem:[%s1415 + $0x94] sm:$0xf]
  %v1454 = vld [vmem:[%s1415 + $0x98] sm:$0xf]
  %v1455 = vld [vmem:[%s1415 + $0x9c] sm:$0xf]
  %v1456 = vld [vmem:[%s1415 + $0xa0] sm:$0xf]
  %v1457 = vld [vmem:[%s1415 + $0xa4] sm:$0xf]
  %v1458 = vld [vmem:[%s1415 + $0xa8] sm:$0xf]
  %v1459 = vld [vmem:[%s1415 + $0xac] sm:$0xf]
  %v1460 = vld [vmem:[%s1415 + $0xb0] sm:$0xf]
  %v1461 = vld [vmem:[%s1415 + $0xb4] sm:$0xf]
  %v1462 = vld [vmem:[%s1415 + $0xb8] sm:$0xf]
  %v1463 = vld [vmem:[%s1415 + $0xbc] sm:$0xf]
  %v1464 = vld [vmem:[%s1415 + $0xc0] sm:$0xf]
  %v1465 = vld [vmem:[%s1415 + $0xc4] sm:$0xf]
  %v1466 = vld [vmem:[%s1415 + $0xc8] sm:$0xf]
  %v1467 = vld [vmem:[%s1415 + $0xcc] sm:$0xf]
  %v1468 = vld [vmem:[%s1415 + $0xd0] sm:$0xf]
  %v1469 = vld [vmem:[%s1415 + $0xd4] sm:$0xf]
  %v1470 = vld [vmem:[%s1415 + $0xd8] sm:$0xf]
  %v1471 = vld [vmem:[%s1415 + $0xdc] sm:$0xf]
  %v1472 = vld [vmem:[%s1415 + $0xe0] sm:$0xf]
  %v1473 = vld [vmem:[%s1415 + $0xe4] sm:$0xf]
  %v1474 = vld [vmem:[%s1415 + $0xe8] sm:$0xf]
  %v1475 = vld [vmem:[%s1415 + $0xec] sm:$0xf]
  %v1476 = vld [vmem:[%s1415 + $0xf0] sm:$0xf]
  %v1477 = vld [vmem:[%s1415 + $0xf4] sm:$0xf]
  %v1478 = vld [vmem:[%s1415 + $0xf8] sm:$0xf]
  %v1479 = vld [vmem:[%s1415 + $0xfc] sm:$0xf]
  %v1480 = vld [vmem:[%s1415 + $0x100] sm:$0xf]
  %v1481 = vld [vmem:[%s1415 + $0x104] sm:$0xf]
  %v1482 = vld [vmem:[%s1415 + $0x108] sm:$0xf]
  %v1483 = vld [vmem:[%s1415 + $0x10c] sm:$0xf]
  %v1484 = vld [vmem:[%s1415 + $0x110] sm:$0xf]
  %v1485 = vld [vmem:[%s1415 + $0x114] sm:$0xf]
  %v1486 = vld [vmem:[%s1415 + $0x118] sm:$0xf]
  %v1487 = vld [vmem:[%s1415 + $0x11c] sm:$0xf]
  %v1488 = vld [vmem:[%s1415 + $0x120] sm:$0xf]
  %v1489 = vld [vmem:[%s1415 + $0x124] sm:$0xf]
  %v1490 = vld [vmem:[%s1415 + $0x128] sm:$0xf]
  %v1491 = vld [vmem:[%s1415 + $0x12c] sm:$0xf]
  %v1492 = vld [vmem:[%s1415 + $0x130] sm:$0xf]
  %v1493 = vld [vmem:[%s1415 + $0x134] sm:$0xf]
  %v1494 = vld [vmem:[%s1415 + $0x138] sm:$0xf]
  %v1495 = vld [vmem:[%s1415 + $0x13c] sm:$0xf]
  %v1496 = vld [vmem:[%s1415 + $0x140] sm:$0xf]
  %v1497 = vld [vmem:[%s1415 + $0x144] sm:$0xf]
  %v1498 = vld [vmem:[%s1415 + $0x148] sm:$0xf]
  %v1499 = vld [vmem:[%s1415 + $0x14c] sm:$0xf]
  %v1500 = vld [vmem:[%s1415 + $0x150] sm:$0xf]
  %v1501 = vld [vmem:[%s1415 + $0x154] sm:$0xf]
  %v1502 = vld [vmem:[%s1415 + $0x158] sm:$0xf]
  %v1503 = vld [vmem:[%s1415 + $0x15c] sm:$0xf]
  %v1504 = vld [vmem:[%s1415 + $0x160] sm:$0xf]
  %v1505 = vld [vmem:[%s1415 + $0x164] sm:$0xf]
  %v1506 = vld [vmem:[%s1415 + $0x168] sm:$0xf]
  %v1507 = vld [vmem:[%s1415 + $0x16c] sm:$0xf]
  %v1508 = vld [vmem:[%s1415 + $0x170] sm:$0xf]
  %v1509 = vld [vmem:[%s1415 + $0x174] sm:$0xf]
  %v1510 = vld [vmem:[%s1415 + $0x178] sm:$0xf]
  %v1511 = vld [vmem:[%s1415 + $0x17c] sm:$0xf]
  %v1512 = vld [vmem:[%s1415 + $0x180] sm:$0xf]
  %v1513 = vld [vmem:[%s1415 + $0x184] sm:$0xf]
  %v1514 = vld [vmem:[%s1415 + $0x188] sm:$0xf]
  %v1515 = vld [vmem:[%s1415 + $0x18c] sm:$0xf]
  %v1616 = vunpack.c.l.b16 %v1416
  %v1617 = vunpack.c.l.b16 %v1417
  %v1618 = vunpack.c.l.b16 %v1418
  %v1619 = vunpack.c.l.b16 %v1419
  %v1620 = vunpack.c.l.b16 %v1420
  %v1621 = vunpack.c.l.b16 %v1421
  %v1622 = vunpack.c.l.b16 %v1422
  %v1623 = vunpack.c.l.b16 %v1423
  %v1624 = vunpack.c.l.b16 %v1424
  %v1625 = vunpack.c.l.b16 %v1425
  %v1626 = vunpack.c.l.b16 %v1426
  %v1627 = vunpack.c.l.b16 %v1427
  %v1628 = vunpack.c.l.b16 %v1428
  %v1629 = vunpack.c.l.b16 %v1429
  %v1630 = vunpack.c.l.b16 %v1430
  %v1631 = vunpack.c.l.b16 %v1431
  %v1632 = vunpack.c.l.b16 %v1432
  %v1633 = vunpack.c.l.b16 %v1433
  %v1634 = vunpack.c.l.b16 %v1434
  %v1635 = vunpack.c.l.b16 %v1435
  %v1636 = vunpack.c.l.b16 %v1436
  %v1637 = vunpack.c.l.b16 %v1437
  %v1638 = vunpack.c.l.b16 %v1438
  %v1639 = vunpack.c.l.b16 %v1439
  %v1640 = vunpack.c.l.b16 %v1440
  %v1641 = vunpack.c.l.b16 %v1441
  %v1642 = vunpack.c.l.b16 %v1442
  %v1643 = vunpack.c.l.b16 %v1443
  %v1644 = vunpack.c.l.b16 %v1444
  %v1645 = vunpack.c.l.b16 %v1445
  %v1646 = vunpack.c.l.b16 %v1446
  %v1647 = vunpack.c.l.b16 %v1447
  %v1648 = vunpack.c.l.b16 %v1448
  %v1649 = vunpack.c.l.b16 %v1449
  %v1650 = vunpack.c.l.b16 %v1450
  %v1651 = vunpack.c.l.b16 %v1451
  %v1652 = vunpack.c.l.b16 %v1452
  %v1653 = vunpack.c.l.b16 %v1453
  %v1654 = vunpack.c.l.b16 %v1454
  %v1655 = vunpack.c.l.b16 %v1455
  %v1656 = vunpack.c.l.b16 %v1456
  %v1657 = vunpack.c.l.b16 %v1457
  %v1658 = vunpack.c.l.b16 %v1458
  %v1659 = vunpack.c.l.b16 %v1459
  %v1660 = vunpack.c.l.b16 %v1460
  %v1661 = vunpack.c.l.b16 %v1461
  %v1662 = vunpack.c.l.b16 %v1462
  %v1663 = vunpack.c.l.b16 %v1463
  %v1664 = vunpack.c.l.b16 %v1464
  %v1665 = vunpack.c.l.b16 %v1465
  %v1666 = vunpack.c.l.b16 %v1466
  %v1667 = vunpack.c.l.b16 %v1467
  %v1668 = vunpack.c.l.b16 %v1468
  %v1669 = vunpack.c.l.b16 %v1469
  %v1670 = vunpack.c.l.b16 %v1470
  %v1671 = vunpack.c.l.b16 %v1471
  %v1672 = vunpack.c.l.b16 %v1472
  %v1673 = vunpack.c.l.b16 %v1473
  %v1674 = vunpack.c.l.b16 %v1474
  %v1675 = vunpack.c.l.b16 %v1475
  %v1676 = vunpack.c.l.b16 %v1476
  %v1677 = vunpack.c.l.b16 %v1477
  %v1678 = vunpack.c.l.b16 %v1478
  %v1679 = vunpack.c.l.b16 %v1479
  %v1680 = vunpack.c.l.b16 %v1480
  %v1681 = vunpack.c.l.b16 %v1481
  %v1682 = vunpack.c.l.b16 %v1482
  %v1683 = vunpack.c.l.b16 %v1483
  %v1684 = vunpack.c.l.b16 %v1484
  %v1685 = vunpack.c.l.b16 %v1485
  %v1686 = vunpack.c.l.b16 %v1486
  %v1687 = vunpack.c.l.b16 %v1487
  %v1688 = vunpack.c.l.b16 %v1488
  %v1689 = vunpack.c.l.b16 %v1489
  %v1690 = vunpack.c.l.b16 %v1490
  %v1691 = vunpack.c.l.b16 %v1491
  %v1692 = vunpack.c.l.b16 %v1492
  %v1693 = vunpack.c.l.b16 %v1493
  %v1694 = vunpack.c.l.b16 %v1494
  %v1695 = vunpack.c.l.b16 %v1495
  %v1696 = vunpack.c.l.b16 %v1496
  %v1697 = vunpack.c.l.b16 %v1497
  %v1698 = vunpack.c.l.b16 %v1498
  %v1699 = vunpack.c.l.b16 %v1499
  %v1700 = vunpack.c.l.b16 %v1500
  %v1701 = vunpack.c.l.b16 %v1501
  %v1702 = vunpack.c.l.b16 %v1502
  %v1703 = vunpack.c.l.b16 %v1503
  %v1704 = vunpack.c.l.b16 %v1504
  %v1705 = vunpack.c.l.b16 %v1505
  %v1706 = vunpack.c.l.b16 %v1506
  %v1707 = vunpack.c.l.b16 %v1507
  %v1708 = vunpack.c.l.b16 %v1508
  %v1709 = vunpack.c.l.b16 %v1509
  %v1710 = vunpack.c.l.b16 %v1510
  %v1711 = vunpack.c.l.b16 %v1511
  %v1712 = vunpack.c.l.b16 %v1512
  %v1713 = vunpack.c.l.b16 %v1513
  %v1714 = vunpack.c.l.b16 %v1514
  %v1715 = vunpack.c.l.b16 %v1515
  %v1716 = vpack.c.b16 %v1617, %v1616
  %v1717 = vpack.c.b16 %v1619, %v1618
  %v1718 = vpack.c.b16 %v1621, %v1620
  %v1719 = vpack.c.b16 %v1623, %v1622
  %v1720 = vpack.c.b16 %v1625, %v1624
  %v1721 = vpack.c.b16 %v1627, %v1626
  %v1722 = vpack.c.b16 %v1629, %v1628
  %v1723 = vpack.c.b16 %v1631, %v1630
  %v1724 = vpack.c.b16 %v1633, %v1632
  %v1725 = vpack.c.b16 %v1635, %v1634
  %v1726 = vpack.c.b16 %v1637, %v1636
  %v1727 = vpack.c.b16 %v1639, %v1638
  %v1728 = vpack.c.b16 %v1641, %v1640
  %v1729 = vpack.c.b16 %v1643, %v1642
  %v1730 = vpack.c.b16 %v1645, %v1644
  %v1731 = vpack.c.b16 %v1647, %v1646
  %v1732 = vpack.c.b16 %v1649, %v1648
  %v1733 = vpack.c.b16 %v1651, %v1650
  %v1734 = vpack.c.b16 %v1653, %v1652
  %v1735 = vpack.c.b16 %v1655, %v1654
  %v1736 = vpack.c.b16 %v1657, %v1656
  %v1737 = vpack.c.b16 %v1659, %v1658
  %v1738 = vpack.c.b16 %v1661, %v1660
  %v1739 = vpack.c.b16 %v1663, %v1662
  %v1740 = vpack.c.b16 %v1665, %v1664
  %v1741 = vpack.c.b16 %v1667, %v1666
  %v1742 = vpack.c.b16 %v1669, %v1668
  %v1743 = vpack.c.b16 %v1671, %v1670
  %v1744 = vpack.c.b16 %v1673, %v1672
  %v1745 = vpack.c.b16 %v1675, %v1674
  %v1746 = vpack.c.b16 %v1677, %v1676
  %v1747 = vpack.c.b16 %v1679, %v1678
  %v1748 = vpack.c.b16 %v1681, %v1680
  %v1749 = vpack.c.b16 %v1683, %v1682
  %v1750 = vpack.c.b16 %v1685, %v1684
  %v1751 = vpack.c.b16 %v1687, %v1686
  %v1752 = vpack.c.b16 %v1689, %v1688
  %v1753 = vpack.c.b16 %v1691, %v1690
  %v1754 = vpack.c.b16 %v1693, %v1692
  %v1755 = vpack.c.b16 %v1695, %v1694
  %v1756 = vpack.c.b16 %v1697, %v1696
  %v1757 = vpack.c.b16 %v1699, %v1698
  %v1758 = vpack.c.b16 %v1701, %v1700
  %v1759 = vpack.c.b16 %v1703, %v1702
  %v1760 = vpack.c.b16 %v1705, %v1704
  %v1761 = vpack.c.b16 %v1707, %v1706
  %v1762 = vpack.c.b16 %v1709, %v1708
  %v1763 = vpack.c.b16 %v1711, %v1710
  %v1764 = vpack.c.b16 %v1713, %v1712
  %v1765 = vpack.c.b16 %v1715, %v1714
  %1816 = vmatpush.bf16.msra.mxu0 %v1723
  %1817 = vmatpush.bf16.msra.mxu0 %v1722
  %1818 = vmatpush.bf16.msra.mxu0 %v1721
  %1819 = vmatpush.bf16.msra.mxu0 %v1720
  %1820 = vmatpush.bf16.msra.mxu0 %v1719
  %1821 = vmatpush.bf16.msra.mxu0 %v1718
  %1822 = vmatpush.bf16.msra.mxu0 %v1717
  %1823 = vmatpush.bf16.msra.mxu0 %v1716
  %1824 = vmatmul.bf16.gmra.mxu0 %v235
  %v1825 = vpop.f32.mrf.mxu0
  %v1826 = vadd.f32 0.0, %v1825
  %v1827 = vpop.f32.mrf.mxu0
  %v1828 = vadd.f32 0.0, %v1827
  %1829 = vmatmul.bf16.gmra.mxu0 %v242
  %v1830 = vpop.f32.mrf.mxu0
  %v1831 = vadd.f32 0.0, %v1830
  %v1832 = vpop.f32.mrf.mxu0
  %v1833 = vadd.f32 0.0, %v1832
  %1834 = vmatmul.bf16.gmra.mxu0 %v249
  %v1835 = vpop.f32.mrf.mxu0
  %v1836 = vadd.f32 0.0, %v1835
  %v1837 = vpop.f32.mrf.mxu0
  %v1838 = vadd.f32 0.0, %v1837
  %1839 = vmatmul.bf16.gmra.mxu0 %v256
  %v1840 = vpop.f32.mrf.mxu0
  %v1841 = vadd.f32 0.0, %v1840
  %v1842 = vpop.f32.mrf.mxu0
  %v1843 = vadd.f32 0.0, %v1842
  %1844 = vdwg.mxu0
  %1845 = vmatpush.bf16.msra.mxu0 %v1731
  %1846 = vmatpush.bf16.msra.mxu0 %v1730
  %1847 = vmatpush.bf16.msra.mxu0 %v1729
  %1848 = vmatpush.bf16.msra.mxu0 %v1728
  %1849 = vmatpush.bf16.msra.mxu0 %v1727
  %1850 = vmatpush.bf16.msra.mxu0 %v1726
  %1851 = vmatpush.bf16.msra.mxu0 %v1725
  %1852 = vmatpush.bf16.msra.mxu0 %v1724
  %1853 = vmatmul.bf16.gmra.mxu0 %v236
  %v1854 = vpop.f32.mrf.mxu0
  %v1855 = vadd.f32 %v1826, %v1854
  %v1856 = vpop.f32.mrf.mxu0
  %v1857 = vadd.f32 %v1828, %v1856
  %1858 = vmatmul.bf16.gmra.mxu0 %v243
  %v1859 = vpop.f32.mrf.mxu0
  %v1860 = vadd.f32 %v1831, %v1859
  %v1861 = vpop.f32.mrf.mxu0
  %v1862 = vadd.f32 %v1833, %v1861
  %1863 = vmatmul.bf16.gmra.mxu0 %v250
  %v1864 = vpop.f32.mrf.mxu0
  %v1865 = vadd.f32 %v1836, %v1864
  %v1866 = vpop.f32.mrf.mxu0
  %v1867 = vadd.f32 %v1838, %v1866
  %1868 = vmatmul.bf16.gmra.mxu0 %v257
  %v1869 = vpop.f32.mrf.mxu0
  %v1870 = vadd.f32 %v1841, %v1869
  %v1871 = vpop.f32.mrf.mxu0
  %v1872 = vadd.f32 %v1843, %v1871
  %1873 = vdwg.mxu0
  %1874 = vmatpush.bf16.msra.mxu0 %v1739
  %1875 = vmatpush.bf16.msra.mxu0 %v1738
  %1876 = vmatpush.bf16.msra.mxu0 %v1737
  %1877 = vmatpush.bf16.msra.mxu0 %v1736
  %1878 = vmatpush.bf16.msra.mxu0 %v1735
  %1879 = vmatpush.bf16.msra.mxu0 %v1734
  %1880 = vmatpush.bf16.msra.mxu0 %v1733
  %1881 = vmatpush.bf16.msra.mxu0 %v1732
  %1882 = vmatmul.bf16.gmra.mxu0 %v237
  %v1883 = vpop.f32.mrf.mxu0
  %v1884 = vadd.f32 %v1855, %v1883
  %v1885 = vpop.f32.mrf.mxu0
  %v1886 = vadd.f32 %v1857, %v1885
  %1887 = vmatmul.bf16.gmra.mxu0 %v244
  %v1888 = vpop.f32.mrf.mxu0
  %v1889 = vadd.f32 %v1860, %v1888
  %v1890 = vpop.f32.mrf.mxu0
  %v1891 = vadd.f32 %v1862, %v1890
  %1892 = vmatmul.bf16.gmra.mxu0 %v251
  %v1893 = vpop.f32.mrf.mxu0
  %v1894 = vadd.f32 %v1865, %v1893
  %v1895 = vpop.f32.mrf.mxu0
  %v1896 = vadd.f32 %v1867, %v1895
  %1897 = vmatmul.bf16.gmra.mxu0 %v258
  %v1898 = vpop.f32.mrf.mxu0
  %v1899 = vadd.f32 %v1870, %v1898
  %v1900 = vpop.f32.mrf.mxu0
  %v1901 = vadd.f32 %v1872, %v1900
  %1902 = vdwg.mxu0
  %1903 = vmatpush.bf16.msra.mxu0 %v1747
  %1904 = vmatpush.bf16.msra.mxu0 %v1746
  %1905 = vmatpush.bf16.msra.mxu0 %v1745
  %1906 = vmatpush.bf16.msra.mxu0 %v1744
  %1907 = vmatpush.bf16.msra.mxu0 %v1743
  %1908 = vmatpush.bf16.msra.mxu0 %v1742
  %1909 = vmatpush.bf16.msra.mxu0 %v1741
  %1910 = vmatpush.bf16.msra.mxu0 %v1740
  %1911 = vmatmul.bf16.gmra.mxu0 %v238
  %v1912 = vpop.f32.mrf.mxu0
  %v1913 = vadd.f32 %v1884, %v1912
  %v1914 = vpop.f32.mrf.mxu0
  %v1915 = vadd.f32 %v1886, %v1914
  %1916 = vmatmul.bf16.gmra.mxu0 %v245
  %v1917 = vpop.f32.mrf.mxu0
  %v1918 = vadd.f32 %v1889, %v1917
  %v1919 = vpop.f32.mrf.mxu0
  %v1920 = vadd.f32 %v1891, %v1919
  %1921 = vmatmul.bf16.gmra.mxu0 %v252
  %v1922 = vpop.f32.mrf.mxu0
  %v1923 = vadd.f32 %v1894, %v1922
  %v1924 = vpop.f32.mrf.mxu0
  %v1925 = vadd.f32 %v1896, %v1924
  %1926 = vmatmul.bf16.gmra.mxu0 %v259
  %v1927 = vpop.f32.mrf.mxu0
  %v1928 = vadd.f32 %v1899, %v1927
  %v1929 = vpop.f32.mrf.mxu0
  %v1930 = vadd.f32 %v1901, %v1929
  %1931 = vdwg.mxu0
  %1932 = vmatpush.bf16.msra.mxu0 %v1755
  %1933 = vmatpush.bf16.msra.mxu0 %v1754
  %1934 = vmatpush.bf16.msra.mxu0 %v1753
  %1935 = vmatpush.bf16.msra.mxu0 %v1752
  %1936 = vmatpush.bf16.msra.mxu0 %v1751
  %1937 = vmatpush.bf16.msra.mxu0 %v1750
  %1938 = vmatpush.bf16.msra.mxu0 %v1749
  %1939 = vmatpush.bf16.msra.mxu0 %v1748
  %1940 = vmatmul.bf16.gmra.mxu0 %v239
  %v1941 = vpop.f32.mrf.mxu0
  %v1942 = vadd.f32 %v1913, %v1941
  %v1943 = vpop.f32.mrf.mxu0
  %v1944 = vadd.f32 %v1915, %v1943
  %1945 = vmatmul.bf16.gmra.mxu0 %v246
  %v1946 = vpop.f32.mrf.mxu0
  %v1947 = vadd.f32 %v1918, %v1946
  %v1948 = vpop.f32.mrf.mxu0
  %v1949 = vadd.f32 %v1920, %v1948
  %1950 = vmatmul.bf16.gmra.mxu0 %v253
  %v1951 = vpop.f32.mrf.mxu0
  %v1952 = vadd.f32 %v1923, %v1951
  %v1953 = vpop.f32.mrf.mxu0
  %v1954 = vadd.f32 %v1925, %v1953
  %1955 = vmatmul.bf16.gmra.mxu0 %v260
  %v1956 = vpop.f32.mrf.mxu0
  %v1957 = vadd.f32 %v1928, %v1956
  %v1958 = vpop.f32.mrf.mxu0
  %v1959 = vadd.f32 %v1930, %v1958
  %1960 = vdwg.mxu0
  %1961 = vmatpush.bf16.msra.mxu0 %v1763
  %1962 = vmatpush.bf16.msra.mxu0 %v1762
  %1963 = vmatpush.bf16.msra.mxu0 %v1761
  %1964 = vmatpush.bf16.msra.mxu0 %v1760
  %1965 = vmatpush.bf16.msra.mxu0 %v1759
  %1966 = vmatpush.bf16.msra.mxu0 %v1758
  %1967 = vmatpush.bf16.msra.mxu0 %v1757
  %1968 = vmatpush.bf16.msra.mxu0 %v1756
  %1969 = vmatmul.bf16.gmra.mxu0 %v240
  %v1970 = vpop.f32.mrf.mxu0
  %v1971 = vadd.f32 %v1942, %v1970
  %v1972 = vpop.f32.mrf.mxu0
  %v1973 = vadd.f32 %v1944, %v1972
  %1974 = vmatmul.bf16.gmra.mxu0 %v247
  %v1975 = vpop.f32.mrf.mxu0
  %v1976 = vadd.f32 %v1947, %v1975
  %v1977 = vpop.f32.mrf.mxu0
  %v1978 = vadd.f32 %v1949, %v1977
  %1979 = vmatmul.bf16.gmra.mxu0 %v254
  %v1980 = vpop.f32.mrf.mxu0
  %v1981 = vadd.f32 %v1952, %v1980
  %v1982 = vpop.f32.mrf.mxu0
  %v1983 = vadd.f32 %v1954, %v1982
  %1984 = vmatmul.bf16.gmra.mxu0 %v261
  %v1985 = vpop.f32.mrf.mxu0
  %v1986 = vadd.f32 %v1957, %v1985
  %v1987 = vpop.f32.mrf.mxu0
  %v1988 = vadd.f32 %v1959, %v1987
  %1989 = vdwg.mxu0
  %1990 = vmatpush.bf16.msra.mxu0 0
  %1991 = vmatpush.bf16.msra.mxu0 0
  %1992 = vmatpush.bf16.msra.mxu0 0
  %1993 = vmatpush.bf16.msra.mxu0 0
  %1994 = vmatpush.bf16.msra.mxu0 0
  %1995 = vmatpush.bf16.msra.mxu0 0
  %1996 = vmatpush.bf16.msra.mxu0 %v1765
  %1997 = vmatpush.bf16.msra.mxu0 %v1764
  %1998 = vmatmul.bf16.gmra.mxu0 %v589
  %v1999 = vpop.f32.mrf.mxu0
  %v2000 = vadd.f32 %v1971, %v1999
  %v2001 = vpop.f32.mrf.mxu0
  %v2002 = vadd.f32 %v1973, %v2001
  %2003 = vmatmul.bf16.gmra.mxu0 %v592
  %v2004 = vpop.f32.mrf.mxu0
  %v2005 = vadd.f32 %v1976, %v2004
  %v2006 = vpop.f32.mrf.mxu0
  %v2007 = vadd.f32 %v1978, %v2006
  %2008 = vmatmul.bf16.gmra.mxu0 %v595
  %v2009 = vpop.f32.mrf.mxu0
  %v2010 = vadd.f32 %v1981, %v2009
  %v2011 = vpop.f32.mrf.mxu0
  %v2012 = vadd.f32 %v1983, %v2011
  %2013 = vmatmul.bf16.gmra.mxu0 %v598
  %v2014 = vpop.f32.mrf.mxu0
  %v2015 = vadd.f32 %v1986, %v2014
  %v2016 = vpop.f32.mrf.mxu0
  %v2017 = vadd.f32 %v1988, %v2016
  %2018 = vdwg.mxu0
  %v2019 = vmax.f32 %v1407, %v2000
  %v2020 = vmax.f32 %v1408, %v2002
  %v2021 = vmax.f32 %v1409, %v2005
  %v2022 = vmax.f32 %v1410, %v2007
  %v2023 = vmax.f32 %v1411, %v2010
  %v2024 = vmax.f32 %v1412, %v2012
  %v2025 = vmax.f32 %v1413, %v2015
  %v2026 = vmax.f32 %v1414, %v2017
  %s2027 = scalar_lea.vmem %s0, 1200
  %v2028 = vld [vmem:[%s2027] sm:$0xf]
  %v2029 = vld [vmem:[%s2027 + $0x4] sm:$0xf]
  %v2030 = vld [vmem:[%s2027 + $0x8] sm:$0xf]
  %v2031 = vld [vmem:[%s2027 + $0xc] sm:$0xf]
  %v2032 = vld [vmem:[%s2027 + $0x10] sm:$0xf]
  %v2033 = vld [vmem:[%s2027 + $0x14] sm:$0xf]
  %v2034 = vld [vmem:[%s2027 + $0x18] sm:$0xf]
  %v2035 = vld [vmem:[%s2027 + $0x1c] sm:$0xf]
  %v2036 = vld [vmem:[%s2027 + $0x20] sm:$0xf]
  %v2037 = vld [vmem:[%s2027 + $0x24] sm:$0xf]
  %v2038 = vld [vmem:[%s2027 + $0x28] sm:$0xf]
  %v2039 = vld [vmem:[%s2027 + $0x2c] sm:$0xf]
  %v2040 = vld [vmem:[%s2027 + $0x30] sm:$0xf]
  %v2041 = vld [vmem:[%s2027 + $0x34] sm:$0xf]
  %v2042 = vld [vmem:[%s2027 + $0x38] sm:$0xf]
  %v2043 = vld [vmem:[%s2027 + $0x3c] sm:$0xf]
  %v2044 = vld [vmem:[%s2027 + $0x40] sm:$0xf]
  %v2045 = vld [vmem:[%s2027 + $0x44] sm:$0xf]
  %v2046 = vld [vmem:[%s2027 + $0x48] sm:$0xf]
  %v2047 = vld [vmem:[%s2027 + $0x4c] sm:$0xf]
  %v2048 = vld [vmem:[%s2027 + $0x50] sm:$0xf]
  %v2049 = vld [vmem:[%s2027 + $0x54] sm:$0xf]
  %v2050 = vld [vmem:[%s2027 + $0x58] sm:$0xf]
  %v2051 = vld [vmem:[%s2027 + $0x5c] sm:$0xf]
  %v2052 = vld [vmem:[%s2027 + $0x60] sm:$0xf]
  %v2053 = vld [vmem:[%s2027 + $0x64] sm:$0xf]
  %v2054 = vld [vmem:[%s2027 + $0x68] sm:$0xf]
  %v2055 = vld [vmem:[%s2027 + $0x6c] sm:$0xf]
  %v2056 = vld [vmem:[%s2027 + $0x70] sm:$0xf]
  %v2057 = vld [vmem:[%s2027 + $0x74] sm:$0xf]
  %v2058 = vld [vmem:[%s2027 + $0x78] sm:$0xf]
  %v2059 = vld [vmem:[%s2027 + $0x7c] sm:$0xf]
  %v2060 = vld [vmem:[%s2027 + $0x80] sm:$0xf]
  %v2061 = vld [vmem:[%s2027 + $0x84] sm:$0xf]
  %v2062 = vld [vmem:[%s2027 + $0x88] sm:$0xf]
  %v2063 = vld [vmem:[%s2027 + $0x8c] sm:$0xf]
  %v2064 = vld [vmem:[%s2027 + $0x90] sm:$0xf]
  %v2065 = vld [vmem:[%s2027 + $0x94] sm:$0xf]
  %v2066 = vld [vmem:[%s2027 + $0x98] sm:$0xf]
  %v2067 = vld [vmem:[%s2027 + $0x9c] sm:$0xf]
  %v2068 = vld [vmem:[%s2027 + $0xa0] sm:$0xf]
  %v2069 = vld [vmem:[%s2027 + $0xa4] sm:$0xf]
  %v2070 = vld [vmem:[%s2027 + $0xa8] sm:$0xf]
  %v2071 = vld [vmem:[%s2027 + $0xac] sm:$0xf]
  %v2072 = vld [vmem:[%s2027 + $0xb0] sm:$0xf]
  %v2073 = vld [vmem:[%s2027 + $0xb4] sm:$0xf]
  %v2074 = vld [vmem:[%s2027 + $0xb8] sm:$0xf]
  %v2075 = vld [vmem:[%s2027 + $0xbc] sm:$0xf]
  %v2076 = vld [vmem:[%s2027 + $0xc0] sm:$0xf]
  %v2077 = vld [vmem:[%s2027 + $0xc4] sm:$0xf]
  %v2078 = vld [vmem:[%s2027 + $0xc8] sm:$0xf]
  %v2079 = vld [vmem:[%s2027 + $0xcc] sm:$0xf]
  %v2080 = vld [vmem:[%s2027 + $0xd0] sm:$0xf]
  %v2081 = vld [vmem:[%s2027 + $0xd4] sm:$0xf]
  %v2082 = vld [vmem:[%s2027 + $0xd8] sm:$0xf]
  %v2083 = vld [vmem:[%s2027 + $0xdc] sm:$0xf]
  %v2084 = vld [vmem:[%s2027 + $0xe0] sm:$0xf]
  %v2085 = vld [vmem:[%s2027 + $0xe4] sm:$0xf]
  %v2086 = vld [vmem:[%s2027 + $0xe8] sm:$0xf]
  %v2087 = vld [vmem:[%s2027 + $0xec] sm:$0xf]
  %v2088 = vld [vmem:[%s2027 + $0xf0] sm:$0xf]
  %v2089 = vld [vmem:[%s2027 + $0xf4] sm:$0xf]
  %v2090 = vld [vmem:[%s2027 + $0xf8] sm:$0xf]
  %v2091 = vld [vmem:[%s2027 + $0xfc] sm:$0xf]
  %v2092 = vld [vmem:[%s2027 + $0x100] sm:$0xf]
  %v2093 = vld [vmem:[%s2027 + $0x104] sm:$0xf]
  %v2094 = vld [vmem:[%s2027 + $0x108] sm:$0xf]
  %v2095 = vld [vmem:[%s2027 + $0x10c] sm:$0xf]
  %v2096 = vld [vmem:[%s2027 + $0x110] sm:$0xf]
  %v2097 = vld [vmem:[%s2027 + $0x114] sm:$0xf]
  %v2098 = vld [vmem:[%s2027 + $0x118] sm:$0xf]
  %v2099 = vld [vmem:[%s2027 + $0x11c] sm:$0xf]
  %v2100 = vld [vmem:[%s2027 + $0x120] sm:$0xf]
  %v2101 = vld [vmem:[%s2027 + $0x124] sm:$0xf]
  %v2102 = vld [vmem:[%s2027 + $0x128] sm:$0xf]
  %v2103 = vld [vmem:[%s2027 + $0x12c] sm:$0xf]
  %v2104 = vld [vmem:[%s2027 + $0x130] sm:$0xf]
  %v2105 = vld [vmem:[%s2027 + $0x134] sm:$0xf]
  %v2106 = vld [vmem:[%s2027 + $0x138] sm:$0xf]
  %v2107 = vld [vmem:[%s2027 + $0x13c] sm:$0xf]
  %v2108 = vld [vmem:[%s2027 + $0x140] sm:$0xf]
  %v2109 = vld [vmem:[%s2027 + $0x144] sm:$0xf]
  %v2110 = vld [vmem:[%s2027 + $0x148] sm:$0xf]
  %v2111 = vld [vmem:[%s2027 + $0x14c] sm:$0xf]
  %v2112 = vld [vmem:[%s2027 + $0x150] sm:$0xf]
  %v2113 = vld [vmem:[%s2027 + $0x154] sm:$0xf]
  %v2114 = vld [vmem:[%s2027 + $0x158] sm:$0xf]
  %v2115 = vld [vmem:[%s2027 + $0x15c] sm:$0xf]
  %v2116 = vld [vmem:[%s2027 + $0x160] sm:$0xf]
  %v2117 = vld [vmem:[%s2027 + $0x164] sm:$0xf]
  %v2118 = vld [vmem:[%s2027 + $0x168] sm:$0xf]
  %v2119 = vld [vmem:[%s2027 + $0x16c] sm:$0xf]
  %v2120 = vld [vmem:[%s2027 + $0x170] sm:$0xf]
  %v2121 = vld [vmem:[%s2027 + $0x174] sm:$0xf]
  %v2122 = vld [vmem:[%s2027 + $0x178] sm:$0xf]
  %v2123 = vld [vmem:[%s2027 + $0x17c] sm:$0xf]
  %v2124 = vld [vmem:[%s2027 + $0x180] sm:$0xf]
  %v2125 = vld [vmem:[%s2027 + $0x184] sm:$0xf]
  %v2126 = vld [vmem:[%s2027 + $0x188] sm:$0xf]
  %v2127 = vld [vmem:[%s2027 + $0x18c] sm:$0xf]
  %v2228 = vunpack.c.l.b16 %v2028
  %v2229 = vunpack.c.l.b16 %v2029
  %v2230 = vunpack.c.l.b16 %v2030
  %v2231 = vunpack.c.l.b16 %v2031
  %v2232 = vunpack.c.l.b16 %v2032
  %v2233 = vunpack.c.l.b16 %v2033
  %v2234 = vunpack.c.l.b16 %v2034
  %v2235 = vunpack.c.l.b16 %v2035
  %v2236 = vunpack.c.l.b16 %v2036
  %v2237 = vunpack.c.l.b16 %v2037
  %v2238 = vunpack.c.l.b16 %v2038
  %v2239 = vunpack.c.l.b16 %v2039
  %v2240 = vunpack.c.l.b16 %v2040
  %v2241 = vunpack.c.l.b16 %v2041
  %v2242 = vunpack.c.l.b16 %v2042
  %v2243 = vunpack.c.l.b16 %v2043
  %v2244 = vunpack.c.l.b16 %v2044
  %v2245 = vunpack.c.l.b16 %v2045
  %v2246 = vunpack.c.l.b16 %v2046
  %v2247 = vunpack.c.l.b16 %v2047
  %v2248 = vunpack.c.l.b16 %v2048
  %v2249 = vunpack.c.l.b16 %v2049
  %v2250 = vunpack.c.l.b16 %v2050
  %v2251 = vunpack.c.l.b16 %v2051
  %v2252 = vunpack.c.l.b16 %v2052
  %v2253 = vunpack.c.l.b16 %v2053
  %v2254 = vunpack.c.l.b16 %v2054
  %v2255 = vunpack.c.l.b16 %v2055
  %v2256 = vunpack.c.l.b16 %v2056
  %v2257 = vunpack.c.l.b16 %v2057
  %v2258 = vunpack.c.l.b16 %v2058
  %v2259 = vunpack.c.l.b16 %v2059
  %v2260 = vunpack.c.l.b16 %v2060
  %v2261 = vunpack.c.l.b16 %v2061
  %v2262 = vunpack.c.l.b16 %v2062
  %v2263 = vunpack.c.l.b16 %v2063
  %v2264 = vunpack.c.l.b16 %v2064
  %v2265 = vunpack.c.l.b16 %v2065
  %v2266 = vunpack.c.l.b16 %v2066
  %v2267 = vunpack.c.l.b16 %v2067
  %v2268 = vunpack.c.l.b16 %v2068
  %v2269 = vunpack.c.l.b16 %v2069
  %v2270 = vunpack.c.l.b16 %v2070
  %v2271 = vunpack.c.l.b16 %v2071
  %v2272 = vunpack.c.l.b16 %v2072
  %v2273 = vunpack.c.l.b16 %v2073
  %v2274 = vunpack.c.l.b16 %v2074
  %v2275 = vunpack.c.l.b16 %v2075
  %v2276 = vunpack.c.l.b16 %v2076
  %v2277 = vunpack.c.l.b16 %v2077
  %v2278 = vunpack.c.l.b16 %v2078
  %v2279 = vunpack.c.l.b16 %v2079
  %v2280 = vunpack.c.l.b16 %v2080
  %v2281 = vunpack.c.l.b16 %v2081
  %v2282 = vunpack.c.l.b16 %v2082
  %v2283 = vunpack.c.l.b16 %v2083
  %v2284 = vunpack.c.l.b16 %v2084
  %v2285 = vunpack.c.l.b16 %v2085
  %v2286 = vunpack.c.l.b16 %v2086
  %v2287 = vunpack.c.l.b16 %v2087
  %v2288 = vunpack.c.l.b16 %v2088
  %v2289 = vunpack.c.l.b16 %v2089
  %v2290 = vunpack.c.l.b16 %v2090
  %v2291 = vunpack.c.l.b16 %v2091
  %v2292 = vunpack.c.l.b16 %v2092
  %v2293 = vunpack.c.l.b16 %v2093
  %v2294 = vunpack.c.l.b16 %v2094
  %v2295 = vunpack.c.l.b16 %v2095
  %v2296 = vunpack.c.l.b16 %v2096
  %v2297 = vunpack.c.l.b16 %v2097
  %v2298 = vunpack.c.l.b16 %v2098
  %v2299 = vunpack.c.l.b16 %v2099
  %v2300 = vunpack.c.l.b16 %v2100
  %v2301 = vunpack.c.l.b16 %v2101
  %v2302 = vunpack.c.l.b16 %v2102
  %v2303 = vunpack.c.l.b16 %v2103
  %v2304 = vunpack.c.l.b16 %v2104
  %v2305 = vunpack.c.l.b16 %v2105
  %v2306 = vunpack.c.l.b16 %v2106
  %v2307 = vunpack.c.l.b16 %v2107
  %v2308 = vunpack.c.l.b16 %v2108
  %v2309 = vunpack.c.l.b16 %v2109
  %v2310 = vunpack.c.l.b16 %v2110
  %v2311 = vunpack.c.l.b16 %v2111
  %v2312 = vunpack.c.l.b16 %v2112
  %v2313 = vunpack.c.l.b16 %v2113
  %v2314 = vunpack.c.l.b16 %v2114
  %v2315 = vunpack.c.l.b16 %v2115
  %v2316 = vunpack.c.l.b16 %v2116
  %v2317 = vunpack.c.l.b16 %v2117
  %v2318 = vunpack.c.l.b16 %v2118
  %v2319 = vunpack.c.l.b16 %v2119
  %v2320 = vunpack.c.l.b16 %v2120
  %v2321 = vunpack.c.l.b16 %v2121
  %v2322 = vunpack.c.l.b16 %v2122
  %v2323 = vunpack.c.l.b16 %v2123
  %v2324 = vunpack.c.l.b16 %v2124
  %v2325 = vunpack.c.l.b16 %v2125
  %v2326 = vunpack.c.l.b16 %v2126
  %v2327 = vunpack.c.l.b16 %v2127
  %v2328 = vpack.c.b16 %v2229, %v2228
  %v2329 = vpack.c.b16 %v2231, %v2230
  %v2330 = vpack.c.b16 %v2233, %v2232
  %v2331 = vpack.c.b16 %v2235, %v2234
  %v2332 = vpack.c.b16 %v2237, %v2236
  %v2333 = vpack.c.b16 %v2239, %v2238
  %v2334 = vpack.c.b16 %v2241, %v2240
  %v2335 = vpack.c.b16 %v2243, %v2242
  %v2336 = vpack.c.b16 %v2245, %v2244
  %v2337 = vpack.c.b16 %v2247, %v2246
  %v2338 = vpack.c.b16 %v2249, %v2248
  %v2339 = vpack.c.b16 %v2251, %v2250
  %v2340 = vpack.c.b16 %v2253, %v2252
  %v2341 = vpack.c.b16 %v2255, %v2254
  %v2342 = vpack.c.b16 %v2257, %v2256
  %v2343 = vpack.c.b16 %v2259, %v2258
  %v2344 = vpack.c.b16 %v2261, %v2260
  %v2345 = vpack.c.b16 %v2263, %v2262
  %v2346 = vpack.c.b16 %v2265, %v2264
  %v2347 = vpack.c.b16 %v2267, %v2266
  %v2348 = vpack.c.b16 %v2269, %v2268
  %v2349 = vpack.c.b16 %v2271, %v2270
  %v2350 = vpack.c.b16 %v2273, %v2272
  %v2351 = vpack.c.b16 %v2275, %v2274
  %v2352 = vpack.c.b16 %v2277, %v2276
  %v2353 = vpack.c.b16 %v2279, %v2278
  %v2354 = vpack.c.b16 %v2281, %v2280
  %v2355 = vpack.c.b16 %v2283, %v2282
  %v2356 = vpack.c.b16 %v2285, %v2284
  %v2357 = vpack.c.b16 %v2287, %v2286
  %v2358 = vpack.c.b16 %v2289, %v2288
  %v2359 = vpack.c.b16 %v2291, %v2290
  %v2360 = vpack.c.b16 %v2293, %v2292
  %v2361 = vpack.c.b16 %v2295, %v2294
  %v2362 = vpack.c.b16 %v2297, %v2296
  %v2363 = vpack.c.b16 %v2299, %v2298
  %v2364 = vpack.c.b16 %v2301, %v2300
  %v2365 = vpack.c.b16 %v2303, %v2302
  %v2366 = vpack.c.b16 %v2305, %v2304
  %v2367 = vpack.c.b16 %v2307, %v2306
  %v2368 = vpack.c.b16 %v2309, %v2308
  %v2369 = vpack.c.b16 %v2311, %v2310
  %v2370 = vpack.c.b16 %v2313, %v2312
  %v2371 = vpack.c.b16 %v2315, %v2314
  %v2372 = vpack.c.b16 %v2317, %v2316
  %v2373 = vpack.c.b16 %v2319, %v2318
  %v2374 = vpack.c.b16 %v2321, %v2320
  %v2375 = vpack.c.b16 %v2323, %v2322
  %v2376 = vpack.c.b16 %v2325, %v2324
  %v2377 = vpack.c.b16 %v2327, %v2326
  %2428 = vmatpush.bf16.msra.mxu0 %v2335
  %2429 = vmatpush.bf16.msra.mxu0 %v2334
  %2430 = vmatpush.bf16.msra.mxu0 %v2333
  %2431 = vmatpush.bf16.msra.mxu0 %v2332
  %2432 = vmatpush.bf16.msra.mxu0 %v2331
  %2433 = vmatpush.bf16.msra.mxu0 %v2330
  %2434 = vmatpush.bf16.msra.mxu0 %v2329
  %2435 = vmatpush.bf16.msra.mxu0 %v2328
  %2436 = vmatmul.bf16.gmra.mxu0 %v235
  %v2437 = vpop.f32.mrf.mxu0
  %v2438 = vadd.f32 0.0, %v2437
  %v2439 = vpop.f32.mrf.mxu0
  %v2440 = vadd.f32 0.0, %v2439
  %2441 = vmatmul.bf16.gmra.mxu0 %v242
  %v2442 = vpop.f32.mrf.mxu0
  %v2443 = vadd.f32 0.0, %v2442
  %v2444 = vpop.f32.mrf.mxu0
  %v2445 = vadd.f32 0.0, %v2444
  %2446 = vmatmul.bf16.gmra.mxu0 %v249
  %v2447 = vpop.f32.mrf.mxu0
  %v2448 = vadd.f32 0.0, %v2447
  %v2449 = vpop.f32.mrf.mxu0
  %v2450 = vadd.f32 0.0, %v2449
  %2451 = vmatmul.bf16.gmra.mxu0 %v256
  %v2452 = vpop.f32.mrf.mxu0
  %v2453 = vadd.f32 0.0, %v2452
  %v2454 = vpop.f32.mrf.mxu0
  %v2455 = vadd.f32 0.0, %v2454
  %2456 = vdwg.mxu0
  %2457 = vmatpush.bf16.msra.mxu0 %v2343
  %2458 = vmatpush.bf16.msra.mxu0 %v2342
  %2459 = vmatpush.bf16.msra.mxu0 %v2341
  %2460 = vmatpush.bf16.msra.mxu0 %v2340
  %2461 = vmatpush.bf16.msra.mxu0 %v2339
  %2462 = vmatpush.bf16.msra.mxu0 %v2338
  %2463 = vmatpush.bf16.msra.mxu0 %v2337
  %2464 = vmatpush.bf16.msra.mxu0 %v2336
  %2465 = vmatmul.bf16.gmra.mxu0 %v236
  %v2466 = vpop.f32.mrf.mxu0
  %v2467 = vadd.f32 %v2438, %v2466
  %v2468 = vpop.f32.mrf.mxu0
  %v2469 = vadd.f32 %v2440, %v2468
  %2470 = vmatmul.bf16.gmra.mxu0 %v243
  %v2471 = vpop.f32.mrf.mxu0
  %v2472 = vadd.f32 %v2443, %v2471
  %v2473 = vpop.f32.mrf.mxu0
  %v2474 = vadd.f32 %v2445, %v2473
  %2475 = vmatmul.bf16.gmra.mxu0 %v250
  %v2476 = vpop.f32.mrf.mxu0
  %v2477 = vadd.f32 %v2448, %v2476
  %v2478 = vpop.f32.mrf.mxu0
  %v2479 = vadd.f32 %v2450, %v2478
  %2480 = vmatmul.bf16.gmra.mxu0 %v257
  %v2481 = vpop.f32.mrf.mxu0
  %v2482 = vadd.f32 %v2453, %v2481
  %v2483 = vpop.f32.mrf.mxu0
  %v2484 = vadd.f32 %v2455, %v2483
  %2485 = vdwg.mxu0
  %2486 = vmatpush.bf16.msra.mxu0 %v2351
  %2487 = vmatpush.bf16.msra.mxu0 %v2350
  %2488 = vmatpush.bf16.msra.mxu0 %v2349
  %2489 = vmatpush.bf16.msra.mxu0 %v2348
  %2490 = vmatpush.bf16.msra.mxu0 %v2347
  %2491 = vmatpush.bf16.msra.mxu0 %v2346
  %2492 = vmatpush.bf16.msra.mxu0 %v2345
  %2493 = vmatpush.bf16.msra.mxu0 %v2344
  %2494 = vmatmul.bf16.gmra.mxu0 %v237
  %v2495 = vpop.f32.mrf.mxu0
  %v2496 = vadd.f32 %v2467, %v2495
  %v2497 = vpop.f32.mrf.mxu0
  %v2498 = vadd.f32 %v2469, %v2497
  %2499 = vmatmul.bf16.gmra.mxu0 %v244
  %v2500 = vpop.f32.mrf.mxu0
  %v2501 = vadd.f32 %v2472, %v2500
  %v2502 = vpop.f32.mrf.mxu0
  %v2503 = vadd.f32 %v2474, %v2502
  %2504 = vmatmul.bf16.gmra.mxu0 %v251
  %v2505 = vpop.f32.mrf.mxu0
  %v2506 = vadd.f32 %v2477, %v2505
  %v2507 = vpop.f32.mrf.mxu0
  %v2508 = vadd.f32 %v2479, %v2507
  %2509 = vmatmul.bf16.gmra.mxu0 %v258
  %v2510 = vpop.f32.mrf.mxu0
  %v2511 = vadd.f32 %v2482, %v2510
  %v2512 = vpop.f32.mrf.mxu0
  %v2513 = vadd.f32 %v2484, %v2512
  %2514 = vdwg.mxu0
  %2515 = vmatpush.bf16.msra.mxu0 %v2359
  %2516 = vmatpush.bf16.msra.mxu0 %v2358
  %2517 = vmatpush.bf16.msra.mxu0 %v2357
  %2518 = vmatpush.bf16.msra.mxu0 %v2356
  %2519 = vmatpush.bf16.msra.mxu0 %v2355
  %2520 = vmatpush.bf16.msra.mxu0 %v2354
  %2521 = vmatpush.bf16.msra.mxu0 %v2353
  %2522 = vmatpush.bf16.msra.mxu0 %v2352
  %2523 = vmatmul.bf16.gmra.mxu0 %v238
  %v2524 = vpop.f32.mrf.mxu0
  %v2525 = vadd.f32 %v2496, %v2524
  %v2526 = vpop.f32.mrf.mxu0
  %v2527 = vadd.f32 %v2498, %v2526
  %2528 = vmatmul.bf16.gmra.mxu0 %v245
  %v2529 = vpop.f32.mrf.mxu0
  %v2530 = vadd.f32 %v2501, %v2529
  %v2531 = vpop.f32.mrf.mxu0
  %v2532 = vadd.f32 %v2503, %v2531
  %2533 = vmatmul.bf16.gmra.mxu0 %v252
  %v2534 = vpop.f32.mrf.mxu0
  %v2535 = vadd.f32 %v2506, %v2534
  %v2536 = vpop.f32.mrf.mxu0
  %v2537 = vadd.f32 %v2508, %v2536
  %2538 = vmatmul.bf16.gmra.mxu0 %v259
  %v2539 = vpop.f32.mrf.mxu0
  %v2540 = vadd.f32 %v2511, %v2539
  %v2541 = vpop.f32.mrf.mxu0
  %v2542 = vadd.f32 %v2513, %v2541
  %2543 = vdwg.mxu0
  %2544 = vmatpush.bf16.msra.mxu0 %v2367
  %2545 = vmatpush.bf16.msra.mxu0 %v2366
  %2546 = vmatpush.bf16.msra.mxu0 %v2365
  %2547 = vmatpush.bf16.msra.mxu0 %v2364
  %2548 = vmatpush.bf16.msra.mxu0 %v2363
  %2549 = vmatpush.bf16.msra.mxu0 %v2362
  %2550 = vmatpush.bf16.msra.mxu0 %v2361
  %2551 = vmatpush.bf16.msra.mxu0 %v2360
  %2552 = vmatmul.bf16.gmra.mxu0 %v239
  %v2553 = vpop.f32.mrf.mxu0
  %v2554 = vadd.f32 %v2525, %v2553
  %v2555 = vpop.f32.mrf.mxu0
  %v2556 = vadd.f32 %v2527, %v2555
  %2557 = vmatmul.bf16.gmra.mxu0 %v246
  %v2558 = vpop.f32.mrf.mxu0
  %v2559 = vadd.f32 %v2530, %v2558
  %v2560 = vpop.f32.mrf.mxu0
  %v2561 = vadd.f32 %v2532, %v2560
  %2562 = vmatmul.bf16.gmra.mxu0 %v253
  %v2563 = vpop.f32.mrf.mxu0
  %v2564 = vadd.f32 %v2535, %v2563
  %v2565 = vpop.f32.mrf.mxu0
  %v2566 = vadd.f32 %v2537, %v2565
  %2567 = vmatmul.bf16.gmra.mxu0 %v260
  %v2568 = vpop.f32.mrf.mxu0
  %v2569 = vadd.f32 %v2540, %v2568
  %v2570 = vpop.f32.mrf.mxu0
  %v2571 = vadd.f32 %v2542, %v2570
  %2572 = vdwg.mxu0
  %2573 = vmatpush.bf16.msra.mxu0 %v2375
  %2574 = vmatpush.bf16.msra.mxu0 %v2374
  %2575 = vmatpush.bf16.msra.mxu0 %v2373
  %2576 = vmatpush.bf16.msra.mxu0 %v2372
  %2577 = vmatpush.bf16.msra.mxu0 %v2371
  %2578 = vmatpush.bf16.msra.mxu0 %v2370
  %2579 = vmatpush.bf16.msra.mxu0 %v2369
  %2580 = vmatpush.bf16.msra.mxu0 %v2368
  %2581 = vmatmul.bf16.gmra.mxu0 %v240
  %v2582 = vpop.f32.mrf.mxu0
  %v2583 = vadd.f32 %v2554, %v2582
  %v2584 = vpop.f32.mrf.mxu0
  %v2585 = vadd.f32 %v2556, %v2584
  %2586 = vmatmul.bf16.gmra.mxu0 %v247
  %v2587 = vpop.f32.mrf.mxu0
  %v2588 = vadd.f32 %v2559, %v2587
  %v2589 = vpop.f32.mrf.mxu0
  %v2590 = vadd.f32 %v2561, %v2589
  %2591 = vmatmul.bf16.gmra.mxu0 %v254
  %v2592 = vpop.f32.mrf.mxu0
  %v2593 = vadd.f32 %v2564, %v2592
  %v2594 = vpop.f32.mrf.mxu0
  %v2595 = vadd.f32 %v2566, %v2594
  %2596 = vmatmul.bf16.gmra.mxu0 %v261
  %v2597 = vpop.f32.mrf.mxu0
  %v2598 = vadd.f32 %v2569, %v2597
  %v2599 = vpop.f32.mrf.mxu0
  %v2600 = vadd.f32 %v2571, %v2599
  %2601 = vdwg.mxu0
  %2602 = vmatpush.bf16.msra.mxu0 0
  %2603 = vmatpush.bf16.msra.mxu0 0
  %2604 = vmatpush.bf16.msra.mxu0 0
  %2605 = vmatpush.bf16.msra.mxu0 0
  %2606 = vmatpush.bf16.msra.mxu0 0
  %2607 = vmatpush.bf16.msra.mxu0 0
  %2608 = vmatpush.bf16.msra.mxu0 %v2377
  %2609 = vmatpush.bf16.msra.mxu0 %v2376
  %2610 = vmatmul.bf16.gmra.mxu0 %v589
  %v2611 = vpop.f32.mrf.mxu0
  %v2612 = vadd.f32 %v2583, %v2611
  %v2613 = vpop.f32.mrf.mxu0
  %v2614 = vadd.f32 %v2585, %v2613
  %2615 = vmatmul.bf16.gmra.mxu0 %v592
  %v2616 = vpop.f32.mrf.mxu0
  %v2617 = vadd.f32 %v2588, %v2616
  %v2618 = vpop.f32.mrf.mxu0
  %v2619 = vadd.f32 %v2590, %v2618
  %2620 = vmatmul.bf16.gmra.mxu0 %v595
  %v2621 = vpop.f32.mrf.mxu0
  %v2622 = vadd.f32 %v2593, %v2621
  %v2623 = vpop.f32.mrf.mxu0
  %v2624 = vadd.f32 %v2595, %v2623
  %2625 = vmatmul.bf16.gmra.mxu0 %v598
  %v2626 = vpop.f32.mrf.mxu0
  %v2627 = vadd.f32 %v2598, %v2626
  %v2628 = vpop.f32.mrf.mxu0
  %v2629 = vadd.f32 %v2600, %v2628
  %2630 = vdwg.mxu0
  %v2631 = vmax.f32 %v2019, %v2612
  %v2632 = vmax.f32 %v2020, %v2614
  %v2633 = vmax.f32 %v2021, %v2617
  %v2634 = vmax.f32 %v2022, %v2619
  %v2635 = vmax.f32 %v2023, %v2622
  %v2636 = vmax.f32 %v2024, %v2624
  %v2637 = vmax.f32 %v2025, %v2627
  %v2638 = vmax.f32 %v2026, %v2629
  %v2639 = vld [vmem:[%s2] sm:$0xff]
  %v2640 = vld [vmem:[%s2 + $0x8] sm:$0xff]
  %v2641 = vld [vmem:[%s2 + $0x10] sm:$0xff]
  %v2642 = vld [vmem:[%s2 + $0x18] sm:$0xff]
  %v2643 = vld [vmem:[%s2 + $0x20] sm:$0xff]
  %v2644 = vld [vmem:[%s2 + $0x28] sm:$0xff]
  %v2645 = vld [vmem:[%s2 + $0x30] sm:$0xff]
  %v2646 = vld [vmem:[%s2 + $0x38] sm:$0xff]
  %2648 = vset.pattern.permute.xlu0 0
  %2649 = vperm.xlu0 %2648, %v2639
  %v2650 = vpop.permute.xlu0 %2649
  %2653 = vset.pattern.permute.xlu0 0
  %2654 = vperm.xlu0 %2653, %v2640
  %v2655 = vpop.permute.xlu0 %2654
  %2658 = vset.pattern.permute.xlu0 0
  %2659 = vperm.xlu0 %2658, %v2641
  %v2660 = vpop.permute.xlu0 %2659
  %2663 = vset.pattern.permute.xlu0 0
  %2664 = vperm.xlu0 %2663, %v2642
  %v2665 = vpop.permute.xlu0 %2664
  %2668 = vset.pattern.permute.xlu0 0
  %2669 = vperm.xlu0 %2668, %v2643
  %v2670 = vpop.permute.xlu0 %2669
  %2673 = vset.pattern.permute.xlu0 0
  %2674 = vperm.xlu0 %2673, %v2644
  %v2675 = vpop.permute.xlu0 %2674
  %2678 = vset.pattern.permute.xlu0 0
  %2679 = vperm.xlu0 %2678, %v2645
  %v2680 = vpop.permute.xlu0 %2679
  %2683 = vset.pattern.permute.xlu0 0
  %2684 = vperm.xlu0 %2683, %v2646
  %v2685 = vpop.permute.xlu0 %2684
  %v2687 = vadd.f32 %v2631, %v2650
  %v2688 = vadd.f32 %v2632, %v2655
  %v2689 = vadd.f32 %v2633, %v2660
  %v2690 = vadd.f32 %v2634, %v2665
  %v2691 = vadd.f32 %v2635, %v2670
  %v2692 = vadd.f32 %v2636, %v2675
  %v2693 = vadd.f32 %v2637, %v2680
  %v2694 = vadd.f32 %v2638, %v2685
  %v2695 = vmax.f32 %v2687, 0.0
  %v2696 = vmax.f32 %v2688, 0.0
  %v2697 = vmax.f32 %v2689, 0.0
  %v2698 = vmax.f32 %v2690, 0.0
  %v2699 = vmax.f32 %v2691, 0.0
  %v2700 = vmax.f32 %v2692, 0.0
  %v2701 = vmax.f32 %v2693, 0.0
  %v2702 = vmax.f32 %v2694, 0.0
  %v2703 = vpack.c.bf16 %v2695, %v2695
  %v2704 = vpack.c.bf16 %v2696, %v2696
  %v2705 = vpack.c.bf16 %v2697, %v2697
  %v2706 = vpack.c.bf16 %v2698, %v2698
  %v2707 = vpack.c.bf16 %v2699, %v2699
  %v2708 = vpack.c.bf16 %v2700, %v2700
  %v2709 = vpack.c.bf16 %v2701, %v2701
  %v2710 = vpack.c.bf16 %v2702, %v2702
  %2711 = vst [vmem:[%s3] sm:$0xf] %v2703
  %2712 = vst [vmem:[%s3 + $0x4] sm:$0xf] %v2704
  %2713 = vst [vmem:[%s3 + $0x8] sm:$0xf] %v2705
  %2714 = vst [vmem:[%s3 + $0xc] sm:$0xf] %v2706
  %2715 = vst [vmem:[%s3 + $0x10] sm:$0xf] %v2707
  %2716 = vst [vmem:[%s3 + $0x14] sm:$0xf] %v2708
  %2717 = vst [vmem:[%s3 + $0x18] sm:$0xf] %v2709
  %2718 = vst [vmem:[%s3 + $0x1c] sm:$0xf] %v2710
  // Predicated region
  $region14: #{gauge_net_forward.6} parent=0 // pred_check
    _
  $region15: #{gauge_net_forward.6} parent=0 // pred_check_branch
    %2720 = sbr.rel (0) target = $region17
  $region16: #{gauge_net_forward.6} parent=0 // pred_region
    _
  $region17: #{gauge_net_forward.6} parent=0 // pred_fallthru
    _
  // Predicated region
  $region18: #{gauge_net_forward.6} parent=0 // pred_check
    _
  $region19: #{gauge_net_forward.6} parent=0 // pred_check_branch
    %2722 = sbr.rel (0) target = $region21
  $region20: #{gauge_net_forward.6} parent=0 // pred_region
    _
  $region21: #{gauge_net_forward.6} parent=0 // pred_fallthru
    _

// kernel: gauge_net_forward.7
$region0: #{gauge_net_forward.7}
  #allocation0 [shape = 'u32[]', space=smem, size = 0x4, offset = 0x4, fixed_abs, tag = 'smem constant byte address 0x4 - core index']
  #allocation1 [shape = 'u32[72,128]{1,0:T(1,128)}', space=vmem, size = 0x9000, scoped, tag = 'internal scratch']
  %s0 = inlined_call_operand.vmem [shape: bf16[8,1024], index: 0, kind: input, shape index: {}]
  %s1 = inlined_call_operand.vmem [shape: bf16[1024,512], index: 1, kind: input, shape index: {}]
  %s2 = inlined_call_operand.vmem [shape: f32[1,512], index: 2, kind: input, shape index: {}]
  %s3 = inlined_call_operand.vmem [shape: bf16[512,256], index: 3, kind: input, shape index: {}]
  %s4 = inlined_call_operand.vmem [shape: f32[1,256], index: 4, kind: input, shape index: {}]
  %s5 = inlined_call_operand.vmem [shape: bf16[256,128], index: 5, kind: input, shape index: {}]
  %s6 = inlined_call_operand.vmem [shape: f32[1,128], index: 6, kind: input, shape index: {}]
  %s7 = inlined_call_operand.vmem [shape: bf16[128,128], index: 7, kind: input, shape index: {}]
  %s8 = inlined_call_operand.vmem [shape: f32[1,128], index: 8, kind: input, shape index: {}]
  %s9 = inlined_call_operand.vmem [shape: f32[8,128], index: 9, kind: output, shape index: {}]
  %s10 = sld [smem:[#allocation0]]
  $region46: #{gauge_net_forward.7} parent=0
    _
  %s12 = ssub.s32 1, %s10
  %s13 = scalar_select 0, %s12, %s10
  // Predicated region
  $region2: #{gauge_net_forward.7} parent=0 // pred_check
    _
  $region3: #{gauge_net_forward.7} parent=0 // pred_check_branch
    %15 = sbr.rel (0) target = $region5
  $region4: #{gauge_net_forward.7} parent=0 // pred_region
    _
  $region5: #{gauge_net_forward.7} parent=0 // pred_fallthru
    _
  // Predicated region
  $region6: #{gauge_net_forward.7} parent=0 // pred_check
    _
  $region7: #{gauge_net_forward.7} parent=0 // pred_check_branch
    %17 = sbr.rel (0) target = $region9
  $region8: #{gauge_net_forward.7} parent=0 // pred_region
    _
  $region9: #{gauge_net_forward.7} parent=0 // pred_fallthru
    _
  // Predicated region
  $region10: #{gauge_net_forward.7} parent=0 // pred_check
    _
  $region11: #{gauge_net_forward.7} parent=0 // pred_check_branch
    %19 = sbr.rel (0) target = $region13
  $region12: #{gauge_net_forward.7} parent=0 // pred_region
    _
  $region13: #{gauge_net_forward.7} parent=0 // pred_fallthru
    _
  // Predicated region
  $region14: #{gauge_net_forward.7} parent=0 // pred_check
    _
  $region15: #{gauge_net_forward.7} parent=0 // pred_check_branch
    %21 = sbr.rel (0) target = $region17
  $region16: #{gauge_net_forward.7} parent=0 // pred_region
    _
  $region17: #{gauge_net_forward.7} parent=0 // pred_fallthru
    _
  // Predicated region
  $region18: #{gauge_net_forward.7} parent=0 // pred_check
    _
  $region19: #{gauge_net_forward.7} parent=0 // pred_check_branch
    %23 = sbr.rel (0) target = $region21
  $region20: #{gauge_net_forward.7} parent=0 // pred_region
    _
  $region21: #{gauge_net_forward.7} parent=0 // pred_fallthru
    _
  // Predicated region
  $region22: #{gauge_net_forward.7} parent=0 // pred_check
    _
  $region23: #{gauge_net_forward.7} parent=0 // pred_check_branch
    %25 = sbr.rel (0) target = $region25
  $region24: #{gauge_net_forward.7} parent=0 // pred_region
    _
  $region25: #{gauge_net_forward.7} parent=0 // pred_fallthru
    _
  // Predicated region
  $region26: #{gauge_net_forward.7} parent=0 // pred_check
    _
  $region27: #{gauge_net_forward.7} parent=0 // pred_check_branch
    %27 = sbr.rel (0) target = $region29
  $region28: #{gauge_net_forward.7} parent=0 // pred_region
    _
  $region29: #{gauge_net_forward.7} parent=0 // pred_fallthru
    _
  // Predicated region
  $region30: #{gauge_net_forward.7} parent=0 // pred_check
    _
  $region31: #{gauge_net_forward.7} parent=0 // pred_check_branch
    %29 = sbr.rel (0) target = $region33
  $region32: #{gauge_net_forward.7} parent=0 // pred_region
    _
  $region33: #{gauge_net_forward.7} parent=0 // pred_fallthru
    _
  // Predicated region
  $region34: #{gauge_net_forward.7} parent=0 // pred_check
    _
  $region35: #{gauge_net_forward.7} parent=0 // pred_check_branch
    %31 = sbr.rel (0) target = $region37
  $region36: #{gauge_net_forward.7} parent=0 // pred_region
    _
  $region37: #{gauge_net_forward.7} parent=0 // pred_fallthru
    _
  %v32 = vld [vmem:[%s0] sm:$0xff]
  %v33 = vld [vmem:[%s0 + $0x8] sm:$0xff]
  %v34 = vld [vmem:[%s0 + $0x10] sm:$0xff]
  %v35 = vld [vmem:[%s0 + $0x18] sm:$0xff]
  %v36 = vld [vmem:[%s1] sm:$0xff]
  %v37 = vld [vmem:[%s1 + $0x8] sm:$0xff]
  %v38 = vld [vmem:[%s1 + $0x10] sm:$0xff]
  %v39 = vld [vmem:[%s1 + $0x18] sm:$0xff]
  %v40 = vld [vmem:[%s1 + $0x20] sm:$0xff]
  %v41 = vld [vmem:[%s1 + $0x28] sm:$0xff]
  %v42 = vld [vmem:[%s1 + $0x30] sm:$0xff]
  %v43 = vld [vmem:[%s1 + $0x38] sm:$0xff]
  %v44 = vld [vmem:[%s1 + $0x40] sm:$0xff]
  %v45 = vld [vmem:[%s1 + $0x48] sm:$0xff]
  %v46 = vld [vmem:[%s1 + $0x50] sm:$0xff]
  %v47 = vld [vmem:[%s1 + $0x58] sm:$0xff]
  %v48 = vld [vmem:[%s1 + $0x60] sm:$0xff]
  %v49 = vld [vmem:[%s1 + $0x68] sm:$0xff]
  %v50 = vld [vmem:[%s1 + $0x70] sm:$0xff]
  %v51 = vld [vmem:[%s1 + $0x78] sm:$0xff]
  %v52 = vld [vmem:[%s1 + $0x80] sm:$0xff]
  %v53 = vld [vmem:[%s1 + $0x88] sm:$0xff]
  %v54 = vld [vmem:[%s1 + $0x90] sm:$0xff]
  %v55 = vld [vmem:[%s1 + $0x98] sm:$0xff]
  %v56 = vld [vmem:[%s1 + $0xa0] sm:$0xff]
  %v57 = vld [vmem:[%s1 + $0xa8] sm:$0xff]
  %v58 = vld [vmem:[%s1 + $0xb0] sm:$0xff]
  %v59 = vld [vmem:[%s1 + $0xb8] sm:$0xff]
  %v60 = vld [vmem:[%s1 + $0xc0] sm:$0xff]
  %v61 = vld [vmem:[%s1 + $0xc8] sm:$0xff]
  %v62 = vld [vmem:[%s1 + $0xd0] sm:$0xff]
  %v63 = vld [vmem:[%s1 + $0xd8] sm:$0xff]
  %v64 = vld [vmem:[%s1 + $0xe0] sm:$0xff]
  %v65 = vld [vmem:[%s1 + $0xe8] sm:$0xff]
  %v66 = vld [vmem:[%s1 + $0xf0] sm:$0xff]
  %v67 = vld [vmem:[%s1 + $0xf8] sm:$0xff]
  %v68 = vld [vmem:[%s1 + $0x100] sm:$0xff]
  %v69 = vld [vmem:[%s1 + $0x108] sm:$0xff]
  %v70 = vld [vmem:[%s1 + $0x110] sm:$0xff]
  %v71 = vld [vmem:[%s1 + $0x118] sm:$0xff]
  %v72 = vld [vmem:[%s1 + $0x120] sm:$0xff]
  %v73 = vld [vmem:[%s1 + $0x128] sm:$0xff]
  %v74 = vld [vmem:[%s1 + $0x130] sm:$0xff]
  %v75 = vld [vmem:[%s1 + $0x138] sm:$0xff]
  %v76 = vld [vmem:[%s1 + $0x140] sm:$0xff]
  %v77 = vld [vmem:[%s1 + $0x148] sm:$0xff]
  %v78 = vld [vmem:[%s1 + $0x150] sm:$0xff]
  %v79 = vld [vmem:[%s1 + $0x158] sm:$0xff]
  %v80 = vld [vmem:[%s1 + $0x160] sm:$0xff]
  %v81 = vld [vmem:[%s1 + $0x168] sm:$0xff]
  %v82 = vld [vmem:[%s1 + $0x170] sm:$0xff]
  %v83 = vld [vmem:[%s1 + $0x178] sm:$0xff]
  %v84 = vld [vmem:[%s1 + $0x180] sm:$0xff]
  %v85 = vld [vmem:[%s1 + $0x188] sm:$0xff]
  %v86 = vld [vmem:[%s1 + $0x190] sm:$0xff]
  %v87 = vld [vmem:[%s1 + $0x198] sm:$0xff]
  %v88 = vld [vmem:[%s1 + $0x1a0] sm:$0xff]
  %v89 = vld [vmem:[%s1 + $0x1a8] sm:$0xff]
  %v90 = vld [vmem:[%s1 + $0x1b0] sm:$0xff]
  %v91 = vld [vmem:[%s1 + $0x1b8] sm:$0xff]
  %v92 = vld [vmem:[%s1 + $0x1c0] sm:$0xff]
  %v93 = vld [vmem:[%s1 + $0x1c8] sm:$0xff]
  %v94 = vld [vmem:[%s1 + $0x1d0] sm:$0xff]
  %v95 = vld [vmem:[%s1 + $0x1d8] sm:$0xff]
  %v96 = vld [vmem:[%s1 + $0x1e0] sm:$0xff]
  %v97 = vld [vmem:[%s1 + $0x1e8] sm:$0xff]
  %v98 = vld [vmem:[%s1 + $0x1f0] sm:$0xff]
  %v99 = vld [vmem:[%s1 + $0x1f8] sm:$0xff]
  %v100 = vld [vmem:[%s1 + $0x200] sm:$0xff]
  %v101 = vld [vmem:[%s1 + $0x208] sm:$0xff]
  %v102 = vld [vmem:[%s1 + $0x210] sm:$0xff]
  %v103 = vld [vmem:[%s1 + $0x218] sm:$0xff]
  %v104 = vld [vmem:[%s1 + $0x220] sm:$0xff]
  %v105 = vld [vmem:[%s1 + $0x228] sm:$0xff]
  %v106 = vld [vmem:[%s1 + $0x230] sm:$0xff]
  %v107 = vld [vmem:[%s1 + $0x238] sm:$0xff]
  %v108 = vld [vmem:[%s1 + $0x240] sm:$0xff]
  %v109 = vld [vmem:[%s1 + $0x248] sm:$0xff]
  %v110 = vld [vmem:[%s1 + $0x250] sm:$0xff]
  %v111 = vld [vmem:[%s1 + $0x258] sm:$0xff]
  %v112 = vld [vmem:[%s1 + $0x260] sm:$0xff]
  %v113 = vld [vmem:[%s1 + $0x268] sm:$0xff]
  %v114 = vld [vmem:[%s1 + $0x270] sm:$0xff]
  %v115 = vld [vmem:[%s1 + $0x278] sm:$0xff]
  %v116 = vld [vmem:[%s1 + $0x280] sm:$0xff]
  %v117 = vld [vmem:[%s1 + $0x288] sm:$0xff]
  %v118 = vld [vmem:[%s1 + $0x290] sm:$0xff]
  %v119 = vld [vmem:[%s1 + $0x298] sm:$0xff]
  %v120 = vld [vmem:[%s1 + $0x2a0] sm:$0xff]
  %v121 = vld [vmem:[%s1 + $0x2a8] sm:$0xff]
  %v122 = vld [vmem:[%s1 + $0x2b0] sm:$0xff]
  %v123 = vld [vmem:[%s1 + $0x2b8] sm:$0xff]
  %v124 = vld [vmem:[%s1 + $0x2c0] sm:$0xff]
  %v125 = vld [vmem:[%s1 + $0x2c8] sm:$0xff]
  %v126 = vld [vmem:[%s1 + $0x2d0] sm:$0xff]
  %v127 = vld [vmem:[%s1 + $0x2d8] sm:$0xff]
  %v128 = vld [vmem:[%s1 + $0x2e0] sm:$0xff]
  %v129 = vld [vmem:[%s1 + $0x2e8] sm:$0xff]
  %v130 = vld [vmem:[%s1 + $0x2f0] sm:$0xff]
  %v131 = vld [vmem:[%s1 + $0x2f8] sm:$0xff]
  %v132 = vld [vmem:[%s1 + $0x300] sm:$0xff]
  %v133 = vld [vmem:[%s1 + $0x308] sm:$0xff]
  %v134 = vld [vmem:[%s1 + $0x310] sm:$0xff]
  %v135 = vld [vmem:[%s1 + $0x318] sm:$0xff]
  %v136 = vld [vmem:[%s1 + $0x320] sm:$0xff]
  %v137 = vld [vmem:[%s1 + $0x328] sm:$0xff]
  %v138 = vld [vmem:[%s1 + $0x330] sm:$0xff]
  %v139 = vld [vmem:[%s1 + $0x338] sm:$0xff]
  %v140 = vld [vmem:[%s1 + $0x340] sm:$0xff]
  %v141 = vld [vmem:[%s1 + $0x348] sm:$0xff]
  %v142 = vld [vmem:[%s1 + $0x350] sm:$0xff]
  %v143 = vld [vmem:[%s1 + $0x358] sm:$0xff]
  %v144 = vld [vmem:[%s1 + $0x360] sm:$0xff]
  %v145 = vld [vmem:[%s1 + $0x368] sm:$0xff]
  %v146 = vld [vmem:[%s1 + $0x370] sm:$0xff]
  %v147 = vld [vmem:[%s1 + $0x378] sm:$0xff]
  %v148 = vld [vmem:[%s1 + $0x380] sm:$0xff]
  %v149 = vld [vmem:[%s1 + $0x388] sm:$0xff]
  %v150 = vld [vmem:[%s1 + $0x390] sm:$0xff]
  %v151 = vld [vmem:[%s1 + $0x398] sm:$0xff]
  %v152 = vld [vmem:[%s1 + $0x3a0] sm:$0xff]
  %v153 = vld [vmem:[%s1 + $0x3a8] sm:$0xff]
  %v154 = vld [vmem:[%s1 + $0x3b0] sm:$0xff]
  %v155 = vld [vmem:[%s1 + $0x3b8] sm:$0xff]
  %v156 = vld [vmem:[%s1 + $0x3c0] sm:$0xff]
  %v157 = vld [vmem:[%s1 + $0x3c8] sm:$0xff]
  %v158 = vld [vmem:[%s1 + $0x3d0] sm:$0xff]
  %v159 = vld [vmem:[%s1 + $0x3d8] sm:$0xff]
  %v160 = vld [vmem:[%s1 + $0x3e0] sm:$0xff]
  %v161 = vld [vmem:[%s1 + $0x3e8] sm:$0xff]
  %v162 = vld [vmem:[%s1 + $0x3f0] sm:$0xff]
  %v163 = vld [vmem:[%s1 + $0x3f8] sm:$0xff]
  %v164 = vld [vmem:[%s1 + $0x400] sm:$0xff]
  %v165 = vld [vmem:[%s1 + $0x408] sm:$0xff]
  %v166 = vld [vmem:[%s1 + $0x410] sm:$0xff]
  %v167 = vld [vmem:[%s1 + $0x418] sm:$0xff]
  %v168 = vld [vmem:[%s1 + $0x420] sm:$0xff]
  %v169 = vld [vmem:[%s1 + $0x428] sm:$0xff]
  %v170 = vld [vmem:[%s1 + $0x430] sm:$0xff]
  %v171 = vld [vmem:[%s1 + $0x438] sm:$0xff]
  %v172 = vld [vmem:[%s1 + $0x440] sm:$0xff]
  %v173 = vld [vmem:[%s1 + $0x448] sm:$0xff]
  %v174 = vld [vmem:[%s1 + $0x450] sm:$0xff]
  %v175 = vld [vmem:[%s1 + $0x458] sm:$0xff]
  %v176 = vld [vmem:[%s1 + $0x460] sm:$0xff]
  %v177 = vld [vmem:[%s1 + $0x468] sm:$0xff]
  %v178 = vld [vmem:[%s1 + $0x470] sm:$0xff]
  %v179 = vld [vmem:[%s1 + $0x478] sm:$0xff]
  %v180 = vld [vmem:[%s1 + $0x480] sm:$0xff]
  %v181 = vld [vmem:[%s1 + $0x488] sm:$0xff]
  %v182 = vld [vmem:[%s1 + $0x490] sm:$0xff]
  %v183 = vld [vmem:[%s1 + $0x498] sm:$0xff]
  %v184 = vld [vmem:[%s1 + $0x4a0] sm:$0xff]
  %v185 = vld [vmem:[%s1 + $0x4a8] sm:$0xff]
  %v186 = vld [vmem:[%s1 + $0x4b0] sm:$0xff]
  %v187 = vld [vmem:[%s1 + $0x4b8] sm:$0xff]
  %v188 = vld [vmem:[%s1 + $0x4c0] sm:$0xff]
  %v189 = vld [vmem:[%s1 + $0x4c8] sm:$0xff]
  %v190 = vld [vmem:[%s1 + $0x4d0] sm:$0xff]
  %v191 = vld [vmem:[%s1 + $0x4d8] sm:$0xff]
  %v192 = vld [vmem:[%s1 + $0x4e0] sm:$0xff]
  %v193 = vld [vmem:[%s1 + $0x4e8] sm:$0xff]
  %v194 = vld [vmem:[%s1 + $0x4f0] sm:$0xff]
  %v195 = vld [vmem:[%s1 + $0x4f8] sm:$0xff]
  %v196 = vld [vmem:[%s1 + $0x500] sm:$0xff]
  %v197 = vld [vmem:[%s1 + $0x508] sm:$0xff]
  %v198 = vld [vmem:[%s1 + $0x510] sm:$0xff]
  %v199 = vld [vmem:[%s1 + $0x518] sm:$0xff]
  %v200 = vld [vmem:[%s1 + $0x520] sm:$0xff]
  %v201 = vld [vmem:[%s1 + $0x528] sm:$0xff]
  %v202 = vld [vmem:[%s1 + $0x530] sm:$0xff]
  %v203 = vld [vmem:[%s1 + $0x538] sm:$0xff]
  %v204 = vld [vmem:[%s1 + $0x540] sm:$0xff]
  %v205 = vld [vmem:[%s1 + $0x548] sm:$0xff]
  %v206 = vld [vmem:[%s1 + $0x550] sm:$0xff]
  %v207 = vld [vmem:[%s1 + $0x558] sm:$0xff]
  %v208 = vld [vmem:[%s1 + $0x560] sm:$0xff]
  %v209 = vld [vmem:[%s1 + $0x568] sm:$0xff]
  %v210 = vld [vmem:[%s1 + $0x570] sm:$0xff]
  %v211 = vld [vmem:[%s1 + $0x578] sm:$0xff]
  %v212 = vld [vmem:[%s1 + $0x580] sm:$0xff]
  %v213 = vld [vmem:[%s1 + $0x588] sm:$0xff]
  %v214 = vld [vmem:[%s1 + $0x590] sm:$0xff]
  %v215 = vld [vmem:[%s1 + $0x598] sm:$0xff]
  %v216 = vld [vmem:[%s1 + $0x5a0] sm:$0xff]
  %v217 = vld [vmem:[%s1 + $0x5a8] sm:$0xff]
  %v218 = vld [vmem:[%s1 + $0x5b0] sm:$0xff]
  %v219 = vld [vmem:[%s1 + $0x5b8] sm:$0xff]
  %v220 = vld [vmem:[%s1 + $0x5c0] sm:$0xff]
  %v221 = vld [vmem:[%s1 + $0x5c8] sm:$0xff]
  %v222 = vld [vmem:[%s1 + $0x5d0] sm:$0xff]
  %v223 = vld [vmem:[%s1 + $0x5d8] sm:$0xff]
  %v224 = vld [vmem:[%s1 + $0x5e0] sm:$0xff]
  %v225 = vld [vmem:[%s1 + $0x5e8] sm:$0xff]
  %v226 = vld [vmem:[%s1 + $0x5f0] sm:$0xff]
  %v227 = vld [vmem:[%s1 + $0x5f8] sm:$0xff]
  %v228 = vld [vmem:[%s1 + $0x600] sm:$0xff]
  %v229 = vld [vmem:[%s1 + $0x608] sm:$0xff]
  %v230 = vld [vmem:[%s1 + $0x610] sm:$0xff]
  %v231 = vld [vmem:[%s1 + $0x618] sm:$0xff]
  %v232 = vld [vmem:[%s1 + $0x620] sm:$0xff]
  %v233 = vld [vmem:[%s1 + $0x628] sm:$0xff]
  %v234 = vld [vmem:[%s1 + $0x630] sm:$0xff]
  %v235 = vld [vmem:[%s1 + $0x638] sm:$0xff]
  %v236 = vld [vmem:[%s1 + $0x640] sm:$0xff]
  %v237 = vld [vmem:[%s1 + $0x648] sm:$0xff]
  %v238 = vld [vmem:[%s1 + $0x650] sm:$0xff]
  %v239 = vld [vmem:[%s1 + $0x658] sm:$0xff]
  %v240 = vld [vmem:[%s1 + $0x660] sm:$0xff]
  %v241 = vld [vmem:[%s1 + $0x668] sm:$0xff]
  %v242 = vld [vmem:[%s1 + $0x670] sm:$0xff]
  %v243 = vld [vmem:[%s1 + $0x678] sm:$0xff]
  %v244 = vld [vmem:[%s1 + $0x680] sm:$0xff]
  %v245 = vld [vmem:[%s1 + $0x688] sm:$0xff]
  %v246 = vld [vmem:[%s1 + $0x690] sm:$0xff]
  %v247 = vld [vmem:[%s1 + $0x698] sm:$0xff]
  %v248 = vld [vmem:[%s1 + $0x6a0] sm:$0xff]
  %v249 = vld [vmem:[%s1 + $0x6a8] sm:$0xff]
  %v250 = vld [vmem:[%s1 + $0x6b0] sm:$0xff]
  %v251 = vld [vmem:[%s1 + $0x6b8] sm:$0xff]
  %v252 = vld [vmem:[%s1 + $0x6c0] sm:$0xff]
  %v253 = vld [vmem:[%s1 + $0x6c8] sm:$0xff]
  %v254 = vld [vmem:[%s1 + $0x6d0] sm:$0xff]
  %v255 = vld [vmem:[%s1 + $0x6d8] sm:$0xff]
  %v256 = vld [vmem:[%s1 + $0x6e0] sm:$0xff]
  %v257 = vld [vmem:[%s1 + $0x6e8] sm:$0xff]
  %v258 = vld [vmem:[%s1 + $0x6f0] sm:$0xff]
  %v259 = vld [vmem:[%s1 + $0x6f8] sm:$0xff]
  %v260 = vld [vmem:[%s1 + $0x700] sm:$0xff]
  %v261 = vld [vmem:[%s1 + $0x708] sm:$0xff]
  %v262 = vld [vmem:[%s1 + $0x710] sm:$0xff]
  %v263 = vld [vmem:[%s1 + $0x718] sm:$0xff]
  %v264 = vld [vmem:[%s1 + $0x720] sm:$0xff]
  %v265 = vld [vmem:[%s1 + $0x728] sm:$0xff]
  %v266 = vld [vmem:[%s1 + $0x730] sm:$0xff]
  %v267 = vld [vmem:[%s1 + $0x738] sm:$0xff]
  %v268 = vld [vmem:[%s1 + $0x740] sm:$0xff]
  %v269 = vld [vmem:[%s1 + $0x748] sm:$0xff]
  %v270 = vld [vmem:[%s1 + $0x750] sm:$0xff]
  %v271 = vld [vmem:[%s1 + $0x758] sm:$0xff]
  %v272 = vld [vmem:[%s1 + $0x760] sm:$0xff]
  %v273 = vld [vmem:[%s1 + $0x768] sm:$0xff]
  %v274 = vld [vmem:[%s1 + $0x770] sm:$0xff]
  %v275 = vld [vmem:[%s1 + $0x778] sm:$0xff]
  %v276 = vld [vmem:[%s1 + $0x780] sm:$0xff]
  %v277 = vld [vmem:[%s1 + $0x788] sm:$0xff]
  %v278 = vld [vmem:[%s1 + $0x790] sm:$0xff]
  %v279 = vld [vmem:[%s1 + $0x798] sm:$0xff]
  %v280 = vld [vmem:[%s1 + $0x7a0] sm:$0xff]
  %v281 = vld [vmem:[%s1 + $0x7a8] sm:$0xff]
  %v282 = vld [vmem:[%s1 + $0x7b0] sm:$0xff]
  %v283 = vld [vmem:[%s1 + $0x7b8] sm:$0xff]
  %v284 = vld [vmem:[%s1 + $0x7c0] sm:$0xff]
  %v285 = vld [vmem:[%s1 + $0x7c8] sm:$0xff]
  %v286 = vld [vmem:[%s1 + $0x7d0] sm:$0xff]
  %v287 = vld [vmem:[%s1 + $0x7d8] sm:$0xff]
  %v288 = vld [vmem:[%s1 + $0x7e0] sm:$0xff]
  %v289 = vld [vmem:[%s1 + $0x7e8] sm:$0xff]
  %v290 = vld [vmem:[%s1 + $0x7f0] sm:$0xff]
  %v291 = vld [vmem:[%s1 + $0x7f8] sm:$0xff]
  %v292 = vld [vmem:[%s2] sm:$0xf]
  %v294 = vperm.slane %v292, 0
  %v295 = vperm.slane %v292, 1
  %v296 = vperm.slane %v292, 2
  %v297 = vperm.slane %v292, 3
  %v306 = vunpack.c.l.b16 %v32
  %v307 = vunpack.c.h.b16 %v32
  %v308 = vunpack.c.l.b16 %v33
  %v309 = vunpack.c.h.b16 %v33
  %v310 = vunpack.c.l.b16 %v34
  %v311 = vunpack.c.h.b16 %v34
  %v312 = vunpack.c.l.b16 %v35
  %v313 = vunpack.c.h.b16 %v35
  %v314 = vpack.c.b16 %v306, %v306
  %v315 = vpack.c.b16 %v307, %v307
  %v316 = vpack.c.b16 %v308, %v308
  %v317 = vpack.c.b16 %v309, %v309
  %v318 = vpack.c.b16 %v310, %v310
  %v319 = vpack.c.b16 %v311, %v311
  %v320 = vpack.c.b16 %v312, %v312
  %v321 = vpack.c.b16 %v313, %v313
  %v586 = vunpack.c.l.b16 %v36
  %v587 = vunpack.c.h.b16 %v36
  %v588 = vunpack.c.l.b16 %v37
  %v589 = vunpack.c.h.b16 %v37
  %v590 = vunpack.c.l.b16 %v38
  %v591 = vunpack.c.h.b16 %v38
  %v592 = vunpack.c.l.b16 %v39
  %v593 = vunpack.c.h.b16 %v39
  %v594 = vunpack.c.l.b16 %v40
  %v595 = vunpack.c.h.b16 %v40
  %v596 = vunpack.c.l.b16 %v41
  %v597 = vunpack.c.h.b16 %v41
  %v598 = vunpack.c.l.b16 %v42
  %v599 = vunpack.c.h.b16 %v42
  %v600 = vunpack.c.l.b16 %v43
  %v601 = vunpack.c.h.b16 %v43
  %v602 = vunpack.c.l.b16 %v44
  %v603 = vunpack.c.h.b16 %v44
  %v604 = vunpack.c.l.b16 %v45
  %v605 = vunpack.c.h.b16 %v45
  %v606 = vunpack.c.l.b16 %v46
  %v607 = vunpack.c.h.b16 %v46
  %v608 = vunpack.c.l.b16 %v47
  %v609 = vunpack.c.h.b16 %v47
  %v610 = vunpack.c.l.b16 %v48
  %v611 = vunpack.c.h.b16 %v48
  %v612 = vunpack.c.l.b16 %v49
  %v613 = vunpack.c.h.b16 %v49
  %v614 = vunpack.c.l.b16 %v50
  %v615 = vunpack.c.h.b16 %v50
  %v616 = vunpack.c.l.b16 %v51
  %v617 = vunpack.c.h.b16 %v51
  %v618 = vunpack.c.l.b16 %v52
  %v619 = vunpack.c.h.b16 %v52
  %v620 = vunpack.c.l.b16 %v53
  %v621 = vunpack.c.h.b16 %v53
  %v622 = vunpack.c.l.b16 %v54
  %v623 = vunpack.c.h.b16 %v54
  %v624 = vunpack.c.l.b16 %v55
  %v625 = vunpack.c.h.b16 %v55
  %v626 = vunpack.c.l.b16 %v56
  %v627 = vunpack.c.h.b16 %v56
  %v628 = vunpack.c.l.b16 %v57
  %v629 = vunpack.c.h.b16 %v57
  %v630 = vunpack.c.l.b16 %v58
  %v631 = vunpack.c.h.b16 %v58
  %v632 = vunpack.c.l.b16 %v59
  %v633 = vunpack.c.h.b16 %v59
  %v634 = vunpack.c.l.b16 %v60
  %v635 = vunpack.c.h.b16 %v60
  %v636 = vunpack.c.l.b16 %v61
  %v637 = vunpack.c.h.b16 %v61
  %v638 = vunpack.c.l.b16 %v62
  %v639 = vunpack.c.h.b16 %v62
  %v640 = vunpack.c.l.b16 %v63
  %v641 = vunpack.c.h.b16 %v63
  %v642 = vunpack.c.l.b16 %v64
  %v643 = vunpack.c.h.b16 %v64
  %v644 = vunpack.c.l.b16 %v65
  %v645 = vunpack.c.h.b16 %v65
  %v646 = vunpack.c.l.b16 %v66
  %v647 = vunpack.c.h.b16 %v66
  %v648 = vunpack.c.l.b16 %v67
  %v649 = vunpack.c.h.b16 %v67
  %v650 = vunpack.c.l.b16 %v68
  %v651 = vunpack.c.h.b16 %v68
  %v652 = vunpack.c.l.b16 %v69
  %v653 = vunpack.c.h.b16 %v69
  %v654 = vunpack.c.l.b16 %v70
  %v655 = vunpack.c.h.b16 %v70
  %v656 = vunpack.c.l.b16 %v71
  %v657 = vunpack.c.h.b16 %v71
  %v658 = vunpack.c.l.b16 %v72
  %v659 = vunpack.c.h.b16 %v72
  %v660 = vunpack.c.l.b16 %v73
  %v661 = vunpack.c.h.b16 %v73
  %v662 = vunpack.c.l.b16 %v74
  %v663 = vunpack.c.h.b16 %v74
  %v664 = vunpack.c.l.b16 %v75
  %v665 = vunpack.c.h.b16 %v75
  %v666 = vunpack.c.l.b16 %v76
  %v667 = vunpack.c.h.b16 %v76
  %v668 = vunpack.c.l.b16 %v77
  %v669 = vunpack.c.h.b16 %v77
  %v670 = vunpack.c.l.b16 %v78
  %v671 = vunpack.c.h.b16 %v78
  %v672 = vunpack.c.l.b16 %v79
  %v673 = vunpack.c.h.b16 %v79
  %v674 = vunpack.c.l.b16 %v80
  %v675 = vunpack.c.h.b16 %v80
  %v676 = vunpack.c.l.b16 %v81
  %v677 = vunpack.c.h.b16 %v81
  %v678 = vunpack.c.l.b16 %v82
  %v679 = vunpack.c.h.b16 %v82
  %v680 = vunpack.c.l.b16 %v83
  %v681 = vunpack.c.h.b16 %v83
  %v682 = vunpack.c.l.b16 %v84
  %v683 = vunpack.c.h.b16 %v84
  %v684 = vunpack.c.l.b16 %v85
  %v685 = vunpack.c.h.b16 %v85
  %v686 = vunpack.c.l.b16 %v86
  %v687 = vunpack.c.h.b16 %v86
  %v688 = vunpack.c.l.b16 %v87
  %v689 = vunpack.c.h.b16 %v87
  %v690 = vunpack.c.l.b16 %v88
  %v691 = vunpack.c.h.b16 %v88
  %v692 = vunpack.c.l.b16 %v89
  %v693 = vunpack.c.h.b16 %v89
  %v694 = vunpack.c.l.b16 %v90
  %v695 = vunpack.c.h.b16 %v90
  %v696 = vunpack.c.l.b16 %v91
  %v697 = vunpack.c.h.b16 %v91
  %v698 = vunpack.c.l.b16 %v92
  %v699 = vunpack.c.h.b16 %v92
  %v700 = vunpack.c.l.b16 %v93
  %v701 = vunpack.c.h.b16 %v93
  %v702 = vunpack.c.l.b16 %v94
  %v703 = vunpack.c.h.b16 %v94
  %v704 = vunpack.c.l.b16 %v95
  %v705 = vunpack.c.h.b16 %v95
  %v706 = vunpack.c.l.b16 %v96
  %v707 = vunpack.c.h.b16 %v96
  %v708 = vunpack.c.l.b16 %v97
  %v709 = vunpack.c.h.b16 %v97
  %v710 = vunpack.c.l.b16 %v98
  %v711 = vunpack.c.h.b16 %v98
  %v712 = vunpack.c.l.b16 %v99
  %v713 = vunpack.c.h.b16 %v99
  %v714 = vunpack.c.l.b16 %v100
  %v715 = vunpack.c.h.b16 %v100
  %v716 = vunpack.c.l.b16 %v101
  %v717 = vunpack.c.h.b16 %v101
  %v718 = vunpack.c.l.b16 %v102
  %v719 = vunpack.c.h.b16 %v102
  %v720 = vunpack.c.l.b16 %v103
  %v721 = vunpack.c.h.b16 %v103
  %v722 = vunpack.c.l.b16 %v104
  %v723 = vunpack.c.h.b16 %v104
  %v724 = vunpack.c.l.b16 %v105
  %v725 = vunpack.c.h.b16 %v105
  %v726 = vunpack.c.l.b16 %v106
  %v727 = vunpack.c.h.b16 %v106
  %v728 = vunpack.c.l.b16 %v107
  %v729 = vunpack.c.h.b16 %v107
  %v730 = vunpack.c.l.b16 %v108
  %v731 = vunpack.c.h.b16 %v108
  %v732 = vunpack.c.l.b16 %v109
  %v733 = vunpack.c.h.b16 %v109
  %v734 = vunpack.c.l.b16 %v110
  %v735 = vunpack.c.h.b16 %v110
  %v736 = vunpack.c.l.b16 %v111
  %v737 = vunpack.c.h.b16 %v111
  %v738 = vunpack.c.l.b16 %v112
  %v739 = vunpack.c.h.b16 %v112
  %v740 = vunpack.c.l.b16 %v113
  %v741 = vunpack.c.h.b16 %v113
  %v742 = vunpack.c.l.b16 %v114
  %v743 = vunpack.c.h.b16 %v114
  %v744 = vunpack.c.l.b16 %v115
  %v745 = vunpack.c.h.b16 %v115
  %v746 = vunpack.c.l.b16 %v116
  %v747 = vunpack.c.h.b16 %v116
  %v748 = vunpack.c.l.b16 %v117
  %v749 = vunpack.c.h.b16 %v117
  %v750 = vunpack.c.l.b16 %v118
  %v751 = vunpack.c.h.b16 %v118
  %v752 = vunpack.c.l.b16 %v119
  %v753 = vunpack.c.h.b16 %v119
  %v754 = vunpack.c.l.b16 %v120
  %v755 = vunpack.c.h.b16 %v120
  %v756 = vunpack.c.l.b16 %v121
  %v757 = vunpack.c.h.b16 %v121
  %v758 = vunpack.c.l.b16 %v122
  %v759 = vunpack.c.h.b16 %v122
  %v760 = vunpack.c.l.b16 %v123
  %v761 = vunpack.c.h.b16 %v123
  %v762 = vunpack.c.l.b16 %v124
  %v763 = vunpack.c.h.b16 %v124
  %v764 = vunpack.c.l.b16 %v125
  %v765 = vunpack.c.h.b16 %v125
  %v766 = vunpack.c.l.b16 %v126
  %v767 = vunpack.c.h.b16 %v126
  %v768 = vunpack.c.l.b16 %v127
  %v769 = vunpack.c.h.b16 %v127
  %v770 = vunpack.c.l.b16 %v128
  %v771 = vunpack.c.h.b16 %v128
  %v772 = vunpack.c.l.b16 %v129
  %v773 = vunpack.c.h.b16 %v129
  %v774 = vunpack.c.l.b16 %v130
  %v775 = vunpack.c.h.b16 %v130
  %v776 = vunpack.c.l.b16 %v131
  %v777 = vunpack.c.h.b16 %v131
  %v778 = vunpack.c.l.b16 %v132
  %v779 = vunpack.c.h.b16 %v132
  %v780 = vunpack.c.l.b16 %v133
  %v781 = vunpack.c.h.b16 %v133
  %v782 = vunpack.c.l.b16 %v134
  %v783 = vunpack.c.h.b16 %v134
  %v784 = vunpack.c.l.b16 %v135
  %v785 = vunpack.c.h.b16 %v135
  %v786 = vunpack.c.l.b16 %v136
  %v787 = vunpack.c.h.b16 %v136
  %v788 = vunpack.c.l.b16 %v137
  %v789 = vunpack.c.h.b16 %v137
  %v790 = vunpack.c.l.b16 %v138
  %v791 = vunpack.c.h.b16 %v138
  %v792 = vunpack.c.l.b16 %v139
  %v793 = vunpack.c.h.b16 %v139
  %v794 = vunpack.c.l.b16 %v140
  %v795 = vunpack.c.h.b16 %v140
  %v796 = vunpack.c.l.b16 %v141
  %v797 = vunpack.c.h.b16 %v141
  %v798 = vunpack.c.l.b16 %v142
  %v799 = vunpack.c.h.b16 %v142
  %v800 = vunpack.c.l.b16 %v143
  %v801 = vunpack.c.h.b16 %v143
  %v802 = vunpack.c.l.b16 %v144
  %v803 = vunpack.c.h.b16 %v144
  %v804 = vunpack.c.l.b16 %v145
  %v805 = vunpack.c.h.b16 %v145
  %v806 = vunpack.c.l.b16 %v146
  %v807 = vunpack.c.h.b16 %v146
  %v808 = vunpack.c.l.b16 %v147
  %v809 = vunpack.c.h.b16 %v147
  %v810 = vunpack.c.l.b16 %v148
  %v811 = vunpack.c.h.b16 %v148
  %v812 = vunpack.c.l.b16 %v149
  %v813 = vunpack.c.h.b16 %v149
  %v814 = vunpack.c.l.b16 %v150
  %v815 = vunpack.c.h.b16 %v150
  %v816 = vunpack.c.l.b16 %v151
  %v817 = vunpack.c.h.b16 %v151
  %v818 = vunpack.c.l.b16 %v152
  %v819 = vunpack.c.h.b16 %v152
  %v820 = vunpack.c.l.b16 %v153
  %v821 = vunpack.c.h.b16 %v153
  %v822 = vunpack.c.l.b16 %v154
  %v823 = vunpack.c.h.b16 %v154
  %v824 = vunpack.c.l.b16 %v155
  %v825 = vunpack.c.h.b16 %v155
  %v826 = vunpack.c.l.b16 %v156
  %v827 = vunpack.c.h.b16 %v156
  %v828 = vunpack.c.l.b16 %v157
  %v829 = vunpack.c.h.b16 %v157
  %v830 = vunpack.c.l.b16 %v158
  %v831 = vunpack.c.h.b16 %v158
  %v832 = vunpack.c.l.b16 %v159
  %v833 = vunpack.c.h.b16 %v159
  %v834 = vunpack.c.l.b16 %v160
  %v835 = vunpack.c.h.b16 %v160
  %v836 = vunpack.c.l.b16 %v161
  %v837 = vunpack.c.h.b16 %v161
  %v838 = vunpack.c.l.b16 %v162
  %v839 = vunpack.c.h.b16 %v162
  %v840 = vunpack.c.l.b16 %v163
  %v841 = vunpack.c.h.b16 %v163
  %v842 = vunpack.c.l.b16 %v164
  %v843 = vunpack.c.h.b16 %v164
  %v844 = vunpack.c.l.b16 %v165
  %v845 = vunpack.c.h.b16 %v165
  %v846 = vunpack.c.l.b16 %v166
  %v847 = vunpack.c.h.b16 %v166
  %v848 = vunpack.c.l.b16 %v167
  %v849 = vunpack.c.h.b16 %v167
  %v850 = vunpack.c.l.b16 %v168
  %v851 = vunpack.c.h.b16 %v168
  %v852 = vunpack.c.l.b16 %v169
  %v853 = vunpack.c.h.b16 %v169
  %v854 = vunpack.c.l.b16 %v170
  %v855 = vunpack.c.h.b16 %v170
  %v856 = vunpack.c.l.b16 %v171
  %v857 = vunpack.c.h.b16 %v171
  %v858 = vunpack.c.l.b16 %v172
  %v859 = vunpack.c.h.b16 %v172
  %v860 = vunpack.c.l.b16 %v173
  %v861 = vunpack.c.h.b16 %v173
  %v862 = vunpack.c.l.b16 %v174
  %v863 = vunpack.c.h.b16 %v174
  %v864 = vunpack.c.l.b16 %v175
  %v865 = vunpack.c.h.b16 %v175
  %v866 = vunpack.c.l.b16 %v176
  %v867 = vunpack.c.h.b16 %v176
  %v868 = vunpack.c.l.b16 %v177
  %v869 = vunpack.c.h.b16 %v177
  %v870 = vunpack.c.l.b16 %v178
  %v871 = vunpack.c.h.b16 %v178
  %v872 = vunpack.c.l.b16 %v179
  %v873 = vunpack.c.h.b16 %v179
  %v874 = vunpack.c.l.b16 %v180
  %v875 = vunpack.c.h.b16 %v180
  %v876 = vunpack.c.l.b16 %v181
  %v877 = vunpack.c.h.b16 %v181
  %v878 = vunpack.c.l.b16 %v182
  %v879 = vunpack.c.h.b16 %v182
  %v880 = vunpack.c.l.b16 %v183
  %v881 = vunpack.c.h.b16 %v183
  %v882 = vunpack.c.l.b16 %v184
  %v883 = vunpack.c.h.b16 %v184
  %v884 = vunpack.c.l.b16 %v185
  %v885 = vunpack.c.h.b16 %v185
  %v886 = vunpack.c.l.b16 %v186
  %v887 = vunpack.c.h.b16 %v186
  %v888 = vunpack.c.l.b16 %v187
  %v889 = vunpack.c.h.b16 %v187
  %v890 = vunpack.c.l.b16 %v188
  %v891 = vunpack.c.h.b16 %v188
  %v892 = vunpack.c.l.b16 %v189
  %v893 = vunpack.c.h.b16 %v189
  %v894 = vunpack.c.l.b16 %v190
  %v895 = vunpack.c.h.b16 %v190
  %v896 = vunpack.c.l.b16 %v191
  %v897 = vunpack.c.h.b16 %v191
  %v898 = vunpack.c.l.b16 %v192
  %v899 = vunpack.c.h.b16 %v192
  %v900 = vunpack.c.l.b16 %v193
  %v901 = vunpack.c.h.b16 %v193
  %v902 = vunpack.c.l.b16 %v194
  %v903 = vunpack.c.h.b16 %v194
  %v904 = vunpack.c.l.b16 %v195
  %v905 = vunpack.c.h.b16 %v195
  %v906 = vunpack.c.l.b16 %v196
  %v907 = vunpack.c.h.b16 %v196
  %v908 = vunpack.c.l.b16 %v197
  %v909 = vunpack.c.h.b16 %v197
  %v910 = vunpack.c.l.b16 %v198
  %v911 = vunpack.c.h.b16 %v198
  %v912 = vunpack.c.l.b16 %v199
  %v913 = vunpack.c.h.b16 %v199
  %v914 = vunpack.c.l.b16 %v200
  %v915 = vunpack.c.h.b16 %v200
  %v916 = vunpack.c.l.b16 %v201
  %v917 = vunpack.c.h.b16 %v201
  %v918 = vunpack.c.l.b16 %v202
  %v919 = vunpack.c.h.b16 %v202
  %v920 = vunpack.c.l.b16 %v203
  %v921 = vunpack.c.h.b16 %v203
  %v922 = vunpack.c.l.b16 %v204
  %v923 = vunpack.c.h.b16 %v204
  %v924 = vunpack.c.l.b16 %v205
  %v925 = vunpack.c.h.b16 %v205
  %v926 = vunpack.c.l.b16 %v206
  %v927 = vunpack.c.h.b16 %v206
  %v928 = vunpack.c.l.b16 %v207
  %v929 = vunpack.c.h.b16 %v207
  %v930 = vunpack.c.l.b16 %v208
  %v931 = vunpack.c.h.b16 %v208
  %v932 = vunpack.c.l.b16 %v209
  %v933 = vunpack.c.h.b16 %v209
  %v934 = vunpack.c.l.b16 %v210
  %v935 = vunpack.c.h.b16 %v210
  %v936 = vunpack.c.l.b16 %v211
  %v937 = vunpack.c.h.b16 %v211
  %v938 = vunpack.c.l.b16 %v212
  %v939 = vunpack.c.h.b16 %v212
  %v940 = vunpack.c.l.b16 %v213
  %v941 = vunpack.c.h.b16 %v213
  %v942 = vunpack.c.l.b16 %v214
  %v943 = vunpack.c.h.b16 %v214
  %v944 = vunpack.c.l.b16 %v215
  %v945 = vunpack.c.h.b16 %v215
  %v946 = vunpack.c.l.b16 %v216
  %v947 = vunpack.c.h.b16 %v216
  %v948 = vunpack.c.l.b16 %v217
  %v949 = vunpack.c.h.b16 %v217
  %v950 = vunpack.c.l.b16 %v218
  %v951 = vunpack.c.h.b16 %v218
  %v952 = vunpack.c.l.b16 %v219
  %v953 = vunpack.c.h.b16 %v219
  %v954 = vunpack.c.l.b16 %v220
  %v955 = vunpack.c.h.b16 %v220
  %v956 = vunpack.c.l.b16 %v221
  %v957 = vunpack.c.h.b16 %v221
  %v958 = vunpack.c.l.b16 %v222
  %v959 = vunpack.c.h.b16 %v222
  %v960 = vunpack.c.l.b16 %v223
  %v961 = vunpack.c.h.b16 %v223
  %v962 = vunpack.c.l.b16 %v224
  %v963 = vunpack.c.h.b16 %v224
  %v964 = vunpack.c.l.b16 %v225
  %v965 = vunpack.c.h.b16 %v225
  %v966 = vunpack.c.l.b16 %v226
  %v967 = vunpack.c.h.b16 %v226
  %v968 = vunpack.c.l.b16 %v227
  %v969 = vunpack.c.h.b16 %v227
  %v970 = vunpack.c.l.b16 %v228
  %v971 = vunpack.c.h.b16 %v228
  %v972 = vunpack.c.l.b16 %v229
  %v973 = vunpack.c.h.b16 %v229
  %v974 = vunpack.c.l.b16 %v230
  %v975 = vunpack.c.h.b16 %v230
  %v976 = vunpack.c.l.b16 %v231
  %v977 = vunpack.c.h.b16 %v231
  %v978 = vunpack.c.l.b16 %v232
  %v979 = vunpack.c.h.b16 %v232
  %v980 = vunpack.c.l.b16 %v233
  %v981 = vunpack.c.h.b16 %v233
  %v982 = vunpack.c.l.b16 %v234
  %v983 = vunpack.c.h.b16 %v234
  %v984 = vunpack.c.l.b16 %v235
  %v985 = vunpack.c.h.b16 %v235
  %v986 = vunpack.c.l.b16 %v236
  %v987 = vunpack.c.h.b16 %v236
  %v988 = vunpack.c.l.b16 %v237
  %v989 = vunpack.c.h.b16 %v237
  %v990 = vunpack.c.l.b16 %v238
  %v991 = vunpack.c.h.b16 %v238
  %v992 = vunpack.c.l.b16 %v239
  %v993 = vunpack.c.h.b16 %v239
  %v994 = vunpack.c.l.b16 %v240
  %v995 = vunpack.c.h.b16 %v240
  %v996 = vunpack.c.l.b16 %v241
  %v997 = vunpack.c.h.b16 %v241
  %v998 = vunpack.c.l.b16 %v242
  %v999 = vunpack.c.h.b16 %v242
  %v1000 = vunpack.c.l.b16 %v243
  %v1001 = vunpack.c.h.b16 %v243
  %v1002 = vunpack.c.l.b16 %v244
  %v1003 = vunpack.c.h.b16 %v244
  %v1004 = vunpack.c.l.b16 %v245
  %v1005 = vunpack.c.h.b16 %v245
  %v1006 = vunpack.c.l.b16 %v246
  %v1007 = vunpack.c.h.b16 %v246
  %v1008 = vunpack.c.l.b16 %v247
  %v1009 = vunpack.c.h.b16 %v247
  %v1010 = vunpack.c.l.b16 %v248
  %v1011 = vunpack.c.h.b16 %v248
  %v1012 = vunpack.c.l.b16 %v249
  %v1013 = vunpack.c.h.b16 %v249
  %v1014 = vunpack.c.l.b16 %v250
  %v1015 = vunpack.c.h.b16 %v250
  %v1016 = vunpack.c.l.b16 %v251
  %v1017 = vunpack.c.h.b16 %v251
  %v1018 = vunpack.c.l.b16 %v252
  %v1019 = vunpack.c.h.b16 %v252
  %v1020 = vunpack.c.l.b16 %v253
  %v1021 = vunpack.c.h.b16 %v253
  %v1022 = vunpack.c.l.b16 %v254
  %v1023 = vunpack.c.h.b16 %v254
  %v1024 = vunpack.c.l.b16 %v255
  %v1025 = vunpack.c.h.b16 %v255
  %v1026 = vunpack.c.l.b16 %v256
  %v1027 = vunpack.c.h.b16 %v256
  %v1028 = vunpack.c.l.b16 %v257
  %v1029 = vunpack.c.h.b16 %v257
  %v1030 = vunpack.c.l.b16 %v258
  %v1031 = vunpack.c.h.b16 %v258
  %v1032 = vunpack.c.l.b16 %v259
  %v1033 = vunpack.c.h.b16 %v259
  %v1034 = vunpack.c.l.b16 %v260
  %v1035 = vunpack.c.h.b16 %v260
  %v1036 = vunpack.c.l.b16 %v261
  %v1037 = vunpack.c.h.b16 %v261
  %v1038 = vunpack.c.l.b16 %v262
  %v1039 = vunpack.c.h.b16 %v262
  %v1040 = vunpack.c.l.b16 %v263
  %v1041 = vunpack.c.h.b16 %v263
  %v1042 = vunpack.c.l.b16 %v264
  %v1043 = vunpack.c.h.b16 %v264
  %v1044 = vunpack.c.l.b16 %v265
  %v1045 = vunpack.c.h.b16 %v265
  %v1046 = vunpack.c.l.b16 %v266
  %v1047 = vunpack.c.h.b16 %v266
  %v1048 = vunpack.c.l.b16 %v267
  %v1049 = vunpack.c.h.b16 %v267
  %v1050 = vunpack.c.l.b16 %v268
  %v1051 = vunpack.c.h.b16 %v268
  %v1052 = vunpack.c.l.b16 %v269
  %v1053 = vunpack.c.h.b16 %v269
  %v1054 = vunpack.c.l.b16 %v270
  %v1055 = vunpack.c.h.b16 %v270
  %v1056 = vunpack.c.l.b16 %v271
  %v1057 = vunpack.c.h.b16 %v271
  %v1058 = vunpack.c.l.b16 %v272
  %v1059 = vunpack.c.h.b16 %v272
  %v1060 = vunpack.c.l.b16 %v273
  %v1061 = vunpack.c.h.b16 %v273
  %v1062 = vunpack.c.l.b16 %v274
  %v1063 = vunpack.c.h.b16 %v274
  %v1064 = vunpack.c.l.b16 %v275
  %v1065 = vunpack.c.h.b16 %v275
  %v1066 = vunpack.c.l.b16 %v276
  %v1067 = vunpack.c.h.b16 %v276
  %v1068 = vunpack.c.l.b16 %v277
  %v1069 = vunpack.c.h.b16 %v277
  %v1070 = vunpack.c.l.b16 %v278
  %v1071 = vunpack.c.h.b16 %v278
  %v1072 = vunpack.c.l.b16 %v279
  %v1073 = vunpack.c.h.b16 %v279
  %v1074 = vunpack.c.l.b16 %v280
  %v1075 = vunpack.c.h.b16 %v280
  %v1076 = vunpack.c.l.b16 %v281
  %v1077 = vunpack.c.h.b16 %v281
  %v1078 = vunpack.c.l.b16 %v282
  %v1079 = vunpack.c.h.b16 %v282
  %v1080 = vunpack.c.l.b16 %v283
  %v1081 = vunpack.c.h.b16 %v283
  %v1082 = vunpack.c.l.b16 %v284
  %v1083 = vunpack.c.h.b16 %v284
  %v1084 = vunpack.c.l.b16 %v285
  %v1085 = vunpack.c.h.b16 %v285
  %v1086 = vunpack.c.l.b16 %v286
  %v1087 = vunpack.c.h.b16 %v286
  %v1088 = vunpack.c.l.b16 %v287
  %v1089 = vunpack.c.h.b16 %v287
  %v1090 = vunpack.c.l.b16 %v288
  %v1091 = vunpack.c.h.b16 %v288
  %v1092 = vunpack.c.l.b16 %v289
  %v1093 = vunpack.c.h.b16 %v289
  %v1094 = vunpack.c.l.b16 %v290
  %v1095 = vunpack.c.h.b16 %v290
  %v1096 = vunpack.c.l.b16 %v291
  %v1097 = vunpack.c.h.b16 %v291
  %v1098 = vpack.c.b16 %v590, %v586
  %v1099 = vpack.c.b16 %v591, %v587
  %v1100 = vpack.c.b16 %v592, %v588
  %v1101 = vpack.c.b16 %v593, %v589
  %v1102 = vpack.c.b16 %v598, %v594
  %v1103 = vpack.c.b16 %v599, %v595
  %v1104 = vpack.c.b16 %v600, %v596
  %v1105 = vpack.c.b16 %v601, %v597
  %v1106 = vpack.c.b16 %v606, %v602
  %v1107 = vpack.c.b16 %v607, %v603
  %v1108 = vpack.c.b16 %v608, %v604
  %v1109 = vpack.c.b16 %v609, %v605
  %v1110 = vpack.c.b16 %v614, %v610
  %v1111 = vpack.c.b16 %v615, %v611
  %v1112 = vpack.c.b16 %v616, %v612
  %v1113 = vpack.c.b16 %v617, %v613
  %v1114 = vpack.c.b16 %v622, %v618
  %v1115 = vpack.c.b16 %v623, %v619
  %v1116 = vpack.c.b16 %v624, %v620
  %v1117 = vpack.c.b16 %v625, %v621
  %v1118 = vpack.c.b16 %v630, %v626
  %v1119 = vpack.c.b16 %v631, %v627
  %v1120 = vpack.c.b16 %v632, %v628
  %v1121 = vpack.c.b16 %v633, %v629
  %v1122 = vpack.c.b16 %v638, %v634
  %v1123 = vpack.c.b16 %v639, %v635
  %v1124 = vpack.c.b16 %v640, %v636
  %v1125 = vpack.c.b16 %v641, %v637
  %v1126 = vpack.c.b16 %v646, %v642
  %v1127 = vpack.c.b16 %v647, %v643
  %v1128 = vpack.c.b16 %v648, %v644
  %v1129 = vpack.c.b16 %v649, %v645
  %v1130 = vpack.c.b16 %v654, %v650
  %v1131 = vpack.c.b16 %v655, %v651
  %v1132 = vpack.c.b16 %v656, %v652
  %v1133 = vpack.c.b16 %v657, %v653
  %v1134 = vpack.c.b16 %v662, %v658
  %v1135 = vpack.c.b16 %v663, %v659
  %v1136 = vpack.c.b16 %v664, %v660
  %v1137 = vpack.c.b16 %v665, %v661
  %v1138 = vpack.c.b16 %v670, %v666
  %v1139 = vpack.c.b16 %v671, %v667
  %v1140 = vpack.c.b16 %v672, %v668
  %v1141 = vpack.c.b16 %v673, %v669
  %v1142 = vpack.c.b16 %v678, %v674
  %v1143 = vpack.c.b16 %v679, %v675
  %v1144 = vpack.c.b16 %v680, %v676
  %v1145 = vpack.c.b16 %v681, %v677
  %v1146 = vpack.c.b16 %v686, %v682
  %v1147 = vpack.c.b16 %v687, %v683
  %v1148 = vpack.c.b16 %v688, %v684
  %v1149 = vpack.c.b16 %v689, %v685
  %v1150 = vpack.c.b16 %v694, %v690
  %v1151 = vpack.c.b16 %v695, %v691
  %v1152 = vpack.c.b16 %v696, %v692
  %v1153 = vpack.c.b16 %v697, %v693
  %v1154 = vpack.c.b16 %v702, %v698
  %v1155 = vpack.c.b16 %v703, %v699
  %v1156 = vpack.c.b16 %v704, %v700
  %v1157 = vpack.c.b16 %v705, %v701
  %v1158 = vpack.c.b16 %v710, %v706
  %v1159 = vpack.c.b16 %v711, %v707
  %v1160 = vpack.c.b16 %v712, %v708
  %v1161 = vpack.c.b16 %v713, %v709
  %v1162 = vpack.c.b16 %v718, %v714
  %v1163 = vpack.c.b16 %v719, %v715
  %v1164 = vpack.c.b16 %v720, %v716
  %v1165 = vpack.c.b16 %v721, %v717
  %v1166 = vpack.c.b16 %v726, %v722
  %v1167 = vpack.c.b16 %v727, %v723
  %v1168 = vpack.c.b16 %v728, %v724
  %v1169 = vpack.c.b16 %v729, %v725
  %v1170 = vpack.c.b16 %v734, %v730
  %v1171 = vpack.c.b16 %v735, %v731
  %v1172 = vpack.c.b16 %v736, %v732
  %v1173 = vpack.c.b16 %v737, %v733
  %v1174 = vpack.c.b16 %v742, %v738
  %v1175 = vpack.c.b16 %v743, %v739
  %v1176 = vpack.c.b16 %v744, %v740
  %v1177 = vpack.c.b16 %v745, %v741
  %v1178 = vpack.c.b16 %v750, %v746
  %v1179 = vpack.c.b16 %v751, %v747
  %v1180 = vpack.c.b16 %v752, %v748
  %v1181 = vpack.c.b16 %v753, %v749
  %v1182 = vpack.c.b16 %v758, %v754
  %v1183 = vpack.c.b16 %v759, %v755
  %v1184 = vpack.c.b16 %v760, %v756
  %v1185 = vpack.c.b16 %v761, %v757
  %v1186 = vpack.c.b16 %v766, %v762
  %v1187 = vpack.c.b16 %v767, %v763
  %v1188 = vpack.c.b16 %v768, %v764
  %v1189 = vpack.c.b16 %v769, %v765
  %v1190 = vpack.c.b16 %v774, %v770
  %v1191 = vpack.c.b16 %v775, %v771
  %v1192 = vpack.c.b16 %v776, %v772
  %v1193 = vpack.c.b16 %v777, %v773
  %v1194 = vpack.c.b16 %v782, %v778
  %v1195 = vpack.c.b16 %v783, %v779
  %v1196 = vpack.c.b16 %v784, %v780
  %v1197 = vpack.c.b16 %v785, %v781
  %v1198 = vpack.c.b16 %v790, %v786
  %v1199 = vpack.c.b16 %v791, %v787
  %v1200 = vpack.c.b16 %v792, %v788
  %v1201 = vpack.c.b16 %v793, %v789
  %v1202 = vpack.c.b16 %v798, %v794
  %v1203 = vpack.c.b16 %v799, %v795
  %v1204 = vpack.c.b16 %v800, %v796
  %v1205 = vpack.c.b16 %v801, %v797
  %v1206 = vpack.c.b16 %v806, %v802
  %v1207 = vpack.c.b16 %v807, %v803
  %v1208 = vpack.c.b16 %v808, %v804
  %v1209 = vpack.c.b16 %v809, %v805
  %v1210 = vpack.c.b16 %v814, %v810
  %v1211 = vpack.c.b16 %v815, %v811
  %v1212 = vpack.c.b16 %v816, %v812
  %v1213 = vpack.c.b16 %v817, %v813
  %v1214 = vpack.c.b16 %v822, %v818
  %v1215 = vpack.c.b16 %v823, %v819
  %v1216 = vpack.c.b16 %v824, %v820
  %v1217 = vpack.c.b16 %v825, %v821
  %v1218 = vpack.c.b16 %v830, %v826
  %v1219 = vpack.c.b16 %v831, %v827
  %v1220 = vpack.c.b16 %v832, %v828
  %v1221 = vpack.c.b16 %v833, %v829
  %v1222 = vpack.c.b16 %v838, %v834
  %v1223 = vpack.c.b16 %v839, %v835
  %v1224 = vpack.c.b16 %v840, %v836
  %v1225 = vpack.c.b16 %v841, %v837
  %v1226 = vpack.c.b16 %v846, %v842
  %v1227 = vpack.c.b16 %v847, %v843
  %v1228 = vpack.c.b16 %v848, %v844
  %v1229 = vpack.c.b16 %v849, %v845
  %v1230 = vpack.c.b16 %v854, %v850
  %v1231 = vpack.c.b16 %v855, %v851
  %v1232 = vpack.c.b16 %v856, %v852
  %v1233 = vpack.c.b16 %v857, %v853
  %v1234 = vpack.c.b16 %v862, %v858
  %v1235 = vpack.c.b16 %v863, %v859
  %v1236 = vpack.c.b16 %v864, %v860
  %v1237 = vpack.c.b16 %v865, %v861
  %v1238 = vpack.c.b16 %v870, %v866
  %v1239 = vpack.c.b16 %v871, %v867
  %v1240 = vpack.c.b16 %v872, %v868
  %v1241 = vpack.c.b16 %v873, %v869
  %v1242 = vpack.c.b16 %v878, %v874
  %v1243 = vpack.c.b16 %v879, %v875
  %v1244 = vpack.c.b16 %v880, %v876
  %v1245 = vpack.c.b16 %v881, %v877
  %v1246 = vpack.c.b16 %v886, %v882
  %v1247 = vpack.c.b16 %v887, %v883
  %v1248 = vpack.c.b16 %v888, %v884
  %v1249 = vpack.c.b16 %v889, %v885
  %v1250 = vpack.c.b16 %v894, %v890
  %v1251 = vpack.c.b16 %v895, %v891
  %v1252 = vpack.c.b16 %v896, %v892
  %v1253 = vpack.c.b16 %v897, %v893
  %v1254 = vpack.c.b16 %v902, %v898
  %v1255 = vpack.c.b16 %v903, %v899
  %v1256 = vpack.c.b16 %v904, %v900
  %v1257 = vpack.c.b16 %v905, %v901
  %v1258 = vpack.c.b16 %v910, %v906
  %v1259 = vpack.c.b16 %v911, %v907
  %v1260 = vpack.c.b16 %v912, %v908
  %v1261 = vpack.c.b16 %v913, %v909
  %v1262 = vpack.c.b16 %v918, %v914
  %v1263 = vpack.c.b16 %v919, %v915
  %v1264 = vpack.c.b16 %v920, %v916
  %v1265 = vpack.c.b16 %v921, %v917
  %v1266 = vpack.c.b16 %v926, %v922
  %v1267 = vpack.c.b16 %v927, %v923
  %v1268 = vpack.c.b16 %v928, %v924
  %v1269 = vpack.c.b16 %v929, %v925
  %v1270 = vpack.c.b16 %v934, %v930
  %v1271 = vpack.c.b16 %v935, %v931
  %v1272 = vpack.c.b16 %v936, %v932
  %v1273 = vpack.c.b16 %v937, %v933
  %v1274 = vpack.c.b16 %v942, %v938
  %v1275 = vpack.c.b16 %v943, %v939
  %v1276 = vpack.c.b16 %v944, %v940
  %v1277 = vpack.c.b16 %v945, %v941
  %v1278 = vpack.c.b16 %v950, %v946
  %v1279 = vpack.c.b16 %v951, %v947
  %v1280 = vpack.c.b16 %v952, %v948
  %v1281 = vpack.c.b16 %v953, %v949
  %v1282 = vpack.c.b16 %v958, %v954
  %v1283 = vpack.c.b16 %v959, %v955
  %v1284 = vpack.c.b16 %v960, %v956
  %v1285 = vpack.c.b16 %v961, %v957
  %v1286 = vpack.c.b16 %v966, %v962
  %v1287 = vpack.c.b16 %v967, %v963
  %v1288 = vpack.c.b16 %v968, %v964
  %v1289 = vpack.c.b16 %v969, %v965
  %v1290 = vpack.c.b16 %v974, %v970
  %v1291 = vpack.c.b16 %v975, %v971
  %v1292 = vpack.c.b16 %v976, %v972
  %v1293 = vpack.c.b16 %v977, %v973
  %v1294 = vpack.c.b16 %v982, %v978
  %v1295 = vpack.c.b16 %v983, %v979
  %v1296 = vpack.c.b16 %v984, %v980
  %v1297 = vpack.c.b16 %v985, %v981
  %v1298 = vpack.c.b16 %v990, %v986
  %v1299 = vpack.c.b16 %v991, %v987
  %v1300 = vpack.c.b16 %v992, %v988
  %v1301 = vpack.c.b16 %v993, %v989
  %v1302 = vpack.c.b16 %v998, %v994
  %v1303 = vpack.c.b16 %v999, %v995
  %v1304 = vpack.c.b16 %v1000, %v996
  %v1305 = vpack.c.b16 %v1001, %v997
  %v1306 = vpack.c.b16 %v1006, %v1002
  %v1307 = vpack.c.b16 %v1007, %v1003
  %v1308 = vpack.c.b16 %v1008, %v1004
  %v1309 = vpack.c.b16 %v1009, %v1005
  %v1310 = vpack.c.b16 %v1014, %v1010
  %v1311 = vpack.c.b16 %v1015, %v1011
  %v1312 = vpack.c.b16 %v1016, %v1012
  %v1313 = vpack.c.b16 %v1017, %v1013
  %v1314 = vpack.c.b16 %v1022, %v1018
  %v1315 = vpack.c.b16 %v1023, %v1019
  %v1316 = vpack.c.b16 %v1024, %v1020
  %v1317 = vpack.c.b16 %v1025, %v1021
  %v1318 = vpack.c.b16 %v1030, %v1026
  %v1319 = vpack.c.b16 %v1031, %v1027
  %v1320 = vpack.c.b16 %v1032, %v1028
  %v1321 = vpack.c.b16 %v1033, %v1029
  %v1322 = vpack.c.b16 %v1038, %v1034
  %v1323 = vpack.c.b16 %v1039, %v1035
  %v1324 = vpack.c.b16 %v1040, %v1036
  %v1325 = vpack.c.b16 %v1041, %v1037
  %v1326 = vpack.c.b16 %v1046, %v1042
  %v1327 = vpack.c.b16 %v1047, %v1043
  %v1328 = vpack.c.b16 %v1048, %v1044
  %v1329 = vpack.c.b16 %v1049, %v1045
  %v1330 = vpack.c.b16 %v1054, %v1050
  %v1331 = vpack.c.b16 %v1055, %v1051
  %v1332 = vpack.c.b16 %v1056, %v1052
  %v1333 = vpack.c.b16 %v1057, %v1053
  %v1334 = vpack.c.b16 %v1062, %v1058
  %v1335 = vpack.c.b16 %v1063, %v1059
  %v1336 = vpack.c.b16 %v1064, %v1060
  %v1337 = vpack.c.b16 %v1065, %v1061
  %v1338 = vpack.c.b16 %v1070, %v1066
  %v1339 = vpack.c.b16 %v1071, %v1067
  %v1340 = vpack.c.b16 %v1072, %v1068
  %v1341 = vpack.c.b16 %v1073, %v1069
  %v1342 = vpack.c.b16 %v1078, %v1074
  %v1343 = vpack.c.b16 %v1079, %v1075
  %v1344 = vpack.c.b16 %v1080, %v1076
  %v1345 = vpack.c.b16 %v1081, %v1077
  %v1346 = vpack.c.b16 %v1086, %v1082
  %v1347 = vpack.c.b16 %v1087, %v1083
  %v1348 = vpack.c.b16 %v1088, %v1084
  %v1349 = vpack.c.b16 %v1089, %v1085
  %v1350 = vpack.c.b16 %v1094, %v1090
  %v1351 = vpack.c.b16 %v1095, %v1091
  %v1352 = vpack.c.b16 %v1096, %v1092
  %v1353 = vpack.c.b16 %v1097, %v1093
  %1610 = vmatpush.bf16.msra.mxu0 %v1126
  %1611 = vmatpush.bf16.msra.mxu0 %v1122
  %1612 = vmatpush.bf16.msra.mxu0 %v1118
  %1613 = vmatpush.bf16.msra.mxu0 %v1114
  %1614 = vmatpush.bf16.msra.mxu0 %v1110
  %1615 = vmatpush.bf16.msra.mxu0 %v1106
  %1616 = vmatpush.bf16.msra.mxu0 %v1102
  %1617 = vmatpush.bf16.msra.mxu0 %v1098
  %1618 = vmatmul.bf16.gmra.mxu0 %v314
  %v1619 = vpop.f32.mrf.mxu0
  %v1620 = vadd.f32 %v294, %v1619
  %v1621 = vpop.f32.mrf.mxu0
  %1622 = vdwg.mxu0
  %1623 = vmatpush.bf16.msra.mxu0 %v1158
  %1624 = vmatpush.bf16.msra.mxu0 %v1154
  %1625 = vmatpush.bf16.msra.mxu0 %v1150
  %1626 = vmatpush.bf16.msra.mxu0 %v1146
  %1627 = vmatpush.bf16.msra.mxu0 %v1142
  %1628 = vmatpush.bf16.msra.mxu0 %v1138
  %1629 = vmatpush.bf16.msra.mxu0 %v1134
  %1630 = vmatpush.bf16.msra.mxu0 %v1130
  %1631 = vmatmul.bf16.gmra.mxu0 %v315
  %v1632 = vpop.f32.mrf.mxu0
  %v1633 = vadd.f32 %v1620, %v1632
  %v1634 = vpop.f32.mrf.mxu0
  %1635 = vdwg.mxu0
  %1636 = vmatpush.bf16.msra.mxu0 %v1190
  %1637 = vmatpush.bf16.msra.mxu0 %v1186
  %1638 = vmatpush.bf16.msra.mxu0 %v1182
  %1639 = vmatpush.bf16.msra.mxu0 %v1178
  %1640 = vmatpush.bf16.msra.mxu0 %v1174
  %1641 = vmatpush.bf16.msra.mxu0 %v1170
  %1642 = vmatpush.bf16.msra.mxu0 %v1166
  %1643 = vmatpush.bf16.msra.mxu0 %v1162
  %1644 = vmatmul.bf16.gmra.mxu0 %v316
  %v1645 = vpop.f32.mrf.mxu0
  %v1646 = vadd.f32 %v1633, %v1645
  %v1647 = vpop.f32.mrf.mxu0
  %1648 = vdwg.mxu0
  %1649 = vmatpush.bf16.msra.mxu0 %v1222
  %1650 = vmatpush.bf16.msra.mxu0 %v1218
  %1651 = vmatpush.bf16.msra.mxu0 %v1214
  %1652 = vmatpush.bf16.msra.mxu0 %v1210
  %1653 = vmatpush.bf16.msra.mxu0 %v1206
  %1654 = vmatpush.bf16.msra.mxu0 %v1202
  %1655 = vmatpush.bf16.msra.mxu0 %v1198
  %1656 = vmatpush.bf16.msra.mxu0 %v1194
  %1657 = vmatmul.bf16.gmra.mxu0 %v317
  %v1658 = vpop.f32.mrf.mxu0
  %v1659 = vadd.f32 %v1646, %v1658
  %v1660 = vpop.f32.mrf.mxu0
  %1661 = vdwg.mxu0
  %1662 = vmatpush.bf16.msra.mxu0 %v1254
  %1663 = vmatpush.bf16.msra.mxu0 %v1250
  %1664 = vmatpush.bf16.msra.mxu0 %v1246
  %1665 = vmatpush.bf16.msra.mxu0 %v1242
  %1666 = vmatpush.bf16.msra.mxu0 %v1238
  %1667 = vmatpush.bf16.msra.mxu0 %v1234
  %1668 = vmatpush.bf16.msra.mxu0 %v1230
  %1669 = vmatpush.bf16.msra.mxu0 %v1226
  %1670 = vmatmul.bf16.gmra.mxu0 %v318
  %v1671 = vpop.f32.mrf.mxu0
  %v1672 = vadd.f32 %v1659, %v1671
  %v1673 = vpop.f32.mrf.mxu0
  %1674 = vdwg.mxu0
  %1675 = vmatpush.bf16.msra.mxu0 %v1286
  %1676 = vmatpush.bf16.msra.mxu0 %v1282
  %1677 = vmatpush.bf16.msra.mxu0 %v1278
  %1678 = vmatpush.bf16.msra.mxu0 %v1274
  %1679 = vmatpush.bf16.msra.mxu0 %v1270
  %1680 = vmatpush.bf16.msra.mxu0 %v1266
  %1681 = vmatpush.bf16.msra.mxu0 %v1262
  %1682 = vmatpush.bf16.msra.mxu0 %v1258
  %1683 = vmatmul.bf16.gmra.mxu0 %v319
  %v1684 = vpop.f32.mrf.mxu0
  %v1685 = vadd.f32 %v1672, %v1684
  %v1686 = vpop.f32.mrf.mxu0
  %1687 = vdwg.mxu0
  %1688 = vmatpush.bf16.msra.mxu0 %v1318
  %1689 = vmatpush.bf16.msra.mxu0 %v1314
  %1690 = vmatpush.bf16.msra.mxu0 %v1310
  %1691 = vmatpush.bf16.msra.mxu0 %v1306
  %1692 = vmatpush.bf16.msra.mxu0 %v1302
  %1693 = vmatpush.bf16.msra.mxu0 %v1298
  %1694 = vmatpush.bf16.msra.mxu0 %v1294
  %1695 = vmatpush.bf16.msra.mxu0 %v1290
  %1696 = vmatmul.bf16.gmra.mxu0 %v320
  %v1697 = vpop.f32.mrf.mxu0
  %v1698 = vadd.f32 %v1685, %v1697
  %v1699 = vpop.f32.mrf.mxu0
  %1700 = vdwg.mxu0
  %1701 = vmatpush.bf16.msra.mxu0 %v1350
  %1702 = vmatpush.bf16.msra.mxu0 %v1346
  %1703 = vmatpush.bf16.msra.mxu0 %v1342
  %1704 = vmatpush.bf16.msra.mxu0 %v1338
  %1705 = vmatpush.bf16.msra.mxu0 %v1334
  %1706 = vmatpush.bf16.msra.mxu0 %v1330
  %1707 = vmatpush.bf16.msra.mxu0 %v1326
  %1708 = vmatpush.bf16.msra.mxu0 %v1322
  %1709 = vmatmul.bf16.gmra.mxu0 %v321
  %v1710 = vpop.f32.mrf.mxu0
  %v1711 = vadd.f32 %v1698, %v1710
  %v1712 = vpop.f32.mrf.mxu0
  %1713 = vdwg.mxu0
  %1714 = vmatpush.bf16.msra.mxu0 %v1127
  %1715 = vmatpush.bf16.msra.mxu0 %v1123
  %1716 = vmatpush.bf16.msra.mxu0 %v1119
  %1717 = vmatpush.bf16.msra.mxu0 %v1115
  %1718 = vmatpush.bf16.msra.mxu0 %v1111
  %1719 = vmatpush.bf16.msra.mxu0 %v1107
  %1720 = vmatpush.bf16.msra.mxu0 %v1103
  %1721 = vmatpush.bf16.msra.mxu0 %v1099
  %1722 = vmatmul.bf16.gmra.mxu0 %v314
  %v1723 = vpop.f32.mrf.mxu0
  %v1724 = vadd.f32 %v295, %v1723
  %v1725 = vpop.f32.mrf.mxu0
  %1726 = vdwg.mxu0
  %1727 = vmatpush.bf16.msra.mxu0 %v1159
  %1728 = vmatpush.bf16.msra.mxu0 %v1155
  %1729 = vmatpush.bf16.msra.mxu0 %v1151
  %1730 = vmatpush.bf16.msra.mxu0 %v1147
  %1731 = vmatpush.bf16.msra.mxu0 %v1143
  %1732 = vmatpush.bf16.msra.mxu0 %v1139
  %1733 = vmatpush.bf16.msra.mxu0 %v1135
  %1734 = vmatpush.bf16.msra.mxu0 %v1131
  %1735 = vmatmul.bf16.gmra.mxu0 %v315
  %v1736 = vpop.f32.mrf.mxu0
  %v1737 = vadd.f32 %v1724, %v1736
  %v1738 = vpop.f32.mrf.mxu0
  %1739 = vdwg.mxu0
  %1740 = vmatpush.bf16.msra.mxu0 %v1191
  %1741 = vmatpush.bf16.msra.mxu0 %v1187
  %1742 = vmatpush.bf16.msra.mxu0 %v1183
  %1743 = vmatpush.bf16.msra.mxu0 %v1179
  %1744 = vmatpush.bf16.msra.mxu0 %v1175
  %1745 = vmatpush.bf16.msra.mxu0 %v1171
  %1746 = vmatpush.bf16.msra.mxu0 %v1167
  %1747 = vmatpush.bf16.msra.mxu0 %v1163
  %1748 = vmatmul.bf16.gmra.mxu0 %v316
  %v1749 = vpop.f32.mrf.mxu0
  %v1750 = vadd.f32 %v1737, %v1749
  %v1751 = vpop.f32.mrf.mxu0
  %1752 = vdwg.mxu0
  %1753 = vmatpush.bf16.msra.mxu0 %v1223
  %1754 = vmatpush.bf16.msra.mxu0 %v1219
  %1755 = vmatpush.bf16.msra.mxu0 %v1215
  %1756 = vmatpush.bf16.msra.mxu0 %v1211
  %1757 = vmatpush.bf16.msra.mxu0 %v1207
  %1758 = vmatpush.bf16.msra.mxu0 %v1203
  %1759 = vmatpush.bf16.msra.mxu0 %v1199
  %1760 = vmatpush.bf16.msra.mxu0 %v1195
  %1761 = vmatmul.bf16.gmra.mxu0 %v317
  %v1762 = vpop.f32.mrf.mxu0
  %v1763 = vadd.f32 %v1750, %v1762
  %v1764 = vpop.f32.mrf.mxu0
  %1765 = vdwg.mxu0
  %1766 = vmatpush.bf16.msra.mxu0 %v1255
  %1767 = vmatpush.bf16.msra.mxu0 %v1251
  %1768 = vmatpush.bf16.msra.mxu0 %v1247
  %1769 = vmatpush.bf16.msra.mxu0 %v1243
  %1770 = vmatpush.bf16.msra.mxu0 %v1239
  %1771 = vmatpush.bf16.msra.mxu0 %v1235
  %1772 = vmatpush.bf16.msra.mxu0 %v1231
  %1773 = vmatpush.bf16.msra.mxu0 %v1227
  %1774 = vmatmul.bf16.gmra.mxu0 %v318
  %v1775 = vpop.f32.mrf.mxu0
  %v1776 = vadd.f32 %v1763, %v1775
  %v1777 = vpop.f32.mrf.mxu0
  %1778 = vdwg.mxu0
  %1779 = vmatpush.bf16.msra.mxu0 %v1287
  %1780 = vmatpush.bf16.msra.mxu0 %v1283
  %1781 = vmatpush.bf16.msra.mxu0 %v1279
  %1782 = vmatpush.bf16.msra.mxu0 %v1275
  %1783 = vmatpush.bf16.msra.mxu0 %v1271
  %1784 = vmatpush.bf16.msra.mxu0 %v1267
  %1785 = vmatpush.bf16.msra.mxu0 %v1263
  %1786 = vmatpush.bf16.msra.mxu0 %v1259
  %1787 = vmatmul.bf16.gmra.mxu0 %v319
  %v1788 = vpop.f32.mrf.mxu0
  %v1789 = vadd.f32 %v1776, %v1788
  %v1790 = vpop.f32.mrf.mxu0
  %1791 = vdwg.mxu0
  %1792 = vmatpush.bf16.msra.mxu0 %v1319
  %1793 = vmatpush.bf16.msra.mxu0 %v1315
  %1794 = vmatpush.bf16.msra.mxu0 %v1311
  %1795 = vmatpush.bf16.msra.mxu0 %v1307
  %1796 = vmatpush.bf16.msra.mxu0 %v1303
  %1797 = vmatpush.bf16.msra.mxu0 %v1299
  %1798 = vmatpush.bf16.msra.mxu0 %v1295
  %1799 = vmatpush.bf16.msra.mxu0 %v1291
  %1800 = vmatmul.bf16.gmra.mxu0 %v320
  %v1801 = vpop.f32.mrf.mxu0
  %v1802 = vadd.f32 %v1789, %v1801
  %v1803 = vpop.f32.mrf.mxu0
  %1804 = vdwg.mxu0
  %1805 = vmatpush.bf16.msra.mxu0 %v1351
  %1806 = vmatpush.bf16.msra.mxu0 %v1347
  %1807 = vmatpush.bf16.msra.mxu0 %v1343
  %1808 = vmatpush.bf16.msra.mxu0 %v1339
  %1809 = vmatpush.bf16.msra.mxu0 %v1335
  %1810 = vmatpush.bf16.msra.mxu0 %v1331
  %1811 = vmatpush.bf16.msra.mxu0 %v1327
  %1812 = vmatpush.bf16.msra.mxu0 %v1323
  %1813 = vmatmul.bf16.gmra.mxu0 %v321
  %v1814 = vpop.f32.mrf.mxu0
  %v1815 = vadd.f32 %v1802, %v1814
  %v1816 = vpop.f32.mrf.mxu0
  %1817 = vdwg.mxu0
  %1818 = vmatpush.bf16.msra.mxu0 %v1128
  %1819 = vmatpush.bf16.msra.mxu0 %v1124
  %1820 = vmatpush.bf16.msra.mxu0 %v1120
  %1821 = vmatpush.bf16.msra.mxu0 %v1116
  %1822 = vmatpush.bf16.msra.mxu0 %v1112
  %1823 = vmatpush.bf16.msra.mxu0 %v1108
  %1824 = vmatpush.bf16.msra.mxu0 %v1104
  %1825 = vmatpush.bf16.msra.mxu0 %v1100
  %1826 = vmatmul.bf16.gmra.mxu0 %v314
  %v1827 = vpop.f32.mrf.mxu0
  %v1828 = vadd.f32 %v296, %v1827
  %v1829 = vpop.f32.mrf.mxu0
  %1830 = vdwg.mxu0
  %1831 = vmatpush.bf16.msra.mxu0 %v1160
  %1832 = vmatpush.bf16.msra.mxu0 %v1156
  %1833 = vmatpush.bf16.msra.mxu0 %v1152
  %1834 = vmatpush.bf16.msra.mxu0 %v1148
  %1835 = vmatpush.bf16.msra.mxu0 %v1144
  %1836 = vmatpush.bf16.msra.mxu0 %v1140
  %1837 = vmatpush.bf16.msra.mxu0 %v1136
  %1838 = vmatpush.bf16.msra.mxu0 %v1132
  %1839 = vmatmul.bf16.gmra.mxu0 %v315
  %v1840 = vpop.f32.mrf.mxu0
  %v1841 = vadd.f32 %v1828, %v1840
  %v1842 = vpop.f32.mrf.mxu0
  %1843 = vdwg.mxu0
  %1844 = vmatpush.bf16.msra.mxu0 %v1192
  %1845 = vmatpush.bf16.msra.mxu0 %v1188
  %1846 = vmatpush.bf16.msra.mxu0 %v1184
  %1847 = vmatpush.bf16.msra.mxu0 %v1180
  %1848 = vmatpush.bf16.msra.mxu0 %v1176
  %1849 = vmatpush.bf16.msra.mxu0 %v1172
  %1850 = vmatpush.bf16.msra.mxu0 %v1168
  %1851 = vmatpush.bf16.msra.mxu0 %v1164
  %1852 = vmatmul.bf16.gmra.mxu0 %v316
  %v1853 = vpop.f32.mrf.mxu0
  %v1854 = vadd.f32 %v1841, %v1853
  %v1855 = vpop.f32.mrf.mxu0
  %1856 = vdwg.mxu0
  %1857 = vmatpush.bf16.msra.mxu0 %v1224
  %1858 = vmatpush.bf16.msra.mxu0 %v1220
  %1859 = vmatpush.bf16.msra.mxu0 %v1216
  %1860 = vmatpush.bf16.msra.mxu0 %v1212
  %1861 = vmatpush.bf16.msra.mxu0 %v1208
  %1862 = vmatpush.bf16.msra.mxu0 %v1204
  %1863 = vmatpush.bf16.msra.mxu0 %v1200
  %1864 = vmatpush.bf16.msra.mxu0 %v1196
  %1865 = vmatmul.bf16.gmra.mxu0 %v317
  %v1866 = vpop.f32.mrf.mxu0
  %v1867 = vadd.f32 %v1854, %v1866
  %v1868 = vpop.f32.mrf.mxu0
  %1869 = vdwg.mxu0
  %1870 = vmatpush.bf16.msra.mxu0 %v1256
  %1871 = vmatpush.bf16.msra.mxu0 %v1252
  %1872 = vmatpush.bf16.msra.mxu0 %v1248
  %1873 = vmatpush.bf16.msra.mxu0 %v1244
  %1874 = vmatpush.bf16.msra.mxu0 %v1240
  %1875 = vmatpush.bf16.msra.mxu0 %v1236
  %1876 = vmatpush.bf16.msra.mxu0 %v1232
  %1877 = vmatpush.bf16.msra.mxu0 %v1228
  %1878 = vmatmul.bf16.gmra.mxu0 %v318
  %v1879 = vpop.f32.mrf.mxu0
  %v1880 = vadd.f32 %v1867, %v1879
  %v1881 = vpop.f32.mrf.mxu0
  %1882 = vdwg.mxu0
  %1883 = vmatpush.bf16.msra.mxu0 %v1288
  %1884 = vmatpush.bf16.msra.mxu0 %v1284
  %1885 = vmatpush.bf16.msra.mxu0 %v1280
  %1886 = vmatpush.bf16.msra.mxu0 %v1276
  %1887 = vmatpush.bf16.msra.mxu0 %v1272
  %1888 = vmatpush.bf16.msra.mxu0 %v1268
  %1889 = vmatpush.bf16.msra.mxu0 %v1264
  %1890 = vmatpush.bf16.msra.mxu0 %v1260
  %1891 = vmatmul.bf16.gmra.mxu0 %v319
  %v1892 = vpop.f32.mrf.mxu0
  %v1893 = vadd.f32 %v1880, %v1892
  %v1894 = vpop.f32.mrf.mxu0
  %1895 = vdwg.mxu0
  %1896 = vmatpush.bf16.msra.mxu0 %v1320
  %1897 = vmatpush.bf16.msra.mxu0 %v1316
  %1898 = vmatpush.bf16.msra.mxu0 %v1312
  %1899 = vmatpush.bf16.msra.mxu0 %v1308
  %1900 = vmatpush.bf16.msra.mxu0 %v1304
  %1901 = vmatpush.bf16.msra.mxu0 %v1300
  %1902 = vmatpush.bf16.msra.mxu0 %v1296
  %1903 = vmatpush.bf16.msra.mxu0 %v1292
  %1904 = vmatmul.bf16.gmra.mxu0 %v320
  %v1905 = vpop.f32.mrf.mxu0
  %v1906 = vadd.f32 %v1893, %v1905
  %v1907 = vpop.f32.mrf.mxu0
  %1908 = vdwg.mxu0
  %1909 = vmatpush.bf16.msra.mxu0 %v1352
  %1910 = vmatpush.bf16.msra.mxu0 %v1348
  %1911 = vmatpush.bf16.msra.mxu0 %v1344
  %1912 = vmatpush.bf16.msra.mxu0 %v1340
  %1913 = vmatpush.bf16.msra.mxu0 %v1336
  %1914 = vmatpush.bf16.msra.mxu0 %v1332
  %1915 = vmatpush.bf16.msra.mxu0 %v1328
  %1916 = vmatpush.bf16.msra.mxu0 %v1324
  %1917 = vmatmul.bf16.gmra.mxu0 %v321
  %v1918 = vpop.f32.mrf.mxu0
  %v1919 = vadd.f32 %v1906, %v1918
  %v1920 = vpop.f32.mrf.mxu0
  %1921 = vdwg.mxu0
  %1922 = vmatpush.bf16.msra.mxu0 %v1129
  %1923 = vmatpush.bf16.msra.mxu0 %v1125
  %1924 = vmatpush.bf16.msra.mxu0 %v1121
  %1925 = vmatpush.bf16.msra.mxu0 %v1117
  %1926 = vmatpush.bf16.msra.mxu0 %v1113
  %1927 = vmatpush.bf16.msra.mxu0 %v1109
  %1928 = vmatpush.bf16.msra.mxu0 %v1105
  %1929 = vmatpush.bf16.msra.mxu0 %v1101
  %1930 = vmatmul.bf16.gmra.mxu0 %v314
  %v1931 = vpop.f32.mrf.mxu0
  %v1932 = vadd.f32 %v297, %v1931
  %v1933 = vpop.f32.mrf.mxu0
  %1934 = vdwg.mxu0
  %1935 = vmatpush.bf16.msra.mxu0 %v1161
  %1936 = vmatpush.bf16.msra.mxu0 %v1157
  %1937 = vmatpush.bf16.msra.mxu0 %v1153
  %1938 = vmatpush.bf16.msra.mxu0 %v1149
  %1939 = vmatpush.bf16.msra.mxu0 %v1145
  %1940 = vmatpush.bf16.msra.mxu0 %v1141
  %1941 = vmatpush.bf16.msra.mxu0 %v1137
  %1942 = vmatpush.bf16.msra.mxu0 %v1133
  %1943 = vmatmul.bf16.gmra.mxu0 %v315
  %v1944 = vpop.f32.mrf.mxu0
  %v1945 = vadd.f32 %v1932, %v1944
  %v1946 = vpop.f32.mrf.mxu0
  %1947 = vdwg.mxu0
  %1948 = vmatpush.bf16.msra.mxu0 %v1193
  %1949 = vmatpush.bf16.msra.mxu0 %v1189
  %1950 = vmatpush.bf16.msra.mxu0 %v1185
  %1951 = vmatpush.bf16.msra.mxu0 %v1181
  %1952 = vmatpush.bf16.msra.mxu0 %v1177
  %1953 = vmatpush.bf16.msra.mxu0 %v1173
  %1954 = vmatpush.bf16.msra.mxu0 %v1169
  %1955 = vmatpush.bf16.msra.mxu0 %v1165
  %1956 = vmatmul.bf16.gmra.mxu0 %v316
  %v1957 = vpop.f32.mrf.mxu0
  %v1958 = vadd.f32 %v1945, %v1957
  %v1959 = vpop.f32.mrf.mxu0
  %1960 = vdwg.mxu0
  %1961 = vmatpush.bf16.msra.mxu0 %v1225
  %1962 = vmatpush.bf16.msra.mxu0 %v1221
  %1963 = vmatpush.bf16.msra.mxu0 %v1217
  %1964 = vmatpush.bf16.msra.mxu0 %v1213
  %1965 = vmatpush.bf16.msra.mxu0 %v1209
  %1966 = vmatpush.bf16.msra.mxu0 %v1205
  %1967 = vmatpush.bf16.msra.mxu0 %v1201
  %1968 = vmatpush.bf16.msra.mxu0 %v1197
  %1969 = vmatmul.bf16.gmra.mxu0 %v317
  %v1970 = vpop.f32.mrf.mxu0
  %v1971 = vadd.f32 %v1958, %v1970
  %v1972 = vpop.f32.mrf.mxu0
  %1973 = vdwg.mxu0
  %1974 = vmatpush.bf16.msra.mxu0 %v1257
  %1975 = vmatpush.bf16.msra.mxu0 %v1253
  %1976 = vmatpush.bf16.msra.mxu0 %v1249
  %1977 = vmatpush.bf16.msra.mxu0 %v1245
  %1978 = vmatpush.bf16.msra.mxu0 %v1241
  %1979 = vmatpush.bf16.msra.mxu0 %v1237
  %1980 = vmatpush.bf16.msra.mxu0 %v1233
  %1981 = vmatpush.bf16.msra.mxu0 %v1229
  %1982 = vmatmul.bf16.gmra.mxu0 %v318
  %v1983 = vpop.f32.mrf.mxu0
  %v1984 = vadd.f32 %v1971, %v1983
  %v1985 = vpop.f32.mrf.mxu0
  %1986 = vdwg.mxu0
  %1987 = vmatpush.bf16.msra.mxu0 %v1289
  %1988 = vmatpush.bf16.msra.mxu0 %v1285
  %1989 = vmatpush.bf16.msra.mxu0 %v1281
  %1990 = vmatpush.bf16.msra.mxu0 %v1277
  %1991 = vmatpush.bf16.msra.mxu0 %v1273
  %1992 = vmatpush.bf16.msra.mxu0 %v1269
  %1993 = vmatpush.bf16.msra.mxu0 %v1265
  %1994 = vmatpush.bf16.msra.mxu0 %v1261
  %1995 = vmatmul.bf16.gmra.mxu0 %v319
  %v1996 = vpop.f32.mrf.mxu0
  %v1997 = vadd.f32 %v1984, %v1996
  %v1998 = vpop.f32.mrf.mxu0
  %1999 = vdwg.mxu0
  %2000 = vmatpush.bf16.msra.mxu0 %v1321
  %2001 = vmatpush.bf16.msra.mxu0 %v1317
  %2002 = vmatpush.bf16.msra.mxu0 %v1313
  %2003 = vmatpush.bf16.msra.mxu0 %v1309
  %2004 = vmatpush.bf16.msra.mxu0 %v1305
  %2005 = vmatpush.bf16.msra.mxu0 %v1301
  %2006 = vmatpush.bf16.msra.mxu0 %v1297
  %2007 = vmatpush.bf16.msra.mxu0 %v1293
  %2008 = vmatmul.bf16.gmra.mxu0 %v320
  %v2009 = vpop.f32.mrf.mxu0
  %v2010 = vadd.f32 %v1997, %v2009
  %v2011 = vpop.f32.mrf.mxu0
  %2012 = vdwg.mxu0
  %2013 = vmatpush.bf16.msra.mxu0 %v1353
  %2014 = vmatpush.bf16.msra.mxu0 %v1349
  %2015 = vmatpush.bf16.msra.mxu0 %v1345
  %2016 = vmatpush.bf16.msra.mxu0 %v1341
  %2017 = vmatpush.bf16.msra.mxu0 %v1337
  %2018 = vmatpush.bf16.msra.mxu0 %v1333
  %2019 = vmatpush.bf16.msra.mxu0 %v1329
  %2020 = vmatpush.bf16.msra.mxu0 %v1325
  %2021 = vmatmul.bf16.gmra.mxu0 %v321
  %v2022 = vpop.f32.mrf.mxu0
  %v2023 = vadd.f32 %v2010, %v2022
  %v2024 = vpop.f32.mrf.mxu0
  %2025 = vdwg.mxu0
  %v2026 = vmax.f32 %v1711, 0.0
  %v2027 = vmax.f32 %v1815, 0.0
  %v2028 = vmax.f32 %v1919, 0.0
  %v2029 = vmax.f32 %v2023, 0.0
  %v2030 = vpack.c.bf16 %v2026, %v2026
  %v2031 = vpack.c.bf16 %v2027, %v2027
  %v2032 = vpack.c.bf16 %v2028, %v2028
  %v2033 = vpack.c.bf16 %v2029, %v2029
  %v2034 = vld [vmem:[%s3] sm:$0xff]
  %v2035 = vld [vmem:[%s3 + $0x8] sm:$0xff]
  %v2036 = vld [vmem:[%s3 + $0x10] sm:$0xff]
  %v2037 = vld [vmem:[%s3 + $0x18] sm:$0xff]
  %v2038 = vld [vmem:[%s3 + $0x20] sm:$0xff]
  %v2039 = vld [vmem:[%s3 + $0x28] sm:$0xff]
  %v2040 = vld [vmem:[%s3 + $0x30] sm:$0xff]
  %v2041 = vld [vmem:[%s3 + $0x38] sm:$0xff]
  %v2042 = vld [vmem:[%s3 + $0x40] sm:$0xff]
  %v2043 = vld [vmem:[%s3 + $0x48] sm:$0xff]
  %v2044 = vld [vmem:[%s3 + $0x50] sm:$0xff]
  %v2045 = vld [vmem:[%s3 + $0x58] sm:$0xff]
  %v2046 = vld [vmem:[%s3 + $0x60] sm:$0xff]
  %v2047 = vld [vmem:[%s3 + $0x68] sm:$0xff]
  %v2048 = vld [vmem:[%s3 + $0x70] sm:$0xff]
  %v2049 = vld [vmem:[%s3 + $0x78] sm:$0xff]
  %v2050 = vld [vmem:[%s3 + $0x80] sm:$0xff]
  %v2051 = vld [vmem:[%s3 + $0x88] sm:$0xff]
  %v2052 = vld [vmem:[%s3 + $0x90] sm:$0xff]
  %v2053 = vld [vmem:[%s3 + $0x98] sm:$0xff]
  %v2054 = vld [vmem:[%s3 + $0xa0] sm:$0xff]
  %v2055 = vld [vmem:[%s3 + $0xa8] sm:$0xff]
  %v2056 = vld [vmem:[%s3 + $0xb0] sm:$0xff]
  %v2057 = vld [vmem:[%s3 + $0xb8] sm:$0xff]
  %v2058 = vld [vmem:[%s3 + $0xc0] sm:$0xff]
  %v2059 = vld [vmem:[%s3 + $0xc8] sm:$0xff]
  %v2060 = vld [vmem:[%s3 + $0xd0] sm:$0xff]
  %v2061 = vld [vmem:[%s3 + $0xd8] sm:$0xff]
  %v2062 = vld [vmem:[%s3 + $0xe0] sm:$0xff]
  %v2063 = vld [vmem:[%s3 + $0xe8] sm:$0xff]
  %v2064 = vld [vmem:[%s3 + $0xf0] sm:$0xff]
  %v2065 = vld [vmem:[%s3 + $0xf8] sm:$0xff]
  %v2066 = vld [vmem:[%s3 + $0x100] sm:$0xff]
  %v2067 = vld [vmem:[%s3 + $0x108] sm:$0xff]
  %v2068 = vld [vmem:[%s3 + $0x110] sm:$0xff]
  %v2069 = vld [vmem:[%s3 + $0x118] sm:$0xff]
  %v2070 = vld [vmem:[%s3 + $0x120] sm:$0xff]
  %v2071 = vld [vmem:[%s3 + $0x128] sm:$0xff]
  %v2072 = vld [vmem:[%s3 + $0x130] sm:$0xff]
  %v2073 = vld [vmem:[%s3 + $0x138] sm:$0xff]
  %v2074 = vld [vmem:[%s3 + $0x140] sm:$0xff]
  %v2075 = vld [vmem:[%s3 + $0x148] sm:$0xff]
  %v2076 = vld [vmem:[%s3 + $0x150] sm:$0xff]
  %v2077 = vld [vmem:[%s3 + $0x158] sm:$0xff]
  %v2078 = vld [vmem:[%s3 + $0x160] sm:$0xff]
  %v2079 = vld [vmem:[%s3 + $0x168] sm:$0xff]
  %v2080 = vld [vmem:[%s3 + $0x170] sm:$0xff]
  %v2081 = vld [vmem:[%s3 + $0x178] sm:$0xff]
  %v2082 = vld [vmem:[%s3 + $0x180] sm:$0xff]
  %v2083 = vld [vmem:[%s3 + $0x188] sm:$0xff]
  %v2084 = vld [vmem:[%s3 + $0x190] sm:$0xff]
  %v2085 = vld [vmem:[%s3 + $0x198] sm:$0xff]
  %v2086 = vld [vmem:[%s3 + $0x1a0] sm:$0xff]
  %v2087 = vld [vmem:[%s3 + $0x1a8] sm:$0xff]
  %v2088 = vld [vmem:[%s3 + $0x1b0] sm:$0xff]
  %v2089 = vld [vmem:[%s3 + $0x1b8] sm:$0xff]
  %v2090 = vld [vmem:[%s3 + $0x1c0] sm:$0xff]
  %v2091 = vld [vmem:[%s3 + $0x1c8] sm:$0xff]
  %v2092 = vld [vmem:[%s3 + $0x1d0] sm:$0xff]
  %v2093 = vld [vmem:[%s3 + $0x1d8] sm:$0xff]
  %v2094 = vld [vmem:[%s3 + $0x1e0] sm:$0xff]
  %v2095 = vld [vmem:[%s3 + $0x1e8] sm:$0xff]
  %v2096 = vld [vmem:[%s3 + $0x1f0] sm:$0xff]
  %v2097 = vld [vmem:[%s3 + $0x1f8] sm:$0xff]
  %v2098 = vld [vmem:[%s4] sm:$0x3]
  %v2100 = vperm.slane %v2098, 0
  %v2101 = vperm.slane %v2098, 1
  %v2168 = vunpack.c.l.b16 %v2034
  %v2169 = vunpack.c.h.b16 %v2034
  %v2170 = vunpack.c.l.b16 %v2035
  %v2171 = vunpack.c.h.b16 %v2035
  %v2172 = vunpack.c.l.b16 %v2036
  %v2173 = vunpack.c.h.b16 %v2036
  %v2174 = vunpack.c.l.b16 %v2037
  %v2175 = vunpack.c.h.b16 %v2037
  %v2176 = vunpack.c.l.b16 %v2038
  %v2177 = vunpack.c.h.b16 %v2038
  %v2178 = vunpack.c.l.b16 %v2039
  %v2179 = vunpack.c.h.b16 %v2039
  %v2180 = vunpack.c.l.b16 %v2040
  %v2181 = vunpack.c.h.b16 %v2040
  %v2182 = vunpack.c.l.b16 %v2041
  %v2183 = vunpack.c.h.b16 %v2041
  %v2184 = vunpack.c.l.b16 %v2042
  %v2185 = vunpack.c.h.b16 %v2042
  %v2186 = vunpack.c.l.b16 %v2043
  %v2187 = vunpack.c.h.b16 %v2043
  %v2188 = vunpack.c.l.b16 %v2044
  %v2189 = vunpack.c.h.b16 %v2044
  %v2190 = vunpack.c.l.b16 %v2045
  %v2191 = vunpack.c.h.b16 %v2045
  %v2192 = vunpack.c.l.b16 %v2046
  %v2193 = vunpack.c.h.b16 %v2046
  %v2194 = vunpack.c.l.b16 %v2047
  %v2195 = vunpack.c.h.b16 %v2047
  %v2196 = vunpack.c.l.b16 %v2048
  %v2197 = vunpack.c.h.b16 %v2048
  %v2198 = vunpack.c.l.b16 %v2049
  %v2199 = vunpack.c.h.b16 %v2049
  %v2200 = vunpack.c.l.b16 %v2050
  %v2201 = vunpack.c.h.b16 %v2050
  %v2202 = vunpack.c.l.b16 %v2051
  %v2203 = vunpack.c.h.b16 %v2051
  %v2204 = vunpack.c.l.b16 %v2052
  %v2205 = vunpack.c.h.b16 %v2052
  %v2206 = vunpack.c.l.b16 %v2053
  %v2207 = vunpack.c.h.b16 %v2053
  %v2208 = vunpack.c.l.b16 %v2054
  %v2209 = vunpack.c.h.b16 %v2054
  %v2210 = vunpack.c.l.b16 %v2055
  %v2211 = vunpack.c.h.b16 %v2055
  %v2212 = vunpack.c.l.b16 %v2056
  %v2213 = vunpack.c.h.b16 %v2056
  %v2214 = vunpack.c.l.b16 %v2057
  %v2215 = vunpack.c.h.b16 %v2057
  %v2216 = vunpack.c.l.b16 %v2058
  %v2217 = vunpack.c.h.b16 %v2058
  %v2218 = vunpack.c.l.b16 %v2059
  %v2219 = vunpack.c.h.b16 %v2059
  %v2220 = vunpack.c.l.b16 %v2060
  %v2221 = vunpack.c.h.b16 %v2060
  %v2222 = vunpack.c.l.b16 %v2061
  %v2223 = vunpack.c.h.b16 %v2061
  %v2224 = vunpack.c.l.b16 %v2062
  %v2225 = vunpack.c.h.b16 %v2062
  %v2226 = vunpack.c.l.b16 %v2063
  %v2227 = vunpack.c.h.b16 %v2063
  %v2228 = vunpack.c.l.b16 %v2064
  %v2229 = vunpack.c.h.b16 %v2064
  %v2230 = vunpack.c.l.b16 %v2065
  %v2231 = vunpack.c.h.b16 %v2065
  %v2232 = vunpack.c.l.b16 %v2066
  %v2233 = vunpack.c.h.b16 %v2066
  %v2234 = vunpack.c.l.b16 %v2067
  %v2235 = vunpack.c.h.b16 %v2067
  %v2236 = vunpack.c.l.b16 %v2068
  %v2237 = vunpack.c.h.b16 %v2068
  %v2238 = vunpack.c.l.b16 %v2069
  %v2239 = vunpack.c.h.b16 %v2069
  %v2240 = vunpack.c.l.b16 %v2070
  %v2241 = vunpack.c.h.b16 %v2070
  %v2242 = vunpack.c.l.b16 %v2071
  %v2243 = vunpack.c.h.b16 %v2071
  %v2244 = vunpack.c.l.b16 %v2072
  %v2245 = vunpack.c.h.b16 %v2072
  %v2246 = vunpack.c.l.b16 %v2073
  %v2247 = vunpack.c.h.b16 %v2073
  %v2248 = vunpack.c.l.b16 %v2074
  %v2249 = vunpack.c.h.b16 %v2074
  %v2250 = vunpack.c.l.b16 %v2075
  %v2251 = vunpack.c.h.b16 %v2075
  %v2252 = vunpack.c.l.b16 %v2076
  %v2253 = vunpack.c.h.b16 %v2076
  %v2254 = vunpack.c.l.b16 %v2077
  %v2255 = vunpack.c.h.b16 %v2077
  %v2256 = vunpack.c.l.b16 %v2078
  %v2257 = vunpack.c.h.b16 %v2078
  %v2258 = vunpack.c.l.b16 %v2079
  %v2259 = vunpack.c.h.b16 %v2079
  %v2260 = vunpack.c.l.b16 %v2080
  %v2261 = vunpack.c.h.b16 %v2080
  %v2262 = vunpack.c.l.b16 %v2081
  %v2263 = vunpack.c.h.b16 %v2081
  %v2264 = vunpack.c.l.b16 %v2082
  %v2265 = vunpack.c.h.b16 %v2082
  %v2266 = vunpack.c.l.b16 %v2083
  %v2267 = vunpack.c.h.b16 %v2083
  %v2268 = vunpack.c.l.b16 %v2084
  %v2269 = vunpack.c.h.b16 %v2084
  %v2270 = vunpack.c.l.b16 %v2085
  %v2271 = vunpack.c.h.b16 %v2085
  %v2272 = vunpack.c.l.b16 %v2086
  %v2273 = vunpack.c.h.b16 %v2086
  %v2274 = vunpack.c.l.b16 %v2087
  %v2275 = vunpack.c.h.b16 %v2087
  %v2276 = vunpack.c.l.b16 %v2088
  %v2277 = vunpack.c.h.b16 %v2088
  %v2278 = vunpack.c.l.b16 %v2089
  %v2279 = vunpack.c.h.b16 %v2089
  %v2280 = vunpack.c.l.b16 %v2090
  %v2281 = vunpack.c.h.b16 %v2090
  %v2282 = vunpack.c.l.b16 %v2091
  %v2283 = vunpack.c.h.b16 %v2091
  %v2284 = vunpack.c.l.b16 %v2092
  %v2285 = vunpack.c.h.b16 %v2092
  %v2286 = vunpack.c.l.b16 %v2093
  %v2287 = vunpack.c.h.b16 %v2093
  %v2288 = vunpack.c.l.b16 %v2094
  %v2289 = vunpack.c.h.b16 %v2094
  %v2290 = vunpack.c.l.b16 %v2095
  %v2291 = vunpack.c.h.b16 %v2095
  %v2292 = vunpack.c.l.b16 %v2096
  %v2293 = vunpack.c.h.b16 %v2096
  %v2294 = vunpack.c.l.b16 %v2097
  %v2295 = vunpack.c.h.b16 %v2097
  %v2296 = vpack.c.b16 %v2170, %v2168
  %v2297 = vpack.c.b16 %v2171, %v2169
  %v2298 = vpack.c.b16 %v2174, %v2172
  %v2299 = vpack.c.b16 %v2175, %v2173
  %v2300 = vpack.c.b16 %v2178, %v2176
  %v2301 = vpack.c.b16 %v2179, %v2177
  %v2302 = vpack.c.b16 %v2182, %v2180
  %v2303 = vpack.c.b16 %v2183, %v2181
  %v2304 = vpack.c.b16 %v2186, %v2184
  %v2305 = vpack.c.b16 %v2187, %v2185
  %v2306 = vpack.c.b16 %v2190, %v2188
  %v2307 = vpack.c.b16 %v2191, %v2189
  %v2308 = vpack.c.b16 %v2194, %v2192
  %v2309 = vpack.c.b16 %v2195, %v2193
  %v2310 = vpack.c.b16 %v2198, %v2196
  %v2311 = vpack.c.b16 %v2199, %v2197
  %v2312 = vpack.c.b16 %v2202, %v2200
  %v2313 = vpack.c.b16 %v2203, %v2201
  %v2314 = vpack.c.b16 %v2206, %v2204
  %v2315 = vpack.c.b16 %v2207, %v2205
  %v2316 = vpack.c.b16 %v2210, %v2208
  %v2317 = vpack.c.b16 %v2211, %v2209
  %v2318 = vpack.c.b16 %v2214, %v2212
  %v2319 = vpack.c.b16 %v2215, %v2213
  %v2320 = vpack.c.b16 %v2218, %v2216
  %v2321 = vpack.c.b16 %v2219, %v2217
  %v2322 = vpack.c.b16 %v2222, %v2220
  %v2323 = vpack.c.b16 %v2223, %v2221
  %v2324 = vpack.c.b16 %v2226, %v2224
  %v2325 = vpack.c.b16 %v2227, %v2225
  %v2326 = vpack.c.b16 %v2230, %v2228
  %v2327 = vpack.c.b16 %v2231, %v2229
  %v2328 = vpack.c.b16 %v2234, %v2232
  %v2329 = vpack.c.b16 %v2235, %v2233
  %v2330 = vpack.c.b16 %v2238, %v2236
  %v2331 = vpack.c.b16 %v2239, %v2237
  %v2332 = vpack.c.b16 %v2242, %v2240
  %v2333 = vpack.c.b16 %v2243, %v2241
  %v2334 = vpack.c.b16 %v2246, %v2244
  %v2335 = vpack.c.b16 %v2247, %v2245
  %v2336 = vpack.c.b16 %v2250, %v2248
  %v2337 = vpack.c.b16 %v2251, %v2249
  %v2338 = vpack.c.b16 %v2254, %v2252
  %v2339 = vpack.c.b16 %v2255, %v2253
  %v2340 = vpack.c.b16 %v2258, %v2256
  %v2341 = vpack.c.b16 %v2259, %v2257
  %v2342 = vpack.c.b16 %v2262, %v2260
  %v2343 = vpack.c.b16 %v2263, %v2261
  %v2344 = vpack.c.b16 %v2266, %v2264
  %v2345 = vpack.c.b16 %v2267, %v2265
  %v2346 = vpack.c.b16 %v2270, %v2268
  %v2347 = vpack.c.b16 %v2271, %v2269
  %v2348 = vpack.c.b16 %v2274, %v2272
  %v2349 = vpack.c.b16 %v2275, %v2273
  %v2350 = vpack.c.b16 %v2278, %v2276
  %v2351 = vpack.c.b16 %v2279, %v2277
  %v2352 = vpack.c.b16 %v2282, %v2280
  %v2353 = vpack.c.b16 %v2283, %v2281
  %v2354 = vpack.c.b16 %v2286, %v2284
  %v2355 = vpack.c.b16 %v2287, %v2285
  %v2356 = vpack.c.b16 %v2290, %v2288
  %v2357 = vpack.c.b16 %v2291, %v2289
  %v2358 = vpack.c.b16 %v2294, %v2292
  %v2359 = vpack.c.b16 %v2295, %v2293
  %2424 = vmatpush.bf16.msra.mxu0 %v2310
  %2425 = vmatpush.bf16.msra.mxu0 %v2308
  %2426 = vmatpush.bf16.msra.mxu0 %v2306
  %2427 = vmatpush.bf16.msra.mxu0 %v2304
  %2428 = vmatpush.bf16.msra.mxu0 %v2302
  %2429 = vmatpush.bf16.msra.mxu0 %v2300
  %2430 = vmatpush.bf16.msra.mxu0 %v2298
  %2431 = vmatpush.bf16.msra.mxu0 %v2296
  %2432 = vmatmul.bf16.gmra.mxu0 %v2030
  %v2433 = vpop.f32.mrf.mxu0
  %v2434 = vadd.f32 %v2100, %v2433
  %v2435 = vpop.f32.mrf.mxu0
  %2436 = vdwg.mxu0
  %2437 = vmatpush.bf16.msra.mxu0 %v2326
  %2438 = vmatpush.bf16.msra.mxu0 %v2324
  %2439 = vmatpush.bf16.msra.mxu0 %v2322
  %2440 = vmatpush.bf16.msra.mxu0 %v2320
  %2441 = vmatpush.bf16.msra.mxu0 %v2318
  %2442 = vmatpush.bf16.msra.mxu0 %v2316
  %2443 = vmatpush.bf16.msra.mxu0 %v2314
  %2444 = vmatpush.bf16.msra.mxu0 %v2312
  %2445 = vmatmul.bf16.gmra.mxu0 %v2031
  %v2446 = vpop.f32.mrf.mxu0
  %v2447 = vadd.f32 %v2434, %v2446
  %v2448 = vpop.f32.mrf.mxu0
  %2449 = vdwg.mxu0
  %2450 = vmatpush.bf16.msra.mxu0 %v2342
  %2451 = vmatpush.bf16.msra.mxu0 %v2340
  %2452 = vmatpush.bf16.msra.mxu0 %v2338
  %2453 = vmatpush.bf16.msra.mxu0 %v2336
  %2454 = vmatpush.bf16.msra.mxu0 %v2334
  %2455 = vmatpush.bf16.msra.mxu0 %v2332
  %2456 = vmatpush.bf16.msra.mxu0 %v2330
  %2457 = vmatpush.bf16.msra.mxu0 %v2328
  %2458 = vmatmul.bf16.gmra.mxu0 %v2032
  %v2459 = vpop.f32.mrf.mxu0
  %v2460 = vadd.f32 %v2447, %v2459
  %v2461 = vpop.f32.mrf.mxu0
  %2462 = vdwg.mxu0
  %2463 = vmatpush.bf16.msra.mxu0 %v2358
  %2464 = vmatpush.bf16.msra.mxu0 %v2356
  %2465 = vmatpush.bf16.msra.mxu0 %v2354
  %2466 = vmatpush.bf16.msra.mxu0 %v2352
  %2467 = vmatpush.bf16.msra.mxu0 %v2350
  %2468 = vmatpush.bf16.msra.mxu0 %v2348
  %2469 = vmatpush.bf16.msra.mxu0 %v2346
  %2470 = vmatpush.bf16.msra.mxu0 %v2344
  %2471 = vmatmul.bf16.gmra.mxu0 %v2033
  %v2472 = vpop.f32.mrf.mxu0
  %v2473 = vadd.f32 %v2460, %v2472
  %v2474 = vpop.f32.mrf.mxu0
  %2475 = vdwg.mxu0
  %2476 = vmatpush.bf16.msra.mxu0 %v2311
  %2477 = vmatpush.bf16.msra.mxu0 %v2309
  %2478 = vmatpush.bf16.msra.mxu0 %v2307
  %2479 = vmatpush.bf16.msra.mxu0 %v2305
  %2480 = vmatpush.bf16.msra.mxu0 %v2303
  %2481 = vmatpush.bf16.msra.mxu0 %v2301
  %2482 = vmatpush.bf16.msra.mxu0 %v2299
  %2483 = vmatpush.bf16.msra.mxu0 %v2297
  %2484 = vmatmul.bf16.gmra.mxu0 %v2030
  %v2485 = vpop.f32.mrf.mxu0
  %v2486 = vadd.f32 %v2101, %v2485
  %v2487 = vpop.f32.mrf.mxu0
  %2488 = vdwg.mxu0
  %2489 = vmatpush.bf16.msra.mxu0 %v2327
  %2490 = vmatpush.bf16.msra.mxu0 %v2325
  %2491 = vmatpush.bf16.msra.mxu0 %v2323
  %2492 = vmatpush.bf16.msra.mxu0 %v2321
  %2493 = vmatpush.bf16.msra.mxu0 %v2319
  %2494 = vmatpush.bf16.msra.mxu0 %v2317
  %2495 = vmatpush.bf16.msra.mxu0 %v2315
  %2496 = vmatpush.bf16.msra.mxu0 %v2313
  %2497 = vmatmul.bf16.gmra.mxu0 %v2031
  %v2498 = vpop.f32.mrf.mxu0
  %v2499 = vadd.f32 %v2486, %v2498
  %v2500 = vpop.f32.mrf.mxu0
  %2501 = vdwg.mxu0
  %2502 = vmatpush.bf16.msra.mxu0 %v2343
  %2503 = vmatpush.bf16.msra.mxu0 %v2341
  %2504 = vmatpush.bf16.msra.mxu0 %v2339
  %2505 = vmatpush.bf16.msra.mxu0 %v2337
  %2506 = vmatpush.bf16.msra.mxu0 %v2335
  %2507 = vmatpush.bf16.msra.mxu0 %v2333
  %2508 = vmatpush.bf16.msra.mxu0 %v2331
  %2509 = vmatpush.bf16.msra.mxu0 %v2329
  %2510 = vmatmul.bf16.gmra.mxu0 %v2032
  %v2511 = vpop.f32.mrf.mxu0
  %v2512 = vadd.f32 %v2499, %v2511
  %v2513 = vpop.f32.mrf.mxu0
  %2514 = vdwg.mxu0
  %2515 = vmatpush.bf16.msra.mxu0 %v2359
  %2516 = vmatpush.bf16.msra.mxu0 %v2357
  %2517 = vmatpush.bf16.msra.mxu0 %v2355
  %2518 = vmatpush.bf16.msra.mxu0 %v2353
  %2519 = vmatpush.bf16.msra.mxu0 %v2351
  %2520 = vmatpush.bf16.msra.mxu0 %v2349
  %2521 = vmatpush.bf16.msra.mxu0 %v2347
  %2522 = vmatpush.bf16.msra.mxu0 %v2345
  %2523 = vmatmul.bf16.gmra.mxu0 %v2033
  %v2524 = vpop.f32.mrf.mxu0
  %v2525 = vadd.f32 %v2512, %v2524
  %v2526 = vpop.f32.mrf.mxu0
  %2527 = vdwg.mxu0
  %v2528 = vmax.f32 %v2473, 0.0
  %v2529 = vmax.f32 %v2525, 0.0
  %v2530 = vpack.c.bf16 %v2528, %v2528
  %v2531 = vpack.c.bf16 %v2529, %v2529
  %v2532 = vld [vmem:[%s5] sm:$0xf]
  %v2533 = vld [vmem:[%s5 + $0x4] sm:$0xf]
  %v2534 = vld [vmem:[%s5 + $0x8] sm:$0xf]
  %v2535 = vld [vmem:[%s5 + $0xc] sm:$0xf]
  %v2536 = vld [vmem:[%s5 + $0x10] sm:$0xf]
  %v2537 = vld [vmem:[%s5 + $0x14] sm:$0xf]
  %v2538 = vld [vmem:[%s5 + $0x18] sm:$0xf]
  %v2539 = vld [vmem:[%s5 + $0x1c] sm:$0xf]
  %v2540 = vld [vmem:[%s5 + $0x20] sm:$0xf]
  %v2541 = vld [vmem:[%s5 + $0x24] sm:$0xf]
  %v2542 = vld [vmem:[%s5 + $0x28] sm:$0xf]
  %v2543 = vld [vmem:[%s5 + $0x2c] sm:$0xf]
  %v2544 = vld [vmem:[%s5 + $0x30] sm:$0xf]
  %v2545 = vld [vmem:[%s5 + $0x34] sm:$0xf]
  %v2546 = vld [vmem:[%s5 + $0x38] sm:$0xf]
  %v2547 = vld [vmem:[%s5 + $0x3c] sm:$0xf]
  %v2548 = vld [vmem:[%s5 + $0x40] sm:$0xf]
  %v2549 = vld [vmem:[%s5 + $0x44] sm:$0xf]
  %v2550 = vld [vmem:[%s5 + $0x48] sm:$0xf]
  %v2551 = vld [vmem:[%s5 + $0x4c] sm:$0xf]
  %v2552 = vld [vmem:[%s5 + $0x50] sm:$0xf]
  %v2553 = vld [vmem:[%s5 + $0x54] sm:$0xf]
  %v2554 = vld [vmem:[%s5 + $0x58] sm:$0xf]
  %v2555 = vld [vmem:[%s5 + $0x5c] sm:$0xf]
  %v2556 = vld [vmem:[%s5 + $0x60] sm:$0xf]
  %v2557 = vld [vmem:[%s5 + $0x64] sm:$0xf]
  %v2558 = vld [vmem:[%s5 + $0x68] sm:$0xf]
  %v2559 = vld [vmem:[%s5 + $0x6c] sm:$0xf]
  %v2560 = vld [vmem:[%s5 + $0x70] sm:$0xf]
  %v2561 = vld [vmem:[%s5 + $0x74] sm:$0xf]
  %v2562 = vld [vmem:[%s5 + $0x78] sm:$0xf]
  %v2563 = vld [vmem:[%s5 + $0x7c] sm:$0xf]
  %v2564 = vld [vmem:[%s6] sm:$0x1]
  %v2566 = vperm.slane %v2564, 0
  %v2600 = vunpack.c.l.b16 %v2532
  %v2601 = vunpack.c.l.b16 %v2533
  %v2602 = vunpack.c.l.b16 %v2534
  %v2603 = vunpack.c.l.b16 %v2535
  %v2604 = vunpack.c.l.b16 %v2536
  %v2605 = vunpack.c.l.b16 %v2537
  %v2606 = vunpack.c.l.b16 %v2538
  %v2607 = vunpack.c.l.b16 %v2539
  %v2608 = vunpack.c.l.b16 %v2540
  %v2609 = vunpack.c.l.b16 %v2541
  %v2610 = vunpack.c.l.b16 %v2542
  %v2611 = vunpack.c.l.b16 %v2543
  %v2612 = vunpack.c.l.b16 %v2544
  %v2613 = vunpack.c.l.b16 %v2545
  %v2614 = vunpack.c.l.b16 %v2546
  %v2615 = vunpack.c.l.b16 %v2547
  %v2616 = vunpack.c.l.b16 %v2548
  %v2617 = vunpack.c.l.b16 %v2549
  %v2618 = vunpack.c.l.b16 %v2550
  %v2619 = vunpack.c.l.b16 %v2551
  %v2620 = vunpack.c.l.b16 %v2552
  %v2621 = vunpack.c.l.b16 %v2553
  %v2622 = vunpack.c.l.b16 %v2554
  %v2623 = vunpack.c.l.b16 %v2555
  %v2624 = vunpack.c.l.b16 %v2556
  %v2625 = vunpack.c.l.b16 %v2557
  %v2626 = vunpack.c.l.b16 %v2558
  %v2627 = vunpack.c.l.b16 %v2559
  %v2628 = vunpack.c.l.b16 %v2560
  %v2629 = vunpack.c.l.b16 %v2561
  %v2630 = vunpack.c.l.b16 %v2562
  %v2631 = vunpack.c.l.b16 %v2563
  %v2632 = vpack.c.b16 %v2601, %v2600
  %v2633 = vpack.c.b16 %v2603, %v2602
  %v2634 = vpack.c.b16 %v2605, %v2604
  %v2635 = vpack.c.b16 %v2607, %v2606
  %v2636 = vpack.c.b16 %v2609, %v2608
  %v2637 = vpack.c.b16 %v2611, %v2610
  %v2638 = vpack.c.b16 %v2613, %v2612
  %v2639 = vpack.c.b16 %v2615, %v2614
  %v2640 = vpack.c.b16 %v2617, %v2616
  %v2641 = vpack.c.b16 %v2619, %v2618
  %v2642 = vpack.c.b16 %v2621, %v2620
  %v2643 = vpack.c.b16 %v2623, %v2622
  %v2644 = vpack.c.b16 %v2625, %v2624
  %v2645 = vpack.c.b16 %v2627, %v2626
  %v2646 = vpack.c.b16 %v2629, %v2628
  %v2647 = vpack.c.b16 %v2631, %v2630
  %2664 = vmatpush.bf16.msra.mxu0 %v2639
  %2665 = vmatpush.bf16.msra.mxu0 %v2638
  %2666 = vmatpush.bf16.msra.mxu0 %v2637
  %2667 = vmatpush.bf16.msra.mxu0 %v2636
  %2668 = vmatpush.bf16.msra.mxu0 %v2635
  %2669 = vmatpush.bf16.msra.mxu0 %v2634
  %2670 = vmatpush.bf16.msra.mxu0 %v2633
  %2671 = vmatpush.bf16.msra.mxu0 %v2632
  %2672 = vmatmul.bf16.gmra.mxu0 %v2530
  %v2673 = vpop.f32.mrf.mxu0
  %v2674 = vadd.f32 %v2566, %v2673
  %v2675 = vpop.f32.mrf.mxu0
  %2676 = vdwg.mxu0
  %2677 = vmatpush.bf16.msra.mxu0 %v2647
  %2678 = vmatpush.bf16.msra.mxu0 %v2646
  %2679 = vmatpush.bf16.msra.mxu0 %v2645
  %2680 = vmatpush.bf16.msra.mxu0 %v2644
  %2681 = vmatpush.bf16.msra.mxu0 %v2643
  %2682 = vmatpush.bf16.msra.mxu0 %v2642
  %2683 = vmatpush.bf16.msra.mxu0 %v2641
  %2684 = vmatpush.bf16.msra.mxu0 %v2640
  %2685 = vmatmul.bf16.gmra.mxu0 %v2531
  %v2686 = vpop.f32.mrf.mxu0
  %v2687 = vadd.f32 %v2674, %v2686
  %v2688 = vpop.f32.mrf.mxu0
  %2689 = vdwg.mxu0
  %v2690 = vmax.f32 %v2687, 0.0
  %v2691 = vpack.c.bf16 %v2690, %v2690
  %v2692 = vld [vmem:[%s7] sm:$0xf]
  %v2693 = vld [vmem:[%s7 + $0x4] sm:$0xf]
  %v2694 = vld [vmem:[%s7 + $0x8] sm:$0xf]
  %v2695 = vld [vmem:[%s7 + $0xc] sm:$0xf]
  %v2696 = vld [vmem:[%s7 + $0x10] sm:$0xf]
  %v2697 = vld [vmem:[%s7 + $0x14] sm:$0xf]
  %v2698 = vld [vmem:[%s7 + $0x18] sm:$0xf]
  %v2699 = vld [vmem:[%s7 + $0x1c] sm:$0xf]
  %v2700 = vld [vmem:[%s7 + $0x20] sm:$0xf]
  %v2701 = vld [vmem:[%s7 + $0x24] sm:$0xf]
  %v2702 = vld [vmem:[%s7 + $0x28] sm:$0xf]
  %v2703 = vld [vmem:[%s7 + $0x2c] sm:$0xf]
  %v2704 = vld [vmem:[%s7 + $0x30] sm:$0xf]
  %v2705 = vld [vmem:[%s7 + $0x34] sm:$0xf]
  %v2706 = vld [vmem:[%s7 + $0x38] sm:$0xf]
  %v2707 = vld [vmem:[%s7 + $0x3c] sm:$0xf]
  %v2708 = vld [vmem:[%s8] sm:$0x1]
  %v2710 = vperm.slane %v2708, 0
  %v2728 = vunpack.c.l.b16 %v2692
  %v2729 = vunpack.c.l.b16 %v2693
  %v2730 = vunpack.c.l.b16 %v2694
  %v2731 = vunpack.c.l.b16 %v2695
  %v2732 = vunpack.c.l.b16 %v2696
  %v2733 = vunpack.c.l.b16 %v2697
  %v2734 = vunpack.c.l.b16 %v2698
  %v2735 = vunpack.c.l.b16 %v2699
  %v2736 = vunpack.c.l.b16 %v2700
  %v2737 = vunpack.c.l.b16 %v2701
  %v2738 = vunpack.c.l.b16 %v2702
  %v2739 = vunpack.c.l.b16 %v2703
  %v2740 = vunpack.c.l.b16 %v2704
  %v2741 = vunpack.c.l.b16 %v2705
  %v2742 = vunpack.c.l.b16 %v2706
  %v2743 = vunpack.c.l.b16 %v2707
  %v2744 = vpack.c.b16 %v2729, %v2728
  %v2745 = vpack.c.b16 %v2731, %v2730
  %v2746 = vpack.c.b16 %v2733, %v2732
  %v2747 = vpack.c.b16 %v2735, %v2734
  %v2748 = vpack.c.b16 %v2737, %v2736
  %v2749 = vpack.c.b16 %v2739, %v2738
  %v2750 = vpack.c.b16 %v2741, %v2740
  %v2751 = vpack.c.b16 %v2743, %v2742
  %2760 = vmatpush.bf16.msra.mxu0 %v2751
  %2761 = vmatpush.bf16.msra.mxu0 %v2750
  %2762 = vmatpush.bf16.msra.mxu0 %v2749
  %2763 = vmatpush.bf16.msra.mxu0 %v2748
  %2764 = vmatpush.bf16.msra.mxu0 %v2747
  %2765 = vmatpush.bf16.msra.mxu0 %v2746
  %2766 = vmatpush.bf16.msra.mxu0 %v2745
  %2767 = vmatpush.bf16.msra.mxu0 %v2744
  %2768 = vmatmul.bf16.gmra.mxu0 %v2691
  %v2769 = vpop.f32.mrf.mxu0
  %v2770 = vadd.f32 %v2710, %v2769
  %v2771 = vpop.f32.mrf.mxu0
  %2772 = vdwg.mxu0
  %2773 = vst [vmem:[%s9] sm:$0xff] %v2770
  // Predicated region
  $region38: #{gauge_net_forward.7} parent=0 // pred_check
    _
  $region39: #{gauge_net_forward.7} parent=0 // pred_check_branch
    %2775 = sbr.rel (0) target = $region41
  $region40: #{gauge_net_forward.7} parent=0 // pred_region
    _
  $region41: #{gauge_net_forward.7} parent=0 // pred_fallthru
    _
  // Predicated region
  $region42: #{gauge_net_forward.7} parent=0 // pred_check
    _
  $region43: #{gauge_net_forward.7} parent=0 // pred_check_branch
    %2777 = sbr.rel (0) target = $region45
  $region44: #{gauge_net_forward.7} parent=0 // pred_region
    _
  $region45: #{gauge_net_forward.7} parent=0 // pred_fallthru
    _

</llo_original>
